<compile_context>
chip_gen: v5e
topology: v5e:2x2
jax: 0.10.0
libtpu: 0.0.40
codegen_flags: <defaults>
</compile_context>

<pallas_src>
import math
from functools import partial

import jax
import jax.numpy as jnp
from jax.experimental import pallas as pl
from jax.experimental.pallas import tpu as pltpu

# ----- small synthetic BERT config (TPU-friendly: hidden lane-dense, head_dim=128) -----
B, S = 2, 8                  # batch, seq
H = 256                      # hidden (multiple of 128 -> lane dense)
L = 2                        # transformer layers
NH = 2                       # attention heads
HD = H // NH                 # head dim = 128 (full lane width -> aligned slices)
FF = 4 * H                   # intermediate (FFN) size
OUT_DIM = 32                 # params['out_dim']
OUT_PAD = 128                # lane-dense padded output width (sliced in wrapper)
VOCAB = 100
TYPE_VOCAB = 2
MAX_POS = 16
LN_EPS = 1e-12

# Offsets into the coalesced per-layer vector slab `lvecs` (L, 13*H).
OFF_BO = 0 * H
OFF_LN1G = 1 * H
OFF_LN1B = 2 * H
OFF_BF = 3 * H
OFF_LN2G = 4 * H
OFF_LN2B = 5 * H
OFF_BQKV = 6 * H            # width 3*H
OFF_BI = 9 * H              # width FF = 4*H
LVEC_W = 13 * H


def _layernorm(x, g, b):
    mu = jnp.mean(x, axis=-1, keepdims=True)
    var = jnp.mean(jnp.square(x - mu), axis=-1, keepdims=True)
    return (x - mu) * jax.lax.rsqrt(var + LN_EPS) * g + b


def _gelu(x):
    # TODO(synk): BERT uses the exact erf-GELU; lax.erf may not lower in Mosaic,
    # so the standard tanh approximation is used (sub-1e-3 relative difference).
    c = math.sqrt(2.0 / math.pi)
    return 0.5 * x * (1.0 + jnp.tanh(c * (x + 0.044715 * x * x * x)))


def bert_encoder_kernel(emb_ref, mask_ref, misc_ref, lvec_ref,
                        wqkv_ref, wo_ref, wi_ref, wf_ref, headw_ref,
                        out_ref):
    # One grid step == one tower (BlockSpecs already selected this tower's slabs).
    bf16 = jnp.bfloat16
    misc = misc_ref[...]                                       # (4, H) f32

    # embeddings LayerNorm (all dropouts are eval-mode identities).
    h = _layernorm(emb_ref[...].reshape(B * S, H), misc[0], misc[1])

    # BERT extended attention mask: (1 - mask) * -10000, broadcast ONCE over
    # (queries, keys) and replicated into the (NH*B) head-batch axis.
    mask_bias = jnp.broadcast_to(
        ((1.0 - mask_ref[...]) * -10000.0)[:, None, :], (B, S, S))
    mask_bias = jnp.concatenate([mask_bias] * NH, axis=0)      # (NH*B, S, S)

    scale = 1.0 / math.sqrt(HD)

    # Static unrolled layer loop: all L layers' weights stay VMEM-resident
    # (fine at this size; stream via an "arbitrary" grid axis for BERT-base).
    for l in range(L):
        lv = lvec_ref[l]                                       # (13*H,) f32

        # Fused QKV: one full-width [B*S, H] @ [H, 3H] matmul (bf16 in, f32 acc).
        qkv = (jnp.dot(h.astype(bf16), wqkv_ref[l],
                       preferred_element_type=jnp.float32)
               + lv[OFF_BQKV:OFF_BQKV + 3 * H])
        qkv3 = qkv.reshape(B, S, 3 * H)

        # Heads are full 128-lane slices (HD == 128): stack them along the batch
        # axis so scores / context each run as ONE batched einsum over NH*B.
        def gather_heads(base):
            return jnp.concatenate(
                [qkv3[:, :, base + n * HD: base + (n + 1) * HD]
                 for n in range(NH)], axis=0).astype(bf16)     # (NH*B, S, HD)

        q = gather_heads(0)
        k = gather_heads(H)
        v = gather_heads(2 * H)

        s = jnp.einsum('nqd,nkd->nqk', q, k,
                       preferred_element_type=jnp.float32) * scale
        s = s + mask_bias
        s = s - jnp.max(s, axis=-1, keepdims=True)
        p = jnp.exp(s)
        p = p * pl.reciprocal(jnp.sum(p, axis=-1, keepdims=True), approx=True)
        ctx_nb = jnp.einsum('nqk,nkd->nqd', p.astype(bf16), v,
                            preferred_element_type=jnp.float32)   # (NH*B, S, HD)

        # Lane-aligned concat(heads) -> single full-width output projection.
        ctx = jnp.concatenate([ctx_nb[n * B:(n + 1) * B] for n in range(NH)],
                              axis=-1).reshape(B * S, H)
        attn = (jnp.dot(ctx.astype(bf16), wo_ref[l],
                        preferred_element_type=jnp.float32)
                + lv[OFF_BO:OFF_BO + H])
        h = _layernorm(h + attn,
                       lv[OFF_LN1G:OFF_LN1G + H], lv[OFF_LN1B:OFF_LN1B + H])

        # FFN: two full-width 2-D matmuls.
        ffn = _gelu(jnp.dot(h.astype(bf16), wi_ref[l],
                            preferred_element_type=jnp.float32)
                    + lv[OFF_BI:OFF_BI + FF])
        ffn = (jnp.dot(ffn.astype(bf16), wf_ref[l],
                       preferred_element_type=jnp.float32)
               + lv[OFF_BF:OFF_BF + H])
        h = _layernorm(h + ffn,
                       lv[OFF_LN2G:OFF_LN2G + H], lv[OFF_LN2B:OFF_LN2B + H])

    # pooler: tanh(W * h[:, 0] + b); then additional_linear (add_linear=True),
    # output padded to 128 lanes for a lane-dense store (sliced in wrapper).
    cls = h.reshape(B, S, H)[:, 0, :]                          # (B, H)
    pooled = jnp.tanh(
        jnp.dot(cls.astype(bf16), headw_ref[:, :H],
                preferred_element_type=jnp.float32) + misc[2])
    out_ref[...] = (
        jnp.dot(pooled.astype(bf16), headw_ref[:, H:],
                preferred_element_type=jnp.float32) + misc[3, :OUT_PAD])


# ----------------------------- JAX-side glue -----------------------------

def make_encoder_params(key):
    ks = jax.random.split(key, 12)
    init = lambda k, shape: jax.random.normal(k, shape, jnp.float32) * 0.02
    zeros = lambda shape: jnp.zeros(shape, jnp.float32)
    ones = lambda shape: jnp.ones(shape, jnp.float32)
    # TODO(synk): BertModel.from_pretrained weight loading has no in-script
    # equivalent; parameters are randomly initialized with the same structure.
    return dict(
        word_emb=init(ks[0], (VOCAB, H)),
        pos_emb=init(ks[1], (MAX_POS, H)),
        type_emb=init(ks[2], (TYPE_VOCAB, H)),
        emb_g=ones((H,)), emb_b=zeros((H,)),
        wq=init(ks[3], (L, H, H)), bq=zeros((L, H)),
        wk=init(ks[4], (L, H, H)), bk=zeros((L, H)),
        wv=init(ks[5], (L, H, H)), bv=zeros((L, H)),
        wo=init(ks[6], (L, H, H)), bo=zeros((L, H)),
        ln1_g=ones((L, H)), ln1_b=zeros((L, H)),
        wi=init(ks[7], (L, H, FF)), bi=zeros((L, FF)),
        wf=init(ks[8], (L, FF, H)), bf=zeros((L, H)),
        ln2_g=ones((L, H)), ln2_b=zeros((L, H)),
        pool_w=init(ks[9], (H, H)), pool_b=zeros((H,)),
        add_w=init(ks[10], (H, OUT_DIM)), add_b=zeros((OUT_DIM,)),
    )


# Kernel weight-argument order (after the per-call emb / mask activations).
_WEIGHT_KEYS = ('misc', 'lvecs', 'wqkv', 'wo', 'wi', 'wf', 'headw')


def pack_encoder(p):
    """One-time kernel-layout packing for a single tower (hot-path free)."""
    wqkv = jnp.concatenate([p['wq'], p['wk'], p['wv']], axis=-1)       # (L, H, 3H)
    six = jnp.concatenate(
        [p['bo'][:, None, :], p['ln1_g'][:, None, :], p['ln1_b'][:, None, :],
         p['bf'][:, None, :], p['ln2_g'][:, None, :], p['ln2_b'][:, None, :]],
        axis=1).reshape(L, 6 * H)
    lvecs = jnp.concatenate(
        [six,
         jnp.concatenate([p['bq'], p['bk'], p['bv']], axis=-1),        # (L, 3H)
         p['bi']],                                                     # (L, FF)
        axis=-1)                                                       # (L, 13H)
    add_w = jnp.zeros((H, OUT_PAD), jnp.float32).at[:, :OUT_DIM].set(p['add_w'])
    add_b = jnp.zeros((H,), jnp.float32).at[:OUT_DIM].set(p['add_b'])
    misc = jnp.stack([p['emb_g'], p['emb_b'], p['pool_b'], add_b])     # (4, H)
    headw = jnp.concatenate([p['pool_w'], add_w], axis=-1)             # (H, H+OUT_PAD)
    as_bf16 = lambda x: x.astype(jnp.bfloat16)
    return dict(
        misc=misc, lvecs=lvecs,
        wqkv=as_bf16(wqkv), wo=as_bf16(p['wo']),
        wi=as_bf16(p['wi']), wf=as_bf16(p['wf']),
        headw=as_bf16(headw),
        word_emb=p['word_emb'], pos_emb=p['pos_emb'], type_emb=p['type_emb'],
    )


def pack_biencoder(ctxt_params, cand_params):
    """Pack and stack both towers ONCE (tower axis = 0: ctxt, 1: cand)."""
    pc, pd = pack_encoder(ctxt_params), pack_encoder(cand_params)
    return jax.tree_util.tree_map(lambda a, b: jnp.stack([a, b]), pc, pd)


def _embed(packed, tower, token_ids, segment_ids):
    # Embedding-table gathers are kept as XLA glue (data-dependent gather).
    pos = packed['pos_emb'][tower][:S][None, :, :]
    return (packed['word_emb'][tower][token_ids]
            + pos
            + packed['type_emb'][tower][segment_ids])                 # (B, S, H)


def _tower_spec(trailing, index_of_tower):
    zeros = (0,) * len(trailing)
    return pl.BlockSpec(
        (None,) + tuple(trailing),
        lambda t, _f=index_of_tower, _z=zeros: (_f(t),) + _z)


def _run_towers(packed, tower_ids, emb, mask):
    """One pallas_call for all requested towers (grid axis = tower, 'parallel')."""
    n = emb.shape[0]
    if tower_ids == (0, 1):
        wmap = lambda t: t                  # both towers: grid index == tower index
    else:
        const = tower_ids[0]
        wmap = lambda t: const              # single tower: constant weight block
    act_map = lambda t: t

    inputs = [emb, mask]
    in_specs = [_tower_spec(emb.shape[1:], act_map),
                _tower_spec(mask.shape[1:], act_map)]
    for key in _WEIGHT_KEYS:
        arr = packed[key]
        inputs.append(arr)
        in_specs.append(_tower_spec(arr.shape[1:], wmap))

    out = pl.pallas_call(
        bert_encoder_kernel,
        grid=(n,),
        in_specs=in_specs,
        out_specs=_tower_spec((B, OUT_PAD), act_map),
        out_shape=jax.ShapeDtypeStruct((n, B, OUT_PAD), jnp.float32),
        # Toy config fits default scoped VMEM on all chips; for real BERT-base
        # raise vmem_limit_bytes (v6e) or stream layer weights (v5e/v7x).
        compiler_params=pltpu.CompilerParams(
            dimension_semantics=("parallel",)),   # v7x: towers split across TCs
    )(*inputs)
    return out[:, :, :OUT_DIM]                    # drop lane padding


@jax.jit
def biencoder_forward(packed,
                      token_idx_ctxt, segment_idx_ctxt, mask_ctxt,
                      token_idx_cands, segment_idx_cands, mask_cands):
    towers = []
    if token_idx_ctxt is not None:
        towers.append((0, _embed(packed, 0, token_idx_ctxt, segment_idx_ctxt),
                       mask_ctxt.astype(jnp.float32)))
    if token_idx_cands is not None:
        towers.append((1, _embed(packed, 1, token_idx_cands, segment_idx_cands),
                       mask_cands.astype(jnp.float32)))
    if not towers:
        return None, None
    tower_ids = tuple(t for t, _, _ in towers)
    emb = jnp.stack([e for _, e, _ in towers])
    msk = jnp.stack([m for _, _, m in towers])
    outs = _run_towers(packed, tower_ids, emb, msk)
    results = {tid: outs[i] for i, tid in enumerate(tower_ids)}
    return results.get(0), results.get(1)


if __name__ == "__main__":
    key = jax.random.PRNGKey(0)
    k_ctxt, k_cand, k_t1, k_t2 = jax.random.split(key, 4)

    ctxt_params = make_encoder_params(k_ctxt)
    cand_params = make_encoder_params(k_cand)

    # Pre-pack ONCE (outside the hot path), per the performance review.
    packed = jax.block_until_ready(pack_biencoder(ctxt_params, cand_params))

    token_idx_ctxt = jax.random.randint(k_t1, (B, S), 0, VOCAB, jnp.int32)
    segment_idx_ctxt = jnp.zeros((B, S), jnp.int32)
    mask_ctxt = jnp.ones((B, S), jnp.int32).at[1, 6:].set(0)   # some padding

    token_idx_cands = jax.random.randint(k_t2, (B, S), 0, VOCAB, jnp.int32)
    segment_idx_cands = jnp.zeros((B, S), jnp.int32)
    mask_cands = jnp.ones((B, S), jnp.int32).at[0, 5:].set(0)

    emb_ctxt, emb_cands = biencoder_forward(
        packed,
        token_idx_ctxt, segment_idx_ctxt, mask_ctxt,
        token_idx_cands, segment_idx_cands, mask_cands)

    jax.block_until_ready((emb_ctxt, emb_cands))
    assert emb_ctxt.shape == (B, OUT_DIM) and emb_cands.shape == (B, OUT_DIM)
    assert jnp.all(jnp.isfinite(emb_ctxt)) and jnp.all(jnp.isfinite(emb_cands))
    print("KERNEL_OK")
</pallas_src>

<mosaic_0001>
module attributes {stable_mosaic.version = 11 : i64} {
  func.func @bert_encoder_kernel(%arg0: i32, %arg1: memref<1x2x8x256xf32, #tpu.memory_space<vmem>>, %arg2: memref<1x2x8xf32, #tpu.memory_space<vmem>>, %arg3: memref<1x4x256xf32, #tpu.memory_space<vmem>>, %arg4: memref<1x2x3328xf32, #tpu.memory_space<vmem>>, %arg5: memref<1x2x256x768xbf16, #tpu.memory_space<vmem>>, %arg6: memref<1x2x256x256xbf16, #tpu.memory_space<vmem>>, %arg7: memref<1x2x256x1024xbf16, #tpu.memory_space<vmem>>, %arg8: memref<1x2x1024x256xbf16, #tpu.memory_space<vmem>>, %arg9: memref<1x256x384xbf16, #tpu.memory_space<vmem>>, %arg10: memref<1x2x128xf32, #tpu.memory_space<vmem>>) attributes {dimension_semantics = [#tpu.dimension_semantics<parallel>], iteration_bounds = array<i64: 2>, scalar_prefetch = 0 : i64, scratch_operands = 0 : i64, tpu.core_type = #tpu.core_type<tc>, window_params = [{transform_indices = @transform_0, window_bounds = array<i64: 1, 2, 8, 256>}, {transform_indices = @transform_1, window_bounds = array<i64: 1, 2, 8>}, {transform_indices = @transform_2, window_bounds = array<i64: 1, 4, 256>}, {transform_indices = @transform_3, window_bounds = array<i64: 1, 2, 3328>}, {transform_indices = @transform_4, window_bounds = array<i64: 1, 2, 256, 768>}, {transform_indices = @transform_5, window_bounds = array<i64: 1, 2, 256, 256>}, {transform_indices = @transform_6, window_bounds = array<i64: 1, 2, 256, 1024>}, {transform_indices = @transform_7, window_bounds = array<i64: 1, 2, 1024, 256>}, {transform_indices = @transform_8, window_bounds = array<i64: 1, 256, 384>}, {transform_indices = @transform_9, window_bounds = array<i64: 1, 2, 128>}]} {
    %c0 = arith.constant 0 : index
    %c0_0 = arith.constant 0 : index
    %c0_1 = arith.constant 0 : index
    %0 = vector.load %arg3[%c0, %c0_0, %c0_1] : memref<1x4x256xf32, #tpu.memory_space<vmem>>, vector<1x4x256xf32>
    %1 = vector.shape_cast %0 : vector<1x4x256xf32> to vector<4x256xf32>
    %c0_2 = arith.constant 0 : index
    %c0_3 = arith.constant 0 : index
    %c0_4 = arith.constant 0 : index
    %c0_5 = arith.constant 0 : index
    %2 = vector.load %arg1[%c0_2, %c0_3, %c0_4, %c0_5] : memref<1x2x8x256xf32, #tpu.memory_space<vmem>>, vector<1x2x8x256xf32>
    %3 = vector.shape_cast %2 : vector<1x2x8x256xf32> to vector<2x8x256xf32>
    %4 = vector.shape_cast %3 : vector<2x8x256xf32> to vector<16x256xf32>
    %5 = vector.extract_strided_slice %1 {offsets = [0, 0], sizes = [1, 256], strides = [1, 1]} : vector<4x256xf32> to vector<1x256xf32>
    %6 = vector.shape_cast %5 : vector<1x256xf32> to vector<256xf32>
    %7 = vector.extract_strided_slice %1 {offsets = [1, 0], sizes = [1, 256], strides = [1, 1]} : vector<4x256xf32> to vector<1x256xf32>
    %8 = vector.shape_cast %7 : vector<1x256xf32> to vector<256xf32>
    %cst = arith.constant dense<0.000000e+00> : vector<16xf32>
    %9 = vector.multi_reduction <add>, %4, %cst [1] : vector<16x256xf32> to vector<16xf32>
    %10 = vector.shape_cast %9 : vector<16xf32> to vector<16x1xf32>
    %cst_6 = arith.constant 2.560000e+02 : f32
    %11 = vector.broadcast %cst_6 : f32 to vector<16x1xf32>
    %12 = arith.divf %10, %11 : vector<16x1xf32>
    %13 = vector.broadcast %12 : vector<16x1xf32> to vector<16x256xf32>
    %14 = arith.subf %4, %13 : vector<16x256xf32>
    %15 = arith.mulf %14, %14 : vector<16x256xf32>
    %cst_7 = arith.constant dense<0.000000e+00> : vector<16xf32>
    %16 = vector.multi_reduction <add>, %15, %cst_7 [1] : vector<16x256xf32> to vector<16xf32>
    %17 = vector.shape_cast %16 : vector<16xf32> to vector<16x1xf32>
    %cst_8 = arith.constant 2.560000e+02 : f32
    %18 = vector.broadcast %cst_8 : f32 to vector<16x1xf32>
    %19 = arith.divf %17, %18 : vector<16x1xf32>
    %20 = vector.broadcast %12 : vector<16x1xf32> to vector<16x256xf32>
    %21 = arith.subf %4, %20 : vector<16x256xf32>
    %cst_9 = arith.constant 9.99999996E-13 : f32
    %22 = vector.broadcast %cst_9 : f32 to vector<16x1xf32>
    %23 = arith.addf %19, %22 : vector<16x1xf32>
    %24 = math.rsqrt %23 : vector<16x1xf32>
    %25 = vector.broadcast %24 : vector<16x1xf32> to vector<16x256xf32>
    %26 = arith.mulf %21, %25 : vector<16x256xf32>
    %27 = vector.shape_cast %6 : vector<256xf32> to vector<1x256xf32>
    %28 = vector.broadcast %27 : vector<1x256xf32> to vector<16x256xf32>
    %29 = arith.mulf %26, %28 : vector<16x256xf32>
    %30 = vector.shape_cast %8 : vector<256xf32> to vector<1x256xf32>
    %31 = vector.broadcast %30 : vector<1x256xf32> to vector<16x256xf32>
    %32 = arith.addf %29, %31 : vector<16x256xf32>
    %c0_10 = arith.constant 0 : index
    %c0_11 = arith.constant 0 : index
    %c0_12 = arith.constant 0 : index
    %33 = vector.load %arg2[%c0_10, %c0_11, %c0_12] : memref<1x2x8xf32, #tpu.memory_space<vmem>>, vector<1x2x8xf32>
    %34 = vector.shape_cast %33 : vector<1x2x8xf32> to vector<2x8xf32>
    %cst_13 = arith.constant 1.000000e+00 : f32
    %35 = vector.broadcast %cst_13 : f32 to vector<2x8xf32>
    %36 = arith.subf %35, %34 : vector<2x8xf32>
    %cst_14 = arith.constant -1.000000e+04 : f32
    %37 = vector.broadcast %cst_14 : f32 to vector<2x8xf32>
    %38 = arith.mulf %36, %37 : vector<2x8xf32>
    %39 = vector.shape_cast %38 : vector<2x8xf32> to vector<2x1x8xf32>
    %40 = vector.shape_cast %39 : vector<2x1x8xf32> to vector<2x1x8xf32>
    %41 = vector.broadcast %40 : vector<2x1x8xf32> to vector<2x8x8xf32>
    %42 = tpu.concatenate %41, %41 in 0 : vector<2x8x8xf32>, vector<2x8x8xf32> -> vector<4x8x8xf32>
    %c0_15 = arith.constant 0 : index
    %c0_16 = arith.constant 0 : index
    %c0_17 = arith.constant 0 : index
    %43 = vector.load %arg4[%c0_15, %c0_16, %c0_17] : memref<1x2x3328xf32, #tpu.memory_space<vmem>>, vector<1x1x3328xf32>
    %44 = vector.shape_cast %43 : vector<1x1x3328xf32> to vector<3328xf32>
    %45 = arith.truncf %32 : vector<16x256xf32> to vector<16x256xbf16>
    %c0_18 = arith.constant 0 : index
    %c0_19 = arith.constant 0 : index
    %c0_20 = arith.constant 0 : index
    %c0_21 = arith.constant 0 : index
    %46 = vector.load %arg5[%c0_18, %c0_19, %c0_20, %c0_21] : memref<1x2x256x768xbf16, #tpu.memory_space<vmem>>, vector<1x1x256x768xbf16>
    %47 = vector.shape_cast %46 : vector<1x1x256x768xbf16> to vector<256x768xbf16>
    %cst_22 = arith.constant dense<0.000000e+00> : vector<16x768xf32>
    %48 = tpu.matmul %45, %47, %cst_22 {dimension_numbers = #tpu.dot_dimension_numbers<[1], [0], [0], [1], [0, 0, 1, 1], [], []>} : vector<16x256xbf16>, vector<256x768xbf16>, vector<16x768xf32> -> vector<16x768xf32>
    %49 = vector.extract_strided_slice %44 {offsets = [1536], sizes = [768], strides = [1]} : vector<3328xf32> to vector<768xf32>
    %50 = vector.shape_cast %49 : vector<768xf32> to vector<1x768xf32>
    %51 = vector.broadcast %50 : vector<1x768xf32> to vector<16x768xf32>
    %52 = arith.addf %48, %51 : vector<16x768xf32>
    %53 = vector.shape_cast %52 : vector<16x768xf32> to vector<2x8x768xf32>
    %54 = vector.extract_strided_slice %53 {offsets = [0, 0, 0], sizes = [2, 8, 128], strides = [1, 1, 1]} : vector<2x8x768xf32> to vector<2x8x128xf32>
    %55 = vector.extract_strided_slice %53 {offsets = [0, 0, 128], sizes = [2, 8, 128], strides = [1, 1, 1]} : vector<2x8x768xf32> to vector<2x8x128xf32>
    %56 = tpu.concatenate %54, %55 in 0 : vector<2x8x128xf32>, vector<2x8x128xf32> -> vector<4x8x128xf32>
    %57 = arith.truncf %56 : vector<4x8x128xf32> to vector<4x8x128xbf16>
    %58 = vector.extract_strided_slice %53 {offsets = [0, 0, 256], sizes = [2, 8, 128], strides = [1, 1, 1]} : vector<2x8x768xf32> to vector<2x8x128xf32>
    %59 = vector.extract_strided_slice %53 {offsets = [0, 0, 384], sizes = [2, 8, 128], strides = [1, 1, 1]} : vector<2x8x768xf32> to vector<2x8x128xf32>
    %60 = tpu.concatenate %58, %59 in 0 : vector<2x8x128xf32>, vector<2x8x128xf32> -> vector<4x8x128xf32>
    %61 = arith.truncf %60 : vector<4x8x128xf32> to vector<4x8x128xbf16>
    %62 = vector.extract_strided_slice %53 {offsets = [0, 0, 512], sizes = [2, 8, 128], strides = [1, 1, 1]} : vector<2x8x768xf32> to vector<2x8x128xf32>
    %63 = vector.extract_strided_slice %53 {offsets = [0, 0, 640], sizes = [2, 8, 128], strides = [1, 1, 1]} : vector<2x8x768xf32> to vector<2x8x128xf32>
    %64 = tpu.concatenate %62, %63 in 0 : vector<2x8x128xf32>, vector<2x8x128xf32> -> vector<4x8x128xf32>
    %65 = arith.truncf %64 : vector<4x8x128xf32> to vector<4x8x128xbf16>
    "tpu.trace_start"() <{level = 10 : i32, message = "nqd,nkd->nqk"}> : () -> ()
    %cst_23 = arith.constant dense<0.000000e+00> : vector<4x8x8xf32>
    %66 = tpu.matmul %57, %61, %cst_23 {dimension_numbers = #tpu.dot_dimension_numbers<[2], [2], [1], [1], [0, 0, 0, 1, 1, 1], [0], [0]>} : vector<4x8x128xbf16>, vector<4x8x128xbf16>, vector<4x8x8xf32> -> vector<4x8x8xf32>
    "tpu.trace_stop"() : () -> ()
    %cst_24 = arith.constant 0.0883883461 : f32
    %67 = vector.broadcast %cst_24 : f32 to vector<4x8x8xf32>
    %68 = arith.mulf %66, %67 : vector<4x8x8xf32>
    %69 = arith.addf %68, %42 : vector<4x8x8xf32>
    %cst_25 = arith.constant dense<0xFF800000> : vector<4x8xf32>
    %70 = vector.multi_reduction <maximumf>, %69, %cst_25 [2] : vector<4x8x8xf32> to vector<4x8xf32>
    %71 = vector.shape_cast %70 : vector<4x8xf32> to vector<4x8x1xf32>
    %72 = vector.broadcast %71 : vector<4x8x1xf32> to vector<4x8x8xf32>
    %73 = arith.subf %69, %72 : vector<4x8x8xf32>
    %74 = math.exp %73 : vector<4x8x8xf32>
    %cst_26 = arith.constant dense<0.000000e+00> : vector<4x8xf32>
    %75 = vector.multi_reduction <add>, %74, %cst_26 [2] : vector<4x8x8xf32> to vector<4x8xf32>
    %76 = vector.shape_cast %75 : vector<4x8xf32> to vector<4x8x1xf32>
    %77 = tpu.reciprocal %76 {approx = true} : vector<4x8x1xf32> -> vector<4x8x1xf32>
    %78 = vector.broadcast %77 : vector<4x8x1xf32> to vector<4x8x8xf32>
    %79 = arith.mulf %74, %78 : vector<4x8x8xf32>
    %80 = arith.truncf %79 : vector<4x8x8xf32> to vector<4x8x8xbf16>
    "tpu.trace_start"() <{level = 10 : i32, message = "nqk,nkd->nqd"}> : () -> ()
    %cst_27 = arith.constant dense<0.000000e+00> : vector<4x8x128xf32>
    %81 = tpu.matmul %80, %65, %cst_27 {dimension_numbers = #tpu.dot_dimension_numbers<[2], [1], [1], [2], [0, 0, 0, 1, 1, 2], [0], [0]>} : vector<4x8x8xbf16>, vector<4x8x128xbf16>, vector<4x8x128xf32> -> vector<4x8x128xf32>
    "tpu.trace_stop"() : () -> ()
    %82 = vector.extract_strided_slice %81 {offsets = [0, 0, 0], sizes = [2, 8, 128], strides = [1, 1, 1]} : vector<4x8x128xf32> to vector<2x8x128xf32>
    %83 = vector.extract_strided_slice %81 {offsets = [2, 0, 0], sizes = [2, 8, 128], strides = [1, 1, 1]} : vector<4x8x128xf32> to vector<2x8x128xf32>
    %84 = tpu.concatenate %82, %83 in 2 : vector<2x8x128xf32>, vector<2x8x128xf32> -> vector<2x8x256xf32>
    %85 = vector.shape_cast %84 : vector<2x8x256xf32> to vector<16x256xf32>
    %86 = arith.truncf %85 : vector<16x256xf32> to vector<16x256xbf16>
    %c0_28 = arith.constant 0 : index
    %c0_29 = arith.constant 0 : index
    %c0_30 = arith.constant 0 : index
    %c0_31 = arith.constant 0 : index
    %87 = vector.load %arg6[%c0_28, %c0_29, %c0_30, %c0_31] : memref<1x2x256x256xbf16, #tpu.memory_space<vmem>>, vector<1x1x256x256xbf16>
    %88 = vector.shape_cast %87 : vector<1x1x256x256xbf16> to vector<256x256xbf16>
    %cst_32 = arith.constant dense<0.000000e+00> : vector<16x256xf32>
    %89 = tpu.matmul %86, %88, %cst_32 {dimension_numbers = #tpu.dot_dimension_numbers<[1], [0], [0], [1], [0, 0, 1, 1], [], []>} : vector<16x256xbf16>, vector<256x256xbf16>, vector<16x256xf32> -> vector<16x256xf32>
    %90 = vector.extract_strided_slice %44 {offsets = [0], sizes = [256], strides = [1]} : vector<3328xf32> to vector<256xf32>
    %91 = vector.shape_cast %90 : vector<256xf32> to vector<1x256xf32>
    %92 = vector.broadcast %91 : vector<1x256xf32> to vector<16x256xf32>
    %93 = arith.addf %89, %92 : vector<16x256xf32>
    %94 = arith.addf %32, %93 : vector<16x256xf32>
    %95 = vector.extract_strided_slice %44 {offsets = [256], sizes = [256], strides = [1]} : vector<3328xf32> to vector<256xf32>
    %96 = vector.extract_strided_slice %44 {offsets = [512], sizes = [256], strides = [1]} : vector<3328xf32> to vector<256xf32>
    %cst_33 = arith.constant dense<0.000000e+00> : vector<16xf32>
    %97 = vector.multi_reduction <add>, %94, %cst_33 [1] : vector<16x256xf32> to vector<16xf32>
    %98 = vector.shape_cast %97 : vector<16xf32> to vector<16x1xf32>
    %cst_34 = arith.constant 2.560000e+02 : f32
    %99 = vector.broadcast %cst_34 : f32 to vector<16x1xf32>
    %100 = arith.divf %98, %99 : vector<16x1xf32>
    %101 = vector.broadcast %100 : vector<16x1xf32> to vector<16x256xf32>
    %102 = arith.subf %94, %101 : vector<16x256xf32>
    %103 = arith.mulf %102, %102 : vector<16x256xf32>
    %cst_35 = arith.constant dense<0.000000e+00> : vector<16xf32>
    %104 = vector.multi_reduction <add>, %103, %cst_35 [1] : vector<16x256xf32> to vector<16xf32>
    %105 = vector.shape_cast %104 : vector<16xf32> to vector<16x1xf32>
    %cst_36 = arith.constant 2.560000e+02 : f32
    %106 = vector.broadcast %cst_36 : f32 to vector<16x1xf32>
    %107 = arith.divf %105, %106 : vector<16x1xf32>
    %108 = vector.broadcast %100 : vector<16x1xf32> to vector<16x256xf32>
    %109 = arith.subf %94, %108 : vector<16x256xf32>
    %cst_37 = arith.constant 9.99999996E-13 : f32
    %110 = vector.broadcast %cst_37 : f32 to vector<16x1xf32>
    %111 = arith.addf %107, %110 : vector<16x1xf32>
    %112 = math.rsqrt %111 : vector<16x1xf32>
    %113 = vector.broadcast %112 : vector<16x1xf32> to vector<16x256xf32>
    %114 = arith.mulf %109, %113 : vector<16x256xf32>
    %115 = vector.shape_cast %95 : vector<256xf32> to vector<1x256xf32>
    %116 = vector.broadcast %115 : vector<1x256xf32> to vector<16x256xf32>
    %117 = arith.mulf %114, %116 : vector<16x256xf32>
    %118 = vector.shape_cast %96 : vector<256xf32> to vector<1x256xf32>
    %119 = vector.broadcast %118 : vector<1x256xf32> to vector<16x256xf32>
    %120 = arith.addf %117, %119 : vector<16x256xf32>
    %121 = arith.truncf %120 : vector<16x256xf32> to vector<16x256xbf16>
    %c0_38 = arith.constant 0 : index
    %c0_39 = arith.constant 0 : index
    %c0_40 = arith.constant 0 : index
    %c0_41 = arith.constant 0 : index
    %122 = vector.load %arg7[%c0_38, %c0_39, %c0_40, %c0_41] : memref<1x2x256x1024xbf16, #tpu.memory_space<vmem>>, vector<1x1x256x1024xbf16>
    %123 = vector.shape_cast %122 : vector<1x1x256x1024xbf16> to vector<256x1024xbf16>
    %cst_42 = arith.constant dense<0.000000e+00> : vector<16x1024xf32>
    %124 = tpu.matmul %121, %123, %cst_42 {dimension_numbers = #tpu.dot_dimension_numbers<[1], [0], [0], [1], [0, 0, 1, 1], [], []>} : vector<16x256xbf16>, vector<256x1024xbf16>, vector<16x1024xf32> -> vector<16x1024xf32>
    %125 = vector.extract_strided_slice %44 {offsets = [2304], sizes = [1024], strides = [1]} : vector<3328xf32> to vector<1024xf32>
    %126 = vector.shape_cast %125 : vector<1024xf32> to vector<1x1024xf32>
    %127 = vector.broadcast %126 : vector<1x1024xf32> to vector<16x1024xf32>
    %128 = arith.addf %124, %127 : vector<16x1024xf32>
    %cst_43 = arith.constant 5.000000e-01 : f32
    %129 = vector.broadcast %cst_43 : f32 to vector<16x1024xf32>
    %130 = arith.mulf %129, %128 : vector<16x1024xf32>
    %cst_44 = arith.constant 4.471500e-02 : f32
    %131 = vector.broadcast %cst_44 : f32 to vector<16x1024xf32>
    %132 = arith.mulf %131, %128 : vector<16x1024xf32>
    %133 = arith.mulf %132, %128 : vector<16x1024xf32>
    %134 = arith.mulf %133, %128 : vector<16x1024xf32>
    %135 = arith.addf %128, %134 : vector<16x1024xf32>
    %cst_45 = arith.constant 0.797884583 : f32
    %136 = vector.broadcast %cst_45 : f32 to vector<16x1024xf32>
    %137 = arith.mulf %136, %135 : vector<16x1024xf32>
    %138 = math.tanh %137 : vector<16x1024xf32>
    %cst_46 = arith.constant 1.000000e+00 : f32
    %139 = vector.broadcast %cst_46 : f32 to vector<16x1024xf32>
    %140 = arith.addf %139, %138 : vector<16x1024xf32>
    %141 = arith.mulf %130, %140 : vector<16x1024xf32>
    %142 = arith.truncf %141 : vector<16x1024xf32> to vector<16x1024xbf16>
    %c0_47 = arith.constant 0 : index
    %c0_48 = arith.constant 0 : index
    %c0_49 = arith.constant 0 : index
    %c0_50 = arith.constant 0 : index
    %143 = vector.load %arg8[%c0_47, %c0_48, %c0_49, %c0_50] : memref<1x2x1024x256xbf16, #tpu.memory_space<vmem>>, vector<1x1x1024x256xbf16>
    %144 = vector.shape_cast %143 : vector<1x1x1024x256xbf16> to vector<1024x256xbf16>
    %cst_51 = arith.constant dense<0.000000e+00> : vector<16x256xf32>
    %145 = tpu.matmul %142, %144, %cst_51 {dimension_numbers = #tpu.dot_dimension_numbers<[1], [0], [0], [1], [0, 0, 1, 1], [], []>} : vector<16x1024xbf16>, vector<1024x256xbf16>, vector<16x256xf32> -> vector<16x256xf32>
    %146 = vector.extract_strided_slice %44 {offsets = [768], sizes = [256], strides = [1]} : vector<3328xf32> to vector<256xf32>
    %147 = vector.shape_cast %146 : vector<256xf32> to vector<1x256xf32>
    %148 = vector.broadcast %147 : vector<1x256xf32> to vector<16x256xf32>
    %149 = arith.addf %145, %148 : vector<16x256xf32>
    %150 = arith.addf %120, %149 : vector<16x256xf32>
    %151 = vector.extract_strided_slice %44 {offsets = [1024], sizes = [256], strides = [1]} : vector<3328xf32> to vector<256xf32>
    %152 = vector.extract_strided_slice %44 {offsets = [1280], sizes = [256], strides = [1]} : vector<3328xf32> to vector<256xf32>
    %cst_52 = arith.constant dense<0.000000e+00> : vector<16xf32>
    %153 = vector.multi_reduction <add>, %150, %cst_52 [1] : vector<16x256xf32> to vector<16xf32>
    %154 = vector.shape_cast %153 : vector<16xf32> to vector<16x1xf32>
    %cst_53 = arith.constant 2.560000e+02 : f32
    %155 = vector.broadcast %cst_53 : f32 to vector<16x1xf32>
    %156 = arith.divf %154, %155 : vector<16x1xf32>
    %157 = vector.broadcast %156 : vector<16x1xf32> to vector<16x256xf32>
    %158 = arith.subf %150, %157 : vector<16x256xf32>
    %159 = arith.mulf %158, %158 : vector<16x256xf32>
    %cst_54 = arith.constant dense<0.000000e+00> : vector<16xf32>
    %160 = vector.multi_reduction <add>, %159, %cst_54 [1] : vector<16x256xf32> to vector<16xf32>
    %161 = vector.shape_cast %160 : vector<16xf32> to vector<16x1xf32>
    %cst_55 = arith.constant 2.560000e+02 : f32
    %162 = vector.broadcast %cst_55 : f32 to vector<16x1xf32>
    %163 = arith.divf %161, %162 : vector<16x1xf32>
    %164 = vector.broadcast %156 : vector<16x1xf32> to vector<16x256xf32>
    %165 = arith.subf %150, %164 : vector<16x256xf32>
    %cst_56 = arith.constant 9.99999996E-13 : f32
    %166 = vector.broadcast %cst_56 : f32 to vector<16x1xf32>
    %167 = arith.addf %163, %166 : vector<16x1xf32>
    %168 = math.rsqrt %167 : vector<16x1xf32>
    %169 = vector.broadcast %168 : vector<16x1xf32> to vector<16x256xf32>
    %170 = arith.mulf %165, %169 : vector<16x256xf32>
    %171 = vector.shape_cast %151 : vector<256xf32> to vector<1x256xf32>
    %172 = vector.broadcast %171 : vector<1x256xf32> to vector<16x256xf32>
    %173 = arith.mulf %170, %172 : vector<16x256xf32>
    %174 = vector.shape_cast %152 : vector<256xf32> to vector<1x256xf32>
    %175 = vector.broadcast %174 : vector<1x256xf32> to vector<16x256xf32>
    %176 = arith.addf %173, %175 : vector<16x256xf32>
    %c0_57 = arith.constant 0 : index
    %c1 = arith.constant 1 : index
    %c0_58 = arith.constant 0 : index
    %177 = vector.load %arg4[%c0_57, %c1, %c0_58] : memref<1x2x3328xf32, #tpu.memory_space<vmem>>, vector<1x1x3328xf32>
    %178 = vector.shape_cast %177 : vector<1x1x3328xf32> to vector<3328xf32>
    %179 = arith.truncf %176 : vector<16x256xf32> to vector<16x256xbf16>
    %c0_59 = arith.constant 0 : index
    %c1_60 = arith.constant 1 : index
    %c0_61 = arith.constant 0 : index
    %c0_62 = arith.constant 0 : index
    %180 = vector.load %arg5[%c0_59, %c1_60, %c0_61, %c0_62] : memref<1x2x256x768xbf16, #tpu.memory_space<vmem>>, vector<1x1x256x768xbf16>
    %181 = vector.shape_cast %180 : vector<1x1x256x768xbf16> to vector<256x768xbf16>
    %cst_63 = arith.constant dense<0.000000e+00> : vector<16x768xf32>
    %182 = tpu.matmul %179, %181, %cst_63 {dimension_numbers = #tpu.dot_dimension_numbers<[1], [0], [0], [1], [0, 0, 1, 1], [], []>} : vector<16x256xbf16>, vector<256x768xbf16>, vector<16x768xf32> -> vector<16x768xf32>
    %183 = vector.extract_strided_slice %178 {offsets = [1536], sizes = [768], strides = [1]} : vector<3328xf32> to vector<768xf32>
    %184 = vector.shape_cast %183 : vector<768xf32> to vector<1x768xf32>
    %185 = vector.broadcast %184 : vector<1x768xf32> to vector<16x768xf32>
    %186 = arith.addf %182, %185 : vector<16x768xf32>
    %187 = vector.shape_cast %186 : vector<16x768xf32> to vector<2x8x768xf32>
    %188 = vector.extract_strided_slice %187 {offsets = [0, 0, 0], sizes = [2, 8, 128], strides = [1, 1, 1]} : vector<2x8x768xf32> to vector<2x8x128xf32>
    %189 = vector.extract_strided_slice %187 {offsets = [0, 0, 128], sizes = [2, 8, 128], strides = [1, 1, 1]} : vector<2x8x768xf32> to vector<2x8x128xf32>
    %190 = tpu.concatenate %188, %189 in 0 : vector<2x8x128xf32>, vector<2x8x128xf32> -> vector<4x8x128xf32>
    %191 = arith.truncf %190 : vector<4x8x128xf32> to vector<4x8x128xbf16>
    %192 = vector.extract_strided_slice %187 {offsets = [0, 0, 256], sizes = [2, 8, 128], strides = [1, 1, 1]} : vector<2x8x768xf32> to vector<2x8x128xf32>
    %193 = vector.extract_strided_slice %187 {offsets = [0, 0, 384], sizes = [2, 8, 128], strides = [1, 1, 1]} : vector<2x8x768xf32> to vector<2x8x128xf32>
    %194 = tpu.concatenate %192, %193 in 0 : vector<2x8x128xf32>, vector<2x8x128xf32> -> vector<4x8x128xf32>
    %195 = arith.truncf %194 : vector<4x8x128xf32> to vector<4x8x128xbf16>
    %196 = vector.extract_strided_slice %187 {offsets = [0, 0, 512], sizes = [2, 8, 128], strides = [1, 1, 1]} : vector<2x8x768xf32> to vector<2x8x128xf32>
    %197 = vector.extract_strided_slice %187 {offsets = [0, 0, 640], sizes = [2, 8, 128], strides = [1, 1, 1]} : vector<2x8x768xf32> to vector<2x8x128xf32>
    %198 = tpu.concatenate %196, %197 in 0 : vector<2x8x128xf32>, vector<2x8x128xf32> -> vector<4x8x128xf32>
    %199 = arith.truncf %198 : vector<4x8x128xf32> to vector<4x8x128xbf16>
    "tpu.trace_start"() <{level = 10 : i32, message = "nqd,nkd->nqk"}> : () -> ()
    %cst_64 = arith.constant dense<0.000000e+00> : vector<4x8x8xf32>
    %200 = tpu.matmul %191, %195, %cst_64 {dimension_numbers = #tpu.dot_dimension_numbers<[2], [2], [1], [1], [0, 0, 0, 1, 1, 1], [0], [0]>} : vector<4x8x128xbf16>, vector<4x8x128xbf16>, vector<4x8x8xf32> -> vector<4x8x8xf32>
    "tpu.trace_stop"() : () -> ()
    %cst_65 = arith.constant 0.0883883461 : f32
    %201 = vector.broadcast %cst_65 : f32 to vector<4x8x8xf32>
    %202 = arith.mulf %200, %201 : vector<4x8x8xf32>
    %203 = arith.addf %202, %42 : vector<4x8x8xf32>
    %cst_66 = arith.constant dense<0xFF800000> : vector<4x8xf32>
    %204 = vector.multi_reduction <maximumf>, %203, %cst_66 [2] : vector<4x8x8xf32> to vector<4x8xf32>
    %205 = vector.shape_cast %204 : vector<4x8xf32> to vector<4x8x1xf32>
    %206 = vector.broadcast %205 : vector<4x8x1xf32> to vector<4x8x8xf32>
    %207 = arith.subf %203, %206 : vector<4x8x8xf32>
    %208 = math.exp %207 : vector<4x8x8xf32>
    %cst_67 = arith.constant dense<0.000000e+00> : vector<4x8xf32>
    %209 = vector.multi_reduction <add>, %208, %cst_67 [2] : vector<4x8x8xf32> to vector<4x8xf32>
    %210 = vector.shape_cast %209 : vector<4x8xf32> to vector<4x8x1xf32>
    %211 = tpu.reciprocal %210 {approx = true} : vector<4x8x1xf32> -> vector<4x8x1xf32>
    %212 = vector.broadcast %211 : vector<4x8x1xf32> to vector<4x8x8xf32>
    %213 = arith.mulf %208, %212 : vector<4x8x8xf32>
    %214 = arith.truncf %213 : vector<4x8x8xf32> to vector<4x8x8xbf16>
    "tpu.trace_start"() <{level = 10 : i32, message = "nqk,nkd->nqd"}> : () -> ()
    %cst_68 = arith.constant dense<0.000000e+00> : vector<4x8x128xf32>
    %215 = tpu.matmul %214, %199, %cst_68 {dimension_numbers = #tpu.dot_dimension_numbers<[2], [1], [1], [2], [0, 0, 0, 1, 1, 2], [0], [0]>} : vector<4x8x8xbf16>, vector<4x8x128xbf16>, vector<4x8x128xf32> -> vector<4x8x128xf32>
    "tpu.trace_stop"() : () -> ()
    %216 = vector.extract_strided_slice %215 {offsets = [0, 0, 0], sizes = [2, 8, 128], strides = [1, 1, 1]} : vector<4x8x128xf32> to vector<2x8x128xf32>
    %217 = vector.extract_strided_slice %215 {offsets = [2, 0, 0], sizes = [2, 8, 128], strides = [1, 1, 1]} : vector<4x8x128xf32> to vector<2x8x128xf32>
    %218 = tpu.concatenate %216, %217 in 2 : vector<2x8x128xf32>, vector<2x8x128xf32> -> vector<2x8x256xf32>
    %219 = vector.shape_cast %218 : vector<2x8x256xf32> to vector<16x256xf32>
    %220 = arith.truncf %219 : vector<16x256xf32> to vector<16x256xbf16>
    %c0_69 = arith.constant 0 : index
    %c1_70 = arith.constant 1 : index
    %c0_71 = arith.constant 0 : index
    %c0_72 = arith.constant 0 : index
    %221 = vector.load %arg6[%c0_69, %c1_70, %c0_71, %c0_72] : memref<1x2x256x256xbf16, #tpu.memory_space<vmem>>, vector<1x1x256x256xbf16>
    %222 = vector.shape_cast %221 : vector<1x1x256x256xbf16> to vector<256x256xbf16>
    %cst_73 = arith.constant dense<0.000000e+00> : vector<16x256xf32>
    %223 = tpu.matmul %220, %222, %cst_73 {dimension_numbers = #tpu.dot_dimension_numbers<[1], [0], [0], [1], [0, 0, 1, 1], [], []>} : vector<16x256xbf16>, vector<256x256xbf16>, vector<16x256xf32> -> vector<16x256xf32>
    %224 = vector.extract_strided_slice %178 {offsets = [0], sizes = [256], strides = [1]} : vector<3328xf32> to vector<256xf32>
    %225 = vector.shape_cast %224 : vector<256xf32> to vector<1x256xf32>
    %226 = vector.broadcast %225 : vector<1x256xf32> to vector<16x256xf32>
    %227 = arith.addf %223, %226 : vector<16x256xf32>
    %228 = arith.addf %176, %227 : vector<16x256xf32>
    %229 = vector.extract_strided_slice %178 {offsets = [256], sizes = [256], strides = [1]} : vector<3328xf32> to vector<256xf32>
    %230 = vector.extract_strided_slice %178 {offsets = [512], sizes = [256], strides = [1]} : vector<3328xf32> to vector<256xf32>
    %cst_74 = arith.constant dense<0.000000e+00> : vector<16xf32>
    %231 = vector.multi_reduction <add>, %228, %cst_74 [1] : vector<16x256xf32> to vector<16xf32>
    %232 = vector.shape_cast %231 : vector<16xf32> to vector<16x1xf32>
    %cst_75 = arith.constant 2.560000e+02 : f32
    %233 = vector.broadcast %cst_75 : f32 to vector<16x1xf32>
    %234 = arith.divf %232, %233 : vector<16x1xf32>
    %235 = vector.broadcast %234 : vector<16x1xf32> to vector<16x256xf32>
    %236 = arith.subf %228, %235 : vector<16x256xf32>
    %237 = arith.mulf %236, %236 : vector<16x256xf32>
    %cst_76 = arith.constant dense<0.000000e+00> : vector<16xf32>
    %238 = vector.multi_reduction <add>, %237, %cst_76 [1] : vector<16x256xf32> to vector<16xf32>
    %239 = vector.shape_cast %238 : vector<16xf32> to vector<16x1xf32>
    %cst_77 = arith.constant 2.560000e+02 : f32
    %240 = vector.broadcast %cst_77 : f32 to vector<16x1xf32>
    %241 = arith.divf %239, %240 : vector<16x1xf32>
    %242 = vector.broadcast %234 : vector<16x1xf32> to vector<16x256xf32>
    %243 = arith.subf %228, %242 : vector<16x256xf32>
    %cst_78 = arith.constant 9.99999996E-13 : f32
    %244 = vector.broadcast %cst_78 : f32 to vector<16x1xf32>
    %245 = arith.addf %241, %244 : vector<16x1xf32>
    %246 = math.rsqrt %245 : vector<16x1xf32>
    %247 = vector.broadcast %246 : vector<16x1xf32> to vector<16x256xf32>
    %248 = arith.mulf %243, %247 : vector<16x256xf32>
    %249 = vector.shape_cast %229 : vector<256xf32> to vector<1x256xf32>
    %250 = vector.broadcast %249 : vector<1x256xf32> to vector<16x256xf32>
    %251 = arith.mulf %248, %250 : vector<16x256xf32>
    %252 = vector.shape_cast %230 : vector<256xf32> to vector<1x256xf32>
    %253 = vector.broadcast %252 : vector<1x256xf32> to vector<16x256xf32>
    %254 = arith.addf %251, %253 : vector<16x256xf32>
    %255 = arith.truncf %254 : vector<16x256xf32> to vector<16x256xbf16>
    %c0_79 = arith.constant 0 : index
    %c1_80 = arith.constant 1 : index
    %c0_81 = arith.constant 0 : index
    %c0_82 = arith.constant 0 : index
    %256 = vector.load %arg7[%c0_79, %c1_80, %c0_81, %c0_82] : memref<1x2x256x1024xbf16, #tpu.memory_space<vmem>>, vector<1x1x256x1024xbf16>
    %257 = vector.shape_cast %256 : vector<1x1x256x1024xbf16> to vector<256x1024xbf16>
    %cst_83 = arith.constant dense<0.000000e+00> : vector<16x1024xf32>
    %258 = tpu.matmul %255, %257, %cst_83 {dimension_numbers = #tpu.dot_dimension_numbers<[1], [0], [0], [1], [0, 0, 1, 1], [], []>} : vector<16x256xbf16>, vector<256x1024xbf16>, vector<16x1024xf32> -> vector<16x1024xf32>
    %259 = vector.extract_strided_slice %178 {offsets = [2304], sizes = [1024], strides = [1]} : vector<3328xf32> to vector<1024xf32>
    %260 = vector.shape_cast %259 : vector<1024xf32> to vector<1x1024xf32>
    %261 = vector.broadcast %260 : vector<1x1024xf32> to vector<16x1024xf32>
    %262 = arith.addf %258, %261 : vector<16x1024xf32>
    %cst_84 = arith.constant 5.000000e-01 : f32
    %263 = vector.broadcast %cst_84 : f32 to vector<16x1024xf32>
    %264 = arith.mulf %263, %262 : vector<16x1024xf32>
    %cst_85 = arith.constant 4.471500e-02 : f32
    %265 = vector.broadcast %cst_85 : f32 to vector<16x1024xf32>
    %266 = arith.mulf %265, %262 : vector<16x1024xf32>
    %267 = arith.mulf %266, %262 : vector<16x1024xf32>
    %268 = arith.mulf %267, %262 : vector<16x1024xf32>
    %269 = arith.addf %262, %268 : vector<16x1024xf32>
    %cst_86 = arith.constant 0.797884583 : f32
    %270 = vector.broadcast %cst_86 : f32 to vector<16x1024xf32>
    %271 = arith.mulf %270, %269 : vector<16x1024xf32>
    %272 = math.tanh %271 : vector<16x1024xf32>
    %cst_87 = arith.constant 1.000000e+00 : f32
    %273 = vector.broadcast %cst_87 : f32 to vector<16x1024xf32>
    %274 = arith.addf %273, %272 : vector<16x1024xf32>
    %275 = arith.mulf %264, %274 : vector<16x1024xf32>
    %276 = arith.truncf %275 : vector<16x1024xf32> to vector<16x1024xbf16>
    %c0_88 = arith.constant 0 : index
    %c1_89 = arith.constant 1 : index
    %c0_90 = arith.constant 0 : index
    %c0_91 = arith.constant 0 : index
    %277 = vector.load %arg8[%c0_88, %c1_89, %c0_90, %c0_91] : memref<1x2x1024x256xbf16, #tpu.memory_space<vmem>>, vector<1x1x1024x256xbf16>
    %278 = vector.shape_cast %277 : vector<1x1x1024x256xbf16> to vector<1024x256xbf16>
    %cst_92 = arith.constant dense<0.000000e+00> : vector<16x256xf32>
    %279 = tpu.matmul %276, %278, %cst_92 {dimension_numbers = #tpu.dot_dimension_numbers<[1], [0], [0], [1], [0, 0, 1, 1], [], []>} : vector<16x1024xbf16>, vector<1024x256xbf16>, vector<16x256xf32> -> vector<16x256xf32>
    %280 = vector.extract_strided_slice %178 {offsets = [768], sizes = [256], strides = [1]} : vector<3328xf32> to vector<256xf32>
    %281 = vector.shape_cast %280 : vector<256xf32> to vector<1x256xf32>
    %282 = vector.broadcast %281 : vector<1x256xf32> to vector<16x256xf32>
    %283 = arith.addf %279, %282 : vector<16x256xf32>
    %284 = arith.addf %254, %283 : vector<16x256xf32>
    %285 = vector.extract_strided_slice %178 {offsets = [1024], sizes = [256], strides = [1]} : vector<3328xf32> to vector<256xf32>
    %286 = vector.extract_strided_slice %178 {offsets = [1280], sizes = [256], strides = [1]} : vector<3328xf32> to vector<256xf32>
    %cst_93 = arith.constant dense<0.000000e+00> : vector<16xf32>
    %287 = vector.multi_reduction <add>, %284, %cst_93 [1] : vector<16x256xf32> to vector<16xf32>
    %288 = vector.shape_cast %287 : vector<16xf32> to vector<16x1xf32>
    %cst_94 = arith.constant 2.560000e+02 : f32
    %289 = vector.broadcast %cst_94 : f32 to vector<16x1xf32>
    %290 = arith.divf %288, %289 : vector<16x1xf32>
    %291 = vector.broadcast %290 : vector<16x1xf32> to vector<16x256xf32>
    %292 = arith.subf %284, %291 : vector<16x256xf32>
    %293 = arith.mulf %292, %292 : vector<16x256xf32>
    %cst_95 = arith.constant dense<0.000000e+00> : vector<16xf32>
    %294 = vector.multi_reduction <add>, %293, %cst_95 [1] : vector<16x256xf32> to vector<16xf32>
    %295 = vector.shape_cast %294 : vector<16xf32> to vector<16x1xf32>
    %cst_96 = arith.constant 2.560000e+02 : f32
    %296 = vector.broadcast %cst_96 : f32 to vector<16x1xf32>
    %297 = arith.divf %295, %296 : vector<16x1xf32>
    %298 = vector.broadcast %290 : vector<16x1xf32> to vector<16x256xf32>
    %299 = arith.subf %284, %298 : vector<16x256xf32>
    %cst_97 = arith.constant 9.99999996E-13 : f32
    %300 = vector.broadcast %cst_97 : f32 to vector<16x1xf32>
    %301 = arith.addf %297, %300 : vector<16x1xf32>
    %302 = math.rsqrt %301 : vector<16x1xf32>
    %303 = vector.broadcast %302 : vector<16x1xf32> to vector<16x256xf32>
    %304 = arith.mulf %299, %303 : vector<16x256xf32>
    %305 = vector.shape_cast %285 : vector<256xf32> to vector<1x256xf32>
    %306 = vector.broadcast %305 : vector<1x256xf32> to vector<16x256xf32>
    %307 = arith.mulf %304, %306 : vector<16x256xf32>
    %308 = vector.shape_cast %286 : vector<256xf32> to vector<1x256xf32>
    %309 = vector.broadcast %308 : vector<1x256xf32> to vector<16x256xf32>
    %310 = arith.addf %307, %309 : vector<16x256xf32>
    %311 = vector.shape_cast %310 : vector<16x256xf32> to vector<2x8x256xf32>
    %312 = vector.extract_strided_slice %311 {offsets = [0, 0, 0], sizes = [2, 1, 256], strides = [1, 1, 1]} : vector<2x8x256xf32> to vector<2x1x256xf32>
    %313 = vector.shape_cast %312 : vector<2x1x256xf32> to vector<2x256xf32>
    %314 = arith.truncf %313 : vector<2x256xf32> to vector<2x256xbf16>
    %c0_98 = arith.constant 0 : index
    %c0_99 = arith.constant 0 : index
    %c0_100 = arith.constant 0 : index
    %315 = vector.load %arg9[%c0_98, %c0_99, %c0_100] : memref<1x256x384xbf16, #tpu.memory_space<vmem>>, vector<1x256x256xbf16>
    %316 = vector.shape_cast %315 : vector<1x256x256xbf16> to vector<256x256xbf16>
    %cst_101 = arith.constant dense<0.000000e+00> : vector<2x256xf32>
    %317 = tpu.matmul %314, %316, %cst_101 {dimension_numbers = #tpu.dot_dimension_numbers<[1], [0], [0], [1], [0, 0, 1, 1], [], []>} : vector<2x256xbf16>, vector<256x256xbf16>, vector<2x256xf32> -> vector<2x256xf32>
    %318 = vector.extract_strided_slice %1 {offsets = [2, 0], sizes = [1, 256], strides = [1, 1]} : vector<4x256xf32> to vector<1x256xf32>
    %319 = vector.shape_cast %318 : vector<1x256xf32> to vector<256xf32>
    %320 = vector.shape_cast %319 : vector<256xf32> to vector<1x256xf32>
    %321 = vector.broadcast %320 : vector<1x256xf32> to vector<2x256xf32>
    %322 = arith.addf %317, %321 : vector<2x256xf32>
    %323 = math.tanh %322 : vector<2x256xf32>
    %324 = arith.truncf %323 : vector<2x256xf32> to vector<2x256xbf16>
    %c0_102 = arith.constant 0 : index
    %c0_103 = arith.constant 0 : index
    %c256 = arith.constant 256 : index
    %325 = vector.load %arg9[%c0_102, %c0_103, %c256] : memref<1x256x384xbf16, #tpu.memory_space<vmem>>, vector<1x256x128xbf16>
    %326 = vector.shape_cast %325 : vector<1x256x128xbf16> to vector<256x128xbf16>
    %cst_104 = arith.constant dense<0.000000e+00> : vector<2x128xf32>
    %327 = tpu.matmul %324, %326, %cst_104 {dimension_numbers = #tpu.dot_dimension_numbers<[1], [0], [0], [1], [0, 0, 1, 1], [], []>} : vector<2x256xbf16>, vector<256x128xbf16>, vector<2x128xf32> -> vector<2x128xf32>
    %328 = vector.extract_strided_slice %1 {offsets = [3, 0], sizes = [1, 128], strides = [1, 1]} : vector<4x256xf32> to vector<1x128xf32>
    %329 = vector.shape_cast %328 : vector<1x128xf32> to vector<128xf32>
    %330 = vector.shape_cast %329 : vector<128xf32> to vector<1x128xf32>
    %331 = vector.broadcast %330 : vector<1x128xf32> to vector<2x128xf32>
    %332 = arith.addf %327, %331 : vector<2x128xf32>
    %c0_105 = arith.constant 0 : index
    %c0_106 = arith.constant 0 : index
    %c0_107 = arith.constant 0 : index
    %333 = vector.load %arg10[%c0_105, %c0_106, %c0_107] : memref<1x2x128xf32, #tpu.memory_space<vmem>>, vector<1x2x128xf32>
    %334 = vector.shape_cast %333 : vector<1x2x128xf32> to vector<2x128xf32>
    %335 = vector.shape_cast %332 : vector<2x128xf32> to vector<1x2x128xf32>
    tpu.vector_store %arg10[%c0_105, %c0_106, %c0_107], %335 {strides = array<i32>} : memref<1x2x128xf32, #tpu.memory_space<vmem>>, vector<1x2x128xf32>,
    return
  }
  func.func @transform_0(%arg0: i32) -> (i32, i32, i32, i32) {
    %c0_i32 = arith.constant 0 : i32
    %c0_i32_0 = arith.constant 0 : i32
    %c0_i32_1 = arith.constant 0 : i32
    %c0_i32_2 = arith.constant 0 : i32
    return %arg0, %c0_i32, %c0_i32_0, %c0_i32_1 : i32, i32, i32, i32
  }
  func.func @transform_1(%arg0: i32) -> (i32, i32, i32) {
    %c0_i32 = arith.constant 0 : i32
    %c0_i32_0 = arith.constant 0 : i32
    %c0_i32_1 = arith.constant 0 : i32
    return %arg0, %c0_i32, %c0_i32_0 : i32, i32, i32
  }
  func.func @transform_2(%arg0: i32) -> (i32, i32, i32) {
    %c0_i32 = arith.constant 0 : i32
    %c0_i32_0 = arith.constant 0 : i32
    %c0_i32_1 = arith.constant 0 : i32
    return %arg0, %c0_i32, %c0_i32_0 : i32, i32, i32
  }
  func.func @transform_3(%arg0: i32) -> (i32, i32, i32) {
    %c0_i32 = arith.constant 0 : i32
    %c0_i32_0 = arith.constant 0 : i32
    %c0_i32_1 = arith.constant 0 : i32
    return %arg0, %c0_i32, %c0_i32_0 : i32, i32, i32
  }
  func.func @transform_4(%arg0: i32) -> (i32, i32, i32, i32) {
    %c0_i32 = arith.constant 0 : i32
    %c0_i32_0 = arith.constant 0 : i32
    %c0_i32_1 = arith.constant 0 : i32
    %c0_i32_2 = arith.constant 0 : i32
    return %arg0, %c0_i32, %c0_i32_0, %c0_i32_1 : i32, i32, i32, i32
  }
  func.func @transform_5(%arg0: i32) -> (i32, i32, i32, i32) {
    %c0_i32 = arith.constant 0 : i32
    %c0_i32_0 = arith.constant 0 : i32
    %c0_i32_1 = arith.constant 0 : i32
    %c0_i32_2 = arith.constant 0 : i32
    return %arg0, %c0_i32, %c0_i32_0, %c0_i32_1 : i32, i32, i32, i32
  }
  func.func @transform_6(%arg0: i32) -> (i32, i32, i32, i32) {
    %c0_i32 = arith.constant 0 : i32
    %c0_i32_0 = arith.constant 0 : i32
    %c0_i32_1 = arith.constant 0 : i32
    %c0_i32_2 = arith.constant 0 : i32
    return %arg0, %c0_i32, %c0_i32_0, %c0_i32_1 : i32, i32, i32, i32
  }
  func.func @transform_7(%arg0: i32) -> (i32, i32, i32, i32) {
    %c0_i32 = arith.constant 0 : i32
    %c0_i32_0 = arith.constant 0 : i32
    %c0_i32_1 = arith.constant 0 : i32
    %c0_i32_2 = arith.constant 0 : i32
    return %arg0, %c0_i32, %c0_i32_0, %c0_i32_1 : i32, i32, i32, i32
  }
  func.func @transform_8(%arg0: i32) -> (i32, i32, i32) {
    %c0_i32 = arith.constant 0 : i32
    %c0_i32_0 = arith.constant 0 : i32
    %c0_i32_1 = arith.constant 0 : i32
    return %arg0, %c0_i32, %c0_i32_0 : i32, i32, i32
  }
  func.func @transform_9(%arg0: i32) -> (i32, i32, i32) {
    %c0_i32 = arith.constant 0 : i32
    %c0_i32_0 = arith.constant 0 : i32
    %c0_i32_1 = arith.constant 0 : i32
    return %arg0, %c0_i32, %c0_i32_0 : i32, i32, i32
  }
}

</mosaic_0001>

<llo_original>
// kernel: biencoder_forward.1
$region0: #{biencoder_forward.1}
  #allocation0 [shape = 'u32[]', space=smem, size = 0x4, offset = 0x4, fixed_abs, tag = 'smem constant byte address 0x4 - core index']
  #allocation1 [shape = 'u32[72,128]{1,0:T(1,128)}', space=vmem, size = 0x9000, scoped, tag = 'internal scratch']
  %s0 = inlined_call_operand.vmem [shape: f32[2,2,8,256], index: 0, kind: input, shape index: {}]
  %s1 = inlined_call_operand.vmem [shape: f32[2,2,8], index: 1, kind: input, shape index: {}]
  %s2 = inlined_call_operand.hbm [shape: f32[2,4,256], index: 2, kind: input, shape index: {}]
  %s3 = inlined_call_operand.hbm [shape: f32[2,2,3328], index: 3, kind: input, shape index: {}]
  %s4 = inlined_call_operand.hbm [shape: bf16[2,2,256,768], index: 4, kind: input, shape index: {}]
  %s5 = inlined_call_operand.hbm [shape: bf16[2,2,256,256], index: 5, kind: input, shape index: {}]
  %s6 = inlined_call_operand.hbm [shape: bf16[2,2,256,1024], index: 6, kind: input, shape index: {}]
  %s7 = inlined_call_operand.hbm [shape: bf16[2,2,1024,256], index: 7, kind: input, shape index: {}]
  %s8 = inlined_call_operand.hbm [shape: bf16[2,256,384], index: 8, kind: input, shape index: {}]
  %s9 = inlined_call_operand.vmem [shape: f32[2,2,128], index: 9, kind: output, shape index: {}]
  %s10 = sld [smem:[#allocation0]]
  $region97: #{biencoder_forward.1} parent=0
    _
  %s12 = ssub.s32 1, %s10
  %s13 = scalar_select 0, %s12, %s10
  $region1: #{biencoder_forward.1} parent=0
    #allocation2 [shape = 'u8[8192]{0}', space=vmem, size = 0x2000, scoped, tag = 'input window, operand 2']
    #allocation3 [shape = 's32[2]{0}', space=sflag, size = 0x8, scoped, tag = 'scoped memory for biencoder_forward.1']
    #allocation4 [shape = 'u8[53248]{0}', space=vmem, size = 0xd000, scoped, tag = 'input window, operand 3']
    #allocation5 [shape = 's32[2]{0}', space=sflag, size = 0x8, scoped, tag = 'scoped memory for biencoder_forward.1']
    #allocation6 [shape = 'u8[1572864]{0}', space=vmem, size = 0x180000, scoped, tag = 'input window, operand 4']
    #allocation7 [shape = 'u8[524288]{0}', space=vmem, size = 0x80000, scoped, tag = 'input window, operand 5']
    #allocation8 [shape = 's32[2]{0}', space=sflag, size = 0x8, scoped, tag = 'scoped memory for biencoder_forward.1']
    #allocation9 [shape = 'u8[2097152]{0}', space=vmem, size = 0x200000, scoped, tag = 'input window, operand 6']
    #allocation10 [shape = 'u8[2097152]{0}', space=vmem, size = 0x200000, scoped, tag = 'input window, operand 7']
    #allocation11 [shape = 's32[2]{0}', space=sflag, size = 0x8, scoped, tag = 'scoped memory for biencoder_forward.1']
    #allocation12 [shape = 'u8[393216]{0}', space=vmem, size = 0x60000, scoped, tag = 'input window, operand 8']
    %14 = vsyncpa [#allocation3], 0
    %s15 = scalar_lea.sflag [#allocation3], 1
    %16 = vsyncpa %s15, 0
    %17 = vsyncpa [#allocation5], 0
    %s18 = scalar_lea.sflag [#allocation5], 1
    %19 = vsyncpa %s18, 0
    %20 = vsyncpa [#allocation8], 0
    %s21 = scalar_lea.sflag [#allocation8], 1
    %22 = vsyncpa %s21, 0
    %23 = vsyncpa [#allocation11], 0
    %s24 = scalar_lea.sflag [#allocation11], 1
    %25 = vsyncpa %s24, 0
    loop: start=0, step=1, limit=4
    $region2: #{biencoder_forward.1} parent=1 // loop_pre_header
      _
    $region3: #{biencoder_forward.1} parent=1 // loop_header
      %s27 = sphi 0, %s31
      %p28 = scmp.ge.s32.totalorder %s27, 4
      %s37 = sphi 0, %s39
      %s40 = sphi 0, %s37
      %s41 = sphi 0, %s40
      %s57 = sphi 0, %s41
      %s63 = sphi 0, %s65
      %s66 = sphi 0, %s63
      %s67 = sphi 0, %s66
      %s83 = sphi 0, %s67
      %s89 = sphi 0, %s91
      %s92 = sphi 0, %s89
      %s93 = sphi 0, %s92
      %s109 = sphi 0, %s93
      %s115 = sphi 0, %s117
      %s118 = sphi 0, %s115
      %s119 = sphi 0, %s118
      %s135 = sphi 0, %s119
      %s141 = sphi 0, %s143
      %s144 = sphi 0, %s141
      %s145 = sphi 0, %s144
      %s161 = sphi 0, %s145
      %s167 = sphi 0, %s169
      %s170 = sphi 0, %s167
      %s171 = sphi 0, %s170
      %s187 = sphi 0, %s171
      %s193 = sphi 0, %s195
      %s196 = sphi 0, %s193
      %s197 = sphi 0, %s196
      %s213 = sphi 0, %s197
      %s219 = sphi 0, %s221
      %s222 = sphi 0, %s219
      %s223 = sphi 0, %s222
      %s239 = sphi 0, %s223
      %s245 = sphi 0, %s247
      %s248 = sphi 0, %s245
      %s249 = sphi 0, %s248
      %s265 = sphi 0, %s249
      %s271 = sphi 0, %s273
      %s274 = sphi 0, %s271
      %s275 = sphi 0, %s274
      %s291 = sphi 0, %s275
    $region4: #{biencoder_forward.1} parent=1 // loop_header_branch
      %30 = sbr.rel (%p28) target = $region8
    $region5: #{biencoder_forward.1} parent=1 // loop_body
      %s32 = ssub.s32 %s27, 1
      %s33 = ssub.s32 %s27, 2
      %s34 = sadd.s32 %s27, 1
      %s35 = ssub.s32 %s27, %s34
      %p36 = scmp.eq.s32.totalorder %s35, 0
      %s38 = sadd.s32 %s37, 1
      %s39 = scalar_select %p36, %s37, %s38
      %p42 = pneg %p36
      %p43 = scmp.eq.s32.totalorder %s27, 1
      %p44 = por %p42, %p43
      %p45 = scmp.ne.s32.totalorder %s37, %s40
      %p46 = scmp.eq.s32.totalorder %s27, 0
      %p47 = por %p45, %p46
      %p48 = scmp.ne.s32.totalorder %s37, %s40
      %p49 = scmp.eq.s32.totalorder %s32, 1
      %p50 = por %p48, %p49
      %p51 = scmp.ne.s32.totalorder %s40, %s41
      %p52 = scmp.eq.s32.totalorder %s32, 0
      %p53 = por %p51, %p52
      %p54 = scmp.ne.s32.totalorder %s40, %s41
      %p55 = scmp.eq.s32.totalorder %s33, 1
      %p56 = por %p54, %p55
      %p58 = scmp.ne.s32.totalorder %s41, %s57
      %p59 = scmp.eq.s32.totalorder %s33, 0
      %p60 = por %p58, %p59
      %s61 = ssub.s32 %s27, %s34
      %p62 = scmp.eq.s32.totalorder %s61, 0
      %s64 = sadd.s32 %s63, 1
      %s65 = scalar_select %p62, %s63, %s64
      %p68 = pneg %p62
      %p69 = scmp.eq.s32.totalorder %s27, 1
      %p70 = por %p68, %p69
      %p71 = scmp.ne.s32.totalorder %s63, %s66
      %p72 = scmp.eq.s32.totalorder %s27, 0
      %p73 = por %p71, %p72
      %p74 = scmp.ne.s32.totalorder %s63, %s66
      %p75 = scmp.eq.s32.totalorder %s32, 1
      %p76 = por %p74, %p75
      %p77 = scmp.ne.s32.totalorder %s66, %s67
      %p78 = scmp.eq.s32.totalorder %s32, 0
      %p79 = por %p77, %p78
      %p80 = scmp.ne.s32.totalorder %s66, %s67
      %p81 = scmp.eq.s32.totalorder %s33, 1
      %p82 = por %p80, %p81
      %p84 = scmp.ne.s32.totalorder %s67, %s83
      %p85 = scmp.eq.s32.totalorder %s33, 0
      %p86 = por %p84, %p85
      %s87 = ssub.s32 %s27, %s34
      %p88 = scmp.eq.s32.totalorder %s87, 0
      %s90 = sadd.s32 %s89, 1
      %s91 = scalar_select %p88, %s89, %s90
      %p94 = pneg %p88
      %p95 = scmp.eq.s32.totalorder %s27, 1
      %p96 = por %p94, %p95
      %p97 = scmp.ne.s32.totalorder %s89, %s92
      %p98 = scmp.eq.s32.totalorder %s27, 0
      %p99 = por %p97, %p98
      %p100 = scmp.ne.s32.totalorder %s89, %s92
      %p101 = scmp.eq.s32.totalorder %s32, 1
      %p102 = por %p100, %p101
      %p103 = scmp.ne.s32.totalorder %s92, %s93
      %p104 = scmp.eq.s32.totalorder %s32, 0
      %p105 = por %p103, %p104
      %p106 = scmp.ne.s32.totalorder %s92, %s93
      %p107 = scmp.eq.s32.totalorder %s33, 1
      %p108 = por %p106, %p107
      %p110 = scmp.ne.s32.totalorder %s93, %s109
      %p111 = scmp.eq.s32.totalorder %s33, 0
      %p112 = por %p110, %p111
      %s113 = ssub.s32 %s27, %s34
      %p114 = scmp.eq.s32.totalorder %s113, 0
      %s116 = sadd.s32 %s115, 1
      %s117 = scalar_select %p114, %s115, %s116
      %p120 = pneg %p114
      %p121 = scmp.eq.s32.totalorder %s27, 1
      %p122 = por %p120, %p121
      %p123 = scmp.ne.s32.totalorder %s115, %s118
      %p124 = scmp.eq.s32.totalorder %s27, 0
      %p125 = por %p123, %p124
      %p126 = scmp.ne.s32.totalorder %s115, %s118
      %p127 = scmp.eq.s32.totalorder %s32, 1
      %p128 = por %p126, %p127
      %p129 = scmp.ne.s32.totalorder %s118, %s119
      %p130 = scmp.eq.s32.totalorder %s32, 0
      %p131 = por %p129, %p130
      %p132 = scmp.ne.s32.totalorder %s118, %s119
      %p133 = scmp.eq.s32.totalorder %s33, 1
      %p134 = por %p132, %p133
      %p136 = scmp.ne.s32.totalorder %s119, %s135
      %p137 = scmp.eq.s32.totalorder %s33, 0
      %p138 = por %p136, %p137
      %s139 = ssub.s32 %s27, %s34
      %p140 = scmp.eq.s32.totalorder %s139, 0
      %s142 = sadd.s32 %s141, 1
      %s143 = scalar_select %p140, %s141, %s142
      %p146 = pneg %p140
      %p147 = scmp.eq.s32.totalorder %s27, 1
      %p148 = por %p146, %p147
      %p149 = scmp.ne.s32.totalorder %s141, %s144
      %p150 = scmp.eq.s32.totalorder %s27, 0
      %p151 = por %p149, %p150
      %p152 = scmp.ne.s32.totalorder %s141, %s144
      %p153 = scmp.eq.s32.totalorder %s32, 1
      %p154 = por %p152, %p153
      %p155 = scmp.ne.s32.totalorder %s144, %s145
      %p156 = scmp.eq.s32.totalorder %s32, 0
      %p157 = por %p155, %p156
      %p158 = scmp.ne.s32.totalorder %s144, %s145
      %p159 = scmp.eq.s32.totalorder %s33, 1
      %p160 = por %p158, %p159
      %p162 = scmp.ne.s32.totalorder %s145, %s161
      %p163 = scmp.eq.s32.totalorder %s33, 0
      %p164 = por %p162, %p163
      %s165 = ssub.s32 %s27, %s34
      %p166 = scmp.eq.s32.totalorder %s165, 0
      %s168 = sadd.s32 %s167, 1
      %s169 = scalar_select %p166, %s167, %s168
      %p172 = pneg %p166
      %p173 = scmp.eq.s32.totalorder %s27, 1
      %p174 = por %p172, %p173
      %p175 = scmp.ne.s32.totalorder %s167, %s170
      %p176 = scmp.eq.s32.totalorder %s27, 0
      %p177 = por %p175, %p176
      %p178 = scmp.ne.s32.totalorder %s167, %s170
      %p179 = scmp.eq.s32.totalorder %s32, 1
      %p180 = por %p178, %p179
      %p181 = scmp.ne.s32.totalorder %s170, %s171
      %p182 = scmp.eq.s32.totalorder %s32, 0
      %p183 = por %p181, %p182
      %p184 = scmp.ne.s32.totalorder %s170, %s171
      %p185 = scmp.eq.s32.totalorder %s33, 1
      %p186 = por %p184, %p185
      %p188 = scmp.ne.s32.totalorder %s171, %s187
      %p189 = scmp.eq.s32.totalorder %s33, 0
      %p190 = por %p188, %p189
      %s191 = ssub.s32 %s27, %s34
      %p192 = scmp.eq.s32.totalorder %s191, 0
      %s194 = sadd.s32 %s193, 1
      %s195 = scalar_select %p192, %s193, %s194
      %p198 = pneg %p192
      %p199 = scmp.eq.s32.totalorder %s27, 1
      %p200 = por %p198, %p199
      %p201 = scmp.ne.s32.totalorder %s193, %s196
      %p202 = scmp.eq.s32.totalorder %s27, 0
      %p203 = por %p201, %p202
      %p204 = scmp.ne.s32.totalorder %s193, %s196
      %p205 = scmp.eq.s32.totalorder %s32, 1
      %p206 = por %p204, %p205
      %p207 = scmp.ne.s32.totalorder %s196, %s197
      %p208 = scmp.eq.s32.totalorder %s32, 0
      %p209 = por %p207, %p208
      %p210 = scmp.ne.s32.totalorder %s196, %s197
      %p211 = scmp.eq.s32.totalorder %s33, 1
      %p212 = por %p210, %p211
      %p214 = scmp.ne.s32.totalorder %s197, %s213
      %p215 = scmp.eq.s32.totalorder %s33, 0
      %p216 = por %p214, %p215
      %s217 = ssub.s32 %s27, %s34
      %p218 = scmp.eq.s32.totalorder %s217, 0
      %s220 = sadd.s32 %s219, 1
      %s221 = scalar_select %p218, %s219, %s220
      %p224 = pneg %p218
      %p225 = scmp.eq.s32.totalorder %s27, 1
      %p226 = por %p224, %p225
      %p227 = scmp.ne.s32.totalorder %s219, %s222
      %p228 = scmp.eq.s32.totalorder %s27, 0
      %p229 = por %p227, %p228
      %p230 = scmp.ne.s32.totalorder %s219, %s222
      %p231 = scmp.eq.s32.totalorder %s32, 1
      %p232 = por %p230, %p231
      %p233 = scmp.ne.s32.totalorder %s222, %s223
      %p234 = scmp.eq.s32.totalorder %s32, 0
      %p235 = por %p233, %p234
      %p236 = scmp.ne.s32.totalorder %s222, %s223
      %p237 = scmp.eq.s32.totalorder %s33, 1
      %p238 = por %p236, %p237
      %p240 = scmp.ne.s32.totalorder %s223, %s239
      %p241 = scmp.eq.s32.totalorder %s33, 0
      %p242 = por %p240, %p241
      %s243 = ssub.s32 %s27, %s34
      %p244 = scmp.eq.s32.totalorder %s243, 0
      %s246 = sadd.s32 %s245, 1
      %s247 = scalar_select %p244, %s245, %s246
      %p250 = pneg %p244
      %p251 = scmp.eq.s32.totalorder %s27, 1
      %p252 = por %p250, %p251
      %p253 = scmp.ne.s32.totalorder %s245, %s248
      %p254 = scmp.eq.s32.totalorder %s27, 0
      %p255 = por %p253, %p254
      %p256 = scmp.ne.s32.totalorder %s245, %s248
      %p257 = scmp.eq.s32.totalorder %s32, 1
      %p258 = por %p256, %p257
      %p259 = scmp.ne.s32.totalorder %s248, %s249
      %p260 = scmp.eq.s32.totalorder %s32, 0
      %p261 = por %p259, %p260
      %p262 = scmp.ne.s32.totalorder %s248, %s249
      %p263 = scmp.eq.s32.totalorder %s33, 1
      %p264 = por %p262, %p263
      %p266 = scmp.ne.s32.totalorder %s249, %s265
      %p267 = scmp.eq.s32.totalorder %s33, 0
      %p268 = por %p266, %p267
      %s269 = ssub.s32 %s27, %s34
      %p270 = scmp.eq.s32.totalorder %s269, 0
      %s272 = sadd.s32 %s271, 1
      %s273 = scalar_select %p270, %s271, %s272
      %p276 = pneg %p270
      %p277 = scmp.eq.s32.totalorder %s27, 1
      %p278 = por %p276, %p277
      %p279 = scmp.ne.s32.totalorder %s271, %s274
      %p280 = scmp.eq.s32.totalorder %s27, 0
      %p281 = por %p279, %p280
      %p282 = scmp.ne.s32.totalorder %s271, %s274
      %p283 = scmp.eq.s32.totalorder %s32, 1
      %p284 = por %p282, %p283
      %p285 = scmp.ne.s32.totalorder %s274, %s275
      %p286 = scmp.eq.s32.totalorder %s32, 0
      %p287 = por %p285, %p286
      %p288 = scmp.ne.s32.totalorder %s274, %s275
      %p289 = scmp.eq.s32.totalorder %s33, 1
      %p290 = por %p288, %p289
      %p292 = scmp.ne.s32.totalorder %s275, %s291
      %p293 = scmp.eq.s32.totalorder %s33, 0
      %p294 = por %p292, %p293
      %p295 = scmp.le.s32.totalorder 1, %s27
      %p296 = scmp.lt.s32.totalorder %s27, 3
      %p297 = pnand %p295, %p296
      %p298 = pneg %p297
      // Predicated region
      $region9: #{biencoder_forward.1} parent=5 // pred_check
        _
      $region10: #{biencoder_forward.1} parent=5 // pred_check_branch
        %300 = sbr.rel (%p297) target = $region12
      $region11: #{biencoder_forward.1} parent=5 // pred_region
        %s301 = ssub.s32 %s27, 1
      $region12: #{biencoder_forward.1} parent=5 // pred_fallthru
        _
      %p302 = scmp.lt.s32.totalorder %s27, 2
      // Predicated region
      $region13: #{biencoder_forward.1} parent=5 // pred_check
        %p303 = pneg %p302
      $region14: #{biencoder_forward.1} parent=5 // pred_check_branch
        %305 = sbr.rel (%p303) target = $region16
      $region15: #{biencoder_forward.1} parent=5 // pred_region
        // Predicated region
        $region17: #{biencoder_forward.1} parent=15 // pred_check
          %p306 = pneg %p47
        $region18: #{biencoder_forward.1} parent=15 // pred_check_branch
          %308 = sbr.rel (%p306) target = $region20
        $region19: #{biencoder_forward.1} parent=15 // pred_region
          %p309 = scmp.lt.s32.totalorder %s27, 1
          %s310 = scalar_select %p309, %s27, 1
          %s311 = smul.addr %s310, 4
          %s312 = smul.addr %s311, 8
          %s313 = scalar_lea.vmem %s0, %s312
        $region20: #{biencoder_forward.1} parent=15 // pred_fallthru
          _
        // Predicated region
        $region21: #{biencoder_forward.1} parent=15 // pred_check
          %p314 = pneg %p73
        $region22: #{biencoder_forward.1} parent=15 // pred_check_branch
          %316 = sbr.rel (%p314) target = $region24
        $region23: #{biencoder_forward.1} parent=15 // pred_region
          %p317 = scmp.lt.s32.totalorder %s27, 1
          %s318 = scalar_select %p317, %s27, 1
          %s319 = smul.addr %s318, 2
          %s320 = scalar_lea.vmem %s1, %s319
        $region24: #{biencoder_forward.1} parent=15 // pred_fallthru
          _
        // Predicated region
        $region25: #{biencoder_forward.1} parent=15 // pred_check
          %p321 = pneg %p99
        $region26: #{biencoder_forward.1} parent=15 // pred_check_branch
          %323 = sbr.rel (%p321) target = $region28
        $region27: #{biencoder_forward.1} parent=15 // pred_region
          %s324 = sand.u32 %s89, 1
          %s325 = scalar_lea.sflag [#allocation3], %s324
          %s326 = sand.u32 %s89, 1
          %s327 = smul.addr %s326, 8
          %s328 = scalar_lea.vmem [#allocation2], %s327
          %330 = vsyncadd %s325, 0
          %s331 = smul.addr %s27, 2
          %s332 = smul.addr %s331, 4
          %s333 = scalar_lea.hbm %s2, %s332
          %s335 = sshll.u32 %s333, 4
          %s336 = int_to_ptr.hbm [resolvable:$true] %s335
          %s337 = sshll.u32 %s328, 4
          %s338 = int_to_ptr.vmem [resolvable:$true] %s337
          %340 = dma.hbm_to_vmem [thread:$0]  %s336, 128, %s338, %s325
        $region28: #{biencoder_forward.1} parent=15 // pred_fallthru
          _
        // Predicated region
        $region29: #{biencoder_forward.1} parent=15 // pred_check
          %p341 = pneg %p125
        $region30: #{biencoder_forward.1} parent=15 // pred_check_branch
          %343 = sbr.rel (%p341) target = $region32
        $region31: #{biencoder_forward.1} parent=15 // pred_region
          %s344 = sand.u32 %s27, 1
          %s345 = scalar_lea.sflag [#allocation5], %s344
          %s346 = sand.u32 %s115, 1
          %s347 = smul.addr %s346, 52
          %s348 = scalar_lea.vmem [#allocation4], %s347
          %350 = vsyncadd %s345, 0
          %s351 = smul.addr %s27, 26
          %s352 = smul.addr %s351, 2
          %s353 = scalar_lea.hbm %s3, %s352
          %s355 = sshll.u32 %s353, 4
          %s356 = int_to_ptr.hbm [resolvable:$true] %s355
          %s357 = sshll.u32 %s348, 4
          %s358 = int_to_ptr.vmem [resolvable:$true] %s357
          %360 = dma.hbm_to_vmem [thread:$0]  %s356, 832, %s358, %s345
        $region32: #{biencoder_forward.1} parent=15 // pred_fallthru
          _
        // Predicated region
        $region33: #{biencoder_forward.1} parent=15 // pred_check
          %p361 = pneg %p151
        $region34: #{biencoder_forward.1} parent=15 // pred_check_branch
          %363 = sbr.rel (%p361) target = $region36
        $region35: #{biencoder_forward.1} parent=15 // pred_region
          %s364 = sand.u32 %s27, 1
          %s365 = scalar_lea.sflag [#allocation5], %s364
          %s366 = sand.u32 %s141, 1
          %s367 = smul.addr %s366, 1536
          %s368 = scalar_lea.vmem [#allocation6], %s367
          %370 = vsyncadd %s365, 0
          %s371 = smul.addr %s27, 384
          %s372 = smul.addr %s371, 4
          %s373 = scalar_lea.hbm %s4, %s372
          %s374 = sshll.u32 %s373, 4
          %s375 = int_to_ptr.hbm [resolvable:$true] %s374
          %s376 = sshll.u32 %s368, 4
          %s377 = int_to_ptr.vmem [resolvable:$true] %s376
          %382 = dma.hbm_to_vmem [thread:$0]  %s375, 24576, %s377, %s365, 384, 384, 24
        $region36: #{biencoder_forward.1} parent=15 // pred_fallthru
          _
        // Predicated region
        $region37: #{biencoder_forward.1} parent=15 // pred_check
          %p383 = pneg %p177
        $region38: #{biencoder_forward.1} parent=15 // pred_check_branch
          %385 = sbr.rel (%p383) target = $region40
        $region39: #{biencoder_forward.1} parent=15 // pred_region
          %s386 = sand.u32 %s27, 1
          %s387 = scalar_lea.sflag [#allocation8], %s386
          %s388 = sand.u32 %s167, 1
          %s389 = smul.addr %s388, 512
          %s390 = scalar_lea.vmem [#allocation7], %s389
          %392 = vsyncadd %s387, 0
          %s393 = smul.addr %s27, 128
          %s394 = smul.addr %s393, 4
          %s395 = scalar_lea.hbm %s5, %s394
          %s396 = sshll.u32 %s395, 4
          %s397 = int_to_ptr.hbm [resolvable:$true] %s396
          %s398 = sshll.u32 %s390, 4
          %s399 = int_to_ptr.vmem [resolvable:$true] %s398
          %404 = dma.hbm_to_vmem [thread:$0]  %s397, 8192, %s399, %s387, 128, 128, 8
        $region40: #{biencoder_forward.1} parent=15 // pred_fallthru
          _
        // Predicated region
        $region41: #{biencoder_forward.1} parent=15 // pred_check
          %p405 = pneg %p203
        $region42: #{biencoder_forward.1} parent=15 // pred_check_branch
          %407 = sbr.rel (%p405) target = $region44
        $region43: #{biencoder_forward.1} parent=15 // pred_region
          %s408 = sand.u32 %s27, 1
          %s409 = scalar_lea.sflag [#allocation8], %s408
          %s410 = sand.u32 %s193, 1
          %s411 = smul.addr %s410, 2048
          %s412 = scalar_lea.vmem [#allocation9], %s411
          %414 = vsyncadd %s409, 0
          %s415 = smul.addr %s27, 512
          %s416 = smul.addr %s415, 4
          %s417 = scalar_lea.hbm %s6, %s416
          %s418 = sshll.u32 %s417, 4
          %s419 = int_to_ptr.hbm [resolvable:$true] %s418
          %s420 = sshll.u32 %s412, 4
          %s421 = int_to_ptr.vmem [resolvable:$true] %s420
          %426 = dma.hbm_to_vmem [thread:$0]  %s419, 32768, %s421, %s409, 512, 512, 32
        $region44: #{biencoder_forward.1} parent=15 // pred_fallthru
          _
        // Predicated region
        $region45: #{biencoder_forward.1} parent=15 // pred_check
          %p427 = pneg %p229
        $region46: #{biencoder_forward.1} parent=15 // pred_check_branch
          %429 = sbr.rel (%p427) target = $region48
        $region47: #{biencoder_forward.1} parent=15 // pred_region
          %s430 = sand.u32 %s27, 1
          %s431 = scalar_lea.sflag [#allocation11], %s430
          %s432 = sand.u32 %s219, 1
          %s433 = smul.addr %s432, 2048
          %s434 = scalar_lea.vmem [#allocation10], %s433
          %436 = vsyncadd %s431, 0
          %s437 = smul.addr %s27, 512
          %s438 = smul.addr %s437, 4
          %s439 = scalar_lea.hbm %s7, %s438
          %s440 = sshll.u32 %s439, 4
          %s441 = int_to_ptr.hbm [resolvable:$true] %s440
          %s442 = sshll.u32 %s434, 4
          %s443 = int_to_ptr.vmem [resolvable:$true] %s442
          %448 = dma.hbm_to_vmem [thread:$0]  %s441, 32768, %s443, %s431, 128, 128, 8
        $region48: #{biencoder_forward.1} parent=15 // pred_fallthru
          _
        // Predicated region
        $region49: #{biencoder_forward.1} parent=15 // pred_check
          %p449 = pneg %p255
        $region50: #{biencoder_forward.1} parent=15 // pred_check_branch
          %451 = sbr.rel (%p449) target = $region52
        $region51: #{biencoder_forward.1} parent=15 // pred_region
          %s452 = sand.u32 %s27, 1
          %s453 = scalar_lea.sflag [#allocation11], %s452
          %s454 = sand.u32 %s245, 1
          %s455 = smul.addr %s454, 384
          %s456 = scalar_lea.vmem [#allocation12], %s455
          %458 = vsyncadd %s453, 0
          %s459 = smul.addr %s27, 96
          %s460 = smul.addr %s459, 4
          %s461 = scalar_lea.hbm %s8, %s460
          %s462 = sshll.u32 %s461, 4
          %s463 = int_to_ptr.hbm [resolvable:$true] %s462
          %s464 = sshll.u32 %s456, 4
          %s465 = int_to_ptr.vmem [resolvable:$true] %s464
          %470 = dma.hbm_to_vmem [thread:$0]  %s463, 6144, %s465, %s453, 192, 192, 12
        $region52: #{biencoder_forward.1} parent=15 // pred_fallthru
          _
      $region16: #{biencoder_forward.1} parent=5 // pred_fallthru
        _
      %p471 = scmp.le.s32.totalorder 1, %s27
      %p472 = scmp.lt.s32.totalorder %s27, 3
      %p473 = pnand %p471, %p472
      %p474 = pneg %p473
      // Predicated region
      $region53: #{biencoder_forward.1} parent=5 // pred_check
        _
      $region54: #{biencoder_forward.1} parent=5 // pred_check_branch
        %476 = sbr.rel (%p473) target = $region56
      $region55: #{biencoder_forward.1} parent=5 // pred_region
        %s477 = ssub.s32 %s27, 1
        %s478 = sand.u32 %s92, 1
        %s479 = scalar_lea.sflag [#allocation3], %s478
        %s480 = sand.u32 %s92, 1
        %s481 = smul.addr %s480, 8
        %s482 = scalar_lea.vmem [#allocation2], %s481
        // Predicated region
        $region57: #{biencoder_forward.1} parent=55 // pred_check
          %p483 = pneg %p105
        $region58: #{biencoder_forward.1} parent=55 // pred_check_branch
          %485 = sbr.rel (%p483) target = $region60
        $region59: #{biencoder_forward.1} parent=55 // pred_region
          %487 = dma.done %s479, 128
        $region60: #{biencoder_forward.1} parent=55 // pred_fallthru
          _
        %s488 = sand.u32 %s32, 1
        %s489 = scalar_lea.sflag [#allocation5], %s488
        %s490 = sand.u32 %s118, 1
        %s491 = smul.addr %s490, 52
        %s492 = scalar_lea.vmem [#allocation4], %s491
        // Predicated region
        $region61: #{biencoder_forward.1} parent=55 // pred_check
          %p493 = pneg %p131
        $region62: #{biencoder_forward.1} parent=55 // pred_check_branch
          %495 = sbr.rel (%p493) target = $region64
        $region63: #{biencoder_forward.1} parent=55 // pred_region
          %497 = dma.done %s489, 832
        $region64: #{biencoder_forward.1} parent=55 // pred_fallthru
          _
        %s498 = sand.u32 %s32, 1
        %s499 = scalar_lea.sflag [#allocation5], %s498
        %s500 = sand.u32 %s144, 1
        %s501 = smul.addr %s500, 1536
        %s502 = scalar_lea.vmem [#allocation6], %s501
        // Predicated region
        $region65: #{biencoder_forward.1} parent=55 // pred_check
          %p503 = pneg %p157
        $region66: #{biencoder_forward.1} parent=55 // pred_check_branch
          %505 = sbr.rel (%p503) target = $region68
        $region67: #{biencoder_forward.1} parent=55 // pred_region
          %507 = dma.done %s499, 24576
        $region68: #{biencoder_forward.1} parent=55 // pred_fallthru
          _
        %s508 = sand.u32 %s32, 1
        %s509 = scalar_lea.sflag [#allocation8], %s508
        %s510 = sand.u32 %s170, 1
        %s511 = smul.addr %s510, 512
        %s512 = scalar_lea.vmem [#allocation7], %s511
        // Predicated region
        $region69: #{biencoder_forward.1} parent=55 // pred_check
          %p513 = pneg %p183
        $region70: #{biencoder_forward.1} parent=55 // pred_check_branch
          %515 = sbr.rel (%p513) target = $region72
        $region71: #{biencoder_forward.1} parent=55 // pred_region
          %517 = dma.done %s509, 8192
        $region72: #{biencoder_forward.1} parent=55 // pred_fallthru
          _
        %s518 = sand.u32 %s32, 1
        %s519 = scalar_lea.sflag [#allocation8], %s518
        %s520 = sand.u32 %s196, 1
        %s521 = smul.addr %s520, 2048
        %s522 = scalar_lea.vmem [#allocation9], %s521
        // Predicated region
        $region73: #{biencoder_forward.1} parent=55 // pred_check
          %p523 = pneg %p209
        $region74: #{biencoder_forward.1} parent=55 // pred_check_branch
          %525 = sbr.rel (%p523) target = $region76
        $region75: #{biencoder_forward.1} parent=55 // pred_region
          %527 = dma.done %s519, 32768
        $region76: #{biencoder_forward.1} parent=55 // pred_fallthru
          _
        %s528 = sand.u32 %s32, 1
        %s529 = scalar_lea.sflag [#allocation11], %s528
        %s530 = sand.u32 %s222, 1
        %s531 = smul.addr %s530, 2048
        %s532 = scalar_lea.vmem [#allocation10], %s531
        // Predicated region
        $region77: #{biencoder_forward.1} parent=55 // pred_check
          %p533 = pneg %p235
        $region78: #{biencoder_forward.1} parent=55 // pred_check_branch
          %535 = sbr.rel (%p533) target = $region80
        $region79: #{biencoder_forward.1} parent=55 // pred_region
          %537 = dma.done %s529, 32768
        $region80: #{biencoder_forward.1} parent=55 // pred_fallthru
          _
        %s538 = sand.u32 %s32, 1
        %s539 = scalar_lea.sflag [#allocation11], %s538
        %s540 = sand.u32 %s248, 1
        %s541 = smul.addr %s540, 384
        %s542 = scalar_lea.vmem [#allocation12], %s541
        // Predicated region
        $region81: #{biencoder_forward.1} parent=55 // pred_check
          %p543 = pneg %p261
        $region82: #{biencoder_forward.1} parent=55 // pred_check_branch
          %545 = sbr.rel (%p543) target = $region84
        $region83: #{biencoder_forward.1} parent=55 // pred_region
          %547 = dma.done %s539, 6144
        $region84: #{biencoder_forward.1} parent=55 // pred_fallthru
          _
        %p548 = scmp.lt.s32.totalorder %s32, 1
        %s549 = scalar_select %p548, %s32, 1
        %s550 = smul.addr %s549, 4
        %s551 = smul.addr %s550, 8
        %s552 = scalar_lea.vmem %s0, %s551
        %p553 = pneg %p53
        %p554 = pneg %p50
        %p555 = scmp.lt.s32.totalorder %s32, 1
        %s556 = scalar_select %p555, %s32, 1
        %s557 = smul.addr %s556, 2
        %s558 = scalar_lea.vmem %s1, %s557
        %p559 = pneg %p79
        %p560 = pneg %p76
        %s561 = sand.u32 %s92, 1
        %s562 = scalar_lea.sflag [#allocation3], %s561
        %s563 = sand.u32 %s92, 1
        %s564 = smul.addr %s563, 8
        %s565 = scalar_lea.vmem [#allocation2], %s564
        %p566 = pneg %p105
        %p567 = pneg %p102
        %s568 = sand.u32 %s32, 1
        %s569 = scalar_lea.sflag [#allocation5], %s568
        %s570 = sand.u32 %s118, 1
        %s571 = smul.addr %s570, 52
        %s572 = scalar_lea.vmem [#allocation4], %s571
        %p573 = pneg %p131
        %p574 = pneg %p128
        %s575 = sand.u32 %s32, 1
        %s576 = scalar_lea.sflag [#allocation5], %s575
        %s577 = sand.u32 %s144, 1
        %s578 = smul.addr %s577, 1536
        %s579 = scalar_lea.vmem [#allocation6], %s578
        %p580 = pneg %p157
        %p581 = pneg %p154
        %s582 = sand.u32 %s32, 1
        %s583 = scalar_lea.sflag [#allocation8], %s582
        %s584 = sand.u32 %s170, 1
        %s585 = smul.addr %s584, 512
        %s586 = scalar_lea.vmem [#allocation7], %s585
        %p587 = pneg %p183
        %p588 = pneg %p180
        %s589 = sand.u32 %s32, 1
        %s590 = scalar_lea.sflag [#allocation8], %s589
        %s591 = sand.u32 %s196, 1
        %s592 = smul.addr %s591, 2048
        %s593 = scalar_lea.vmem [#allocation9], %s592
        %p594 = pneg %p209
        %p595 = pneg %p206
        %s596 = sand.u32 %s32, 1
        %s597 = scalar_lea.sflag [#allocation11], %s596
        %s598 = sand.u32 %s222, 1
        %s599 = smul.addr %s598, 2048
        %s600 = scalar_lea.vmem [#allocation10], %s599
        %p601 = pneg %p235
        %p602 = pneg %p232
        %s603 = sand.u32 %s32, 1
        %s604 = scalar_lea.sflag [#allocation11], %s603
        %s605 = sand.u32 %s248, 1
        %s606 = smul.addr %s605, 384
        %s607 = scalar_lea.vmem [#allocation12], %s606
        %p608 = pneg %p261
        %p609 = pneg %p258
        %p610 = pneg %p287
        %p611 = pneg %p284
        %p612 = scmp.lt.s32.totalorder %s32, 1
        %s613 = scalar_select %p612, %s32, 1
        %s614 = smul.addr %s613, 2
        %s615 = scalar_lea.vmem %s9, %s614
        %p616 = scmp.lt.s32.totalorder %s32, 1
        %s617 = scalar_select %p616, %s32, 1
        %s618 = smul.addr %s617, 4
        %s619 = smul.addr %s618, 8
        %s620 = scalar_lea.vmem %s0, %s619
        %p621 = scmp.lt.s32.totalorder %s32, 1
        %s622 = scalar_select %p621, %s32, 1
        %s623 = smul.addr %s622, 2
        %s624 = scalar_lea.vmem %s1, %s623
        %p625 = scmp.lt.s32.totalorder %s32, 1
        %s626 = scalar_select %p625, %s32, 1
        %s627 = smul.addr %s626, 2
        %s628 = scalar_lea.vmem %s9, %s627
        %v630 = vld [vmem:[%s482] sm:$0xff]
        %v631 = vld [vmem:[%s620] sm:$0xff]
        %v632 = vld [vmem:[%s620 + $0x8] sm:$0xff]
        %v633 = vld [vmem:[%s620 + $0x10] sm:$0xff]
        %v634 = vld [vmem:[%s620 + $0x18] sm:$0xff]
        %v635 = vadd.f32 %v631, %v632
        %636 = vadd.xlane.f32.xlu0 %v635
        %v637 = vpop.xlane.xlu0 %636
        %v638 = vadd.f32 %v633, %v634
        %639 = vadd.xlane.f32.xlu0 %v638
        %v640 = vpop.xlane.xlu0 %639
        %v641 = vrcp.pop 256.0
        %v642 = vmul.f32 256.0, %v641
        %v643 = vsub.f32 1.0, %v642
        %v644 = vmul.f32 %v641, %v643
        %v645 = vadd.f32 %v641, %v644
        %vm646 = vweird.f32 %v641
        %v647 = vsel %vm646, %v641, %v645
        %v648 = vmul.f32 %v637, %v647
        %v649 = vmul.f32 %v640, %v647
        %v650 = vsub.f32 %v631, %v648
        %v651 = vsub.f32 %v632, %v648
        %v652 = vsub.f32 %v633, %v649
        %v653 = vsub.f32 %v634, %v649
        %v654 = vmul.f32 %v650, %v650
        %v655 = vmul.f32 %v651, %v651
        %v656 = vmul.f32 %v652, %v652
        %v657 = vmul.f32 %v653, %v653
        %v658 = vadd.f32 %v654, %v655
        %659 = vadd.xlane.f32.xlu0 %v658
        %v660 = vpop.xlane.xlu0 %659
        %v661 = vadd.f32 %v656, %v657
        %662 = vadd.xlane.f32.xlu0 %v661
        %v663 = vpop.xlane.xlu0 %662
        %v664 = vmul.f32 %v660, %v647
        %v665 = vmul.f32 %v663, %v647
        %v666 = vadd.f32 %v664, 1e-12
        %v667 = vadd.f32 %v665, 1e-12
        %v668 = vrsqrt.pop %v666
        %v669 = vmul.f32 %v668, %v666
        %v670 = vmul.f32 %v669, %v668
        %v671 = vmul.f32 0.5, %v670
        %v672 = vsub.f32 1.5, %v671
        %v673 = vmul.f32 %v668, %v672
        %vm674 = vweird.f32 %v666
        %vm675 = vweird.f32 %v668
        %vm676 = vmor %vm674, %vm675
        %v677 = vsel %vm676, %v668, %v673
        %v678 = vrsqrt.pop %v667
        %v679 = vmul.f32 %v678, %v667
        %v680 = vmul.f32 %v679, %v678
        %v681 = vmul.f32 0.5, %v680
        %v682 = vsub.f32 1.5, %v681
        %v683 = vmul.f32 %v678, %v682
        %vm684 = vweird.f32 %v667
        %vm685 = vweird.f32 %v678
        %vm686 = vmor %vm684, %vm685
        %v687 = vsel %vm686, %v678, %v683
        %v688 = vmul.f32 %v650, %v677
        %v689 = vmul.f32 %v651, %v677
        %v690 = vmul.f32 %v652, %v687
        %v691 = vmul.f32 %v653, %v687
        %v693 = vperm.slane %v630, 0
        %v694 = vperm.slane %v630, 4
        %v697 = vperm.slane %v693, 0
        %v698 = vperm.slane %v694, 0
        %v699 = vmul.f32 %v688, %v697
        %v700 = vmul.f32 %v689, %v698
        %v701 = vmul.f32 %v690, %v697
        %v702 = vmul.f32 %v691, %v698
        %v703 = vperm.slane %v630, 1
        %v704 = vperm.slane %v630, 5
        %v707 = vperm.slane %v703, 1
        %v708 = vperm.slane %v704, 1
        %v709 = vadd.f32 %v699, %v707
        %v710 = vadd.f32 %v700, %v708
        %v711 = vadd.f32 %v701, %v707
        %v712 = vadd.f32 %v702, %v708
        %v713 = vld [vmem:[%s624] sm:$0x3]
        %v714 = vsub.f32 1.0, %v713
        %v715 = vmul.f32 %v714, -10000.0
        %v717 = vrot.slane %v715, 1
        %v718 = vperm.slane %v715, 0
        %v719 = vperm.slane %v717, 0
        %v722 = vld [vmem:[%s492] ss:$2 sm:$0xff]
        %s723 = scalar_lea.vmem %s492, 16 [#allocation4]
        %v724 = vld [vmem:[%s723] ss:$2 sm:$0xff]
        %s725 = scalar_lea.vmem %s492, 32 [#allocation4]
        %v726 = vld [vmem:[%s725] ss:$2 sm:$0xff]
        %s727 = scalar_lea.vmem %s492, 48 [#allocation4]
        %v728 = vld [vmem:[%s727] ss:$2 sm:$0x3]
        %v729 = vpack.c.bf16 %v711, %v709
        %v730 = vpack.c.bf16 %v712, %v710
        %v731 = vld [vmem:[%s502] sm:$0xff]
        %v732 = vld [vmem:[%s502 + $0x8] sm:$0xff]
        %v733 = vld [vmem:[%s502 + $0x10] sm:$0xff]
        %v734 = vld [vmem:[%s502 + $0x18] sm:$0xff]
        %v735 = vld [vmem:[%s502 + $0x20] sm:$0xff]
        %v736 = vld [vmem:[%s502 + $0x28] sm:$0xff]
        %v737 = vld [vmem:[%s502 + $0x30] sm:$0xff]
        %v738 = vld [vmem:[%s502 + $0x38] sm:$0xff]
        %v739 = vld [vmem:[%s502 + $0x40] sm:$0xff]
        %v740 = vld [vmem:[%s502 + $0x48] sm:$0xff]
        %v741 = vld [vmem:[%s502 + $0x50] sm:$0xff]
        %v742 = vld [vmem:[%s502 + $0x58] sm:$0xff]
        %v743 = vld [vmem:[%s502 + $0x60] sm:$0xff]
        %v744 = vld [vmem:[%s502 + $0x68] sm:$0xff]
        %v745 = vld [vmem:[%s502 + $0x70] sm:$0xff]
        %v746 = vld [vmem:[%s502 + $0x78] sm:$0xff]
        %v747 = vld [vmem:[%s502 + $0x80] sm:$0xff]
        %v748 = vld [vmem:[%s502 + $0x88] sm:$0xff]
        %v749 = vld [vmem:[%s502 + $0x90] sm:$0xff]
        %v750 = vld [vmem:[%s502 + $0x98] sm:$0xff]
        %v751 = vld [vmem:[%s502 + $0xa0] sm:$0xff]
        %v752 = vld [vmem:[%s502 + $0xa8] sm:$0xff]
        %v753 = vld [vmem:[%s502 + $0xb0] sm:$0xff]
        %v754 = vld [vmem:[%s502 + $0xb8] sm:$0xff]
        %v755 = vld [vmem:[%s502 + $0xc0] sm:$0xff]
        %v756 = vld [vmem:[%s502 + $0xc8] sm:$0xff]
        %v757 = vld [vmem:[%s502 + $0xd0] sm:$0xff]
        %v758 = vld [vmem:[%s502 + $0xd8] sm:$0xff]
        %v759 = vld [vmem:[%s502 + $0xe0] sm:$0xff]
        %v760 = vld [vmem:[%s502 + $0xe8] sm:$0xff]
        %v761 = vld [vmem:[%s502 + $0xf0] sm:$0xff]
        %v762 = vld [vmem:[%s502 + $0xf8] sm:$0xff]
        %v763 = vld [vmem:[%s502 + $0x100] sm:$0xff]
        %v764 = vld [vmem:[%s502 + $0x108] sm:$0xff]
        %v765 = vld [vmem:[%s502 + $0x110] sm:$0xff]
        %v766 = vld [vmem:[%s502 + $0x118] sm:$0xff]
        %v767 = vld [vmem:[%s502 + $0x120] sm:$0xff]
        %v768 = vld [vmem:[%s502 + $0x128] sm:$0xff]
        %v769 = vld [vmem:[%s502 + $0x130] sm:$0xff]
        %v770 = vld [vmem:[%s502 + $0x138] sm:$0xff]
        %v771 = vld [vmem:[%s502 + $0x140] sm:$0xff]
        %v772 = vld [vmem:[%s502 + $0x148] sm:$0xff]
        %v773 = vld [vmem:[%s502 + $0x150] sm:$0xff]
        %v774 = vld [vmem:[%s502 + $0x158] sm:$0xff]
        %v775 = vld [vmem:[%s502 + $0x160] sm:$0xff]
        %v776 = vld [vmem:[%s502 + $0x168] sm:$0xff]
        %v777 = vld [vmem:[%s502 + $0x170] sm:$0xff]
        %v778 = vld [vmem:[%s502 + $0x178] sm:$0xff]
        %v779 = vld [vmem:[%s502 + $0x180] sm:$0xff]
        %v780 = vld [vmem:[%s502 + $0x188] sm:$0xff]
        %v781 = vld [vmem:[%s502 + $0x190] sm:$0xff]
        %v782 = vld [vmem:[%s502 + $0x198] sm:$0xff]
        %v783 = vld [vmem:[%s502 + $0x1a0] sm:$0xff]
        %v784 = vld [vmem:[%s502 + $0x1a8] sm:$0xff]
        %v785 = vld [vmem:[%s502 + $0x1b0] sm:$0xff]
        %v786 = vld [vmem:[%s502 + $0x1b8] sm:$0xff]
        %v787 = vld [vmem:[%s502 + $0x1c0] sm:$0xff]
        %v788 = vld [vmem:[%s502 + $0x1c8] sm:$0xff]
        %v789 = vld [vmem:[%s502 + $0x1d0] sm:$0xff]
        %v790 = vld [vmem:[%s502 + $0x1d8] sm:$0xff]
        %v791 = vld [vmem:[%s502 + $0x1e0] sm:$0xff]
        %v792 = vld [vmem:[%s502 + $0x1e8] sm:$0xff]
        %v793 = vld [vmem:[%s502 + $0x1f0] sm:$0xff]
        %v794 = vld [vmem:[%s502 + $0x1f8] sm:$0xff]
        %v795 = vld [vmem:[%s502 + $0x200] sm:$0xff]
        %v796 = vld [vmem:[%s502 + $0x208] sm:$0xff]
        %v797 = vld [vmem:[%s502 + $0x210] sm:$0xff]
        %v798 = vld [vmem:[%s502 + $0x218] sm:$0xff]
        %v799 = vld [vmem:[%s502 + $0x220] sm:$0xff]
        %v800 = vld [vmem:[%s502 + $0x228] sm:$0xff]
        %v801 = vld [vmem:[%s502 + $0x230] sm:$0xff]
        %v802 = vld [vmem:[%s502 + $0x238] sm:$0xff]
        %v803 = vld [vmem:[%s502 + $0x240] sm:$0xff]
        %v804 = vld [vmem:[%s502 + $0x248] sm:$0xff]
        %v805 = vld [vmem:[%s502 + $0x250] sm:$0xff]
        %v806 = vld [vmem:[%s502 + $0x258] sm:$0xff]
        %v807 = vld [vmem:[%s502 + $0x260] sm:$0xff]
        %v808 = vld [vmem:[%s502 + $0x268] sm:$0xff]
        %v809 = vld [vmem:[%s502 + $0x270] sm:$0xff]
        %v810 = vld [vmem:[%s502 + $0x278] sm:$0xff]
        %v811 = vld [vmem:[%s502 + $0x280] sm:$0xff]
        %v812 = vld [vmem:[%s502 + $0x288] sm:$0xff]
        %v813 = vld [vmem:[%s502 + $0x290] sm:$0xff]
        %v814 = vld [vmem:[%s502 + $0x298] sm:$0xff]
        %v815 = vld [vmem:[%s502 + $0x2a0] sm:$0xff]
        %v816 = vld [vmem:[%s502 + $0x2a8] sm:$0xff]
        %v817 = vld [vmem:[%s502 + $0x2b0] sm:$0xff]
        %v818 = vld [vmem:[%s502 + $0x2b8] sm:$0xff]
        %v819 = vld [vmem:[%s502 + $0x2c0] sm:$0xff]
        %v820 = vld [vmem:[%s502 + $0x2c8] sm:$0xff]
        %v821 = vld [vmem:[%s502 + $0x2d0] sm:$0xff]
        %v822 = vld [vmem:[%s502 + $0x2d8] sm:$0xff]
        %v823 = vld [vmem:[%s502 + $0x2e0] sm:$0xff]
        %v824 = vld [vmem:[%s502 + $0x2e8] sm:$0xff]
        %v825 = vld [vmem:[%s502 + $0x2f0] sm:$0xff]
        %v826 = vld [vmem:[%s502 + $0x2f8] sm:$0xff]
        %v829 = vrot.slane %v724, 4
        %v830 = vrot.slane %v726, 4
        %vm831 = vcmask 1043456
        %v832 = vsel %vm831, %v829, %v830
        %v833 = vperm.slane %v832, 0
        %v834 = vperm.slane %v832, 1
        %v835 = vperm.slane %v832, 2
        %v836 = vperm.slane %v832, 3
        %v837 = vperm.slane %v832, 4
        %v838 = vperm.slane %v832, 5
        %v941 = vunpack.c.l.b16 %v731
        %v942 = vunpack.c.h.b16 %v731
        %v943 = vunpack.c.l.b16 %v732
        %v944 = vunpack.c.h.b16 %v732
        %v945 = vunpack.c.l.b16 %v733
        %v946 = vunpack.c.h.b16 %v733
        %v947 = vunpack.c.l.b16 %v734
        %v948 = vunpack.c.h.b16 %v734
        %v949 = vunpack.c.l.b16 %v735
        %v950 = vunpack.c.h.b16 %v735
        %v951 = vunpack.c.l.b16 %v736
        %v952 = vunpack.c.h.b16 %v736
        %v953 = vunpack.c.l.b16 %v737
        %v954 = vunpack.c.h.b16 %v737
        %v955 = vunpack.c.l.b16 %v738
        %v956 = vunpack.c.h.b16 %v738
        %v957 = vunpack.c.l.b16 %v739
        %v958 = vunpack.c.h.b16 %v739
        %v959 = vunpack.c.l.b16 %v740
        %v960 = vunpack.c.h.b16 %v740
        %v961 = vunpack.c.l.b16 %v741
        %v962 = vunpack.c.h.b16 %v741
        %v963 = vunpack.c.l.b16 %v742
        %v964 = vunpack.c.h.b16 %v742
        %v965 = vunpack.c.l.b16 %v743
        %v966 = vunpack.c.h.b16 %v743
        %v967 = vunpack.c.l.b16 %v744
        %v968 = vunpack.c.h.b16 %v744
        %v969 = vunpack.c.l.b16 %v745
        %v970 = vunpack.c.h.b16 %v745
        %v971 = vunpack.c.l.b16 %v746
        %v972 = vunpack.c.h.b16 %v746
        %v973 = vunpack.c.l.b16 %v747
        %v974 = vunpack.c.h.b16 %v747
        %v975 = vunpack.c.l.b16 %v748
        %v976 = vunpack.c.h.b16 %v748
        %v977 = vunpack.c.l.b16 %v749
        %v978 = vunpack.c.h.b16 %v749
        %v979 = vunpack.c.l.b16 %v750
        %v980 = vunpack.c.h.b16 %v750
        %v981 = vunpack.c.l.b16 %v751
        %v982 = vunpack.c.h.b16 %v751
        %v983 = vunpack.c.l.b16 %v752
        %v984 = vunpack.c.h.b16 %v752
        %v985 = vunpack.c.l.b16 %v753
        %v986 = vunpack.c.h.b16 %v753
        %v987 = vunpack.c.l.b16 %v754
        %v988 = vunpack.c.h.b16 %v754
        %v989 = vunpack.c.l.b16 %v755
        %v990 = vunpack.c.h.b16 %v755
        %v991 = vunpack.c.l.b16 %v756
        %v992 = vunpack.c.h.b16 %v756
        %v993 = vunpack.c.l.b16 %v757
        %v994 = vunpack.c.h.b16 %v757
        %v995 = vunpack.c.l.b16 %v758
        %v996 = vunpack.c.h.b16 %v758
        %v997 = vunpack.c.l.b16 %v759
        %v998 = vunpack.c.h.b16 %v759
        %v999 = vunpack.c.l.b16 %v760
        %v1000 = vunpack.c.h.b16 %v760
        %v1001 = vunpack.c.l.b16 %v761
        %v1002 = vunpack.c.h.b16 %v761
        %v1003 = vunpack.c.l.b16 %v762
        %v1004 = vunpack.c.h.b16 %v762
        %v1005 = vunpack.c.l.b16 %v763
        %v1006 = vunpack.c.h.b16 %v763
        %v1007 = vunpack.c.l.b16 %v764
        %v1008 = vunpack.c.h.b16 %v764
        %v1009 = vunpack.c.l.b16 %v765
        %v1010 = vunpack.c.h.b16 %v765
        %v1011 = vunpack.c.l.b16 %v766
        %v1012 = vunpack.c.h.b16 %v766
        %v1013 = vunpack.c.l.b16 %v767
        %v1014 = vunpack.c.h.b16 %v767
        %v1015 = vunpack.c.l.b16 %v768
        %v1016 = vunpack.c.h.b16 %v768
        %v1017 = vunpack.c.l.b16 %v769
        %v1018 = vunpack.c.h.b16 %v769
        %v1019 = vunpack.c.l.b16 %v770
        %v1020 = vunpack.c.h.b16 %v770
        %v1021 = vunpack.c.l.b16 %v771
        %v1022 = vunpack.c.h.b16 %v771
        %v1023 = vunpack.c.l.b16 %v772
        %v1024 = vunpack.c.h.b16 %v772
        %v1025 = vunpack.c.l.b16 %v773
        %v1026 = vunpack.c.h.b16 %v773
        %v1027 = vunpack.c.l.b16 %v774
        %v1028 = vunpack.c.h.b16 %v774
        %v1029 = vunpack.c.l.b16 %v775
        %v1030 = vunpack.c.h.b16 %v775
        %v1031 = vunpack.c.l.b16 %v776
        %v1032 = vunpack.c.h.b16 %v776
        %v1033 = vunpack.c.l.b16 %v777
        %v1034 = vunpack.c.h.b16 %v777
        %v1035 = vunpack.c.l.b16 %v778
        %v1036 = vunpack.c.h.b16 %v778
        %v1037 = vunpack.c.l.b16 %v779
        %v1038 = vunpack.c.h.b16 %v779
        %v1039 = vunpack.c.l.b16 %v780
        %v1040 = vunpack.c.h.b16 %v780
        %v1041 = vunpack.c.l.b16 %v781
        %v1042 = vunpack.c.h.b16 %v781
        %v1043 = vunpack.c.l.b16 %v782
        %v1044 = vunpack.c.h.b16 %v782
        %v1045 = vunpack.c.l.b16 %v783
        %v1046 = vunpack.c.h.b16 %v783
        %v1047 = vunpack.c.l.b16 %v784
        %v1048 = vunpack.c.h.b16 %v784
        %v1049 = vunpack.c.l.b16 %v785
        %v1050 = vunpack.c.h.b16 %v785
        %v1051 = vunpack.c.l.b16 %v786
        %v1052 = vunpack.c.h.b16 %v786
        %v1053 = vunpack.c.l.b16 %v787
        %v1054 = vunpack.c.h.b16 %v787
        %v1055 = vunpack.c.l.b16 %v788
        %v1056 = vunpack.c.h.b16 %v788
        %v1057 = vunpack.c.l.b16 %v789
        %v1058 = vunpack.c.h.b16 %v789
        %v1059 = vunpack.c.l.b16 %v790
        %v1060 = vunpack.c.h.b16 %v790
        %v1061 = vunpack.c.l.b16 %v791
        %v1062 = vunpack.c.h.b16 %v791
        %v1063 = vunpack.c.l.b16 %v792
        %v1064 = vunpack.c.h.b16 %v792
        %v1065 = vunpack.c.l.b16 %v793
        %v1066 = vunpack.c.h.b16 %v793
        %v1067 = vunpack.c.l.b16 %v794
        %v1068 = vunpack.c.h.b16 %v794
        %v1069 = vunpack.c.l.b16 %v795
        %v1070 = vunpack.c.h.b16 %v795
        %v1071 = vunpack.c.l.b16 %v796
        %v1072 = vunpack.c.h.b16 %v796
        %v1073 = vunpack.c.l.b16 %v797
        %v1074 = vunpack.c.h.b16 %v797
        %v1075 = vunpack.c.l.b16 %v798
        %v1076 = vunpack.c.h.b16 %v798
        %v1077 = vunpack.c.l.b16 %v799
        %v1078 = vunpack.c.h.b16 %v799
        %v1079 = vunpack.c.l.b16 %v800
        %v1080 = vunpack.c.h.b16 %v800
        %v1081 = vunpack.c.l.b16 %v801
        %v1082 = vunpack.c.h.b16 %v801
        %v1083 = vunpack.c.l.b16 %v802
        %v1084 = vunpack.c.h.b16 %v802
        %v1085 = vunpack.c.l.b16 %v803
        %v1086 = vunpack.c.h.b16 %v803
        %v1087 = vunpack.c.l.b16 %v804
        %v1088 = vunpack.c.h.b16 %v804
        %v1089 = vunpack.c.l.b16 %v805
        %v1090 = vunpack.c.h.b16 %v805
        %v1091 = vunpack.c.l.b16 %v806
        %v1092 = vunpack.c.h.b16 %v806
        %v1093 = vunpack.c.l.b16 %v807
        %v1094 = vunpack.c.h.b16 %v807
        %v1095 = vunpack.c.l.b16 %v808
        %v1096 = vunpack.c.h.b16 %v808
        %v1097 = vunpack.c.l.b16 %v809
        %v1098 = vunpack.c.h.b16 %v809
        %v1099 = vunpack.c.l.b16 %v810
        %v1100 = vunpack.c.h.b16 %v810
        %v1101 = vunpack.c.l.b16 %v811
        %v1102 = vunpack.c.h.b16 %v811
        %v1103 = vunpack.c.l.b16 %v812
        %v1104 = vunpack.c.h.b16 %v812
        %v1105 = vunpack.c.l.b16 %v813
        %v1106 = vunpack.c.h.b16 %v813
        %v1107 = vunpack.c.l.b16 %v814
        %v1108 = vunpack.c.h.b16 %v814
        %v1109 = vunpack.c.l.b16 %v815
        %v1110 = vunpack.c.h.b16 %v815
        %v1111 = vunpack.c.l.b16 %v816
        %v1112 = vunpack.c.h.b16 %v816
        %v1113 = vunpack.c.l.b16 %v817
        %v1114 = vunpack.c.h.b16 %v817
        %v1115 = vunpack.c.l.b16 %v818
        %v1116 = vunpack.c.h.b16 %v818
        %v1117 = vunpack.c.l.b16 %v819
        %v1118 = vunpack.c.h.b16 %v819
        %v1119 = vunpack.c.l.b16 %v820
        %v1120 = vunpack.c.h.b16 %v820
        %v1121 = vunpack.c.l.b16 %v821
        %v1122 = vunpack.c.h.b16 %v821
        %v1123 = vunpack.c.l.b16 %v822
        %v1124 = vunpack.c.h.b16 %v822
        %v1125 = vunpack.c.l.b16 %v823
        %v1126 = vunpack.c.h.b16 %v823
        %v1127 = vunpack.c.l.b16 %v824
        %v1128 = vunpack.c.h.b16 %v824
        %v1129 = vunpack.c.l.b16 %v825
        %v1130 = vunpack.c.h.b16 %v825
        %v1131 = vunpack.c.l.b16 %v826
        %v1132 = vunpack.c.h.b16 %v826
        %v1133 = vpack.c.b16 %v947, %v941
        %v1134 = vpack.c.b16 %v948, %v942
        %v1135 = vpack.c.b16 %v949, %v943
        %v1136 = vpack.c.b16 %v950, %v944
        %v1137 = vpack.c.b16 %v951, %v945
        %v1138 = vpack.c.b16 %v952, %v946
        %v1139 = vpack.c.b16 %v959, %v953
        %v1140 = vpack.c.b16 %v960, %v954
        %v1141 = vpack.c.b16 %v961, %v955
        %v1142 = vpack.c.b16 %v962, %v956
        %v1143 = vpack.c.b16 %v963, %v957
        %v1144 = vpack.c.b16 %v964, %v958
        %v1145 = vpack.c.b16 %v971, %v965
        %v1146 = vpack.c.b16 %v972, %v966
        %v1147 = vpack.c.b16 %v973, %v967
        %v1148 = vpack.c.b16 %v974, %v968
        %v1149 = vpack.c.b16 %v975, %v969
        %v1150 = vpack.c.b16 %v976, %v970
        %v1151 = vpack.c.b16 %v983, %v977
        %v1152 = vpack.c.b16 %v984, %v978
        %v1153 = vpack.c.b16 %v985, %v979
        %v1154 = vpack.c.b16 %v986, %v980
        %v1155 = vpack.c.b16 %v987, %v981
        %v1156 = vpack.c.b16 %v988, %v982
        %v1157 = vpack.c.b16 %v995, %v989
        %v1158 = vpack.c.b16 %v996, %v990
        %v1159 = vpack.c.b16 %v997, %v991
        %v1160 = vpack.c.b16 %v998, %v992
        %v1161 = vpack.c.b16 %v999, %v993
        %v1162 = vpack.c.b16 %v1000, %v994
        %v1163 = vpack.c.b16 %v1007, %v1001
        %v1164 = vpack.c.b16 %v1008, %v1002
        %v1165 = vpack.c.b16 %v1009, %v1003
        %v1166 = vpack.c.b16 %v1010, %v1004
        %v1167 = vpack.c.b16 %v1011, %v1005
        %v1168 = vpack.c.b16 %v1012, %v1006
        %v1169 = vpack.c.b16 %v1019, %v1013
        %v1170 = vpack.c.b16 %v1020, %v1014
        %v1171 = vpack.c.b16 %v1021, %v1015
        %v1172 = vpack.c.b16 %v1022, %v1016
        %v1173 = vpack.c.b16 %v1023, %v1017
        %v1174 = vpack.c.b16 %v1024, %v1018
        %v1175 = vpack.c.b16 %v1031, %v1025
        %v1176 = vpack.c.b16 %v1032, %v1026
        %v1177 = vpack.c.b16 %v1033, %v1027
        %v1178 = vpack.c.b16 %v1034, %v1028
        %v1179 = vpack.c.b16 %v1035, %v1029
        %v1180 = vpack.c.b16 %v1036, %v1030
        %v1181 = vpack.c.b16 %v1043, %v1037
        %v1182 = vpack.c.b16 %v1044, %v1038
        %v1183 = vpack.c.b16 %v1045, %v1039
        %v1184 = vpack.c.b16 %v1046, %v1040
        %v1185 = vpack.c.b16 %v1047, %v1041
        %v1186 = vpack.c.b16 %v1048, %v1042
        %v1187 = vpack.c.b16 %v1055, %v1049
        %v1188 = vpack.c.b16 %v1056, %v1050
        %v1189 = vpack.c.b16 %v1057, %v1051
        %v1190 = vpack.c.b16 %v1058, %v1052
        %v1191 = vpack.c.b16 %v1059, %v1053
        %v1192 = vpack.c.b16 %v1060, %v1054
        %v1193 = vpack.c.b16 %v1067, %v1061
        %v1194 = vpack.c.b16 %v1068, %v1062
        %v1195 = vpack.c.b16 %v1069, %v1063
        %v1196 = vpack.c.b16 %v1070, %v1064
        %v1197 = vpack.c.b16 %v1071, %v1065
        %v1198 = vpack.c.b16 %v1072, %v1066
        %v1199 = vpack.c.b16 %v1079, %v1073
        %v1200 = vpack.c.b16 %v1080, %v1074
        %v1201 = vpack.c.b16 %v1081, %v1075
        %v1202 = vpack.c.b16 %v1082, %v1076
        %v1203 = vpack.c.b16 %v1083, %v1077
        %v1204 = vpack.c.b16 %v1084, %v1078
        %v1205 = vpack.c.b16 %v1091, %v1085
        %v1206 = vpack.c.b16 %v1092, %v1086
        %v1207 = vpack.c.b16 %v1093, %v1087
        %v1208 = vpack.c.b16 %v1094, %v1088
        %v1209 = vpack.c.b16 %v1095, %v1089
        %v1210 = vpack.c.b16 %v1096, %v1090
        %v1211 = vpack.c.b16 %v1103, %v1097
        %v1212 = vpack.c.b16 %v1104, %v1098
        %v1213 = vpack.c.b16 %v1105, %v1099
        %v1214 = vpack.c.b16 %v1106, %v1100
        %v1215 = vpack.c.b16 %v1107, %v1101
        %v1216 = vpack.c.b16 %v1108, %v1102
        %v1217 = vpack.c.b16 %v1115, %v1109
        %v1218 = vpack.c.b16 %v1116, %v1110
        %v1219 = vpack.c.b16 %v1117, %v1111
        %v1220 = vpack.c.b16 %v1118, %v1112
        %v1221 = vpack.c.b16 %v1119, %v1113
        %v1222 = vpack.c.b16 %v1120, %v1114
        %v1223 = vpack.c.b16 %v1127, %v1121
        %v1224 = vpack.c.b16 %v1128, %v1122
        %v1225 = vpack.c.b16 %v1129, %v1123
        %v1226 = vpack.c.b16 %v1130, %v1124
        %v1227 = vpack.c.b16 %v1131, %v1125
        %v1228 = vpack.c.b16 %v1132, %v1126
        %1325 = vmatpush.bf16.msra.mxu0 %v1175
        %1326 = vmatpush.bf16.msra.mxu0 %v1169
        %1327 = vmatpush.bf16.msra.mxu0 %v1163
        %1328 = vmatpush.bf16.msra.mxu0 %v1157
        %1329 = vmatpush.bf16.msra.mxu0 %v1151
        %1330 = vmatpush.bf16.msra.mxu0 %v1145
        %1331 = vmatpush.bf16.msra.mxu0 %v1139
        %1332 = vmatpush.bf16.msra.mxu0 %v1133
        %1333 = vmatmul.bf16.gmra.mxu0 %v729
        %v1334 = vpop.f32.mrf.mxu0
        %v1335 = vadd.f32 %v833, %v1334
        %v1336 = vpop.f32.mrf.mxu0
        %v1337 = vadd.f32 %v833, %v1336
        %1338 = vdwg.mxu0
        %1339 = vmatpush.bf16.msra.mxu0 %v1223
        %1340 = vmatpush.bf16.msra.mxu0 %v1217
        %1341 = vmatpush.bf16.msra.mxu0 %v1211
        %1342 = vmatpush.bf16.msra.mxu0 %v1205
        %1343 = vmatpush.bf16.msra.mxu0 %v1199
        %1344 = vmatpush.bf16.msra.mxu0 %v1193
        %1345 = vmatpush.bf16.msra.mxu0 %v1187
        %1346 = vmatpush.bf16.msra.mxu0 %v1181
        %1347 = vmatmul.bf16.gmra.mxu0 %v730
        %v1348 = vpop.f32.mrf.mxu0
        %v1349 = vadd.f32 %v1335, %v1348
        %v1350 = vpop.f32.mrf.mxu0
        %v1351 = vadd.f32 %v1337, %v1350
        %1352 = vdwg.mxu0
        %1353 = vmatpush.bf16.msra.mxu0 %v1176
        %1354 = vmatpush.bf16.msra.mxu0 %v1170
        %1355 = vmatpush.bf16.msra.mxu0 %v1164
        %1356 = vmatpush.bf16.msra.mxu0 %v1158
        %1357 = vmatpush.bf16.msra.mxu0 %v1152
        %1358 = vmatpush.bf16.msra.mxu0 %v1146
        %1359 = vmatpush.bf16.msra.mxu0 %v1140
        %1360 = vmatpush.bf16.msra.mxu0 %v1134
        %1361 = vmatmul.bf16.gmra.mxu0 %v729
        %v1362 = vpop.f32.mrf.mxu0
        %v1363 = vadd.f32 %v834, %v1362
        %v1364 = vpop.f32.mrf.mxu0
        %v1365 = vadd.f32 %v834, %v1364
        %1366 = vdwg.mxu0
        %1367 = vmatpush.bf16.msra.mxu0 %v1224
        %1368 = vmatpush.bf16.msra.mxu0 %v1218
        %1369 = vmatpush.bf16.msra.mxu0 %v1212
        %1370 = vmatpush.bf16.msra.mxu0 %v1206
        %1371 = vmatpush.bf16.msra.mxu0 %v1200
        %1372 = vmatpush.bf16.msra.mxu0 %v1194
        %1373 = vmatpush.bf16.msra.mxu0 %v1188
        %1374 = vmatpush.bf16.msra.mxu0 %v1182
        %1375 = vmatmul.bf16.gmra.mxu0 %v730
        %v1376 = vpop.f32.mrf.mxu0
        %v1377 = vadd.f32 %v1363, %v1376
        %v1378 = vpop.f32.mrf.mxu0
        %v1379 = vadd.f32 %v1365, %v1378
        %1380 = vdwg.mxu0
        %1381 = vmatpush.bf16.msra.mxu0 %v1177
        %1382 = vmatpush.bf16.msra.mxu0 %v1171
        %1383 = vmatpush.bf16.msra.mxu0 %v1165
        %1384 = vmatpush.bf16.msra.mxu0 %v1159
        %1385 = vmatpush.bf16.msra.mxu0 %v1153
        %1386 = vmatpush.bf16.msra.mxu0 %v1147
        %1387 = vmatpush.bf16.msra.mxu0 %v1141
        %1388 = vmatpush.bf16.msra.mxu0 %v1135
        %1389 = vmatmul.bf16.gmra.mxu0 %v729
        %v1390 = vpop.f32.mrf.mxu0
        %v1391 = vadd.f32 %v835, %v1390
        %v1392 = vpop.f32.mrf.mxu0
        %v1393 = vadd.f32 %v835, %v1392
        %1394 = vdwg.mxu0
        %1395 = vmatpush.bf16.msra.mxu0 %v1225
        %1396 = vmatpush.bf16.msra.mxu0 %v1219
        %1397 = vmatpush.bf16.msra.mxu0 %v1213
        %1398 = vmatpush.bf16.msra.mxu0 %v1207
        %1399 = vmatpush.bf16.msra.mxu0 %v1201
        %1400 = vmatpush.bf16.msra.mxu0 %v1195
        %1401 = vmatpush.bf16.msra.mxu0 %v1189
        %1402 = vmatpush.bf16.msra.mxu0 %v1183
        %1403 = vmatmul.bf16.gmra.mxu0 %v730
        %v1404 = vpop.f32.mrf.mxu0
        %v1405 = vadd.f32 %v1391, %v1404
        %v1406 = vpop.f32.mrf.mxu0
        %v1407 = vadd.f32 %v1393, %v1406
        %1408 = vdwg.mxu0
        %1409 = vmatpush.bf16.msra.mxu0 %v1178
        %1410 = vmatpush.bf16.msra.mxu0 %v1172
        %1411 = vmatpush.bf16.msra.mxu0 %v1166
        %1412 = vmatpush.bf16.msra.mxu0 %v1160
        %1413 = vmatpush.bf16.msra.mxu0 %v1154
        %1414 = vmatpush.bf16.msra.mxu0 %v1148
        %1415 = vmatpush.bf16.msra.mxu0 %v1142
        %1416 = vmatpush.bf16.msra.mxu0 %v1136
        %1417 = vmatmul.bf16.gmra.mxu0 %v729
        %v1418 = vpop.f32.mrf.mxu0
        %v1419 = vadd.f32 %v836, %v1418
        %v1420 = vpop.f32.mrf.mxu0
        %v1421 = vadd.f32 %v836, %v1420
        %1422 = vdwg.mxu0
        %1423 = vmatpush.bf16.msra.mxu0 %v1226
        %1424 = vmatpush.bf16.msra.mxu0 %v1220
        %1425 = vmatpush.bf16.msra.mxu0 %v1214
        %1426 = vmatpush.bf16.msra.mxu0 %v1208
        %1427 = vmatpush.bf16.msra.mxu0 %v1202
        %1428 = vmatpush.bf16.msra.mxu0 %v1196
        %1429 = vmatpush.bf16.msra.mxu0 %v1190
        %1430 = vmatpush.bf16.msra.mxu0 %v1184
        %1431 = vmatmul.bf16.gmra.mxu0 %v730
        %v1432 = vpop.f32.mrf.mxu0
        %v1433 = vadd.f32 %v1419, %v1432
        %v1434 = vpop.f32.mrf.mxu0
        %v1435 = vadd.f32 %v1421, %v1434
        %1436 = vdwg.mxu0
        %1437 = vmatpush.bf16.msra.mxu0 %v1179
        %1438 = vmatpush.bf16.msra.mxu0 %v1173
        %1439 = vmatpush.bf16.msra.mxu0 %v1167
        %1440 = vmatpush.bf16.msra.mxu0 %v1161
        %1441 = vmatpush.bf16.msra.mxu0 %v1155
        %1442 = vmatpush.bf16.msra.mxu0 %v1149
        %1443 = vmatpush.bf16.msra.mxu0 %v1143
        %1444 = vmatpush.bf16.msra.mxu0 %v1137
        %1445 = vmatmul.bf16.gmra.mxu0 %v729
        %v1446 = vpop.f32.mrf.mxu0
        %v1447 = vadd.f32 %v837, %v1446
        %v1448 = vpop.f32.mrf.mxu0
        %v1449 = vadd.f32 %v837, %v1448
        %1450 = vdwg.mxu0
        %1451 = vmatpush.bf16.msra.mxu0 %v1227
        %1452 = vmatpush.bf16.msra.mxu0 %v1221
        %1453 = vmatpush.bf16.msra.mxu0 %v1215
        %1454 = vmatpush.bf16.msra.mxu0 %v1209
        %1455 = vmatpush.bf16.msra.mxu0 %v1203
        %1456 = vmatpush.bf16.msra.mxu0 %v1197
        %1457 = vmatpush.bf16.msra.mxu0 %v1191
        %1458 = vmatpush.bf16.msra.mxu0 %v1185
        %1459 = vmatmul.bf16.gmra.mxu0 %v730
        %v1460 = vpop.f32.mrf.mxu0
        %v1461 = vadd.f32 %v1447, %v1460
        %v1462 = vpop.f32.mrf.mxu0
        %v1463 = vadd.f32 %v1449, %v1462
        %1464 = vdwg.mxu0
        %1465 = vmatpush.bf16.msra.mxu0 %v1180
        %1466 = vmatpush.bf16.msra.mxu0 %v1174
        %1467 = vmatpush.bf16.msra.mxu0 %v1168
        %1468 = vmatpush.bf16.msra.mxu0 %v1162
        %1469 = vmatpush.bf16.msra.mxu0 %v1156
        %1470 = vmatpush.bf16.msra.mxu0 %v1150
        %1471 = vmatpush.bf16.msra.mxu0 %v1144
        %1472 = vmatpush.bf16.msra.mxu0 %v1138
        %1473 = vmatmul.bf16.gmra.mxu0 %v729
        %v1474 = vpop.f32.mrf.mxu0
        %v1475 = vadd.f32 %v838, %v1474
        %v1476 = vpop.f32.mrf.mxu0
        %v1477 = vadd.f32 %v838, %v1476
        %1478 = vdwg.mxu0
        %1479 = vmatpush.bf16.msra.mxu0 %v1228
        %1480 = vmatpush.bf16.msra.mxu0 %v1222
        %1481 = vmatpush.bf16.msra.mxu0 %v1216
        %1482 = vmatpush.bf16.msra.mxu0 %v1210
        %1483 = vmatpush.bf16.msra.mxu0 %v1204
        %1484 = vmatpush.bf16.msra.mxu0 %v1198
        %1485 = vmatpush.bf16.msra.mxu0 %v1192
        %1486 = vmatpush.bf16.msra.mxu0 %v1186
        %1487 = vmatmul.bf16.gmra.mxu0 %v730
        %v1488 = vpop.f32.mrf.mxu0
        %v1489 = vadd.f32 %v1475, %v1488
        %v1490 = vpop.f32.mrf.mxu0
        %v1491 = vadd.f32 %v1477, %v1490
        %1492 = vdwg.mxu0
        %v1493 = vpack.c.bf16 %v1349, %v1349
        %v1494 = vpack.c.bf16 %v1351, %v1351
        %v1495 = vpack.c.bf16 %v1377, %v1377
        %v1496 = vpack.c.bf16 %v1379, %v1379
        %v1497 = vpack.c.bf16 %v1405, %v1405
        %v1498 = vpack.c.bf16 %v1407, %v1407
        %v1499 = vpack.c.bf16 %v1433, %v1433
        %v1500 = vpack.c.bf16 %v1435, %v1435
        %v1501 = vpack.c.bf16 %v1461, %v1461
        %v1502 = vpack.c.bf16 %v1463, %v1463
        %v1503 = vpack.c.bf16 %v1489, %v1489
        %v1504 = vpack.c.bf16 %v1491, %v1491
        %1505 = vmatpush.bf16.xpose.msra.mxu0 0
        %1506 = vmatpush.bf16.xpose.msra.mxu0 0
        %1507 = vmatpush.bf16.xpose.msra.mxu0 0
        %1508 = vmatpush.bf16.xpose.msra.mxu0 0
        %1509 = vmatpush.bf16.xpose.msra.mxu0 0
        %1510 = vmatpush.bf16.xpose.msra.mxu0 0
        %1511 = vmatpush.bf16.xpose.msra.mxu0 0
        %1512 = vmatpush.bf16.xpose.msra.mxu0 %v1497
        %1513 = vmatmul.bf16.gmra.mxu0 %v1493
        %v1514 = vpop.f32.mrf.mxu0
        %v1515 = vadd.f32 0.0, %v1514
        %v1516 = vpop.f32.mrf.mxu0
        %1517 = vdwg.mxu0
        %1518 = vmatpush.bf16.xpose.msra.mxu0 0
        %1519 = vmatpush.bf16.xpose.msra.mxu0 0
        %1520 = vmatpush.bf16.xpose.msra.mxu0 0
        %1521 = vmatpush.bf16.xpose.msra.mxu0 0
        %1522 = vmatpush.bf16.xpose.msra.mxu0 0
        %1523 = vmatpush.bf16.xpose.msra.mxu0 0
        %1524 = vmatpush.bf16.xpose.msra.mxu0 0
        %1525 = vmatpush.bf16.xpose.msra.mxu0 %v1498
        %1526 = vmatmul.bf16.gmra.mxu0 %v1494
        %v1527 = vpop.f32.mrf.mxu0
        %v1528 = vadd.f32 0.0, %v1527
        %v1529 = vpop.f32.mrf.mxu0
        %1530 = vdwg.mxu0
        %1531 = vmatpush.bf16.xpose.msra.mxu0 0
        %1532 = vmatpush.bf16.xpose.msra.mxu0 0
        %1533 = vmatpush.bf16.xpose.msra.mxu0 0
        %1534 = vmatpush.bf16.xpose.msra.mxu0 0
        %1535 = vmatpush.bf16.xpose.msra.mxu0 0
        %1536 = vmatpush.bf16.xpose.msra.mxu0 0
        %1537 = vmatpush.bf16.xpose.msra.mxu0 0
        %1538 = vmatpush.bf16.xpose.msra.mxu0 %v1499
        %1539 = vmatmul.bf16.gmra.mxu0 %v1495
        %v1540 = vpop.f32.mrf.mxu0
        %v1541 = vadd.f32 0.0, %v1540
        %v1542 = vpop.f32.mrf.mxu0
        %1543 = vdwg.mxu0
        %1544 = vmatpush.bf16.xpose.msra.mxu0 0
        %1545 = vmatpush.bf16.xpose.msra.mxu0 0
        %1546 = vmatpush.bf16.xpose.msra.mxu0 0
        %1547 = vmatpush.bf16.xpose.msra.mxu0 0
        %1548 = vmatpush.bf16.xpose.msra.mxu0 0
        %1549 = vmatpush.bf16.xpose.msra.mxu0 0
        %1550 = vmatpush.bf16.xpose.msra.mxu0 0
        %1551 = vmatpush.bf16.xpose.msra.mxu0 %v1500
        %1552 = vmatmul.bf16.gmra.mxu0 %v1496
        %v1553 = vpop.f32.mrf.mxu0
        %v1554 = vadd.f32 0.0, %v1553
        %v1555 = vpop.f32.mrf.mxu0
        %1556 = vdwg.mxu0
        %v1557 = vmul.f32 %v1515, 0.088388346
        %v1558 = vmul.f32 %v1528, 0.088388346
        %v1559 = vmul.f32 %v1541, 0.088388346
        %v1560 = vmul.f32 %v1554, 0.088388346
        %v1561 = vadd.f32 %v1557, %v718
        %v1562 = vadd.f32 %v1558, %v719
        %v1563 = vadd.f32 %v1559, %v718
        %v1564 = vadd.f32 %v1560, %v719
        %vm1565 = vcmask 64512
        %v1566 = vsel %vm1565, %v1561, -inf
        %1567 = vmax.xlane.f32.xlu0 %v1566
        %v1568 = vpop.xlane.xlu0 %1567
        %v1569 = vsel %vm1565, %v1562, -inf
        %1570 = vmax.xlane.f32.xlu0 %v1569
        %v1571 = vpop.xlane.xlu0 %1570
        %v1572 = vsel %vm1565, %v1563, -inf
        %1573 = vmax.xlane.f32.xlu0 %v1572
        %v1574 = vpop.xlane.xlu0 %1573
        %v1575 = vsel %vm1565, %v1564, -inf
        %1576 = vmax.xlane.f32.xlu0 %v1575
        %v1577 = vpop.xlane.xlu0 %1576
        %v1578 = vsub.f32 %v1561, %v1568
        %v1579 = vsub.f32 %v1562, %v1571
        %v1580 = vsub.f32 %v1563, %v1574
        %v1581 = vsub.f32 %v1564, %v1577
        %v1582 = vmul.f32 %v1578, 1.442695
        %v1583 = vpow.pop %v1582
        %v1584 = vmul.f32 %v1579, 1.442695
        %v1585 = vpow.pop %v1584
        %v1586 = vmul.f32 %v1580, 1.442695
        %v1587 = vpow.pop %v1586
        %v1588 = vmul.f32 %v1581, 1.442695
        %v1589 = vpow.pop %v1588
        %v1590 = vsel %vm1565, %v1583, 0.0
        %1591 = vadd.xlane.f32.xlu0 %v1590
        %v1592 = vpop.xlane.xlu0 %1591
        %v1593 = vsel %vm1565, %v1585, 0.0
        %1594 = vadd.xlane.f32.xlu0 %v1593
        %v1595 = vpop.xlane.xlu0 %1594
        %v1596 = vsel %vm1565, %v1587, 0.0
        %1597 = vadd.xlane.f32.xlu0 %v1596
        %v1598 = vpop.xlane.xlu0 %1597
        %v1599 = vsel %vm1565, %v1589, 0.0
        %1600 = vadd.xlane.f32.xlu0 %v1599
        %v1601 = vpop.xlane.xlu0 %1600
        %v1602 = vrcp.pop %v1592
        %v1603 = vrcp.pop %v1595
        %v1604 = vrcp.pop %v1598
        %v1605 = vrcp.pop %v1601
        %v1606 = vmul.f32 %v1583, %v1602
        %v1607 = vmul.f32 %v1585, %v1603
        %v1608 = vmul.f32 %v1587, %v1604
        %v1609 = vmul.f32 %v1589, %v1605
        %v1610 = vpack.c.bf16 %v1606, %v1606
        %v1611 = vpack.c.bf16 %v1607, %v1607
        %v1612 = vpack.c.bf16 %v1608, %v1608
        %v1613 = vpack.c.bf16 %v1609, %v1609
        %v1615 = vsel %vm1565, %v1610, 0
        %v1618 = vsel %vm831, %v1501, 0
        %1620 = vmatpush.bf16.msra.mxu0 0
        %1621 = vmatpush.bf16.msra.mxu0 0
        %1622 = vmatpush.bf16.msra.mxu0 0
        %1623 = vmatpush.bf16.msra.mxu0 0
        %1624 = vmatpush.bf16.msra.mxu0 0
        %1625 = vmatpush.bf16.msra.mxu0 0
        %1626 = vmatpush.bf16.msra.mxu0 0
        %1627 = vmatpush.bf16.msra.mxu0 %v1618
        %1628 = vmatmul.bf16.gmra.mxu0 %v1615
        %v1629 = vpop.f32.mrf.mxu0
        %v1630 = vadd.f32 0.0, %v1629
        %v1631 = vpop.f32.mrf.mxu0
        %1632 = vdwg.mxu0
        %v1634 = vsel %vm1565, %v1611, 0
        %v1637 = vsel %vm831, %v1502, 0
        %1639 = vmatpush.bf16.msra.mxu0 0
        %1640 = vmatpush.bf16.msra.mxu0 0
        %1641 = vmatpush.bf16.msra.mxu0 0
        %1642 = vmatpush.bf16.msra.mxu0 0
        %1643 = vmatpush.bf16.msra.mxu0 0
        %1644 = vmatpush.bf16.msra.mxu0 0
        %1645 = vmatpush.bf16.msra.mxu0 0
        %1646 = vmatpush.bf16.msra.mxu0 %v1637
        %1647 = vmatmul.bf16.gmra.mxu0 %v1634
        %v1648 = vpop.f32.mrf.mxu0
        %v1649 = vadd.f32 0.0, %v1648
        %v1650 = vpop.f32.mrf.mxu0
        %1651 = vdwg.mxu0
        %v1653 = vsel %vm1565, %v1612, 0
        %v1656 = vsel %vm831, %v1503, 0
        %1658 = vmatpush.bf16.msra.mxu0 0
        %1659 = vmatpush.bf16.msra.mxu0 0
        %1660 = vmatpush.bf16.msra.mxu0 0
        %1661 = vmatpush.bf16.msra.mxu0 0
        %1662 = vmatpush.bf16.msra.mxu0 0
        %1663 = vmatpush.bf16.msra.mxu0 0
        %1664 = vmatpush.bf16.msra.mxu0 0
        %1665 = vmatpush.bf16.msra.mxu0 %v1656
        %1666 = vmatmul.bf16.gmra.mxu0 %v1653
        %v1667 = vpop.f32.mrf.mxu0
        %v1668 = vadd.f32 0.0, %v1667
        %v1669 = vpop.f32.mrf.mxu0
        %1670 = vdwg.mxu0
        %v1672 = vsel %vm1565, %v1613, 0
        %v1675 = vsel %vm831, %v1504, 0
        %1677 = vmatpush.bf16.msra.mxu0 0
        %1678 = vmatpush.bf16.msra.mxu0 0
        %1679 = vmatpush.bf16.msra.mxu0 0
        %1680 = vmatpush.bf16.msra.mxu0 0
        %1681 = vmatpush.bf16.msra.mxu0 0
        %1682 = vmatpush.bf16.msra.mxu0 0
        %1683 = vmatpush.bf16.msra.mxu0 0
        %1684 = vmatpush.bf16.msra.mxu0 %v1675
        %1685 = vmatmul.bf16.gmra.mxu0 %v1672
        %v1686 = vpop.f32.mrf.mxu0
        %v1687 = vadd.f32 0.0, %v1686
        %v1688 = vpop.f32.mrf.mxu0
        %1689 = vdwg.mxu0
        %v1690 = vpack.c.bf16 %v1649, %v1630
        %v1691 = vpack.c.bf16 %v1687, %v1668
        %v1692 = vld [vmem:[%s512] sm:$0xff]
        %v1693 = vld [vmem:[%s512 + $0x8] sm:$0xff]
        %v1694 = vld [vmem:[%s512 + $0x10] sm:$0xff]
        %v1695 = vld [vmem:[%s512 + $0x18] sm:$0xff]
        %v1696 = vld [vmem:[%s512 + $0x20] sm:$0xff]
        %v1697 = vld [vmem:[%s512 + $0x28] sm:$0xff]
        %v1698 = vld [vmem:[%s512 + $0x30] sm:$0xff]
        %v1699 = vld [vmem:[%s512 + $0x38] sm:$0xff]
        %v1700 = vld [vmem:[%s512 + $0x40] sm:$0xff]
        %v1701 = vld [vmem:[%s512 + $0x48] sm:$0xff]
        %v1702 = vld [vmem:[%s512 + $0x50] sm:$0xff]
        %v1703 = vld [vmem:[%s512 + $0x58] sm:$0xff]
        %v1704 = vld [vmem:[%s512 + $0x60] sm:$0xff]
        %v1705 = vld [vmem:[%s512 + $0x68] sm:$0xff]
        %v1706 = vld [vmem:[%s512 + $0x70] sm:$0xff]
        %v1707 = vld [vmem:[%s512 + $0x78] sm:$0xff]
        %v1708 = vld [vmem:[%s512 + $0x80] sm:$0xff]
        %v1709 = vld [vmem:[%s512 + $0x88] sm:$0xff]
        %v1710 = vld [vmem:[%s512 + $0x90] sm:$0xff]
        %v1711 = vld [vmem:[%s512 + $0x98] sm:$0xff]
        %v1712 = vld [vmem:[%s512 + $0xa0] sm:$0xff]
        %v1713 = vld [vmem:[%s512 + $0xa8] sm:$0xff]
        %v1714 = vld [vmem:[%s512 + $0xb0] sm:$0xff]
        %v1715 = vld [vmem:[%s512 + $0xb8] sm:$0xff]
        %v1716 = vld [vmem:[%s512 + $0xc0] sm:$0xff]
        %v1717 = vld [vmem:[%s512 + $0xc8] sm:$0xff]
        %v1718 = vld [vmem:[%s512 + $0xd0] sm:$0xff]
        %v1719 = vld [vmem:[%s512 + $0xd8] sm:$0xff]
        %v1720 = vld [vmem:[%s512 + $0xe0] sm:$0xff]
        %v1721 = vld [vmem:[%s512 + $0xe8] sm:$0xff]
        %v1722 = vld [vmem:[%s512 + $0xf0] sm:$0xff]
        %v1723 = vld [vmem:[%s512 + $0xf8] sm:$0xff]
        %v1725 = vperm.slane %v722, 0
        %v1726 = vperm.slane %v722, 1
        %v1761 = vunpack.c.l.b16 %v1692
        %v1762 = vunpack.c.h.b16 %v1692
        %v1763 = vunpack.c.l.b16 %v1693
        %v1764 = vunpack.c.h.b16 %v1693
        %v1765 = vunpack.c.l.b16 %v1694
        %v1766 = vunpack.c.h.b16 %v1694
        %v1767 = vunpack.c.l.b16 %v1695
        %v1768 = vunpack.c.h.b16 %v1695
        %v1769 = vunpack.c.l.b16 %v1696
        %v1770 = vunpack.c.h.b16 %v1696
        %v1771 = vunpack.c.l.b16 %v1697
        %v1772 = vunpack.c.h.b16 %v1697
        %v1773 = vunpack.c.l.b16 %v1698
        %v1774 = vunpack.c.h.b16 %v1698
        %v1775 = vunpack.c.l.b16 %v1699
        %v1776 = vunpack.c.h.b16 %v1699
        %v1777 = vunpack.c.l.b16 %v1700
        %v1778 = vunpack.c.h.b16 %v1700
        %v1779 = vunpack.c.l.b16 %v1701
        %v1780 = vunpack.c.h.b16 %v1701
        %v1781 = vunpack.c.l.b16 %v1702
        %v1782 = vunpack.c.h.b16 %v1702
        %v1783 = vunpack.c.l.b16 %v1703
        %v1784 = vunpack.c.h.b16 %v1703
        %v1785 = vunpack.c.l.b16 %v1704
        %v1786 = vunpack.c.h.b16 %v1704
        %v1787 = vunpack.c.l.b16 %v1705
        %v1788 = vunpack.c.h.b16 %v1705
        %v1789 = vunpack.c.l.b16 %v1706
        %v1790 = vunpack.c.h.b16 %v1706
        %v1791 = vunpack.c.l.b16 %v1707
        %v1792 = vunpack.c.h.b16 %v1707
        %v1793 = vunpack.c.l.b16 %v1708
        %v1794 = vunpack.c.h.b16 %v1708
        %v1795 = vunpack.c.l.b16 %v1709
        %v1796 = vunpack.c.h.b16 %v1709
        %v1797 = vunpack.c.l.b16 %v1710
        %v1798 = vunpack.c.h.b16 %v1710
        %v1799 = vunpack.c.l.b16 %v1711
        %v1800 = vunpack.c.h.b16 %v1711
        %v1801 = vunpack.c.l.b16 %v1712
        %v1802 = vunpack.c.h.b16 %v1712
        %v1803 = vunpack.c.l.b16 %v1713
        %v1804 = vunpack.c.h.b16 %v1713
        %v1805 = vunpack.c.l.b16 %v1714
        %v1806 = vunpack.c.h.b16 %v1714
        %v1807 = vunpack.c.l.b16 %v1715
        %v1808 = vunpack.c.h.b16 %v1715
        %v1809 = vunpack.c.l.b16 %v1716
        %v1810 = vunpack.c.h.b16 %v1716
        %v1811 = vunpack.c.l.b16 %v1717
        %v1812 = vunpack.c.h.b16 %v1717
        %v1813 = vunpack.c.l.b16 %v1718
        %v1814 = vunpack.c.h.b16 %v1718
        %v1815 = vunpack.c.l.b16 %v1719
        %v1816 = vunpack.c.h.b16 %v1719
        %v1817 = vunpack.c.l.b16 %v1720
        %v1818 = vunpack.c.h.b16 %v1720
        %v1819 = vunpack.c.l.b16 %v1721
        %v1820 = vunpack.c.h.b16 %v1721
        %v1821 = vunpack.c.l.b16 %v1722
        %v1822 = vunpack.c.h.b16 %v1722
        %v1823 = vunpack.c.l.b16 %v1723
        %v1824 = vunpack.c.h.b16 %v1723
        %v1825 = vpack.c.b16 %v1763, %v1761
        %v1826 = vpack.c.b16 %v1764, %v1762
        %v1827 = vpack.c.b16 %v1767, %v1765
        %v1828 = vpack.c.b16 %v1768, %v1766
        %v1829 = vpack.c.b16 %v1771, %v1769
        %v1830 = vpack.c.b16 %v1772, %v1770
        %v1831 = vpack.c.b16 %v1775, %v1773
        %v1832 = vpack.c.b16 %v1776, %v1774
        %v1833 = vpack.c.b16 %v1779, %v1777
        %v1834 = vpack.c.b16 %v1780, %v1778
        %v1835 = vpack.c.b16 %v1783, %v1781
        %v1836 = vpack.c.b16 %v1784, %v1782
        %v1837 = vpack.c.b16 %v1787, %v1785
        %v1838 = vpack.c.b16 %v1788, %v1786
        %v1839 = vpack.c.b16 %v1791, %v1789
        %v1840 = vpack.c.b16 %v1792, %v1790
        %v1841 = vpack.c.b16 %v1795, %v1793
        %v1842 = vpack.c.b16 %v1796, %v1794
        %v1843 = vpack.c.b16 %v1799, %v1797
        %v1844 = vpack.c.b16 %v1800, %v1798
        %v1845 = vpack.c.b16 %v1803, %v1801
        %v1846 = vpack.c.b16 %v1804, %v1802
        %v1847 = vpack.c.b16 %v1807, %v1805
        %v1848 = vpack.c.b16 %v1808, %v1806
        %v1849 = vpack.c.b16 %v1811, %v1809
        %v1850 = vpack.c.b16 %v1812, %v1810
        %v1851 = vpack.c.b16 %v1815, %v1813
        %v1852 = vpack.c.b16 %v1816, %v1814
        %v1853 = vpack.c.b16 %v1819, %v1817
        %v1854 = vpack.c.b16 %v1820, %v1818
        %v1855 = vpack.c.b16 %v1823, %v1821
        %v1856 = vpack.c.b16 %v1824, %v1822
        %1889 = vmatpush.bf16.msra.mxu0 %v1839
        %1890 = vmatpush.bf16.msra.mxu0 %v1837
        %1891 = vmatpush.bf16.msra.mxu0 %v1835
        %1892 = vmatpush.bf16.msra.mxu0 %v1833
        %1893 = vmatpush.bf16.msra.mxu0 %v1831
        %1894 = vmatpush.bf16.msra.mxu0 %v1829
        %1895 = vmatpush.bf16.msra.mxu0 %v1827
        %1896 = vmatpush.bf16.msra.mxu0 %v1825
        %1897 = vmatmul.bf16.gmra.mxu0 %v1690
        %v1898 = vpop.f32.mrf.mxu0
        %v1899 = vadd.f32 %v1725, %v1898
        %v1900 = vpop.f32.mrf.mxu0
        %v1901 = vadd.f32 %v1725, %v1900
        %1902 = vdwg.mxu0
        %1903 = vmatpush.bf16.msra.mxu0 %v1855
        %1904 = vmatpush.bf16.msra.mxu0 %v1853
        %1905 = vmatpush.bf16.msra.mxu0 %v1851
        %1906 = vmatpush.bf16.msra.mxu0 %v1849
        %1907 = vmatpush.bf16.msra.mxu0 %v1847
        %1908 = vmatpush.bf16.msra.mxu0 %v1845
        %1909 = vmatpush.bf16.msra.mxu0 %v1843
        %1910 = vmatpush.bf16.msra.mxu0 %v1841
        %1911 = vmatmul.bf16.gmra.mxu0 %v1691
        %v1912 = vpop.f32.mrf.mxu0
        %v1913 = vadd.f32 %v1899, %v1912
        %v1914 = vpop.f32.mrf.mxu0
        %v1915 = vadd.f32 %v1901, %v1914
        %1916 = vdwg.mxu0
        %1917 = vmatpush.bf16.msra.mxu0 %v1840
        %1918 = vmatpush.bf16.msra.mxu0 %v1838
        %1919 = vmatpush.bf16.msra.mxu0 %v1836
        %1920 = vmatpush.bf16.msra.mxu0 %v1834
        %1921 = vmatpush.bf16.msra.mxu0 %v1832
        %1922 = vmatpush.bf16.msra.mxu0 %v1830
        %1923 = vmatpush.bf16.msra.mxu0 %v1828
        %1924 = vmatpush.bf16.msra.mxu0 %v1826
        %1925 = vmatmul.bf16.gmra.mxu0 %v1690
        %v1926 = vpop.f32.mrf.mxu0
        %v1927 = vadd.f32 %v1726, %v1926
        %v1928 = vpop.f32.mrf.mxu0
        %v1929 = vadd.f32 %v1726, %v1928
        %1930 = vdwg.mxu0
        %1931 = vmatpush.bf16.msra.mxu0 %v1856
        %1932 = vmatpush.bf16.msra.mxu0 %v1854
        %1933 = vmatpush.bf16.msra.mxu0 %v1852
        %1934 = vmatpush.bf16.msra.mxu0 %v1850
        %1935 = vmatpush.bf16.msra.mxu0 %v1848
        %1936 = vmatpush.bf16.msra.mxu0 %v1846
        %1937 = vmatpush.bf16.msra.mxu0 %v1844
        %1938 = vmatpush.bf16.msra.mxu0 %v1842
        %1939 = vmatmul.bf16.gmra.mxu0 %v1691
        %v1940 = vpop.f32.mrf.mxu0
        %v1941 = vadd.f32 %v1927, %v1940
        %v1942 = vpop.f32.mrf.mxu0
        %v1943 = vadd.f32 %v1929, %v1942
        %1944 = vdwg.mxu0
        %v1945 = vadd.f32 %v709, %v1913
        %v1946 = vadd.f32 %v710, %v1941
        %v1947 = vadd.f32 %v711, %v1915
        %v1948 = vadd.f32 %v712, %v1943
        %v1949 = vadd.f32 %v1945, %v1946
        %1950 = vadd.xlane.f32.xlu0 %v1949
        %v1951 = vpop.xlane.xlu0 %1950
        %v1952 = vadd.f32 %v1947, %v1948
        %1953 = vadd.xlane.f32.xlu0 %v1952
        %v1954 = vpop.xlane.xlu0 %1953
        %v1955 = vmul.f32 %v1951, %v647
        %v1956 = vmul.f32 %v1954, %v647
        %v1957 = vsub.f32 %v1945, %v1955
        %v1958 = vsub.f32 %v1946, %v1955
        %v1959 = vsub.f32 %v1947, %v1956
        %v1960 = vsub.f32 %v1948, %v1956
        %v1961 = vmul.f32 %v1957, %v1957
        %v1962 = vmul.f32 %v1958, %v1958
        %v1963 = vmul.f32 %v1959, %v1959
        %v1964 = vmul.f32 %v1960, %v1960
        %v1965 = vadd.f32 %v1961, %v1962
        %1966 = vadd.xlane.f32.xlu0 %v1965
        %v1967 = vpop.xlane.xlu0 %1966
        %v1968 = vadd.f32 %v1963, %v1964
        %1969 = vadd.xlane.f32.xlu0 %v1968
        %v1970 = vpop.xlane.xlu0 %1969
        %v1971 = vmul.f32 %v1967, %v647
        %v1972 = vmul.f32 %v1970, %v647
        %v1973 = vadd.f32 %v1971, 1e-12
        %v1974 = vadd.f32 %v1972, 1e-12
        %v1975 = vrsqrt.pop %v1973
        %v1976 = vmul.f32 %v1975, %v1973
        %v1977 = vmul.f32 %v1976, %v1975
        %v1978 = vmul.f32 0.5, %v1977
        %v1979 = vsub.f32 1.5, %v1978
        %v1980 = vmul.f32 %v1975, %v1979
        %vm1981 = vweird.f32 %v1973
        %vm1982 = vweird.f32 %v1975
        %vm1983 = vmor %vm1981, %vm1982
        %v1984 = vsel %vm1983, %v1975, %v1980
        %v1985 = vrsqrt.pop %v1974
        %v1986 = vmul.f32 %v1985, %v1974
        %v1987 = vmul.f32 %v1986, %v1985
        %v1988 = vmul.f32 0.5, %v1987
        %v1989 = vsub.f32 1.5, %v1988
        %v1990 = vmul.f32 %v1985, %v1989
        %vm1991 = vweird.f32 %v1974
        %vm1992 = vweird.f32 %v1985
        %vm1993 = vmor %vm1991, %vm1992
        %v1994 = vsel %vm1993, %v1985, %v1990
        %v1995 = vmul.f32 %v1957, %v1984
        %v1996 = vmul.f32 %v1958, %v1984
        %v1997 = vmul.f32 %v1959, %v1994
        %v1998 = vmul.f32 %v1960, %v1994
        %v1999 = vrot.slane %v722, 2
        %v2000 = vperm.slane %v1999, 0
        %v2001 = vperm.slane %v1999, 1
        %v2004 = vmul.f32 %v1995, %v2000
        %v2005 = vmul.f32 %v1996, %v2001
        %v2006 = vmul.f32 %v1997, %v2000
        %v2007 = vmul.f32 %v1998, %v2001
        %v2008 = vrot.slane %v722, 4
        %v2009 = vperm.slane %v2008, 0
        %v2010 = vperm.slane %v2008, 1
        %v2013 = vadd.f32 %v2004, %v2009
        %v2014 = vadd.f32 %v2005, %v2010
        %v2015 = vadd.f32 %v2006, %v2009
        %v2016 = vadd.f32 %v2007, %v2010
        %v2017 = vpack.c.bf16 %v2015, %v2013
        %v2018 = vpack.c.bf16 %v2016, %v2014
        %v2019 = vld [vmem:[%s522] sm:$0xff]
        %v2020 = vld [vmem:[%s522 + $0x8] sm:$0xff]
        %v2021 = vld [vmem:[%s522 + $0x10] sm:$0xff]
        %v2022 = vld [vmem:[%s522 + $0x18] sm:$0xff]
        %v2023 = vld [vmem:[%s522 + $0x20] sm:$0xff]
        %v2024 = vld [vmem:[%s522 + $0x28] sm:$0xff]
        %v2025 = vld [vmem:[%s522 + $0x30] sm:$0xff]
        %v2026 = vld [vmem:[%s522 + $0x38] sm:$0xff]
        %v2027 = vld [vmem:[%s522 + $0x40] sm:$0xff]
        %v2028 = vld [vmem:[%s522 + $0x48] sm:$0xff]
        %v2029 = vld [vmem:[%s522 + $0x50] sm:$0xff]
        %v2030 = vld [vmem:[%s522 + $0x58] sm:$0xff]
        %v2031 = vld [vmem:[%s522 + $0x60] sm:$0xff]
        %v2032 = vld [vmem:[%s522 + $0x68] sm:$0xff]
        %v2033 = vld [vmem:[%s522 + $0x70] sm:$0xff]
        %v2034 = vld [vmem:[%s522 + $0x78] sm:$0xff]
        %v2035 = vld [vmem:[%s522 + $0x80] sm:$0xff]
        %v2036 = vld [vmem:[%s522 + $0x88] sm:$0xff]
        %v2037 = vld [vmem:[%s522 + $0x90] sm:$0xff]
        %v2038 = vld [vmem:[%s522 + $0x98] sm:$0xff]
        %v2039 = vld [vmem:[%s522 + $0xa0] sm:$0xff]
        %v2040 = vld [vmem:[%s522 + $0xa8] sm:$0xff]
        %v2041 = vld [vmem:[%s522 + $0xb0] sm:$0xff]
        %v2042 = vld [vmem:[%s522 + $0xb8] sm:$0xff]
        %v2043 = vld [vmem:[%s522 + $0xc0] sm:$0xff]
        %v2044 = vld [vmem:[%s522 + $0xc8] sm:$0xff]
        %v2045 = vld [vmem:[%s522 + $0xd0] sm:$0xff]
        %v2046 = vld [vmem:[%s522 + $0xd8] sm:$0xff]
        %v2047 = vld [vmem:[%s522 + $0xe0] sm:$0xff]
        %v2048 = vld [vmem:[%s522 + $0xe8] sm:$0xff]
        %v2049 = vld [vmem:[%s522 + $0xf0] sm:$0xff]
        %v2050 = vld [vmem:[%s522 + $0xf8] sm:$0xff]
        %v2051 = vld [vmem:[%s522 + $0x100] sm:$0xff]
        %v2052 = vld [vmem:[%s522 + $0x108] sm:$0xff]
        %v2053 = vld [vmem:[%s522 + $0x110] sm:$0xff]
        %v2054 = vld [vmem:[%s522 + $0x118] sm:$0xff]
        %v2055 = vld [vmem:[%s522 + $0x120] sm:$0xff]
        %v2056 = vld [vmem:[%s522 + $0x128] sm:$0xff]
        %v2057 = vld [vmem:[%s522 + $0x130] sm:$0xff]
        %v2058 = vld [vmem:[%s522 + $0x138] sm:$0xff]
        %v2059 = vld [vmem:[%s522 + $0x140] sm:$0xff]
        %v2060 = vld [vmem:[%s522 + $0x148] sm:$0xff]
        %v2061 = vld [vmem:[%s522 + $0x150] sm:$0xff]
        %v2062 = vld [vmem:[%s522 + $0x158] sm:$0xff]
        %v2063 = vld [vmem:[%s522 + $0x160] sm:$0xff]
        %v2064 = vld [vmem:[%s522 + $0x168] sm:$0xff]
        %v2065 = vld [vmem:[%s522 + $0x170] sm:$0xff]
        %v2066 = vld [vmem:[%s522 + $0x178] sm:$0xff]
        %v2067 = vld [vmem:[%s522 + $0x180] sm:$0xff]
        %v2068 = vld [vmem:[%s522 + $0x188] sm:$0xff]
        %v2069 = vld [vmem:[%s522 + $0x190] sm:$0xff]
        %v2070 = vld [vmem:[%s522 + $0x198] sm:$0xff]
        %v2071 = vld [vmem:[%s522 + $0x1a0] sm:$0xff]
        %v2072 = vld [vmem:[%s522 + $0x1a8] sm:$0xff]
        %v2073 = vld [vmem:[%s522 + $0x1b0] sm:$0xff]
        %v2074 = vld [vmem:[%s522 + $0x1b8] sm:$0xff]
        %v2075 = vld [vmem:[%s522 + $0x1c0] sm:$0xff]
        %v2076 = vld [vmem:[%s522 + $0x1c8] sm:$0xff]
        %v2077 = vld [vmem:[%s522 + $0x1d0] sm:$0xff]
        %v2078 = vld [vmem:[%s522 + $0x1d8] sm:$0xff]
        %v2079 = vld [vmem:[%s522 + $0x1e0] sm:$0xff]
        %v2080 = vld [vmem:[%s522 + $0x1e8] sm:$0xff]
        %v2081 = vld [vmem:[%s522 + $0x1f0] sm:$0xff]
        %v2082 = vld [vmem:[%s522 + $0x1f8] sm:$0xff]
        %v2083 = vld [vmem:[%s522 + $0x200] sm:$0xff]
        %v2084 = vld [vmem:[%s522 + $0x208] sm:$0xff]
        %v2085 = vld [vmem:[%s522 + $0x210] sm:$0xff]
        %v2086 = vld [vmem:[%s522 + $0x218] sm:$0xff]
        %v2087 = vld [vmem:[%s522 + $0x220] sm:$0xff]
        %v2088 = vld [vmem:[%s522 + $0x228] sm:$0xff]
        %v2089 = vld [vmem:[%s522 + $0x230] sm:$0xff]
        %v2090 = vld [vmem:[%s522 + $0x238] sm:$0xff]
        %v2091 = vld [vmem:[%s522 + $0x240] sm:$0xff]
        %v2092 = vld [vmem:[%s522 + $0x248] sm:$0xff]
        %v2093 = vld [vmem:[%s522 + $0x250] sm:$0xff]
        %v2094 = vld [vmem:[%s522 + $0x258] sm:$0xff]
        %v2095 = vld [vmem:[%s522 + $0x260] sm:$0xff]
        %v2096 = vld [vmem:[%s522 + $0x268] sm:$0xff]
        %v2097 = vld [vmem:[%s522 + $0x270] sm:$0xff]
        %v2098 = vld [vmem:[%s522 + $0x278] sm:$0xff]
        %v2099 = vld [vmem:[%s522 + $0x280] sm:$0xff]
        %v2100 = vld [vmem:[%s522 + $0x288] sm:$0xff]
        %v2101 = vld [vmem:[%s522 + $0x290] sm:$0xff]
        %v2102 = vld [vmem:[%s522 + $0x298] sm:$0xff]
        %v2103 = vld [vmem:[%s522 + $0x2a0] sm:$0xff]
        %v2104 = vld [vmem:[%s522 + $0x2a8] sm:$0xff]
        %v2105 = vld [vmem:[%s522 + $0x2b0] sm:$0xff]
        %v2106 = vld [vmem:[%s522 + $0x2b8] sm:$0xff]
        %v2107 = vld [vmem:[%s522 + $0x2c0] sm:$0xff]
        %v2108 = vld [vmem:[%s522 + $0x2c8] sm:$0xff]
        %v2109 = vld [vmem:[%s522 + $0x2d0] sm:$0xff]
        %v2110 = vld [vmem:[%s522 + $0x2d8] sm:$0xff]
        %v2111 = vld [vmem:[%s522 + $0x2e0] sm:$0xff]
        %v2112 = vld [vmem:[%s522 + $0x2e8] sm:$0xff]
        %v2113 = vld [vmem:[%s522 + $0x2f0] sm:$0xff]
        %v2114 = vld [vmem:[%s522 + $0x2f8] sm:$0xff]
        %v2115 = vld [vmem:[%s522 + $0x300] sm:$0xff]
        %v2116 = vld [vmem:[%s522 + $0x308] sm:$0xff]
        %v2117 = vld [vmem:[%s522 + $0x310] sm:$0xff]
        %v2118 = vld [vmem:[%s522 + $0x318] sm:$0xff]
        %v2119 = vld [vmem:[%s522 + $0x320] sm:$0xff]
        %v2120 = vld [vmem:[%s522 + $0x328] sm:$0xff]
        %v2121 = vld [vmem:[%s522 + $0x330] sm:$0xff]
        %v2122 = vld [vmem:[%s522 + $0x338] sm:$0xff]
        %v2123 = vld [vmem:[%s522 + $0x340] sm:$0xff]
        %v2124 = vld [vmem:[%s522 + $0x348] sm:$0xff]
        %v2125 = vld [vmem:[%s522 + $0x350] sm:$0xff]
        %v2126 = vld [vmem:[%s522 + $0x358] sm:$0xff]
        %v2127 = vld [vmem:[%s522 + $0x360] sm:$0xff]
        %v2128 = vld [vmem:[%s522 + $0x368] sm:$0xff]
        %v2129 = vld [vmem:[%s522 + $0x370] sm:$0xff]
        %v2130 = vld [vmem:[%s522 + $0x378] sm:$0xff]
        %v2131 = vld [vmem:[%s522 + $0x380] sm:$0xff]
        %v2132 = vld [vmem:[%s522 + $0x388] sm:$0xff]
        %v2133 = vld [vmem:[%s522 + $0x390] sm:$0xff]
        %v2134 = vld [vmem:[%s522 + $0x398] sm:$0xff]
        %v2135 = vld [vmem:[%s522 + $0x3a0] sm:$0xff]
        %v2136 = vld [vmem:[%s522 + $0x3a8] sm:$0xff]
        %v2137 = vld [vmem:[%s522 + $0x3b0] sm:$0xff]
        %v2138 = vld [vmem:[%s522 + $0x3b8] sm:$0xff]
        %v2139 = vld [vmem:[%s522 + $0x3c0] sm:$0xff]
        %v2140 = vld [vmem:[%s522 + $0x3c8] sm:$0xff]
        %v2141 = vld [vmem:[%s522 + $0x3d0] sm:$0xff]
        %v2142 = vld [vmem:[%s522 + $0x3d8] sm:$0xff]
        %v2143 = vld [vmem:[%s522 + $0x3e0] sm:$0xff]
        %v2144 = vld [vmem:[%s522 + $0x3e8] sm:$0xff]
        %v2145 = vld [vmem:[%s522 + $0x3f0] sm:$0xff]
        %v2146 = vld [vmem:[%s522 + $0x3f8] sm:$0xff]
        %v2148 = vrot.slane %v726, 2
        %v2149 = vrot.slane %v728, 2
        %vm2150 = vcmask 1045504
        %v2151 = vsel %vm2150, %v2148, %v2149
        %v2152 = vperm.slane %v2151, 0
        %v2153 = vperm.slane %v2151, 1
        %v2154 = vperm.slane %v2151, 2
        %v2155 = vperm.slane %v2151, 3
        %v2156 = vperm.slane %v2151, 4
        %v2157 = vperm.slane %v2151, 5
        %v2158 = vperm.slane %v2151, 6
        %v2159 = vperm.slane %v2151, 7
        %v2296 = vunpack.c.l.b16 %v2019
        %v2297 = vunpack.c.h.b16 %v2019
        %v2298 = vunpack.c.l.b16 %v2020
        %v2299 = vunpack.c.h.b16 %v2020
        %v2300 = vunpack.c.l.b16 %v2021
        %v2301 = vunpack.c.h.b16 %v2021
        %v2302 = vunpack.c.l.b16 %v2022
        %v2303 = vunpack.c.h.b16 %v2022
        %v2304 = vunpack.c.l.b16 %v2023
        %v2305 = vunpack.c.h.b16 %v2023
        %v2306 = vunpack.c.l.b16 %v2024
        %v2307 = vunpack.c.h.b16 %v2024
        %v2308 = vunpack.c.l.b16 %v2025
        %v2309 = vunpack.c.h.b16 %v2025
        %v2310 = vunpack.c.l.b16 %v2026
        %v2311 = vunpack.c.h.b16 %v2026
        %v2312 = vunpack.c.l.b16 %v2027
        %v2313 = vunpack.c.h.b16 %v2027
        %v2314 = vunpack.c.l.b16 %v2028
        %v2315 = vunpack.c.h.b16 %v2028
        %v2316 = vunpack.c.l.b16 %v2029
        %v2317 = vunpack.c.h.b16 %v2029
        %v2318 = vunpack.c.l.b16 %v2030
        %v2319 = vunpack.c.h.b16 %v2030
        %v2320 = vunpack.c.l.b16 %v2031
        %v2321 = vunpack.c.h.b16 %v2031
        %v2322 = vunpack.c.l.b16 %v2032
        %v2323 = vunpack.c.h.b16 %v2032
        %v2324 = vunpack.c.l.b16 %v2033
        %v2325 = vunpack.c.h.b16 %v2033
        %v2326 = vunpack.c.l.b16 %v2034
        %v2327 = vunpack.c.h.b16 %v2034
        %v2328 = vunpack.c.l.b16 %v2035
        %v2329 = vunpack.c.h.b16 %v2035
        %v2330 = vunpack.c.l.b16 %v2036
        %v2331 = vunpack.c.h.b16 %v2036
        %v2332 = vunpack.c.l.b16 %v2037
        %v2333 = vunpack.c.h.b16 %v2037
        %v2334 = vunpack.c.l.b16 %v2038
        %v2335 = vunpack.c.h.b16 %v2038
        %v2336 = vunpack.c.l.b16 %v2039
        %v2337 = vunpack.c.h.b16 %v2039
        %v2338 = vunpack.c.l.b16 %v2040
        %v2339 = vunpack.c.h.b16 %v2040
        %v2340 = vunpack.c.l.b16 %v2041
        %v2341 = vunpack.c.h.b16 %v2041
        %v2342 = vunpack.c.l.b16 %v2042
        %v2343 = vunpack.c.h.b16 %v2042
        %v2344 = vunpack.c.l.b16 %v2043
        %v2345 = vunpack.c.h.b16 %v2043
        %v2346 = vunpack.c.l.b16 %v2044
        %v2347 = vunpack.c.h.b16 %v2044
        %v2348 = vunpack.c.l.b16 %v2045
        %v2349 = vunpack.c.h.b16 %v2045
        %v2350 = vunpack.c.l.b16 %v2046
        %v2351 = vunpack.c.h.b16 %v2046
        %v2352 = vunpack.c.l.b16 %v2047
        %v2353 = vunpack.c.h.b16 %v2047
        %v2354 = vunpack.c.l.b16 %v2048
        %v2355 = vunpack.c.h.b16 %v2048
        %v2356 = vunpack.c.l.b16 %v2049
        %v2357 = vunpack.c.h.b16 %v2049
        %v2358 = vunpack.c.l.b16 %v2050
        %v2359 = vunpack.c.h.b16 %v2050
        %v2360 = vunpack.c.l.b16 %v2051
        %v2361 = vunpack.c.h.b16 %v2051
        %v2362 = vunpack.c.l.b16 %v2052
        %v2363 = vunpack.c.h.b16 %v2052
        %v2364 = vunpack.c.l.b16 %v2053
        %v2365 = vunpack.c.h.b16 %v2053
        %v2366 = vunpack.c.l.b16 %v2054
        %v2367 = vunpack.c.h.b16 %v2054
        %v2368 = vunpack.c.l.b16 %v2055
        %v2369 = vunpack.c.h.b16 %v2055
        %v2370 = vunpack.c.l.b16 %v2056
        %v2371 = vunpack.c.h.b16 %v2056
        %v2372 = vunpack.c.l.b16 %v2057
        %v2373 = vunpack.c.h.b16 %v2057
        %v2374 = vunpack.c.l.b16 %v2058
        %v2375 = vunpack.c.h.b16 %v2058
        %v2376 = vunpack.c.l.b16 %v2059
        %v2377 = vunpack.c.h.b16 %v2059
        %v2378 = vunpack.c.l.b16 %v2060
        %v2379 = vunpack.c.h.b16 %v2060
        %v2380 = vunpack.c.l.b16 %v2061
        %v2381 = vunpack.c.h.b16 %v2061
        %v2382 = vunpack.c.l.b16 %v2062
        %v2383 = vunpack.c.h.b16 %v2062
        %v2384 = vunpack.c.l.b16 %v2063
        %v2385 = vunpack.c.h.b16 %v2063
        %v2386 = vunpack.c.l.b16 %v2064
        %v2387 = vunpack.c.h.b16 %v2064
        %v2388 = vunpack.c.l.b16 %v2065
        %v2389 = vunpack.c.h.b16 %v2065
        %v2390 = vunpack.c.l.b16 %v2066
        %v2391 = vunpack.c.h.b16 %v2066
        %v2392 = vunpack.c.l.b16 %v2067
        %v2393 = vunpack.c.h.b16 %v2067
        %v2394 = vunpack.c.l.b16 %v2068
        %v2395 = vunpack.c.h.b16 %v2068
        %v2396 = vunpack.c.l.b16 %v2069
        %v2397 = vunpack.c.h.b16 %v2069
        %v2398 = vunpack.c.l.b16 %v2070
        %v2399 = vunpack.c.h.b16 %v2070
        %v2400 = vunpack.c.l.b16 %v2071
        %v2401 = vunpack.c.h.b16 %v2071
        %v2402 = vunpack.c.l.b16 %v2072
        %v2403 = vunpack.c.h.b16 %v2072
        %v2404 = vunpack.c.l.b16 %v2073
        %v2405 = vunpack.c.h.b16 %v2073
        %v2406 = vunpack.c.l.b16 %v2074
        %v2407 = vunpack.c.h.b16 %v2074
        %v2408 = vunpack.c.l.b16 %v2075
        %v2409 = vunpack.c.h.b16 %v2075
        %v2410 = vunpack.c.l.b16 %v2076
        %v2411 = vunpack.c.h.b16 %v2076
        %v2412 = vunpack.c.l.b16 %v2077
        %v2413 = vunpack.c.h.b16 %v2077
        %v2414 = vunpack.c.l.b16 %v2078
        %v2415 = vunpack.c.h.b16 %v2078
        %v2416 = vunpack.c.l.b16 %v2079
        %v2417 = vunpack.c.h.b16 %v2079
        %v2418 = vunpack.c.l.b16 %v2080
        %v2419 = vunpack.c.h.b16 %v2080
        %v2420 = vunpack.c.l.b16 %v2081
        %v2421 = vunpack.c.h.b16 %v2081
        %v2422 = vunpack.c.l.b16 %v2082
        %v2423 = vunpack.c.h.b16 %v2082
        %v2424 = vunpack.c.l.b16 %v2083
        %v2425 = vunpack.c.h.b16 %v2083
        %v2426 = vunpack.c.l.b16 %v2084
        %v2427 = vunpack.c.h.b16 %v2084
        %v2428 = vunpack.c.l.b16 %v2085
        %v2429 = vunpack.c.h.b16 %v2085
        %v2430 = vunpack.c.l.b16 %v2086
        %v2431 = vunpack.c.h.b16 %v2086
        %v2432 = vunpack.c.l.b16 %v2087
        %v2433 = vunpack.c.h.b16 %v2087
        %v2434 = vunpack.c.l.b16 %v2088
        %v2435 = vunpack.c.h.b16 %v2088
        %v2436 = vunpack.c.l.b16 %v2089
        %v2437 = vunpack.c.h.b16 %v2089
        %v2438 = vunpack.c.l.b16 %v2090
        %v2439 = vunpack.c.h.b16 %v2090
        %v2440 = vunpack.c.l.b16 %v2091
        %v2441 = vunpack.c.h.b16 %v2091
        %v2442 = vunpack.c.l.b16 %v2092
        %v2443 = vunpack.c.h.b16 %v2092
        %v2444 = vunpack.c.l.b16 %v2093
        %v2445 = vunpack.c.h.b16 %v2093
        %v2446 = vunpack.c.l.b16 %v2094
        %v2447 = vunpack.c.h.b16 %v2094
        %v2448 = vunpack.c.l.b16 %v2095
        %v2449 = vunpack.c.h.b16 %v2095
        %v2450 = vunpack.c.l.b16 %v2096
        %v2451 = vunpack.c.h.b16 %v2096
        %v2452 = vunpack.c.l.b16 %v2097
        %v2453 = vunpack.c.h.b16 %v2097
        %v2454 = vunpack.c.l.b16 %v2098
        %v2455 = vunpack.c.h.b16 %v2098
        %v2456 = vunpack.c.l.b16 %v2099
        %v2457 = vunpack.c.h.b16 %v2099
        %v2458 = vunpack.c.l.b16 %v2100
        %v2459 = vunpack.c.h.b16 %v2100
        %v2460 = vunpack.c.l.b16 %v2101
        %v2461 = vunpack.c.h.b16 %v2101
        %v2462 = vunpack.c.l.b16 %v2102
        %v2463 = vunpack.c.h.b16 %v2102
        %v2464 = vunpack.c.l.b16 %v2103
        %v2465 = vunpack.c.h.b16 %v2103
        %v2466 = vunpack.c.l.b16 %v2104
        %v2467 = vunpack.c.h.b16 %v2104
        %v2468 = vunpack.c.l.b16 %v2105
        %v2469 = vunpack.c.h.b16 %v2105
        %v2470 = vunpack.c.l.b16 %v2106
        %v2471 = vunpack.c.h.b16 %v2106
        %v2472 = vunpack.c.l.b16 %v2107
        %v2473 = vunpack.c.h.b16 %v2107
        %v2474 = vunpack.c.l.b16 %v2108
        %v2475 = vunpack.c.h.b16 %v2108
        %v2476 = vunpack.c.l.b16 %v2109
        %v2477 = vunpack.c.h.b16 %v2109
        %v2478 = vunpack.c.l.b16 %v2110
        %v2479 = vunpack.c.h.b16 %v2110
        %v2480 = vunpack.c.l.b16 %v2111
        %v2481 = vunpack.c.h.b16 %v2111
        %v2482 = vunpack.c.l.b16 %v2112
        %v2483 = vunpack.c.h.b16 %v2112
        %v2484 = vunpack.c.l.b16 %v2113
        %v2485 = vunpack.c.h.b16 %v2113
        %v2486 = vunpack.c.l.b16 %v2114
        %v2487 = vunpack.c.h.b16 %v2114
        %v2488 = vunpack.c.l.b16 %v2115
        %v2489 = vunpack.c.h.b16 %v2115
        %v2490 = vunpack.c.l.b16 %v2116
        %v2491 = vunpack.c.h.b16 %v2116
        %v2492 = vunpack.c.l.b16 %v2117
        %v2493 = vunpack.c.h.b16 %v2117
        %v2494 = vunpack.c.l.b16 %v2118
        %v2495 = vunpack.c.h.b16 %v2118
        %v2496 = vunpack.c.l.b16 %v2119
        %v2497 = vunpack.c.h.b16 %v2119
        %v2498 = vunpack.c.l.b16 %v2120
        %v2499 = vunpack.c.h.b16 %v2120
        %v2500 = vunpack.c.l.b16 %v2121
        %v2501 = vunpack.c.h.b16 %v2121
        %v2502 = vunpack.c.l.b16 %v2122
        %v2503 = vunpack.c.h.b16 %v2122
        %v2504 = vunpack.c.l.b16 %v2123
        %v2505 = vunpack.c.h.b16 %v2123
        %v2506 = vunpack.c.l.b16 %v2124
        %v2507 = vunpack.c.h.b16 %v2124
        %v2508 = vunpack.c.l.b16 %v2125
        %v2509 = vunpack.c.h.b16 %v2125
        %v2510 = vunpack.c.l.b16 %v2126
        %v2511 = vunpack.c.h.b16 %v2126
        %v2512 = vunpack.c.l.b16 %v2127
        %v2513 = vunpack.c.h.b16 %v2127
        %v2514 = vunpack.c.l.b16 %v2128
        %v2515 = vunpack.c.h.b16 %v2128
        %v2516 = vunpack.c.l.b16 %v2129
        %v2517 = vunpack.c.h.b16 %v2129
        %v2518 = vunpack.c.l.b16 %v2130
        %v2519 = vunpack.c.h.b16 %v2130
        %v2520 = vunpack.c.l.b16 %v2131
        %v2521 = vunpack.c.h.b16 %v2131
        %v2522 = vunpack.c.l.b16 %v2132
        %v2523 = vunpack.c.h.b16 %v2132
        %v2524 = vunpack.c.l.b16 %v2133
        %v2525 = vunpack.c.h.b16 %v2133
        %v2526 = vunpack.c.l.b16 %v2134
        %v2527 = vunpack.c.h.b16 %v2134
        %v2528 = vunpack.c.l.b16 %v2135
        %v2529 = vunpack.c.h.b16 %v2135
        %v2530 = vunpack.c.l.b16 %v2136
        %v2531 = vunpack.c.h.b16 %v2136
        %v2532 = vunpack.c.l.b16 %v2137
        %v2533 = vunpack.c.h.b16 %v2137
        %v2534 = vunpack.c.l.b16 %v2138
        %v2535 = vunpack.c.h.b16 %v2138
        %v2536 = vunpack.c.l.b16 %v2139
        %v2537 = vunpack.c.h.b16 %v2139
        %v2538 = vunpack.c.l.b16 %v2140
        %v2539 = vunpack.c.h.b16 %v2140
        %v2540 = vunpack.c.l.b16 %v2141
        %v2541 = vunpack.c.h.b16 %v2141
        %v2542 = vunpack.c.l.b16 %v2142
        %v2543 = vunpack.c.h.b16 %v2142
        %v2544 = vunpack.c.l.b16 %v2143
        %v2545 = vunpack.c.h.b16 %v2143
        %v2546 = vunpack.c.l.b16 %v2144
        %v2547 = vunpack.c.h.b16 %v2144
        %v2548 = vunpack.c.l.b16 %v2145
        %v2549 = vunpack.c.h.b16 %v2145
        %v2550 = vunpack.c.l.b16 %v2146
        %v2551 = vunpack.c.h.b16 %v2146
        %v2552 = vpack.c.b16 %v2304, %v2296
        %v2553 = vpack.c.b16 %v2305, %v2297
        %v2554 = vpack.c.b16 %v2306, %v2298
        %v2555 = vpack.c.b16 %v2307, %v2299
        %v2556 = vpack.c.b16 %v2308, %v2300
        %v2557 = vpack.c.b16 %v2309, %v2301
        %v2558 = vpack.c.b16 %v2310, %v2302
        %v2559 = vpack.c.b16 %v2311, %v2303
        %v2560 = vpack.c.b16 %v2320, %v2312
        %v2561 = vpack.c.b16 %v2321, %v2313
        %v2562 = vpack.c.b16 %v2322, %v2314
        %v2563 = vpack.c.b16 %v2323, %v2315
        %v2564 = vpack.c.b16 %v2324, %v2316
        %v2565 = vpack.c.b16 %v2325, %v2317
        %v2566 = vpack.c.b16 %v2326, %v2318
        %v2567 = vpack.c.b16 %v2327, %v2319
        %v2568 = vpack.c.b16 %v2336, %v2328
        %v2569 = vpack.c.b16 %v2337, %v2329
        %v2570 = vpack.c.b16 %v2338, %v2330
        %v2571 = vpack.c.b16 %v2339, %v2331
        %v2572 = vpack.c.b16 %v2340, %v2332
        %v2573 = vpack.c.b16 %v2341, %v2333
        %v2574 = vpack.c.b16 %v2342, %v2334
        %v2575 = vpack.c.b16 %v2343, %v2335
        %v2576 = vpack.c.b16 %v2352, %v2344
        %v2577 = vpack.c.b16 %v2353, %v2345
        %v2578 = vpack.c.b16 %v2354, %v2346
        %v2579 = vpack.c.b16 %v2355, %v2347
        %v2580 = vpack.c.b16 %v2356, %v2348
        %v2581 = vpack.c.b16 %v2357, %v2349
        %v2582 = vpack.c.b16 %v2358, %v2350
        %v2583 = vpack.c.b16 %v2359, %v2351
        %v2584 = vpack.c.b16 %v2368, %v2360
        %v2585 = vpack.c.b16 %v2369, %v2361
        %v2586 = vpack.c.b16 %v2370, %v2362
        %v2587 = vpack.c.b16 %v2371, %v2363
        %v2588 = vpack.c.b16 %v2372, %v2364
        %v2589 = vpack.c.b16 %v2373, %v2365
        %v2590 = vpack.c.b16 %v2374, %v2366
        %v2591 = vpack.c.b16 %v2375, %v2367
        %v2592 = vpack.c.b16 %v2384, %v2376
        %v2593 = vpack.c.b16 %v2385, %v2377
        %v2594 = vpack.c.b16 %v2386, %v2378
        %v2595 = vpack.c.b16 %v2387, %v2379
        %v2596 = vpack.c.b16 %v2388, %v2380
        %v2597 = vpack.c.b16 %v2389, %v2381
        %v2598 = vpack.c.b16 %v2390, %v2382
        %v2599 = vpack.c.b16 %v2391, %v2383
        %v2600 = vpack.c.b16 %v2400, %v2392
        %v2601 = vpack.c.b16 %v2401, %v2393
        %v2602 = vpack.c.b16 %v2402, %v2394
        %v2603 = vpack.c.b16 %v2403, %v2395
        %v2604 = vpack.c.b16 %v2404, %v2396
        %v2605 = vpack.c.b16 %v2405, %v2397
        %v2606 = vpack.c.b16 %v2406, %v2398
        %v2607 = vpack.c.b16 %v2407, %v2399
        %v2608 = vpack.c.b16 %v2416, %v2408
        %v2609 = vpack.c.b16 %v2417, %v2409
        %v2610 = vpack.c.b16 %v2418, %v2410
        %v2611 = vpack.c.b16 %v2419, %v2411
        %v2612 = vpack.c.b16 %v2420, %v2412
        %v2613 = vpack.c.b16 %v2421, %v2413
        %v2614 = vpack.c.b16 %v2422, %v2414
        %v2615 = vpack.c.b16 %v2423, %v2415
        %v2616 = vpack.c.b16 %v2432, %v2424
        %v2617 = vpack.c.b16 %v2433, %v2425
        %v2618 = vpack.c.b16 %v2434, %v2426
        %v2619 = vpack.c.b16 %v2435, %v2427
        %v2620 = vpack.c.b16 %v2436, %v2428
        %v2621 = vpack.c.b16 %v2437, %v2429
        %v2622 = vpack.c.b16 %v2438, %v2430
        %v2623 = vpack.c.b16 %v2439, %v2431
        %v2624 = vpack.c.b16 %v2448, %v2440
        %v2625 = vpack.c.b16 %v2449, %v2441
        %v2626 = vpack.c.b16 %v2450, %v2442
        %v2627 = vpack.c.b16 %v2451, %v2443
        %v2628 = vpack.c.b16 %v2452, %v2444
        %v2629 = vpack.c.b16 %v2453, %v2445
        %v2630 = vpack.c.b16 %v2454, %v2446
        %v2631 = vpack.c.b16 %v2455, %v2447
        %v2632 = vpack.c.b16 %v2464, %v2456
        %v2633 = vpack.c.b16 %v2465, %v2457
        %v2634 = vpack.c.b16 %v2466, %v2458
        %v2635 = vpack.c.b16 %v2467, %v2459
        %v2636 = vpack.c.b16 %v2468, %v2460
        %v2637 = vpack.c.b16 %v2469, %v2461
        %v2638 = vpack.c.b16 %v2470, %v2462
        %v2639 = vpack.c.b16 %v2471, %v2463
        %v2640 = vpack.c.b16 %v2480, %v2472
        %v2641 = vpack.c.b16 %v2481, %v2473
        %v2642 = vpack.c.b16 %v2482, %v2474
        %v2643 = vpack.c.b16 %v2483, %v2475
        %v2644 = vpack.c.b16 %v2484, %v2476
        %v2645 = vpack.c.b16 %v2485, %v2477
        %v2646 = vpack.c.b16 %v2486, %v2478
        %v2647 = vpack.c.b16 %v2487, %v2479
        %v2648 = vpack.c.b16 %v2496, %v2488
        %v2649 = vpack.c.b16 %v2497, %v2489
        %v2650 = vpack.c.b16 %v2498, %v2490
        %v2651 = vpack.c.b16 %v2499, %v2491
        %v2652 = vpack.c.b16 %v2500, %v2492
        %v2653 = vpack.c.b16 %v2501, %v2493
        %v2654 = vpack.c.b16 %v2502, %v2494
        %v2655 = vpack.c.b16 %v2503, %v2495
        %v2656 = vpack.c.b16 %v2512, %v2504
        %v2657 = vpack.c.b16 %v2513, %v2505
        %v2658 = vpack.c.b16 %v2514, %v2506
        %v2659 = vpack.c.b16 %v2515, %v2507
        %v2660 = vpack.c.b16 %v2516, %v2508
        %v2661 = vpack.c.b16 %v2517, %v2509
        %v2662 = vpack.c.b16 %v2518, %v2510
        %v2663 = vpack.c.b16 %v2519, %v2511
        %v2664 = vpack.c.b16 %v2528, %v2520
        %v2665 = vpack.c.b16 %v2529, %v2521
        %v2666 = vpack.c.b16 %v2530, %v2522
        %v2667 = vpack.c.b16 %v2531, %v2523
        %v2668 = vpack.c.b16 %v2532, %v2524
        %v2669 = vpack.c.b16 %v2533, %v2525
        %v2670 = vpack.c.b16 %v2534, %v2526
        %v2671 = vpack.c.b16 %v2535, %v2527
        %v2672 = vpack.c.b16 %v2544, %v2536
        %v2673 = vpack.c.b16 %v2545, %v2537
        %v2674 = vpack.c.b16 %v2546, %v2538
        %v2675 = vpack.c.b16 %v2547, %v2539
        %v2676 = vpack.c.b16 %v2548, %v2540
        %v2677 = vpack.c.b16 %v2549, %v2541
        %v2678 = vpack.c.b16 %v2550, %v2542
        %v2679 = vpack.c.b16 %v2551, %v2543
        %2808 = vmatpush.bf16.msra.mxu0 %v2608
        %2809 = vmatpush.bf16.msra.mxu0 %v2600
        %2810 = vmatpush.bf16.msra.mxu0 %v2592
        %2811 = vmatpush.bf16.msra.mxu0 %v2584
        %2812 = vmatpush.bf16.msra.mxu0 %v2576
        %2813 = vmatpush.bf16.msra.mxu0 %v2568
        %2814 = vmatpush.bf16.msra.mxu0 %v2560
        %2815 = vmatpush.bf16.msra.mxu0 %v2552
        %2816 = vmatmul.bf16.gmra.mxu0 %v2017
        %v2817 = vpop.f32.mrf.mxu0
        %v2818 = vadd.f32 %v2152, %v2817
        %v2819 = vpop.f32.mrf.mxu0
        %v2820 = vadd.f32 %v2152, %v2819
        %2821 = vdwg.mxu0
        %2822 = vmatpush.bf16.msra.mxu0 %v2672
        %2823 = vmatpush.bf16.msra.mxu0 %v2664
        %2824 = vmatpush.bf16.msra.mxu0 %v2656
        %2825 = vmatpush.bf16.msra.mxu0 %v2648
        %2826 = vmatpush.bf16.msra.mxu0 %v2640
        %2827 = vmatpush.bf16.msra.mxu0 %v2632
        %2828 = vmatpush.bf16.msra.mxu0 %v2624
        %2829 = vmatpush.bf16.msra.mxu0 %v2616
        %2830 = vmatmul.bf16.gmra.mxu0 %v2018
        %v2831 = vpop.f32.mrf.mxu0
        %v2832 = vadd.f32 %v2818, %v2831
        %v2833 = vpop.f32.mrf.mxu0
        %v2834 = vadd.f32 %v2820, %v2833
        %2835 = vdwg.mxu0
        %2836 = vmatpush.bf16.msra.mxu0 %v2609
        %2837 = vmatpush.bf16.msra.mxu0 %v2601
        %2838 = vmatpush.bf16.msra.mxu0 %v2593
        %2839 = vmatpush.bf16.msra.mxu0 %v2585
        %2840 = vmatpush.bf16.msra.mxu0 %v2577
        %2841 = vmatpush.bf16.msra.mxu0 %v2569
        %2842 = vmatpush.bf16.msra.mxu0 %v2561
        %2843 = vmatpush.bf16.msra.mxu0 %v2553
        %2844 = vmatmul.bf16.gmra.mxu0 %v2017
        %v2845 = vpop.f32.mrf.mxu0
        %v2846 = vadd.f32 %v2153, %v2845
        %v2847 = vpop.f32.mrf.mxu0
        %v2848 = vadd.f32 %v2153, %v2847
        %2849 = vdwg.mxu0
        %2850 = vmatpush.bf16.msra.mxu0 %v2673
        %2851 = vmatpush.bf16.msra.mxu0 %v2665
        %2852 = vmatpush.bf16.msra.mxu0 %v2657
        %2853 = vmatpush.bf16.msra.mxu0 %v2649
        %2854 = vmatpush.bf16.msra.mxu0 %v2641
        %2855 = vmatpush.bf16.msra.mxu0 %v2633
        %2856 = vmatpush.bf16.msra.mxu0 %v2625
        %2857 = vmatpush.bf16.msra.mxu0 %v2617
        %2858 = vmatmul.bf16.gmra.mxu0 %v2018
        %v2859 = vpop.f32.mrf.mxu0
        %v2860 = vadd.f32 %v2846, %v2859
        %v2861 = vpop.f32.mrf.mxu0
        %v2862 = vadd.f32 %v2848, %v2861
        %2863 = vdwg.mxu0
        %2864 = vmatpush.bf16.msra.mxu0 %v2610
        %2865 = vmatpush.bf16.msra.mxu0 %v2602
        %2866 = vmatpush.bf16.msra.mxu0 %v2594
        %2867 = vmatpush.bf16.msra.mxu0 %v2586
        %2868 = vmatpush.bf16.msra.mxu0 %v2578
        %2869 = vmatpush.bf16.msra.mxu0 %v2570
        %2870 = vmatpush.bf16.msra.mxu0 %v2562
        %2871 = vmatpush.bf16.msra.mxu0 %v2554
        %2872 = vmatmul.bf16.gmra.mxu0 %v2017
        %v2873 = vpop.f32.mrf.mxu0
        %v2874 = vadd.f32 %v2154, %v2873
        %v2875 = vpop.f32.mrf.mxu0
        %v2876 = vadd.f32 %v2154, %v2875
        %2877 = vdwg.mxu0
        %2878 = vmatpush.bf16.msra.mxu0 %v2674
        %2879 = vmatpush.bf16.msra.mxu0 %v2666
        %2880 = vmatpush.bf16.msra.mxu0 %v2658
        %2881 = vmatpush.bf16.msra.mxu0 %v2650
        %2882 = vmatpush.bf16.msra.mxu0 %v2642
        %2883 = vmatpush.bf16.msra.mxu0 %v2634
        %2884 = vmatpush.bf16.msra.mxu0 %v2626
        %2885 = vmatpush.bf16.msra.mxu0 %v2618
        %2886 = vmatmul.bf16.gmra.mxu0 %v2018
        %v2887 = vpop.f32.mrf.mxu0
        %v2888 = vadd.f32 %v2874, %v2887
        %v2889 = vpop.f32.mrf.mxu0
        %v2890 = vadd.f32 %v2876, %v2889
        %2891 = vdwg.mxu0
        %2892 = vmatpush.bf16.msra.mxu0 %v2611
        %2893 = vmatpush.bf16.msra.mxu0 %v2603
        %2894 = vmatpush.bf16.msra.mxu0 %v2595
        %2895 = vmatpush.bf16.msra.mxu0 %v2587
        %2896 = vmatpush.bf16.msra.mxu0 %v2579
        %2897 = vmatpush.bf16.msra.mxu0 %v2571
        %2898 = vmatpush.bf16.msra.mxu0 %v2563
        %2899 = vmatpush.bf16.msra.mxu0 %v2555
        %2900 = vmatmul.bf16.gmra.mxu0 %v2017
        %v2901 = vpop.f32.mrf.mxu0
        %v2902 = vadd.f32 %v2155, %v2901
        %v2903 = vpop.f32.mrf.mxu0
        %v2904 = vadd.f32 %v2155, %v2903
        %2905 = vdwg.mxu0
        %2906 = vmatpush.bf16.msra.mxu0 %v2675
        %2907 = vmatpush.bf16.msra.mxu0 %v2667
        %2908 = vmatpush.bf16.msra.mxu0 %v2659
        %2909 = vmatpush.bf16.msra.mxu0 %v2651
        %2910 = vmatpush.bf16.msra.mxu0 %v2643
        %2911 = vmatpush.bf16.msra.mxu0 %v2635
        %2912 = vmatpush.bf16.msra.mxu0 %v2627
        %2913 = vmatpush.bf16.msra.mxu0 %v2619
        %2914 = vmatmul.bf16.gmra.mxu0 %v2018
        %v2915 = vpop.f32.mrf.mxu0
        %v2916 = vadd.f32 %v2902, %v2915
        %v2917 = vpop.f32.mrf.mxu0
        %v2918 = vadd.f32 %v2904, %v2917
        %2919 = vdwg.mxu0
        %2920 = vmatpush.bf16.msra.mxu0 %v2612
        %2921 = vmatpush.bf16.msra.mxu0 %v2604
        %2922 = vmatpush.bf16.msra.mxu0 %v2596
        %2923 = vmatpush.bf16.msra.mxu0 %v2588
        %2924 = vmatpush.bf16.msra.mxu0 %v2580
        %2925 = vmatpush.bf16.msra.mxu0 %v2572
        %2926 = vmatpush.bf16.msra.mxu0 %v2564
        %2927 = vmatpush.bf16.msra.mxu0 %v2556
        %2928 = vmatmul.bf16.gmra.mxu0 %v2017
        %v2929 = vpop.f32.mrf.mxu0
        %v2930 = vadd.f32 %v2156, %v2929
        %v2931 = vpop.f32.mrf.mxu0
        %v2932 = vadd.f32 %v2156, %v2931
        %2933 = vdwg.mxu0
        %2934 = vmatpush.bf16.msra.mxu0 %v2676
        %2935 = vmatpush.bf16.msra.mxu0 %v2668
        %2936 = vmatpush.bf16.msra.mxu0 %v2660
        %2937 = vmatpush.bf16.msra.mxu0 %v2652
        %2938 = vmatpush.bf16.msra.mxu0 %v2644
        %2939 = vmatpush.bf16.msra.mxu0 %v2636
        %2940 = vmatpush.bf16.msra.mxu0 %v2628
        %2941 = vmatpush.bf16.msra.mxu0 %v2620
        %2942 = vmatmul.bf16.gmra.mxu0 %v2018
        %v2943 = vpop.f32.mrf.mxu0
        %v2944 = vadd.f32 %v2930, %v2943
        %v2945 = vpop.f32.mrf.mxu0
        %v2946 = vadd.f32 %v2932, %v2945
        %2947 = vdwg.mxu0
        %2948 = vmatpush.bf16.msra.mxu0 %v2613
        %2949 = vmatpush.bf16.msra.mxu0 %v2605
        %2950 = vmatpush.bf16.msra.mxu0 %v2597
        %2951 = vmatpush.bf16.msra.mxu0 %v2589
        %2952 = vmatpush.bf16.msra.mxu0 %v2581
        %2953 = vmatpush.bf16.msra.mxu0 %v2573
        %2954 = vmatpush.bf16.msra.mxu0 %v2565
        %2955 = vmatpush.bf16.msra.mxu0 %v2557
        %2956 = vmatmul.bf16.gmra.mxu0 %v2017
        %v2957 = vpop.f32.mrf.mxu0
        %v2958 = vadd.f32 %v2157, %v2957
        %v2959 = vpop.f32.mrf.mxu0
        %v2960 = vadd.f32 %v2157, %v2959
        %2961 = vdwg.mxu0
        %2962 = vmatpush.bf16.msra.mxu0 %v2677
        %2963 = vmatpush.bf16.msra.mxu0 %v2669
        %2964 = vmatpush.bf16.msra.mxu0 %v2661
        %2965 = vmatpush.bf16.msra.mxu0 %v2653
        %2966 = vmatpush.bf16.msra.mxu0 %v2645
        %2967 = vmatpush.bf16.msra.mxu0 %v2637
        %2968 = vmatpush.bf16.msra.mxu0 %v2629
        %2969 = vmatpush.bf16.msra.mxu0 %v2621
        %2970 = vmatmul.bf16.gmra.mxu0 %v2018
        %v2971 = vpop.f32.mrf.mxu0
        %v2972 = vadd.f32 %v2958, %v2971
        %v2973 = vpop.f32.mrf.mxu0
        %v2974 = vadd.f32 %v2960, %v2973
        %2975 = vdwg.mxu0
        %2976 = vmatpush.bf16.msra.mxu0 %v2614
        %2977 = vmatpush.bf16.msra.mxu0 %v2606
        %2978 = vmatpush.bf16.msra.mxu0 %v2598
        %2979 = vmatpush.bf16.msra.mxu0 %v2590
        %2980 = vmatpush.bf16.msra.mxu0 %v2582
        %2981 = vmatpush.bf16.msra.mxu0 %v2574
        %2982 = vmatpush.bf16.msra.mxu0 %v2566
        %2983 = vmatpush.bf16.msra.mxu0 %v2558
        %2984 = vmatmul.bf16.gmra.mxu0 %v2017
        %v2985 = vpop.f32.mrf.mxu0
        %v2986 = vadd.f32 %v2158, %v2985
        %v2987 = vpop.f32.mrf.mxu0
        %v2988 = vadd.f32 %v2158, %v2987
        %2989 = vdwg.mxu0
        %2990 = vmatpush.bf16.msra.mxu0 %v2678
        %2991 = vmatpush.bf16.msra.mxu0 %v2670
        %2992 = vmatpush.bf16.msra.mxu0 %v2662
        %2993 = vmatpush.bf16.msra.mxu0 %v2654
        %2994 = vmatpush.bf16.msra.mxu0 %v2646
        %2995 = vmatpush.bf16.msra.mxu0 %v2638
        %2996 = vmatpush.bf16.msra.mxu0 %v2630
        %2997 = vmatpush.bf16.msra.mxu0 %v2622
        %2998 = vmatmul.bf16.gmra.mxu0 %v2018
        %v2999 = vpop.f32.mrf.mxu0
        %v3000 = vadd.f32 %v2986, %v2999
        %v3001 = vpop.f32.mrf.mxu0
        %v3002 = vadd.f32 %v2988, %v3001
        %3003 = vdwg.mxu0
        %3004 = vmatpush.bf16.msra.mxu0 %v2615
        %3005 = vmatpush.bf16.msra.mxu0 %v2607
        %3006 = vmatpush.bf16.msra.mxu0 %v2599
        %3007 = vmatpush.bf16.msra.mxu0 %v2591
        %3008 = vmatpush.bf16.msra.mxu0 %v2583
        %3009 = vmatpush.bf16.msra.mxu0 %v2575
        %3010 = vmatpush.bf16.msra.mxu0 %v2567
        %3011 = vmatpush.bf16.msra.mxu0 %v2559
        %3012 = vmatmul.bf16.gmra.mxu0 %v2017
        %v3013 = vpop.f32.mrf.mxu0
        %v3014 = vadd.f32 %v2159, %v3013
        %v3015 = vpop.f32.mrf.mxu0
        %v3016 = vadd.f32 %v2159, %v3015
        %3017 = vdwg.mxu0
        %3018 = vmatpush.bf16.msra.mxu0 %v2679
        %3019 = vmatpush.bf16.msra.mxu0 %v2671
        %3020 = vmatpush.bf16.msra.mxu0 %v2663
        %3021 = vmatpush.bf16.msra.mxu0 %v2655
        %3022 = vmatpush.bf16.msra.mxu0 %v2647
        %3023 = vmatpush.bf16.msra.mxu0 %v2639
        %3024 = vmatpush.bf16.msra.mxu0 %v2631
        %3025 = vmatpush.bf16.msra.mxu0 %v2623
        %3026 = vmatmul.bf16.gmra.mxu0 %v2018
        %v3027 = vpop.f32.mrf.mxu0
        %v3028 = vadd.f32 %v3014, %v3027
        %v3029 = vpop.f32.mrf.mxu0
        %v3030 = vadd.f32 %v3016, %v3029
        %3031 = vdwg.mxu0
        %v3032 = vmul.f32 %v2832, 0.5
        %v3033 = vmul.f32 %v2860, 0.5
        %v3034 = vmul.f32 %v2888, 0.5
        %v3035 = vmul.f32 %v2916, 0.5
        %v3036 = vmul.f32 %v2944, 0.5
        %v3037 = vmul.f32 %v2972, 0.5
        %v3038 = vmul.f32 %v3000, 0.5
        %v3039 = vmul.f32 %v3028, 0.5
        %v3040 = vmul.f32 %v2834, 0.5
        %v3041 = vmul.f32 %v2862, 0.5
        %v3042 = vmul.f32 %v2890, 0.5
        %v3043 = vmul.f32 %v2918, 0.5
        %v3044 = vmul.f32 %v2946, 0.5
        %v3045 = vmul.f32 %v2974, 0.5
        %v3046 = vmul.f32 %v3002, 0.5
        %v3047 = vmul.f32 %v3030, 0.5
        %v3048 = vmul.f32 %v2832, 0.044715
        %v3049 = vmul.f32 %v2860, 0.044715
        %v3050 = vmul.f32 %v2888, 0.044715
        %v3051 = vmul.f32 %v2916, 0.044715
        %v3052 = vmul.f32 %v2944, 0.044715
        %v3053 = vmul.f32 %v2972, 0.044715
        %v3054 = vmul.f32 %v3000, 0.044715
        %v3055 = vmul.f32 %v3028, 0.044715
        %v3056 = vmul.f32 %v2834, 0.044715
        %v3057 = vmul.f32 %v2862, 0.044715
        %v3058 = vmul.f32 %v2890, 0.044715
        %v3059 = vmul.f32 %v2918, 0.044715
        %v3060 = vmul.f32 %v2946, 0.044715
        %v3061 = vmul.f32 %v2974, 0.044715
        %v3062 = vmul.f32 %v3002, 0.044715
        %v3063 = vmul.f32 %v3030, 0.044715
        %v3064 = vmul.f32 %v3048, %v2832
        %v3065 = vmul.f32 %v3049, %v2860
        %v3066 = vmul.f32 %v3050, %v2888
        %v3067 = vmul.f32 %v3051, %v2916
        %v3068 = vmul.f32 %v3052, %v2944
        %v3069 = vmul.f32 %v3053, %v2972
        %v3070 = vmul.f32 %v3054, %v3000
        %v3071 = vmul.f32 %v3055, %v3028
        %v3072 = vmul.f32 %v3056, %v2834
        %v3073 = vmul.f32 %v3057, %v2862
        %v3074 = vmul.f32 %v3058, %v2890
        %v3075 = vmul.f32 %v3059, %v2918
        %v3076 = vmul.f32 %v3060, %v2946
        %v3077 = vmul.f32 %v3061, %v2974
        %v3078 = vmul.f32 %v3062, %v3002
        %v3079 = vmul.f32 %v3063, %v3030
        %v3080 = vmul.f32 %v3064, %v2832
        %v3081 = vmul.f32 %v3065, %v2860
        %v3082 = vmul.f32 %v3066, %v2888
        %v3083 = vmul.f32 %v3067, %v2916
        %v3084 = vmul.f32 %v3068, %v2944
        %v3085 = vmul.f32 %v3069, %v2972
        %v3086 = vmul.f32 %v3070, %v3000
        %v3087 = vmul.f32 %v3071, %v3028
        %v3088 = vmul.f32 %v3072, %v2834
        %v3089 = vmul.f32 %v3073, %v2862
        %v3090 = vmul.f32 %v3074, %v2890
        %v3091 = vmul.f32 %v3075, %v2918
        %v3092 = vmul.f32 %v3076, %v2946
        %v3093 = vmul.f32 %v3077, %v2974
        %v3094 = vmul.f32 %v3078, %v3002
        %v3095 = vmul.f32 %v3079, %v3030
        %v3096 = vadd.f32 %v2832, %v3080
        %v3097 = vadd.f32 %v2860, %v3081
        %v3098 = vadd.f32 %v2888, %v3082
        %v3099 = vadd.f32 %v2916, %v3083
        %v3100 = vadd.f32 %v2944, %v3084
        %v3101 = vadd.f32 %v2972, %v3085
        %v3102 = vadd.f32 %v3000, %v3086
        %v3103 = vadd.f32 %v3028, %v3087
        %v3104 = vadd.f32 %v2834, %v3088
        %v3105 = vadd.f32 %v2862, %v3089
        %v3106 = vadd.f32 %v2890, %v3090
        %v3107 = vadd.f32 %v2918, %v3091
        %v3108 = vadd.f32 %v2946, %v3092
        %v3109 = vadd.f32 %v2974, %v3093
        %v3110 = vadd.f32 %v3002, %v3094
        %v3111 = vadd.f32 %v3030, %v3095
        %v3112 = vmul.f32 %v3096, 0.7978846
        %v3113 = vmul.f32 %v3097, 0.7978846
        %v3114 = vmul.f32 %v3098, 0.7978846
        %v3115 = vmul.f32 %v3099, 0.7978846
        %v3116 = vmul.f32 %v3100, 0.7978846
        %v3117 = vmul.f32 %v3101, 0.7978846
        %v3118 = vmul.f32 %v3102, 0.7978846
        %v3119 = vmul.f32 %v3103, 0.7978846
        %v3120 = vmul.f32 %v3104, 0.7978846
        %v3121 = vmul.f32 %v3105, 0.7978846
        %v3122 = vmul.f32 %v3106, 0.7978846
        %v3123 = vmul.f32 %v3107, 0.7978846
        %v3124 = vmul.f32 %v3108, 0.7978846
        %v3125 = vmul.f32 %v3109, 0.7978846
        %v3126 = vmul.f32 %v3110, 0.7978846
        %v3127 = vmul.f32 %v3111, 0.7978846
        %v3128 = vtanh.pop %v3112
        %v3129 = vtanh.pop %v3113
        %v3130 = vtanh.pop %v3114
        %v3131 = vtanh.pop %v3115
        %v3132 = vtanh.pop %v3116
        %v3133 = vtanh.pop %v3117
        %v3134 = vtanh.pop %v3118
        %v3135 = vtanh.pop %v3119
        %v3136 = vtanh.pop %v3120
        %v3137 = vtanh.pop %v3121
        %v3138 = vtanh.pop %v3122
        %v3139 = vtanh.pop %v3123
        %v3140 = vtanh.pop %v3124
        %v3141 = vtanh.pop %v3125
        %v3142 = vtanh.pop %v3126
        %v3143 = vtanh.pop %v3127
        %v3144 = vadd.f32 %v3128, 1.0
        %v3145 = vadd.f32 %v3129, 1.0
        %v3146 = vadd.f32 %v3130, 1.0
        %v3147 = vadd.f32 %v3131, 1.0
        %v3148 = vadd.f32 %v3132, 1.0
        %v3149 = vadd.f32 %v3133, 1.0
        %v3150 = vadd.f32 %v3134, 1.0
        %v3151 = vadd.f32 %v3135, 1.0
        %v3152 = vadd.f32 %v3136, 1.0
        %v3153 = vadd.f32 %v3137, 1.0
        %v3154 = vadd.f32 %v3138, 1.0
        %v3155 = vadd.f32 %v3139, 1.0
        %v3156 = vadd.f32 %v3140, 1.0
        %v3157 = vadd.f32 %v3141, 1.0
        %v3158 = vadd.f32 %v3142, 1.0
        %v3159 = vadd.f32 %v3143, 1.0
        %v3160 = vmul.f32 %v3032, %v3144
        %v3161 = vmul.f32 %v3033, %v3145
        %v3162 = vmul.f32 %v3034, %v3146
        %v3163 = vmul.f32 %v3035, %v3147
        %v3164 = vmul.f32 %v3036, %v3148
        %v3165 = vmul.f32 %v3037, %v3149
        %v3166 = vmul.f32 %v3038, %v3150
        %v3167 = vmul.f32 %v3039, %v3151
        %v3168 = vmul.f32 %v3040, %v3152
        %v3169 = vmul.f32 %v3041, %v3153
        %v3170 = vmul.f32 %v3042, %v3154
        %v3171 = vmul.f32 %v3043, %v3155
        %v3172 = vmul.f32 %v3044, %v3156
        %v3173 = vmul.f32 %v3045, %v3157
        %v3174 = vmul.f32 %v3046, %v3158
        %v3175 = vmul.f32 %v3047, %v3159
        %v3176 = vpack.c.bf16 %v3168, %v3160
        %v3177 = vpack.c.bf16 %v3169, %v3161
        %v3178 = vpack.c.bf16 %v3170, %v3162
        %v3179 = vpack.c.bf16 %v3171, %v3163
        %v3180 = vpack.c.bf16 %v3172, %v3164
        %v3181 = vpack.c.bf16 %v3173, %v3165
        %v3182 = vpack.c.bf16 %v3174, %v3166
        %v3183 = vpack.c.bf16 %v3175, %v3167
        %v3184 = vld [vmem:[%s532] sm:$0xff]
        %v3185 = vld [vmem:[%s532 + $0x8] sm:$0xff]
        %v3186 = vld [vmem:[%s532 + $0x10] sm:$0xff]
        %v3187 = vld [vmem:[%s532 + $0x18] sm:$0xff]
        %v3188 = vld [vmem:[%s532 + $0x20] sm:$0xff]
        %v3189 = vld [vmem:[%s532 + $0x28] sm:$0xff]
        %v3190 = vld [vmem:[%s532 + $0x30] sm:$0xff]
        %v3191 = vld [vmem:[%s532 + $0x38] sm:$0xff]
        %v3192 = vld [vmem:[%s532 + $0x40] sm:$0xff]
        %v3193 = vld [vmem:[%s532 + $0x48] sm:$0xff]
        %v3194 = vld [vmem:[%s532 + $0x50] sm:$0xff]
        %v3195 = vld [vmem:[%s532 + $0x58] sm:$0xff]
        %v3196 = vld [vmem:[%s532 + $0x60] sm:$0xff]
        %v3197 = vld [vmem:[%s532 + $0x68] sm:$0xff]
        %v3198 = vld [vmem:[%s532 + $0x70] sm:$0xff]
        %v3199 = vld [vmem:[%s532 + $0x78] sm:$0xff]
        %v3200 = vld [vmem:[%s532 + $0x80] sm:$0xff]
        %v3201 = vld [vmem:[%s532 + $0x88] sm:$0xff]
        %v3202 = vld [vmem:[%s532 + $0x90] sm:$0xff]
        %v3203 = vld [vmem:[%s532 + $0x98] sm:$0xff]
        %v3204 = vld [vmem:[%s532 + $0xa0] sm:$0xff]
        %v3205 = vld [vmem:[%s532 + $0xa8] sm:$0xff]
        %v3206 = vld [vmem:[%s532 + $0xb0] sm:$0xff]
        %v3207 = vld [vmem:[%s532 + $0xb8] sm:$0xff]
        %v3208 = vld [vmem:[%s532 + $0xc0] sm:$0xff]
        %v3209 = vld [vmem:[%s532 + $0xc8] sm:$0xff]
        %v3210 = vld [vmem:[%s532 + $0xd0] sm:$0xff]
        %v3211 = vld [vmem:[%s532 + $0xd8] sm:$0xff]
        %v3212 = vld [vmem:[%s532 + $0xe0] sm:$0xff]
        %v3213 = vld [vmem:[%s532 + $0xe8] sm:$0xff]
        %v3214 = vld [vmem:[%s532 + $0xf0] sm:$0xff]
        %v3215 = vld [vmem:[%s532 + $0xf8] sm:$0xff]
        %v3216 = vld [vmem:[%s532 + $0x100] sm:$0xff]
        %v3217 = vld [vmem:[%s532 + $0x108] sm:$0xff]
        %v3218 = vld [vmem:[%s532 + $0x110] sm:$0xff]
        %v3219 = vld [vmem:[%s532 + $0x118] sm:$0xff]
        %v3220 = vld [vmem:[%s532 + $0x120] sm:$0xff]
        %v3221 = vld [vmem:[%s532 + $0x128] sm:$0xff]
        %v3222 = vld [vmem:[%s532 + $0x130] sm:$0xff]
        %v3223 = vld [vmem:[%s532 + $0x138] sm:$0xff]
        %v3224 = vld [vmem:[%s532 + $0x140] sm:$0xff]
        %v3225 = vld [vmem:[%s532 + $0x148] sm:$0xff]
        %v3226 = vld [vmem:[%s532 + $0x150] sm:$0xff]
        %v3227 = vld [vmem:[%s532 + $0x158] sm:$0xff]
        %v3228 = vld [vmem:[%s532 + $0x160] sm:$0xff]
        %v3229 = vld [vmem:[%s532 + $0x168] sm:$0xff]
        %v3230 = vld [vmem:[%s532 + $0x170] sm:$0xff]
        %v3231 = vld [vmem:[%s532 + $0x178] sm:$0xff]
        %v3232 = vld [vmem:[%s532 + $0x180] sm:$0xff]
        %v3233 = vld [vmem:[%s532 + $0x188] sm:$0xff]
        %v3234 = vld [vmem:[%s532 + $0x190] sm:$0xff]
        %v3235 = vld [vmem:[%s532 + $0x198] sm:$0xff]
        %v3236 = vld [vmem:[%s532 + $0x1a0] sm:$0xff]
        %v3237 = vld [vmem:[%s532 + $0x1a8] sm:$0xff]
        %v3238 = vld [vmem:[%s532 + $0x1b0] sm:$0xff]
        %v3239 = vld [vmem:[%s532 + $0x1b8] sm:$0xff]
        %v3240 = vld [vmem:[%s532 + $0x1c0] sm:$0xff]
        %v3241 = vld [vmem:[%s532 + $0x1c8] sm:$0xff]
        %v3242 = vld [vmem:[%s532 + $0x1d0] sm:$0xff]
        %v3243 = vld [vmem:[%s532 + $0x1d8] sm:$0xff]
        %v3244 = vld [vmem:[%s532 + $0x1e0] sm:$0xff]
        %v3245 = vld [vmem:[%s532 + $0x1e8] sm:$0xff]
        %v3246 = vld [vmem:[%s532 + $0x1f0] sm:$0xff]
        %v3247 = vld [vmem:[%s532 + $0x1f8] sm:$0xff]
        %v3248 = vld [vmem:[%s532 + $0x200] sm:$0xff]
        %v3249 = vld [vmem:[%s532 + $0x208] sm:$0xff]
        %v3250 = vld [vmem:[%s532 + $0x210] sm:$0xff]
        %v3251 = vld [vmem:[%s532 + $0x218] sm:$0xff]
        %v3252 = vld [vmem:[%s532 + $0x220] sm:$0xff]
        %v3253 = vld [vmem:[%s532 + $0x228] sm:$0xff]
        %v3254 = vld [vmem:[%s532 + $0x230] sm:$0xff]
        %v3255 = vld [vmem:[%s532 + $0x238] sm:$0xff]
        %v3256 = vld [vmem:[%s532 + $0x240] sm:$0xff]
        %v3257 = vld [vmem:[%s532 + $0x248] sm:$0xff]
        %v3258 = vld [vmem:[%s532 + $0x250] sm:$0xff]
        %v3259 = vld [vmem:[%s532 + $0x258] sm:$0xff]
        %v3260 = vld [vmem:[%s532 + $0x260] sm:$0xff]
        %v3261 = vld [vmem:[%s532 + $0x268] sm:$0xff]
        %v3262 = vld [vmem:[%s532 + $0x270] sm:$0xff]
        %v3263 = vld [vmem:[%s532 + $0x278] sm:$0xff]
        %v3264 = vld [vmem:[%s532 + $0x280] sm:$0xff]
        %v3265 = vld [vmem:[%s532 + $0x288] sm:$0xff]
        %v3266 = vld [vmem:[%s532 + $0x290] sm:$0xff]
        %v3267 = vld [vmem:[%s532 + $0x298] sm:$0xff]
        %v3268 = vld [vmem:[%s532 + $0x2a0] sm:$0xff]
        %v3269 = vld [vmem:[%s532 + $0x2a8] sm:$0xff]
        %v3270 = vld [vmem:[%s532 + $0x2b0] sm:$0xff]
        %v3271 = vld [vmem:[%s532 + $0x2b8] sm:$0xff]
        %v3272 = vld [vmem:[%s532 + $0x2c0] sm:$0xff]
        %v3273 = vld [vmem:[%s532 + $0x2c8] sm:$0xff]
        %v3274 = vld [vmem:[%s532 + $0x2d0] sm:$0xff]
        %v3275 = vld [vmem:[%s532 + $0x2d8] sm:$0xff]
        %v3276 = vld [vmem:[%s532 + $0x2e0] sm:$0xff]
        %v3277 = vld [vmem:[%s532 + $0x2e8] sm:$0xff]
        %v3278 = vld [vmem:[%s532 + $0x2f0] sm:$0xff]
        %v3279 = vld [vmem:[%s532 + $0x2f8] sm:$0xff]
        %v3280 = vld [vmem:[%s532 + $0x300] sm:$0xff]
        %v3281 = vld [vmem:[%s532 + $0x308] sm:$0xff]
        %v3282 = vld [vmem:[%s532 + $0x310] sm:$0xff]
        %v3283 = vld [vmem:[%s532 + $0x318] sm:$0xff]
        %v3284 = vld [vmem:[%s532 + $0x320] sm:$0xff]
        %v3285 = vld [vmem:[%s532 + $0x328] sm:$0xff]
        %v3286 = vld [vmem:[%s532 + $0x330] sm:$0xff]
        %v3287 = vld [vmem:[%s532 + $0x338] sm:$0xff]
        %v3288 = vld [vmem:[%s532 + $0x340] sm:$0xff]
        %v3289 = vld [vmem:[%s532 + $0x348] sm:$0xff]
        %v3290 = vld [vmem:[%s532 + $0x350] sm:$0xff]
        %v3291 = vld [vmem:[%s532 + $0x358] sm:$0xff]
        %v3292 = vld [vmem:[%s532 + $0x360] sm:$0xff]
        %v3293 = vld [vmem:[%s532 + $0x368] sm:$0xff]
        %v3294 = vld [vmem:[%s532 + $0x370] sm:$0xff]
        %v3295 = vld [vmem:[%s532 + $0x378] sm:$0xff]
        %v3296 = vld [vmem:[%s532 + $0x380] sm:$0xff]
        %v3297 = vld [vmem:[%s532 + $0x388] sm:$0xff]
        %v3298 = vld [vmem:[%s532 + $0x390] sm:$0xff]
        %v3299 = vld [vmem:[%s532 + $0x398] sm:$0xff]
        %v3300 = vld [vmem:[%s532 + $0x3a0] sm:$0xff]
        %v3301 = vld [vmem:[%s532 + $0x3a8] sm:$0xff]
        %v3302 = vld [vmem:[%s532 + $0x3b0] sm:$0xff]
        %v3303 = vld [vmem:[%s532 + $0x3b8] sm:$0xff]
        %v3304 = vld [vmem:[%s532 + $0x3c0] sm:$0xff]
        %v3305 = vld [vmem:[%s532 + $0x3c8] sm:$0xff]
        %v3306 = vld [vmem:[%s532 + $0x3d0] sm:$0xff]
        %v3307 = vld [vmem:[%s532 + $0x3d8] sm:$0xff]
        %v3308 = vld [vmem:[%s532 + $0x3e0] sm:$0xff]
        %v3309 = vld [vmem:[%s532 + $0x3e8] sm:$0xff]
        %v3310 = vld [vmem:[%s532 + $0x3f0] sm:$0xff]
        %v3311 = vld [vmem:[%s532 + $0x3f8] sm:$0xff]
        %v3312 = vrot.slane %v722, 6
        %v3313 = vperm.slane %v3312, 0
        %v3314 = vperm.slane %v3312, 1
        %v3445 = vunpack.c.l.b16 %v3184
        %v3446 = vunpack.c.h.b16 %v3184
        %v3447 = vunpack.c.l.b16 %v3185
        %v3448 = vunpack.c.h.b16 %v3185
        %v3449 = vunpack.c.l.b16 %v3186
        %v3450 = vunpack.c.h.b16 %v3186
        %v3451 = vunpack.c.l.b16 %v3187
        %v3452 = vunpack.c.h.b16 %v3187
        %v3453 = vunpack.c.l.b16 %v3188
        %v3454 = vunpack.c.h.b16 %v3188
        %v3455 = vunpack.c.l.b16 %v3189
        %v3456 = vunpack.c.h.b16 %v3189
        %v3457 = vunpack.c.l.b16 %v3190
        %v3458 = vunpack.c.h.b16 %v3190
        %v3459 = vunpack.c.l.b16 %v3191
        %v3460 = vunpack.c.h.b16 %v3191
        %v3461 = vunpack.c.l.b16 %v3192
        %v3462 = vunpack.c.h.b16 %v3192
        %v3463 = vunpack.c.l.b16 %v3193
        %v3464 = vunpack.c.h.b16 %v3193
        %v3465 = vunpack.c.l.b16 %v3194
        %v3466 = vunpack.c.h.b16 %v3194
        %v3467 = vunpack.c.l.b16 %v3195
        %v3468 = vunpack.c.h.b16 %v3195
        %v3469 = vunpack.c.l.b16 %v3196
        %v3470 = vunpack.c.h.b16 %v3196
        %v3471 = vunpack.c.l.b16 %v3197
        %v3472 = vunpack.c.h.b16 %v3197
        %v3473 = vunpack.c.l.b16 %v3198
        %v3474 = vunpack.c.h.b16 %v3198
        %v3475 = vunpack.c.l.b16 %v3199
        %v3476 = vunpack.c.h.b16 %v3199
        %v3477 = vunpack.c.l.b16 %v3200
        %v3478 = vunpack.c.h.b16 %v3200
        %v3479 = vunpack.c.l.b16 %v3201
        %v3480 = vunpack.c.h.b16 %v3201
        %v3481 = vunpack.c.l.b16 %v3202
        %v3482 = vunpack.c.h.b16 %v3202
        %v3483 = vunpack.c.l.b16 %v3203
        %v3484 = vunpack.c.h.b16 %v3203
        %v3485 = vunpack.c.l.b16 %v3204
        %v3486 = vunpack.c.h.b16 %v3204
        %v3487 = vunpack.c.l.b16 %v3205
        %v3488 = vunpack.c.h.b16 %v3205
        %v3489 = vunpack.c.l.b16 %v3206
        %v3490 = vunpack.c.h.b16 %v3206
        %v3491 = vunpack.c.l.b16 %v3207
        %v3492 = vunpack.c.h.b16 %v3207
        %v3493 = vunpack.c.l.b16 %v3208
        %v3494 = vunpack.c.h.b16 %v3208
        %v3495 = vunpack.c.l.b16 %v3209
        %v3496 = vunpack.c.h.b16 %v3209
        %v3497 = vunpack.c.l.b16 %v3210
        %v3498 = vunpack.c.h.b16 %v3210
        %v3499 = vunpack.c.l.b16 %v3211
        %v3500 = vunpack.c.h.b16 %v3211
        %v3501 = vunpack.c.l.b16 %v3212
        %v3502 = vunpack.c.h.b16 %v3212
        %v3503 = vunpack.c.l.b16 %v3213
        %v3504 = vunpack.c.h.b16 %v3213
        %v3505 = vunpack.c.l.b16 %v3214
        %v3506 = vunpack.c.h.b16 %v3214
        %v3507 = vunpack.c.l.b16 %v3215
        %v3508 = vunpack.c.h.b16 %v3215
        %v3509 = vunpack.c.l.b16 %v3216
        %v3510 = vunpack.c.h.b16 %v3216
        %v3511 = vunpack.c.l.b16 %v3217
        %v3512 = vunpack.c.h.b16 %v3217
        %v3513 = vunpack.c.l.b16 %v3218
        %v3514 = vunpack.c.h.b16 %v3218
        %v3515 = vunpack.c.l.b16 %v3219
        %v3516 = vunpack.c.h.b16 %v3219
        %v3517 = vunpack.c.l.b16 %v3220
        %v3518 = vunpack.c.h.b16 %v3220
        %v3519 = vunpack.c.l.b16 %v3221
        %v3520 = vunpack.c.h.b16 %v3221
        %v3521 = vunpack.c.l.b16 %v3222
        %v3522 = vunpack.c.h.b16 %v3222
        %v3523 = vunpack.c.l.b16 %v3223
        %v3524 = vunpack.c.h.b16 %v3223
        %v3525 = vunpack.c.l.b16 %v3224
        %v3526 = vunpack.c.h.b16 %v3224
        %v3527 = vunpack.c.l.b16 %v3225
        %v3528 = vunpack.c.h.b16 %v3225
        %v3529 = vunpack.c.l.b16 %v3226
        %v3530 = vunpack.c.h.b16 %v3226
        %v3531 = vunpack.c.l.b16 %v3227
        %v3532 = vunpack.c.h.b16 %v3227
        %v3533 = vunpack.c.l.b16 %v3228
        %v3534 = vunpack.c.h.b16 %v3228
        %v3535 = vunpack.c.l.b16 %v3229
        %v3536 = vunpack.c.h.b16 %v3229
        %v3537 = vunpack.c.l.b16 %v3230
        %v3538 = vunpack.c.h.b16 %v3230
        %v3539 = vunpack.c.l.b16 %v3231
        %v3540 = vunpack.c.h.b16 %v3231
        %v3541 = vunpack.c.l.b16 %v3232
        %v3542 = vunpack.c.h.b16 %v3232
        %v3543 = vunpack.c.l.b16 %v3233
        %v3544 = vunpack.c.h.b16 %v3233
        %v3545 = vunpack.c.l.b16 %v3234
        %v3546 = vunpack.c.h.b16 %v3234
        %v3547 = vunpack.c.l.b16 %v3235
        %v3548 = vunpack.c.h.b16 %v3235
        %v3549 = vunpack.c.l.b16 %v3236
        %v3550 = vunpack.c.h.b16 %v3236
        %v3551 = vunpack.c.l.b16 %v3237
        %v3552 = vunpack.c.h.b16 %v3237
        %v3553 = vunpack.c.l.b16 %v3238
        %v3554 = vunpack.c.h.b16 %v3238
        %v3555 = vunpack.c.l.b16 %v3239
        %v3556 = vunpack.c.h.b16 %v3239
        %v3557 = vunpack.c.l.b16 %v3240
        %v3558 = vunpack.c.h.b16 %v3240
        %v3559 = vunpack.c.l.b16 %v3241
        %v3560 = vunpack.c.h.b16 %v3241
        %v3561 = vunpack.c.l.b16 %v3242
        %v3562 = vunpack.c.h.b16 %v3242
        %v3563 = vunpack.c.l.b16 %v3243
        %v3564 = vunpack.c.h.b16 %v3243
        %v3565 = vunpack.c.l.b16 %v3244
        %v3566 = vunpack.c.h.b16 %v3244
        %v3567 = vunpack.c.l.b16 %v3245
        %v3568 = vunpack.c.h.b16 %v3245
        %v3569 = vunpack.c.l.b16 %v3246
        %v3570 = vunpack.c.h.b16 %v3246
        %v3571 = vunpack.c.l.b16 %v3247
        %v3572 = vunpack.c.h.b16 %v3247
        %v3573 = vunpack.c.l.b16 %v3248
        %v3574 = vunpack.c.h.b16 %v3248
        %v3575 = vunpack.c.l.b16 %v3249
        %v3576 = vunpack.c.h.b16 %v3249
        %v3577 = vunpack.c.l.b16 %v3250
        %v3578 = vunpack.c.h.b16 %v3250
        %v3579 = vunpack.c.l.b16 %v3251
        %v3580 = vunpack.c.h.b16 %v3251
        %v3581 = vunpack.c.l.b16 %v3252
        %v3582 = vunpack.c.h.b16 %v3252
        %v3583 = vunpack.c.l.b16 %v3253
        %v3584 = vunpack.c.h.b16 %v3253
        %v3585 = vunpack.c.l.b16 %v3254
        %v3586 = vunpack.c.h.b16 %v3254
        %v3587 = vunpack.c.l.b16 %v3255
        %v3588 = vunpack.c.h.b16 %v3255
        %v3589 = vunpack.c.l.b16 %v3256
        %v3590 = vunpack.c.h.b16 %v3256
        %v3591 = vunpack.c.l.b16 %v3257
        %v3592 = vunpack.c.h.b16 %v3257
        %v3593 = vunpack.c.l.b16 %v3258
        %v3594 = vunpack.c.h.b16 %v3258
        %v3595 = vunpack.c.l.b16 %v3259
        %v3596 = vunpack.c.h.b16 %v3259
        %v3597 = vunpack.c.l.b16 %v3260
        %v3598 = vunpack.c.h.b16 %v3260
        %v3599 = vunpack.c.l.b16 %v3261
        %v3600 = vunpack.c.h.b16 %v3261
        %v3601 = vunpack.c.l.b16 %v3262
        %v3602 = vunpack.c.h.b16 %v3262
        %v3603 = vunpack.c.l.b16 %v3263
        %v3604 = vunpack.c.h.b16 %v3263
        %v3605 = vunpack.c.l.b16 %v3264
        %v3606 = vunpack.c.h.b16 %v3264
        %v3607 = vunpack.c.l.b16 %v3265
        %v3608 = vunpack.c.h.b16 %v3265
        %v3609 = vunpack.c.l.b16 %v3266
        %v3610 = vunpack.c.h.b16 %v3266
        %v3611 = vunpack.c.l.b16 %v3267
        %v3612 = vunpack.c.h.b16 %v3267
        %v3613 = vunpack.c.l.b16 %v3268
        %v3614 = vunpack.c.h.b16 %v3268
        %v3615 = vunpack.c.l.b16 %v3269
        %v3616 = vunpack.c.h.b16 %v3269
        %v3617 = vunpack.c.l.b16 %v3270
        %v3618 = vunpack.c.h.b16 %v3270
        %v3619 = vunpack.c.l.b16 %v3271
        %v3620 = vunpack.c.h.b16 %v3271
        %v3621 = vunpack.c.l.b16 %v3272
        %v3622 = vunpack.c.h.b16 %v3272
        %v3623 = vunpack.c.l.b16 %v3273
        %v3624 = vunpack.c.h.b16 %v3273
        %v3625 = vunpack.c.l.b16 %v3274
        %v3626 = vunpack.c.h.b16 %v3274
        %v3627 = vunpack.c.l.b16 %v3275
        %v3628 = vunpack.c.h.b16 %v3275
        %v3629 = vunpack.c.l.b16 %v3276
        %v3630 = vunpack.c.h.b16 %v3276
        %v3631 = vunpack.c.l.b16 %v3277
        %v3632 = vunpack.c.h.b16 %v3277
        %v3633 = vunpack.c.l.b16 %v3278
        %v3634 = vunpack.c.h.b16 %v3278
        %v3635 = vunpack.c.l.b16 %v3279
        %v3636 = vunpack.c.h.b16 %v3279
        %v3637 = vunpack.c.l.b16 %v3280
        %v3638 = vunpack.c.h.b16 %v3280
        %v3639 = vunpack.c.l.b16 %v3281
        %v3640 = vunpack.c.h.b16 %v3281
        %v3641 = vunpack.c.l.b16 %v3282
        %v3642 = vunpack.c.h.b16 %v3282
        %v3643 = vunpack.c.l.b16 %v3283
        %v3644 = vunpack.c.h.b16 %v3283
        %v3645 = vunpack.c.l.b16 %v3284
        %v3646 = vunpack.c.h.b16 %v3284
        %v3647 = vunpack.c.l.b16 %v3285
        %v3648 = vunpack.c.h.b16 %v3285
        %v3649 = vunpack.c.l.b16 %v3286
        %v3650 = vunpack.c.h.b16 %v3286
        %v3651 = vunpack.c.l.b16 %v3287
        %v3652 = vunpack.c.h.b16 %v3287
        %v3653 = vunpack.c.l.b16 %v3288
        %v3654 = vunpack.c.h.b16 %v3288
        %v3655 = vunpack.c.l.b16 %v3289
        %v3656 = vunpack.c.h.b16 %v3289
        %v3657 = vunpack.c.l.b16 %v3290
        %v3658 = vunpack.c.h.b16 %v3290
        %v3659 = vunpack.c.l.b16 %v3291
        %v3660 = vunpack.c.h.b16 %v3291
        %v3661 = vunpack.c.l.b16 %v3292
        %v3662 = vunpack.c.h.b16 %v3292
        %v3663 = vunpack.c.l.b16 %v3293
        %v3664 = vunpack.c.h.b16 %v3293
        %v3665 = vunpack.c.l.b16 %v3294
        %v3666 = vunpack.c.h.b16 %v3294
        %v3667 = vunpack.c.l.b16 %v3295
        %v3668 = vunpack.c.h.b16 %v3295
        %v3669 = vunpack.c.l.b16 %v3296
        %v3670 = vunpack.c.h.b16 %v3296
        %v3671 = vunpack.c.l.b16 %v3297
        %v3672 = vunpack.c.h.b16 %v3297
        %v3673 = vunpack.c.l.b16 %v3298
        %v3674 = vunpack.c.h.b16 %v3298
        %v3675 = vunpack.c.l.b16 %v3299
        %v3676 = vunpack.c.h.b16 %v3299
        %v3677 = vunpack.c.l.b16 %v3300
        %v3678 = vunpack.c.h.b16 %v3300
        %v3679 = vunpack.c.l.b16 %v3301
        %v3680 = vunpack.c.h.b16 %v3301
        %v3681 = vunpack.c.l.b16 %v3302
        %v3682 = vunpack.c.h.b16 %v3302
        %v3683 = vunpack.c.l.b16 %v3303
        %v3684 = vunpack.c.h.b16 %v3303
        %v3685 = vunpack.c.l.b16 %v3304
        %v3686 = vunpack.c.h.b16 %v3304
        %v3687 = vunpack.c.l.b16 %v3305
        %v3688 = vunpack.c.h.b16 %v3305
        %v3689 = vunpack.c.l.b16 %v3306
        %v3690 = vunpack.c.h.b16 %v3306
        %v3691 = vunpack.c.l.b16 %v3307
        %v3692 = vunpack.c.h.b16 %v3307
        %v3693 = vunpack.c.l.b16 %v3308
        %v3694 = vunpack.c.h.b16 %v3308
        %v3695 = vunpack.c.l.b16 %v3309
        %v3696 = vunpack.c.h.b16 %v3309
        %v3697 = vunpack.c.l.b16 %v3310
        %v3698 = vunpack.c.h.b16 %v3310
        %v3699 = vunpack.c.l.b16 %v3311
        %v3700 = vunpack.c.h.b16 %v3311
        %v3701 = vpack.c.b16 %v3447, %v3445
        %v3702 = vpack.c.b16 %v3448, %v3446
        %v3703 = vpack.c.b16 %v3451, %v3449
        %v3704 = vpack.c.b16 %v3452, %v3450
        %v3705 = vpack.c.b16 %v3455, %v3453
        %v3706 = vpack.c.b16 %v3456, %v3454
        %v3707 = vpack.c.b16 %v3459, %v3457
        %v3708 = vpack.c.b16 %v3460, %v3458
        %v3709 = vpack.c.b16 %v3463, %v3461
        %v3710 = vpack.c.b16 %v3464, %v3462
        %v3711 = vpack.c.b16 %v3467, %v3465
        %v3712 = vpack.c.b16 %v3468, %v3466
        %v3713 = vpack.c.b16 %v3471, %v3469
        %v3714 = vpack.c.b16 %v3472, %v3470
        %v3715 = vpack.c.b16 %v3475, %v3473
        %v3716 = vpack.c.b16 %v3476, %v3474
        %v3717 = vpack.c.b16 %v3479, %v3477
        %v3718 = vpack.c.b16 %v3480, %v3478
        %v3719 = vpack.c.b16 %v3483, %v3481
        %v3720 = vpack.c.b16 %v3484, %v3482
        %v3721 = vpack.c.b16 %v3487, %v3485
        %v3722 = vpack.c.b16 %v3488, %v3486
        %v3723 = vpack.c.b16 %v3491, %v3489
        %v3724 = vpack.c.b16 %v3492, %v3490
        %v3725 = vpack.c.b16 %v3495, %v3493
        %v3726 = vpack.c.b16 %v3496, %v3494
        %v3727 = vpack.c.b16 %v3499, %v3497
        %v3728 = vpack.c.b16 %v3500, %v3498
        %v3729 = vpack.c.b16 %v3503, %v3501
        %v3730 = vpack.c.b16 %v3504, %v3502
        %v3731 = vpack.c.b16 %v3507, %v3505
        %v3732 = vpack.c.b16 %v3508, %v3506
        %v3733 = vpack.c.b16 %v3511, %v3509
        %v3734 = vpack.c.b16 %v3512, %v3510
        %v3735 = vpack.c.b16 %v3515, %v3513
        %v3736 = vpack.c.b16 %v3516, %v3514
        %v3737 = vpack.c.b16 %v3519, %v3517
        %v3738 = vpack.c.b16 %v3520, %v3518
        %v3739 = vpack.c.b16 %v3523, %v3521
        %v3740 = vpack.c.b16 %v3524, %v3522
        %v3741 = vpack.c.b16 %v3527, %v3525
        %v3742 = vpack.c.b16 %v3528, %v3526
        %v3743 = vpack.c.b16 %v3531, %v3529
        %v3744 = vpack.c.b16 %v3532, %v3530
        %v3745 = vpack.c.b16 %v3535, %v3533
        %v3746 = vpack.c.b16 %v3536, %v3534
        %v3747 = vpack.c.b16 %v3539, %v3537
        %v3748 = vpack.c.b16 %v3540, %v3538
        %v3749 = vpack.c.b16 %v3543, %v3541
        %v3750 = vpack.c.b16 %v3544, %v3542
        %v3751 = vpack.c.b16 %v3547, %v3545
        %v3752 = vpack.c.b16 %v3548, %v3546
        %v3753 = vpack.c.b16 %v3551, %v3549
        %v3754 = vpack.c.b16 %v3552, %v3550
        %v3755 = vpack.c.b16 %v3555, %v3553
        %v3756 = vpack.c.b16 %v3556, %v3554
        %v3757 = vpack.c.b16 %v3559, %v3557
        %v3758 = vpack.c.b16 %v3560, %v3558
        %v3759 = vpack.c.b16 %v3563, %v3561
        %v3760 = vpack.c.b16 %v3564, %v3562
        %v3761 = vpack.c.b16 %v3567, %v3565
        %v3762 = vpack.c.b16 %v3568, %v3566
        %v3763 = vpack.c.b16 %v3571, %v3569
        %v3764 = vpack.c.b16 %v3572, %v3570
        %v3765 = vpack.c.b16 %v3575, %v3573
        %v3766 = vpack.c.b16 %v3576, %v3574
        %v3767 = vpack.c.b16 %v3579, %v3577
        %v3768 = vpack.c.b16 %v3580, %v3578
        %v3769 = vpack.c.b16 %v3583, %v3581
        %v3770 = vpack.c.b16 %v3584, %v3582
        %v3771 = vpack.c.b16 %v3587, %v3585
        %v3772 = vpack.c.b16 %v3588, %v3586
        %v3773 = vpack.c.b16 %v3591, %v3589
        %v3774 = vpack.c.b16 %v3592, %v3590
        %v3775 = vpack.c.b16 %v3595, %v3593
        %v3776 = vpack.c.b16 %v3596, %v3594
        %v3777 = vpack.c.b16 %v3599, %v3597
        %v3778 = vpack.c.b16 %v3600, %v3598
        %v3779 = vpack.c.b16 %v3603, %v3601
        %v3780 = vpack.c.b16 %v3604, %v3602
        %v3781 = vpack.c.b16 %v3607, %v3605
        %v3782 = vpack.c.b16 %v3608, %v3606
        %v3783 = vpack.c.b16 %v3611, %v3609
        %v3784 = vpack.c.b16 %v3612, %v3610
        %v3785 = vpack.c.b16 %v3615, %v3613
        %v3786 = vpack.c.b16 %v3616, %v3614
        %v3787 = vpack.c.b16 %v3619, %v3617
        %v3788 = vpack.c.b16 %v3620, %v3618
        %v3789 = vpack.c.b16 %v3623, %v3621
        %v3790 = vpack.c.b16 %v3624, %v3622
        %v3791 = vpack.c.b16 %v3627, %v3625
        %v3792 = vpack.c.b16 %v3628, %v3626
        %v3793 = vpack.c.b16 %v3631, %v3629
        %v3794 = vpack.c.b16 %v3632, %v3630
        %v3795 = vpack.c.b16 %v3635, %v3633
        %v3796 = vpack.c.b16 %v3636, %v3634
        %v3797 = vpack.c.b16 %v3639, %v3637
        %v3798 = vpack.c.b16 %v3640, %v3638
        %v3799 = vpack.c.b16 %v3643, %v3641
        %v3800 = vpack.c.b16 %v3644, %v3642
        %v3801 = vpack.c.b16 %v3647, %v3645
        %v3802 = vpack.c.b16 %v3648, %v3646
        %v3803 = vpack.c.b16 %v3651, %v3649
        %v3804 = vpack.c.b16 %v3652, %v3650
        %v3805 = vpack.c.b16 %v3655, %v3653
        %v3806 = vpack.c.b16 %v3656, %v3654
        %v3807 = vpack.c.b16 %v3659, %v3657
        %v3808 = vpack.c.b16 %v3660, %v3658
        %v3809 = vpack.c.b16 %v3663, %v3661
        %v3810 = vpack.c.b16 %v3664, %v3662
        %v3811 = vpack.c.b16 %v3667, %v3665
        %v3812 = vpack.c.b16 %v3668, %v3666
        %v3813 = vpack.c.b16 %v3671, %v3669
        %v3814 = vpack.c.b16 %v3672, %v3670
        %v3815 = vpack.c.b16 %v3675, %v3673
        %v3816 = vpack.c.b16 %v3676, %v3674
        %v3817 = vpack.c.b16 %v3679, %v3677
        %v3818 = vpack.c.b16 %v3680, %v3678
        %v3819 = vpack.c.b16 %v3683, %v3681
        %v3820 = vpack.c.b16 %v3684, %v3682
        %v3821 = vpack.c.b16 %v3687, %v3685
        %v3822 = vpack.c.b16 %v3688, %v3686
        %v3823 = vpack.c.b16 %v3691, %v3689
        %v3824 = vpack.c.b16 %v3692, %v3690
        %v3825 = vpack.c.b16 %v3695, %v3693
        %v3826 = vpack.c.b16 %v3696, %v3694
        %v3827 = vpack.c.b16 %v3699, %v3697
        %v3828 = vpack.c.b16 %v3700, %v3698
        %3957 = vmatpush.bf16.msra.mxu0 %v3715
        %3958 = vmatpush.bf16.msra.mxu0 %v3713
        %3959 = vmatpush.bf16.msra.mxu0 %v3711
        %3960 = vmatpush.bf16.msra.mxu0 %v3709
        %3961 = vmatpush.bf16.msra.mxu0 %v3707
        %3962 = vmatpush.bf16.msra.mxu0 %v3705
        %3963 = vmatpush.bf16.msra.mxu0 %v3703
        %3964 = vmatpush.bf16.msra.mxu0 %v3701
        %3965 = vmatmul.bf16.gmra.mxu0 %v3176
        %v3966 = vpop.f32.mrf.mxu0
        %v3967 = vadd.f32 %v3313, %v3966
        %v3968 = vpop.f32.mrf.mxu0
        %v3969 = vadd.f32 %v3313, %v3968
        %3970 = vdwg.mxu0
        %3971 = vmatpush.bf16.msra.mxu0 %v3731
        %3972 = vmatpush.bf16.msra.mxu0 %v3729
        %3973 = vmatpush.bf16.msra.mxu0 %v3727
        %3974 = vmatpush.bf16.msra.mxu0 %v3725
        %3975 = vmatpush.bf16.msra.mxu0 %v3723
        %3976 = vmatpush.bf16.msra.mxu0 %v3721
        %3977 = vmatpush.bf16.msra.mxu0 %v3719
        %3978 = vmatpush.bf16.msra.mxu0 %v3717
        %3979 = vmatmul.bf16.gmra.mxu0 %v3177
        %v3980 = vpop.f32.mrf.mxu0
        %v3981 = vadd.f32 %v3967, %v3980
        %v3982 = vpop.f32.mrf.mxu0
        %v3983 = vadd.f32 %v3969, %v3982
        %3984 = vdwg.mxu0
        %3985 = vmatpush.bf16.msra.mxu0 %v3747
        %3986 = vmatpush.bf16.msra.mxu0 %v3745
        %3987 = vmatpush.bf16.msra.mxu0 %v3743
        %3988 = vmatpush.bf16.msra.mxu0 %v3741
        %3989 = vmatpush.bf16.msra.mxu0 %v3739
        %3990 = vmatpush.bf16.msra.mxu0 %v3737
        %3991 = vmatpush.bf16.msra.mxu0 %v3735
        %3992 = vmatpush.bf16.msra.mxu0 %v3733
        %3993 = vmatmul.bf16.gmra.mxu0 %v3178
        %v3994 = vpop.f32.mrf.mxu0
        %v3995 = vadd.f32 %v3981, %v3994
        %v3996 = vpop.f32.mrf.mxu0
        %v3997 = vadd.f32 %v3983, %v3996
        %3998 = vdwg.mxu0
        %3999 = vmatpush.bf16.msra.mxu0 %v3763
        %4000 = vmatpush.bf16.msra.mxu0 %v3761
        %4001 = vmatpush.bf16.msra.mxu0 %v3759
        %4002 = vmatpush.bf16.msra.mxu0 %v3757
        %4003 = vmatpush.bf16.msra.mxu0 %v3755
        %4004 = vmatpush.bf16.msra.mxu0 %v3753
        %4005 = vmatpush.bf16.msra.mxu0 %v3751
        %4006 = vmatpush.bf16.msra.mxu0 %v3749
        %4007 = vmatmul.bf16.gmra.mxu0 %v3179
        %v4008 = vpop.f32.mrf.mxu0
        %v4009 = vadd.f32 %v3995, %v4008
        %v4010 = vpop.f32.mrf.mxu0
        %v4011 = vadd.f32 %v3997, %v4010
        %4012 = vdwg.mxu0
        %4013 = vmatpush.bf16.msra.mxu0 %v3779
        %4014 = vmatpush.bf16.msra.mxu0 %v3777
        %4015 = vmatpush.bf16.msra.mxu0 %v3775
        %4016 = vmatpush.bf16.msra.mxu0 %v3773
        %4017 = vmatpush.bf16.msra.mxu0 %v3771
        %4018 = vmatpush.bf16.msra.mxu0 %v3769
        %4019 = vmatpush.bf16.msra.mxu0 %v3767
        %4020 = vmatpush.bf16.msra.mxu0 %v3765
        %4021 = vmatmul.bf16.gmra.mxu0 %v3180
        %v4022 = vpop.f32.mrf.mxu0
        %v4023 = vadd.f32 %v4009, %v4022
        %v4024 = vpop.f32.mrf.mxu0
        %v4025 = vadd.f32 %v4011, %v4024
        %4026 = vdwg.mxu0
        %4027 = vmatpush.bf16.msra.mxu0 %v3795
        %4028 = vmatpush.bf16.msra.mxu0 %v3793
        %4029 = vmatpush.bf16.msra.mxu0 %v3791
        %4030 = vmatpush.bf16.msra.mxu0 %v3789
        %4031 = vmatpush.bf16.msra.mxu0 %v3787
        %4032 = vmatpush.bf16.msra.mxu0 %v3785
        %4033 = vmatpush.bf16.msra.mxu0 %v3783
        %4034 = vmatpush.bf16.msra.mxu0 %v3781
        %4035 = vmatmul.bf16.gmra.mxu0 %v3181
        %v4036 = vpop.f32.mrf.mxu0
        %v4037 = vadd.f32 %v4023, %v4036
        %v4038 = vpop.f32.mrf.mxu0
        %v4039 = vadd.f32 %v4025, %v4038
        %4040 = vdwg.mxu0
        %4041 = vmatpush.bf16.msra.mxu0 %v3811
        %4042 = vmatpush.bf16.msra.mxu0 %v3809
        %4043 = vmatpush.bf16.msra.mxu0 %v3807
        %4044 = vmatpush.bf16.msra.mxu0 %v3805
        %4045 = vmatpush.bf16.msra.mxu0 %v3803
        %4046 = vmatpush.bf16.msra.mxu0 %v3801
        %4047 = vmatpush.bf16.msra.mxu0 %v3799
        %4048 = vmatpush.bf16.msra.mxu0 %v3797
        %4049 = vmatmul.bf16.gmra.mxu0 %v3182
        %v4050 = vpop.f32.mrf.mxu0
        %v4051 = vadd.f32 %v4037, %v4050
        %v4052 = vpop.f32.mrf.mxu0
        %v4053 = vadd.f32 %v4039, %v4052
        %4054 = vdwg.mxu0
        %4055 = vmatpush.bf16.msra.mxu0 %v3827
        %4056 = vmatpush.bf16.msra.mxu0 %v3825
        %4057 = vmatpush.bf16.msra.mxu0 %v3823
        %4058 = vmatpush.bf16.msra.mxu0 %v3821
        %4059 = vmatpush.bf16.msra.mxu0 %v3819
        %4060 = vmatpush.bf16.msra.mxu0 %v3817
        %4061 = vmatpush.bf16.msra.mxu0 %v3815
        %4062 = vmatpush.bf16.msra.mxu0 %v3813
        %4063 = vmatmul.bf16.gmra.mxu0 %v3183
        %v4064 = vpop.f32.mrf.mxu0
        %v4065 = vadd.f32 %v4051, %v4064
        %v4066 = vpop.f32.mrf.mxu0
        %v4067 = vadd.f32 %v4053, %v4066
        %4068 = vdwg.mxu0
        %4069 = vmatpush.bf16.msra.mxu0 %v3716
        %4070 = vmatpush.bf16.msra.mxu0 %v3714
        %4071 = vmatpush.bf16.msra.mxu0 %v3712
        %4072 = vmatpush.bf16.msra.mxu0 %v3710
        %4073 = vmatpush.bf16.msra.mxu0 %v3708
        %4074 = vmatpush.bf16.msra.mxu0 %v3706
        %4075 = vmatpush.bf16.msra.mxu0 %v3704
        %4076 = vmatpush.bf16.msra.mxu0 %v3702
        %4077 = vmatmul.bf16.gmra.mxu0 %v3176
        %v4078 = vpop.f32.mrf.mxu0
        %v4079 = vadd.f32 %v3314, %v4078
        %v4080 = vpop.f32.mrf.mxu0
        %v4081 = vadd.f32 %v3314, %v4080
        %4082 = vdwg.mxu0
        %4083 = vmatpush.bf16.msra.mxu0 %v3732
        %4084 = vmatpush.bf16.msra.mxu0 %v3730
        %4085 = vmatpush.bf16.msra.mxu0 %v3728
        %4086 = vmatpush.bf16.msra.mxu0 %v3726
        %4087 = vmatpush.bf16.msra.mxu0 %v3724
        %4088 = vmatpush.bf16.msra.mxu0 %v3722
        %4089 = vmatpush.bf16.msra.mxu0 %v3720
        %4090 = vmatpush.bf16.msra.mxu0 %v3718
        %4091 = vmatmul.bf16.gmra.mxu0 %v3177
        %v4092 = vpop.f32.mrf.mxu0
        %v4093 = vadd.f32 %v4079, %v4092
        %v4094 = vpop.f32.mrf.mxu0
        %v4095 = vadd.f32 %v4081, %v4094
        %4096 = vdwg.mxu0
        %4097 = vmatpush.bf16.msra.mxu0 %v3748
        %4098 = vmatpush.bf16.msra.mxu0 %v3746
        %4099 = vmatpush.bf16.msra.mxu0 %v3744
        %4100 = vmatpush.bf16.msra.mxu0 %v3742
        %4101 = vmatpush.bf16.msra.mxu0 %v3740
        %4102 = vmatpush.bf16.msra.mxu0 %v3738
        %4103 = vmatpush.bf16.msra.mxu0 %v3736
        %4104 = vmatpush.bf16.msra.mxu0 %v3734
        %4105 = vmatmul.bf16.gmra.mxu0 %v3178
        %v4106 = vpop.f32.mrf.mxu0
        %v4107 = vadd.f32 %v4093, %v4106
        %v4108 = vpop.f32.mrf.mxu0
        %v4109 = vadd.f32 %v4095, %v4108
        %4110 = vdwg.mxu0
        %4111 = vmatpush.bf16.msra.mxu0 %v3764
        %4112 = vmatpush.bf16.msra.mxu0 %v3762
        %4113 = vmatpush.bf16.msra.mxu0 %v3760
        %4114 = vmatpush.bf16.msra.mxu0 %v3758
        %4115 = vmatpush.bf16.msra.mxu0 %v3756
        %4116 = vmatpush.bf16.msra.mxu0 %v3754
        %4117 = vmatpush.bf16.msra.mxu0 %v3752
        %4118 = vmatpush.bf16.msra.mxu0 %v3750
        %4119 = vmatmul.bf16.gmra.mxu0 %v3179
        %v4120 = vpop.f32.mrf.mxu0
        %v4121 = vadd.f32 %v4107, %v4120
        %v4122 = vpop.f32.mrf.mxu0
        %v4123 = vadd.f32 %v4109, %v4122
        %4124 = vdwg.mxu0
        %4125 = vmatpush.bf16.msra.mxu0 %v3780
        %4126 = vmatpush.bf16.msra.mxu0 %v3778
        %4127 = vmatpush.bf16.msra.mxu0 %v3776
        %4128 = vmatpush.bf16.msra.mxu0 %v3774
        %4129 = vmatpush.bf16.msra.mxu0 %v3772
        %4130 = vmatpush.bf16.msra.mxu0 %v3770
        %4131 = vmatpush.bf16.msra.mxu0 %v3768
        %4132 = vmatpush.bf16.msra.mxu0 %v3766
        %4133 = vmatmul.bf16.gmra.mxu0 %v3180
        %v4134 = vpop.f32.mrf.mxu0
        %v4135 = vadd.f32 %v4121, %v4134
        %v4136 = vpop.f32.mrf.mxu0
        %v4137 = vadd.f32 %v4123, %v4136
        %4138 = vdwg.mxu0
        %4139 = vmatpush.bf16.msra.mxu0 %v3796
        %4140 = vmatpush.bf16.msra.mxu0 %v3794
        %4141 = vmatpush.bf16.msra.mxu0 %v3792
        %4142 = vmatpush.bf16.msra.mxu0 %v3790
        %4143 = vmatpush.bf16.msra.mxu0 %v3788
        %4144 = vmatpush.bf16.msra.mxu0 %v3786
        %4145 = vmatpush.bf16.msra.mxu0 %v3784
        %4146 = vmatpush.bf16.msra.mxu0 %v3782
        %4147 = vmatmul.bf16.gmra.mxu0 %v3181
        %v4148 = vpop.f32.mrf.mxu0
        %v4149 = vadd.f32 %v4135, %v4148
        %v4150 = vpop.f32.mrf.mxu0
        %v4151 = vadd.f32 %v4137, %v4150
        %4152 = vdwg.mxu0
        %4153 = vmatpush.bf16.msra.mxu0 %v3812
        %4154 = vmatpush.bf16.msra.mxu0 %v3810
        %4155 = vmatpush.bf16.msra.mxu0 %v3808
        %4156 = vmatpush.bf16.msra.mxu0 %v3806
        %4157 = vmatpush.bf16.msra.mxu0 %v3804
        %4158 = vmatpush.bf16.msra.mxu0 %v3802
        %4159 = vmatpush.bf16.msra.mxu0 %v3800
        %4160 = vmatpush.bf16.msra.mxu0 %v3798
        %4161 = vmatmul.bf16.gmra.mxu0 %v3182
        %v4162 = vpop.f32.mrf.mxu0
        %v4163 = vadd.f32 %v4149, %v4162
        %v4164 = vpop.f32.mrf.mxu0
        %v4165 = vadd.f32 %v4151, %v4164
        %4166 = vdwg.mxu0
        %4167 = vmatpush.bf16.msra.mxu0 %v3828
        %4168 = vmatpush.bf16.msra.mxu0 %v3826
        %4169 = vmatpush.bf16.msra.mxu0 %v3824
        %4170 = vmatpush.bf16.msra.mxu0 %v3822
        %4171 = vmatpush.bf16.msra.mxu0 %v3820
        %4172 = vmatpush.bf16.msra.mxu0 %v3818
        %4173 = vmatpush.bf16.msra.mxu0 %v3816
        %4174 = vmatpush.bf16.msra.mxu0 %v3814
        %4175 = vmatmul.bf16.gmra.mxu0 %v3183
        %v4176 = vpop.f32.mrf.mxu0
        %v4177 = vadd.f32 %v4163, %v4176
        %v4178 = vpop.f32.mrf.mxu0
        %v4179 = vadd.f32 %v4165, %v4178
        %4180 = vdwg.mxu0
        %v4181 = vadd.f32 %v2013, %v4065
        %v4182 = vadd.f32 %v2014, %v4177
        %v4183 = vadd.f32 %v2015, %v4067
        %v4184 = vadd.f32 %v2016, %v4179
        %v4185 = vadd.f32 %v4181, %v4182
        %4186 = vadd.xlane.f32.xlu0 %v4185
        %v4187 = vpop.xlane.xlu0 %4186
        %v4188 = vadd.f32 %v4183, %v4184
        %4189 = vadd.xlane.f32.xlu0 %v4188
        %v4190 = vpop.xlane.xlu0 %4189
        %v4191 = vmul.f32 %v4187, %v647
        %v4192 = vmul.f32 %v4190, %v647
        %v4193 = vsub.f32 %v4181, %v4191
        %v4194 = vsub.f32 %v4182, %v4191
        %v4195 = vsub.f32 %v4183, %v4192
        %v4196 = vsub.f32 %v4184, %v4192
        %v4197 = vmul.f32 %v4193, %v4193
        %v4198 = vmul.f32 %v4194, %v4194
        %v4199 = vmul.f32 %v4195, %v4195
        %v4200 = vmul.f32 %v4196, %v4196
        %v4201 = vadd.f32 %v4197, %v4198
        %4202 = vadd.xlane.f32.xlu0 %v4201
        %v4203 = vpop.xlane.xlu0 %4202
        %v4204 = vadd.f32 %v4199, %v4200
        %4205 = vadd.xlane.f32.xlu0 %v4204
        %v4206 = vpop.xlane.xlu0 %4205
        %v4207 = vmul.f32 %v4203, %v647
        %v4208 = vmul.f32 %v4206, %v647
        %v4209 = vadd.f32 %v4207, 1e-12
        %v4210 = vadd.f32 %v4208, 1e-12
        %v4211 = vrsqrt.pop %v4209
        %v4212 = vmul.f32 %v4211, %v4209
        %v4213 = vmul.f32 %v4212, %v4211
        %v4214 = vmul.f32 0.5, %v4213
        %v4215 = vsub.f32 1.5, %v4214
        %v4216 = vmul.f32 %v4211, %v4215
        %vm4217 = vweird.f32 %v4209
        %vm4218 = vweird.f32 %v4211
        %vm4219 = vmor %vm4217, %vm4218
        %v4220 = vsel %vm4219, %v4211, %v4216
        %v4221 = vrsqrt.pop %v4210
        %v4222 = vmul.f32 %v4221, %v4210
        %v4223 = vmul.f32 %v4222, %v4221
        %v4224 = vmul.f32 0.5, %v4223
        %v4225 = vsub.f32 1.5, %v4224
        %v4226 = vmul.f32 %v4221, %v4225
        %vm4227 = vweird.f32 %v4210
        %vm4228 = vweird.f32 %v4221
        %vm4229 = vmor %vm4227, %vm4228
        %v4230 = vsel %vm4229, %v4221, %v4226
        %v4231 = vmul.f32 %v4193, %v4220
        %v4232 = vmul.f32 %v4194, %v4220
        %v4233 = vmul.f32 %v4195, %v4230
        %v4234 = vmul.f32 %v4196, %v4230
        %v4235 = vperm.slane %v724, 0
        %v4236 = vperm.slane %v724, 1
        %v4239 = vmul.f32 %v4231, %v4235
        %v4240 = vmul.f32 %v4232, %v4236
        %v4241 = vmul.f32 %v4233, %v4235
        %v4242 = vmul.f32 %v4234, %v4236
        %v4243 = vrot.slane %v724, 2
        %v4244 = vperm.slane %v4243, 0
        %v4245 = vperm.slane %v4243, 1
        %v4248 = vadd.f32 %v4239, %v4244
        %v4249 = vadd.f32 %v4240, %v4245
        %v4250 = vadd.f32 %v4241, %v4244
        %v4251 = vadd.f32 %v4242, %v4245
        %s4252 = scalar_lea.vmem %s492, 1 [#allocation4]
        %v4253 = vld [vmem:[%s4252] ss:$2 sm:$0xff]
        %s4254 = scalar_lea.vmem %s492, 17 [#allocation4]
        %v4255 = vld [vmem:[%s4254] ss:$2 sm:$0xff]
        %s4256 = scalar_lea.vmem %s492, 33 [#allocation4]
        %v4257 = vld [vmem:[%s4256] ss:$2 sm:$0xff]
        %s4258 = scalar_lea.vmem %s492, 49 [#allocation4]
        %v4259 = vld [vmem:[%s4258] ss:$2 sm:$0x3]
        %v4260 = vpack.c.bf16 %v4250, %v4248
        %v4261 = vpack.c.bf16 %v4251, %v4249
        %s4262 = scalar_lea.vmem %s502, 768 [#allocation6]
        %v4263 = vld [vmem:[%s4262] sm:$0xff]
        %v4264 = vld [vmem:[%s4262 + $0x8] sm:$0xff]
        %v4265 = vld [vmem:[%s4262 + $0x10] sm:$0xff]
        %v4266 = vld [vmem:[%s4262 + $0x18] sm:$0xff]
        %v4267 = vld [vmem:[%s4262 + $0x20] sm:$0xff]
        %v4268 = vld [vmem:[%s4262 + $0x28] sm:$0xff]
        %v4269 = vld [vmem:[%s4262 + $0x30] sm:$0xff]
        %v4270 = vld [vmem:[%s4262 + $0x38] sm:$0xff]
        %v4271 = vld [vmem:[%s4262 + $0x40] sm:$0xff]
        %v4272 = vld [vmem:[%s4262 + $0x48] sm:$0xff]
        %v4273 = vld [vmem:[%s4262 + $0x50] sm:$0xff]
        %v4274 = vld [vmem:[%s4262 + $0x58] sm:$0xff]
        %v4275 = vld [vmem:[%s4262 + $0x60] sm:$0xff]
        %v4276 = vld [vmem:[%s4262 + $0x68] sm:$0xff]
        %v4277 = vld [vmem:[%s4262 + $0x70] sm:$0xff]
        %v4278 = vld [vmem:[%s4262 + $0x78] sm:$0xff]
        %v4279 = vld [vmem:[%s4262 + $0x80] sm:$0xff]
        %v4280 = vld [vmem:[%s4262 + $0x88] sm:$0xff]
        %v4281 = vld [vmem:[%s4262 + $0x90] sm:$0xff]
        %v4282 = vld [vmem:[%s4262 + $0x98] sm:$0xff]
        %v4283 = vld [vmem:[%s4262 + $0xa0] sm:$0xff]
        %v4284 = vld [vmem:[%s4262 + $0xa8] sm:$0xff]
        %v4285 = vld [vmem:[%s4262 + $0xb0] sm:$0xff]
        %v4286 = vld [vmem:[%s4262 + $0xb8] sm:$0xff]
        %v4287 = vld [vmem:[%s4262 + $0xc0] sm:$0xff]
        %v4288 = vld [vmem:[%s4262 + $0xc8] sm:$0xff]
        %v4289 = vld [vmem:[%s4262 + $0xd0] sm:$0xff]
        %v4290 = vld [vmem:[%s4262 + $0xd8] sm:$0xff]
        %v4291 = vld [vmem:[%s4262 + $0xe0] sm:$0xff]
        %v4292 = vld [vmem:[%s4262 + $0xe8] sm:$0xff]
        %v4293 = vld [vmem:[%s4262 + $0xf0] sm:$0xff]
        %v4294 = vld [vmem:[%s4262 + $0xf8] sm:$0xff]
        %v4295 = vld [vmem:[%s4262 + $0x100] sm:$0xff]
        %v4296 = vld [vmem:[%s4262 + $0x108] sm:$0xff]
        %v4297 = vld [vmem:[%s4262 + $0x110] sm:$0xff]
        %v4298 = vld [vmem:[%s4262 + $0x118] sm:$0xff]
        %v4299 = vld [vmem:[%s4262 + $0x120] sm:$0xff]
        %v4300 = vld [vmem:[%s4262 + $0x128] sm:$0xff]
        %v4301 = vld [vmem:[%s4262 + $0x130] sm:$0xff]
        %v4302 = vld [vmem:[%s4262 + $0x138] sm:$0xff]
        %v4303 = vld [vmem:[%s4262 + $0x140] sm:$0xff]
        %v4304 = vld [vmem:[%s4262 + $0x148] sm:$0xff]
        %v4305 = vld [vmem:[%s4262 + $0x150] sm:$0xff]
        %v4306 = vld [vmem:[%s4262 + $0x158] sm:$0xff]
        %v4307 = vld [vmem:[%s4262 + $0x160] sm:$0xff]
        %v4308 = vld [vmem:[%s4262 + $0x168] sm:$0xff]
        %v4309 = vld [vmem:[%s4262 + $0x170] sm:$0xff]
        %v4310 = vld [vmem:[%s4262 + $0x178] sm:$0xff]
        %v4311 = vld [vmem:[%s4262 + $0x180] sm:$0xff]
        %v4312 = vld [vmem:[%s4262 + $0x188] sm:$0xff]
        %v4313 = vld [vmem:[%s4262 + $0x190] sm:$0xff]
        %v4314 = vld [vmem:[%s4262 + $0x198] sm:$0xff]
        %v4315 = vld [vmem:[%s4262 + $0x1a0] sm:$0xff]
        %v4316 = vld [vmem:[%s4262 + $0x1a8] sm:$0xff]
        %v4317 = vld [vmem:[%s4262 + $0x1b0] sm:$0xff]
        %v4318 = vld [vmem:[%s4262 + $0x1b8] sm:$0xff]
        %v4319 = vld [vmem:[%s4262 + $0x1c0] sm:$0xff]
        %v4320 = vld [vmem:[%s4262 + $0x1c8] sm:$0xff]
        %v4321 = vld [vmem:[%s4262 + $0x1d0] sm:$0xff]
        %v4322 = vld [vmem:[%s4262 + $0x1d8] sm:$0xff]
        %v4323 = vld [vmem:[%s4262 + $0x1e0] sm:$0xff]
        %v4324 = vld [vmem:[%s4262 + $0x1e8] sm:$0xff]
        %v4325 = vld [vmem:[%s4262 + $0x1f0] sm:$0xff]
        %v4326 = vld [vmem:[%s4262 + $0x1f8] sm:$0xff]
        %v4327 = vld [vmem:[%s4262 + $0x200] sm:$0xff]
        %v4328 = vld [vmem:[%s4262 + $0x208] sm:$0xff]
        %v4329 = vld [vmem:[%s4262 + $0x210] sm:$0xff]
        %v4330 = vld [vmem:[%s4262 + $0x218] sm:$0xff]
        %v4331 = vld [vmem:[%s4262 + $0x220] sm:$0xff]
        %v4332 = vld [vmem:[%s4262 + $0x228] sm:$0xff]
        %v4333 = vld [vmem:[%s4262 + $0x230] sm:$0xff]
        %v4334 = vld [vmem:[%s4262 + $0x238] sm:$0xff]
        %v4335 = vld [vmem:[%s4262 + $0x240] sm:$0xff]
        %v4336 = vld [vmem:[%s4262 + $0x248] sm:$0xff]
        %v4337 = vld [vmem:[%s4262 + $0x250] sm:$0xff]
        %v4338 = vld [vmem:[%s4262 + $0x258] sm:$0xff]
        %v4339 = vld [vmem:[%s4262 + $0x260] sm:$0xff]
        %v4340 = vld [vmem:[%s4262 + $0x268] sm:$0xff]
        %v4341 = vld [vmem:[%s4262 + $0x270] sm:$0xff]
        %v4342 = vld [vmem:[%s4262 + $0x278] sm:$0xff]
        %v4343 = vld [vmem:[%s4262 + $0x280] sm:$0xff]
        %v4344 = vld [vmem:[%s4262 + $0x288] sm:$0xff]
        %v4345 = vld [vmem:[%s4262 + $0x290] sm:$0xff]
        %v4346 = vld [vmem:[%s4262 + $0x298] sm:$0xff]
        %v4347 = vld [vmem:[%s4262 + $0x2a0] sm:$0xff]
        %v4348 = vld [vmem:[%s4262 + $0x2a8] sm:$0xff]
        %v4349 = vld [vmem:[%s4262 + $0x2b0] sm:$0xff]
        %v4350 = vld [vmem:[%s4262 + $0x2b8] sm:$0xff]
        %v4351 = vld [vmem:[%s4262 + $0x2c0] sm:$0xff]
        %v4352 = vld [vmem:[%s4262 + $0x2c8] sm:$0xff]
        %v4353 = vld [vmem:[%s4262 + $0x2d0] sm:$0xff]
        %v4354 = vld [vmem:[%s4262 + $0x2d8] sm:$0xff]
        %v4355 = vld [vmem:[%s4262 + $0x2e0] sm:$0xff]
        %v4356 = vld [vmem:[%s4262 + $0x2e8] sm:$0xff]
        %v4357 = vld [vmem:[%s4262 + $0x2f0] sm:$0xff]
        %v4358 = vld [vmem:[%s4262 + $0x2f8] sm:$0xff]
        %v4361 = vrot.slane %v4255, 4
        %v4362 = vrot.slane %v4257, 4
        %v4363 = vsel %vm831, %v4361, %v4362
        %v4364 = vperm.slane %v4363, 0
        %v4365 = vperm.slane %v4363, 1
        %v4366 = vperm.slane %v4363, 2
        %v4367 = vperm.slane %v4363, 3
        %v4368 = vperm.slane %v4363, 4
        %v4369 = vperm.slane %v4363, 5
        %v4472 = vunpack.c.l.b16 %v4263
        %v4473 = vunpack.c.h.b16 %v4263
        %v4474 = vunpack.c.l.b16 %v4264
        %v4475 = vunpack.c.h.b16 %v4264
        %v4476 = vunpack.c.l.b16 %v4265
        %v4477 = vunpack.c.h.b16 %v4265
        %v4478 = vunpack.c.l.b16 %v4266
        %v4479 = vunpack.c.h.b16 %v4266
        %v4480 = vunpack.c.l.b16 %v4267
        %v4481 = vunpack.c.h.b16 %v4267
        %v4482 = vunpack.c.l.b16 %v4268
        %v4483 = vunpack.c.h.b16 %v4268
        %v4484 = vunpack.c.l.b16 %v4269
        %v4485 = vunpack.c.h.b16 %v4269
        %v4486 = vunpack.c.l.b16 %v4270
        %v4487 = vunpack.c.h.b16 %v4270
        %v4488 = vunpack.c.l.b16 %v4271
        %v4489 = vunpack.c.h.b16 %v4271
        %v4490 = vunpack.c.l.b16 %v4272
        %v4491 = vunpack.c.h.b16 %v4272
        %v4492 = vunpack.c.l.b16 %v4273
        %v4493 = vunpack.c.h.b16 %v4273
        %v4494 = vunpack.c.l.b16 %v4274
        %v4495 = vunpack.c.h.b16 %v4274
        %v4496 = vunpack.c.l.b16 %v4275
        %v4497 = vunpack.c.h.b16 %v4275
        %v4498 = vunpack.c.l.b16 %v4276
        %v4499 = vunpack.c.h.b16 %v4276
        %v4500 = vunpack.c.l.b16 %v4277
        %v4501 = vunpack.c.h.b16 %v4277
        %v4502 = vunpack.c.l.b16 %v4278
        %v4503 = vunpack.c.h.b16 %v4278
        %v4504 = vunpack.c.l.b16 %v4279
        %v4505 = vunpack.c.h.b16 %v4279
        %v4506 = vunpack.c.l.b16 %v4280
        %v4507 = vunpack.c.h.b16 %v4280
        %v4508 = vunpack.c.l.b16 %v4281
        %v4509 = vunpack.c.h.b16 %v4281
        %v4510 = vunpack.c.l.b16 %v4282
        %v4511 = vunpack.c.h.b16 %v4282
        %v4512 = vunpack.c.l.b16 %v4283
        %v4513 = vunpack.c.h.b16 %v4283
        %v4514 = vunpack.c.l.b16 %v4284
        %v4515 = vunpack.c.h.b16 %v4284
        %v4516 = vunpack.c.l.b16 %v4285
        %v4517 = vunpack.c.h.b16 %v4285
        %v4518 = vunpack.c.l.b16 %v4286
        %v4519 = vunpack.c.h.b16 %v4286
        %v4520 = vunpack.c.l.b16 %v4287
        %v4521 = vunpack.c.h.b16 %v4287
        %v4522 = vunpack.c.l.b16 %v4288
        %v4523 = vunpack.c.h.b16 %v4288
        %v4524 = vunpack.c.l.b16 %v4289
        %v4525 = vunpack.c.h.b16 %v4289
        %v4526 = vunpack.c.l.b16 %v4290
        %v4527 = vunpack.c.h.b16 %v4290
        %v4528 = vunpack.c.l.b16 %v4291
        %v4529 = vunpack.c.h.b16 %v4291
        %v4530 = vunpack.c.l.b16 %v4292
        %v4531 = vunpack.c.h.b16 %v4292
        %v4532 = vunpack.c.l.b16 %v4293
        %v4533 = vunpack.c.h.b16 %v4293
        %v4534 = vunpack.c.l.b16 %v4294
        %v4535 = vunpack.c.h.b16 %v4294
        %v4536 = vunpack.c.l.b16 %v4295
        %v4537 = vunpack.c.h.b16 %v4295
        %v4538 = vunpack.c.l.b16 %v4296
        %v4539 = vunpack.c.h.b16 %v4296
        %v4540 = vunpack.c.l.b16 %v4297
        %v4541 = vunpack.c.h.b16 %v4297
        %v4542 = vunpack.c.l.b16 %v4298
        %v4543 = vunpack.c.h.b16 %v4298
        %v4544 = vunpack.c.l.b16 %v4299
        %v4545 = vunpack.c.h.b16 %v4299
        %v4546 = vunpack.c.l.b16 %v4300
        %v4547 = vunpack.c.h.b16 %v4300
        %v4548 = vunpack.c.l.b16 %v4301
        %v4549 = vunpack.c.h.b16 %v4301
        %v4550 = vunpack.c.l.b16 %v4302
        %v4551 = vunpack.c.h.b16 %v4302
        %v4552 = vunpack.c.l.b16 %v4303
        %v4553 = vunpack.c.h.b16 %v4303
        %v4554 = vunpack.c.l.b16 %v4304
        %v4555 = vunpack.c.h.b16 %v4304
        %v4556 = vunpack.c.l.b16 %v4305
        %v4557 = vunpack.c.h.b16 %v4305
        %v4558 = vunpack.c.l.b16 %v4306
        %v4559 = vunpack.c.h.b16 %v4306
        %v4560 = vunpack.c.l.b16 %v4307
        %v4561 = vunpack.c.h.b16 %v4307
        %v4562 = vunpack.c.l.b16 %v4308
        %v4563 = vunpack.c.h.b16 %v4308
        %v4564 = vunpack.c.l.b16 %v4309
        %v4565 = vunpack.c.h.b16 %v4309
        %v4566 = vunpack.c.l.b16 %v4310
        %v4567 = vunpack.c.h.b16 %v4310
        %v4568 = vunpack.c.l.b16 %v4311
        %v4569 = vunpack.c.h.b16 %v4311
        %v4570 = vunpack.c.l.b16 %v4312
        %v4571 = vunpack.c.h.b16 %v4312
        %v4572 = vunpack.c.l.b16 %v4313
        %v4573 = vunpack.c.h.b16 %v4313
        %v4574 = vunpack.c.l.b16 %v4314
        %v4575 = vunpack.c.h.b16 %v4314
        %v4576 = vunpack.c.l.b16 %v4315
        %v4577 = vunpack.c.h.b16 %v4315
        %v4578 = vunpack.c.l.b16 %v4316
        %v4579 = vunpack.c.h.b16 %v4316
        %v4580 = vunpack.c.l.b16 %v4317
        %v4581 = vunpack.c.h.b16 %v4317
        %v4582 = vunpack.c.l.b16 %v4318
        %v4583 = vunpack.c.h.b16 %v4318
        %v4584 = vunpack.c.l.b16 %v4319
        %v4585 = vunpack.c.h.b16 %v4319
        %v4586 = vunpack.c.l.b16 %v4320
        %v4587 = vunpack.c.h.b16 %v4320
        %v4588 = vunpack.c.l.b16 %v4321
        %v4589 = vunpack.c.h.b16 %v4321
        %v4590 = vunpack.c.l.b16 %v4322
        %v4591 = vunpack.c.h.b16 %v4322
        %v4592 = vunpack.c.l.b16 %v4323
        %v4593 = vunpack.c.h.b16 %v4323
        %v4594 = vunpack.c.l.b16 %v4324
        %v4595 = vunpack.c.h.b16 %v4324
        %v4596 = vunpack.c.l.b16 %v4325
        %v4597 = vunpack.c.h.b16 %v4325
        %v4598 = vunpack.c.l.b16 %v4326
        %v4599 = vunpack.c.h.b16 %v4326
        %v4600 = vunpack.c.l.b16 %v4327
        %v4601 = vunpack.c.h.b16 %v4327
        %v4602 = vunpack.c.l.b16 %v4328
        %v4603 = vunpack.c.h.b16 %v4328
        %v4604 = vunpack.c.l.b16 %v4329
        %v4605 = vunpack.c.h.b16 %v4329
        %v4606 = vunpack.c.l.b16 %v4330
        %v4607 = vunpack.c.h.b16 %v4330
        %v4608 = vunpack.c.l.b16 %v4331
        %v4609 = vunpack.c.h.b16 %v4331
        %v4610 = vunpack.c.l.b16 %v4332
        %v4611 = vunpack.c.h.b16 %v4332
        %v4612 = vunpack.c.l.b16 %v4333
        %v4613 = vunpack.c.h.b16 %v4333
        %v4614 = vunpack.c.l.b16 %v4334
        %v4615 = vunpack.c.h.b16 %v4334
        %v4616 = vunpack.c.l.b16 %v4335
        %v4617 = vunpack.c.h.b16 %v4335
        %v4618 = vunpack.c.l.b16 %v4336
        %v4619 = vunpack.c.h.b16 %v4336
        %v4620 = vunpack.c.l.b16 %v4337
        %v4621 = vunpack.c.h.b16 %v4337
        %v4622 = vunpack.c.l.b16 %v4338
        %v4623 = vunpack.c.h.b16 %v4338
        %v4624 = vunpack.c.l.b16 %v4339
        %v4625 = vunpack.c.h.b16 %v4339
        %v4626 = vunpack.c.l.b16 %v4340
        %v4627 = vunpack.c.h.b16 %v4340
        %v4628 = vunpack.c.l.b16 %v4341
        %v4629 = vunpack.c.h.b16 %v4341
        %v4630 = vunpack.c.l.b16 %v4342
        %v4631 = vunpack.c.h.b16 %v4342
        %v4632 = vunpack.c.l.b16 %v4343
        %v4633 = vunpack.c.h.b16 %v4343
        %v4634 = vunpack.c.l.b16 %v4344
        %v4635 = vunpack.c.h.b16 %v4344
        %v4636 = vunpack.c.l.b16 %v4345
        %v4637 = vunpack.c.h.b16 %v4345
        %v4638 = vunpack.c.l.b16 %v4346
        %v4639 = vunpack.c.h.b16 %v4346
        %v4640 = vunpack.c.l.b16 %v4347
        %v4641 = vunpack.c.h.b16 %v4347
        %v4642 = vunpack.c.l.b16 %v4348
        %v4643 = vunpack.c.h.b16 %v4348
        %v4644 = vunpack.c.l.b16 %v4349
        %v4645 = vunpack.c.h.b16 %v4349
        %v4646 = vunpack.c.l.b16 %v4350
        %v4647 = vunpack.c.h.b16 %v4350
        %v4648 = vunpack.c.l.b16 %v4351
        %v4649 = vunpack.c.h.b16 %v4351
        %v4650 = vunpack.c.l.b16 %v4352
        %v4651 = vunpack.c.h.b16 %v4352
        %v4652 = vunpack.c.l.b16 %v4353
        %v4653 = vunpack.c.h.b16 %v4353
        %v4654 = vunpack.c.l.b16 %v4354
        %v4655 = vunpack.c.h.b16 %v4354
        %v4656 = vunpack.c.l.b16 %v4355
        %v4657 = vunpack.c.h.b16 %v4355
        %v4658 = vunpack.c.l.b16 %v4356
        %v4659 = vunpack.c.h.b16 %v4356
        %v4660 = vunpack.c.l.b16 %v4357
        %v4661 = vunpack.c.h.b16 %v4357
        %v4662 = vunpack.c.l.b16 %v4358
        %v4663 = vunpack.c.h.b16 %v4358
        %v4664 = vpack.c.b16 %v4478, %v4472
        %v4665 = vpack.c.b16 %v4479, %v4473
        %v4666 = vpack.c.b16 %v4480, %v4474
        %v4667 = vpack.c.b16 %v4481, %v4475
        %v4668 = vpack.c.b16 %v4482, %v4476
        %v4669 = vpack.c.b16 %v4483, %v4477
        %v4670 = vpack.c.b16 %v4490, %v4484
        %v4671 = vpack.c.b16 %v4491, %v4485
        %v4672 = vpack.c.b16 %v4492, %v4486
        %v4673 = vpack.c.b16 %v4493, %v4487
        %v4674 = vpack.c.b16 %v4494, %v4488
        %v4675 = vpack.c.b16 %v4495, %v4489
        %v4676 = vpack.c.b16 %v4502, %v4496
        %v4677 = vpack.c.b16 %v4503, %v4497
        %v4678 = vpack.c.b16 %v4504, %v4498
        %v4679 = vpack.c.b16 %v4505, %v4499
        %v4680 = vpack.c.b16 %v4506, %v4500
        %v4681 = vpack.c.b16 %v4507, %v4501
        %v4682 = vpack.c.b16 %v4514, %v4508
        %v4683 = vpack.c.b16 %v4515, %v4509
        %v4684 = vpack.c.b16 %v4516, %v4510
        %v4685 = vpack.c.b16 %v4517, %v4511
        %v4686 = vpack.c.b16 %v4518, %v4512
        %v4687 = vpack.c.b16 %v4519, %v4513
        %v4688 = vpack.c.b16 %v4526, %v4520
        %v4689 = vpack.c.b16 %v4527, %v4521
        %v4690 = vpack.c.b16 %v4528, %v4522
        %v4691 = vpack.c.b16 %v4529, %v4523
        %v4692 = vpack.c.b16 %v4530, %v4524
        %v4693 = vpack.c.b16 %v4531, %v4525
        %v4694 = vpack.c.b16 %v4538, %v4532
        %v4695 = vpack.c.b16 %v4539, %v4533
        %v4696 = vpack.c.b16 %v4540, %v4534
        %v4697 = vpack.c.b16 %v4541, %v4535
        %v4698 = vpack.c.b16 %v4542, %v4536
        %v4699 = vpack.c.b16 %v4543, %v4537
        %v4700 = vpack.c.b16 %v4550, %v4544
        %v4701 = vpack.c.b16 %v4551, %v4545
        %v4702 = vpack.c.b16 %v4552, %v4546
        %v4703 = vpack.c.b16 %v4553, %v4547
        %v4704 = vpack.c.b16 %v4554, %v4548
        %v4705 = vpack.c.b16 %v4555, %v4549
        %v4706 = vpack.c.b16 %v4562, %v4556
        %v4707 = vpack.c.b16 %v4563, %v4557
        %v4708 = vpack.c.b16 %v4564, %v4558
        %v4709 = vpack.c.b16 %v4565, %v4559
        %v4710 = vpack.c.b16 %v4566, %v4560
        %v4711 = vpack.c.b16 %v4567, %v4561
        %v4712 = vpack.c.b16 %v4574, %v4568
        %v4713 = vpack.c.b16 %v4575, %v4569
        %v4714 = vpack.c.b16 %v4576, %v4570
        %v4715 = vpack.c.b16 %v4577, %v4571
        %v4716 = vpack.c.b16 %v4578, %v4572
        %v4717 = vpack.c.b16 %v4579, %v4573
        %v4718 = vpack.c.b16 %v4586, %v4580
        %v4719 = vpack.c.b16 %v4587, %v4581
        %v4720 = vpack.c.b16 %v4588, %v4582
        %v4721 = vpack.c.b16 %v4589, %v4583
        %v4722 = vpack.c.b16 %v4590, %v4584
        %v4723 = vpack.c.b16 %v4591, %v4585
        %v4724 = vpack.c.b16 %v4598, %v4592
        %v4725 = vpack.c.b16 %v4599, %v4593
        %v4726 = vpack.c.b16 %v4600, %v4594
        %v4727 = vpack.c.b16 %v4601, %v4595
        %v4728 = vpack.c.b16 %v4602, %v4596
        %v4729 = vpack.c.b16 %v4603, %v4597
        %v4730 = vpack.c.b16 %v4610, %v4604
        %v4731 = vpack.c.b16 %v4611, %v4605
        %v4732 = vpack.c.b16 %v4612, %v4606
        %v4733 = vpack.c.b16 %v4613, %v4607
        %v4734 = vpack.c.b16 %v4614, %v4608
        %v4735 = vpack.c.b16 %v4615, %v4609
        %v4736 = vpack.c.b16 %v4622, %v4616
        %v4737 = vpack.c.b16 %v4623, %v4617
        %v4738 = vpack.c.b16 %v4624, %v4618
        %v4739 = vpack.c.b16 %v4625, %v4619
        %v4740 = vpack.c.b16 %v4626, %v4620
        %v4741 = vpack.c.b16 %v4627, %v4621
        %v4742 = vpack.c.b16 %v4634, %v4628
        %v4743 = vpack.c.b16 %v4635, %v4629
        %v4744 = vpack.c.b16 %v4636, %v4630
        %v4745 = vpack.c.b16 %v4637, %v4631
        %v4746 = vpack.c.b16 %v4638, %v4632
        %v4747 = vpack.c.b16 %v4639, %v4633
        %v4748 = vpack.c.b16 %v4646, %v4640
        %v4749 = vpack.c.b16 %v4647, %v4641
        %v4750 = vpack.c.b16 %v4648, %v4642
        %v4751 = vpack.c.b16 %v4649, %v4643
        %v4752 = vpack.c.b16 %v4650, %v4644
        %v4753 = vpack.c.b16 %v4651, %v4645
        %v4754 = vpack.c.b16 %v4658, %v4652
        %v4755 = vpack.c.b16 %v4659, %v4653
        %v4756 = vpack.c.b16 %v4660, %v4654
        %v4757 = vpack.c.b16 %v4661, %v4655
        %v4758 = vpack.c.b16 %v4662, %v4656
        %v4759 = vpack.c.b16 %v4663, %v4657
        %4856 = vmatpush.bf16.msra.mxu0 %v4706
        %4857 = vmatpush.bf16.msra.mxu0 %v4700
        %4858 = vmatpush.bf16.msra.mxu0 %v4694
        %4859 = vmatpush.bf16.msra.mxu0 %v4688
        %4860 = vmatpush.bf16.msra.mxu0 %v4682
        %4861 = vmatpush.bf16.msra.mxu0 %v4676
        %4862 = vmatpush.bf16.msra.mxu0 %v4670
        %4863 = vmatpush.bf16.msra.mxu0 %v4664
        %4864 = vmatmul.bf16.gmra.mxu0 %v4260
        %v4865 = vpop.f32.mrf.mxu0
        %v4866 = vadd.f32 %v4364, %v4865
        %v4867 = vpop.f32.mrf.mxu0
        %v4868 = vadd.f32 %v4364, %v4867
        %4869 = vdwg.mxu0
        %4870 = vmatpush.bf16.msra.mxu0 %v4754
        %4871 = vmatpush.bf16.msra.mxu0 %v4748
        %4872 = vmatpush.bf16.msra.mxu0 %v4742
        %4873 = vmatpush.bf16.msra.mxu0 %v4736
        %4874 = vmatpush.bf16.msra.mxu0 %v4730
        %4875 = vmatpush.bf16.msra.mxu0 %v4724
        %4876 = vmatpush.bf16.msra.mxu0 %v4718
        %4877 = vmatpush.bf16.msra.mxu0 %v4712
        %4878 = vmatmul.bf16.gmra.mxu0 %v4261
        %v4879 = vpop.f32.mrf.mxu0
        %v4880 = vadd.f32 %v4866, %v4879
        %v4881 = vpop.f32.mrf.mxu0
        %v4882 = vadd.f32 %v4868, %v4881
        %4883 = vdwg.mxu0
        %4884 = vmatpush.bf16.msra.mxu0 %v4707
        %4885 = vmatpush.bf16.msra.mxu0 %v4701
        %4886 = vmatpush.bf16.msra.mxu0 %v4695
        %4887 = vmatpush.bf16.msra.mxu0 %v4689
        %4888 = vmatpush.bf16.msra.mxu0 %v4683
        %4889 = vmatpush.bf16.msra.mxu0 %v4677
        %4890 = vmatpush.bf16.msra.mxu0 %v4671
        %4891 = vmatpush.bf16.msra.mxu0 %v4665
        %4892 = vmatmul.bf16.gmra.mxu0 %v4260
        %v4893 = vpop.f32.mrf.mxu0
        %v4894 = vadd.f32 %v4365, %v4893
        %v4895 = vpop.f32.mrf.mxu0
        %v4896 = vadd.f32 %v4365, %v4895
        %4897 = vdwg.mxu0
        %4898 = vmatpush.bf16.msra.mxu0 %v4755
        %4899 = vmatpush.bf16.msra.mxu0 %v4749
        %4900 = vmatpush.bf16.msra.mxu0 %v4743
        %4901 = vmatpush.bf16.msra.mxu0 %v4737
        %4902 = vmatpush.bf16.msra.mxu0 %v4731
        %4903 = vmatpush.bf16.msra.mxu0 %v4725
        %4904 = vmatpush.bf16.msra.mxu0 %v4719
        %4905 = vmatpush.bf16.msra.mxu0 %v4713
        %4906 = vmatmul.bf16.gmra.mxu0 %v4261
        %v4907 = vpop.f32.mrf.mxu0
        %v4908 = vadd.f32 %v4894, %v4907
        %v4909 = vpop.f32.mrf.mxu0
        %v4910 = vadd.f32 %v4896, %v4909
        %4911 = vdwg.mxu0
        %4912 = vmatpush.bf16.msra.mxu0 %v4708
        %4913 = vmatpush.bf16.msra.mxu0 %v4702
        %4914 = vmatpush.bf16.msra.mxu0 %v4696
        %4915 = vmatpush.bf16.msra.mxu0 %v4690
        %4916 = vmatpush.bf16.msra.mxu0 %v4684
        %4917 = vmatpush.bf16.msra.mxu0 %v4678
        %4918 = vmatpush.bf16.msra.mxu0 %v4672
        %4919 = vmatpush.bf16.msra.mxu0 %v4666
        %4920 = vmatmul.bf16.gmra.mxu0 %v4260
        %v4921 = vpop.f32.mrf.mxu0
        %v4922 = vadd.f32 %v4366, %v4921
        %v4923 = vpop.f32.mrf.mxu0
        %v4924 = vadd.f32 %v4366, %v4923
        %4925 = vdwg.mxu0
        %4926 = vmatpush.bf16.msra.mxu0 %v4756
        %4927 = vmatpush.bf16.msra.mxu0 %v4750
        %4928 = vmatpush.bf16.msra.mxu0 %v4744
        %4929 = vmatpush.bf16.msra.mxu0 %v4738
        %4930 = vmatpush.bf16.msra.mxu0 %v4732
        %4931 = vmatpush.bf16.msra.mxu0 %v4726
        %4932 = vmatpush.bf16.msra.mxu0 %v4720
        %4933 = vmatpush.bf16.msra.mxu0 %v4714
        %4934 = vmatmul.bf16.gmra.mxu0 %v4261
        %v4935 = vpop.f32.mrf.mxu0
        %v4936 = vadd.f32 %v4922, %v4935
        %v4937 = vpop.f32.mrf.mxu0
        %v4938 = vadd.f32 %v4924, %v4937
        %4939 = vdwg.mxu0
        %4940 = vmatpush.bf16.msra.mxu0 %v4709
        %4941 = vmatpush.bf16.msra.mxu0 %v4703
        %4942 = vmatpush.bf16.msra.mxu0 %v4697
        %4943 = vmatpush.bf16.msra.mxu0 %v4691
        %4944 = vmatpush.bf16.msra.mxu0 %v4685
        %4945 = vmatpush.bf16.msra.mxu0 %v4679
        %4946 = vmatpush.bf16.msra.mxu0 %v4673
        %4947 = vmatpush.bf16.msra.mxu0 %v4667
        %4948 = vmatmul.bf16.gmra.mxu0 %v4260
        %v4949 = vpop.f32.mrf.mxu0
        %v4950 = vadd.f32 %v4367, %v4949
        %v4951 = vpop.f32.mrf.mxu0
        %v4952 = vadd.f32 %v4367, %v4951
        %4953 = vdwg.mxu0
        %4954 = vmatpush.bf16.msra.mxu0 %v4757
        %4955 = vmatpush.bf16.msra.mxu0 %v4751
        %4956 = vmatpush.bf16.msra.mxu0 %v4745
        %4957 = vmatpush.bf16.msra.mxu0 %v4739
        %4958 = vmatpush.bf16.msra.mxu0 %v4733
        %4959 = vmatpush.bf16.msra.mxu0 %v4727
        %4960 = vmatpush.bf16.msra.mxu0 %v4721
        %4961 = vmatpush.bf16.msra.mxu0 %v4715
        %4962 = vmatmul.bf16.gmra.mxu0 %v4261
        %v4963 = vpop.f32.mrf.mxu0
        %v4964 = vadd.f32 %v4950, %v4963
        %v4965 = vpop.f32.mrf.mxu0
        %v4966 = vadd.f32 %v4952, %v4965
        %4967 = vdwg.mxu0
        %4968 = vmatpush.bf16.msra.mxu0 %v4710
        %4969 = vmatpush.bf16.msra.mxu0 %v4704
        %4970 = vmatpush.bf16.msra.mxu0 %v4698
        %4971 = vmatpush.bf16.msra.mxu0 %v4692
        %4972 = vmatpush.bf16.msra.mxu0 %v4686
        %4973 = vmatpush.bf16.msra.mxu0 %v4680
        %4974 = vmatpush.bf16.msra.mxu0 %v4674
        %4975 = vmatpush.bf16.msra.mxu0 %v4668
        %4976 = vmatmul.bf16.gmra.mxu0 %v4260
        %v4977 = vpop.f32.mrf.mxu0
        %v4978 = vadd.f32 %v4368, %v4977
        %v4979 = vpop.f32.mrf.mxu0
        %v4980 = vadd.f32 %v4368, %v4979
        %4981 = vdwg.mxu0
        %4982 = vmatpush.bf16.msra.mxu0 %v4758
        %4983 = vmatpush.bf16.msra.mxu0 %v4752
        %4984 = vmatpush.bf16.msra.mxu0 %v4746
        %4985 = vmatpush.bf16.msra.mxu0 %v4740
        %4986 = vmatpush.bf16.msra.mxu0 %v4734
        %4987 = vmatpush.bf16.msra.mxu0 %v4728
        %4988 = vmatpush.bf16.msra.mxu0 %v4722
        %4989 = vmatpush.bf16.msra.mxu0 %v4716
        %4990 = vmatmul.bf16.gmra.mxu0 %v4261
        %v4991 = vpop.f32.mrf.mxu0
        %v4992 = vadd.f32 %v4978, %v4991
        %v4993 = vpop.f32.mrf.mxu0
        %v4994 = vadd.f32 %v4980, %v4993
        %4995 = vdwg.mxu0
        %4996 = vmatpush.bf16.msra.mxu0 %v4711
        %4997 = vmatpush.bf16.msra.mxu0 %v4705
        %4998 = vmatpush.bf16.msra.mxu0 %v4699
        %4999 = vmatpush.bf16.msra.mxu0 %v4693
        %5000 = vmatpush.bf16.msra.mxu0 %v4687
        %5001 = vmatpush.bf16.msra.mxu0 %v4681
        %5002 = vmatpush.bf16.msra.mxu0 %v4675
        %5003 = vmatpush.bf16.msra.mxu0 %v4669
        %5004 = vmatmul.bf16.gmra.mxu0 %v4260
        %v5005 = vpop.f32.mrf.mxu0
        %v5006 = vadd.f32 %v4369, %v5005
        %v5007 = vpop.f32.mrf.mxu0
        %v5008 = vadd.f32 %v4369, %v5007
        %5009 = vdwg.mxu0
        %5010 = vmatpush.bf16.msra.mxu0 %v4759
        %5011 = vmatpush.bf16.msra.mxu0 %v4753
        %5012 = vmatpush.bf16.msra.mxu0 %v4747
        %5013 = vmatpush.bf16.msra.mxu0 %v4741
        %5014 = vmatpush.bf16.msra.mxu0 %v4735
        %5015 = vmatpush.bf16.msra.mxu0 %v4729
        %5016 = vmatpush.bf16.msra.mxu0 %v4723
        %5017 = vmatpush.bf16.msra.mxu0 %v4717
        %5018 = vmatmul.bf16.gmra.mxu0 %v4261
        %v5019 = vpop.f32.mrf.mxu0
        %v5020 = vadd.f32 %v5006, %v5019
        %v5021 = vpop.f32.mrf.mxu0
        %v5022 = vadd.f32 %v5008, %v5021
        %5023 = vdwg.mxu0
        %v5024 = vpack.c.bf16 %v4880, %v4880
        %v5025 = vpack.c.bf16 %v4882, %v4882
        %v5026 = vpack.c.bf16 %v4908, %v4908
        %v5027 = vpack.c.bf16 %v4910, %v4910
        %v5028 = vpack.c.bf16 %v4936, %v4936
        %v5029 = vpack.c.bf16 %v4938, %v4938
        %v5030 = vpack.c.bf16 %v4964, %v4964
        %v5031 = vpack.c.bf16 %v4966, %v4966
        %v5032 = vpack.c.bf16 %v4992, %v4992
        %v5033 = vpack.c.bf16 %v4994, %v4994
        %v5034 = vpack.c.bf16 %v5020, %v5020
        %v5035 = vpack.c.bf16 %v5022, %v5022
        %5036 = vmatpush.bf16.xpose.msra.mxu0 0
        %5037 = vmatpush.bf16.xpose.msra.mxu0 0
        %5038 = vmatpush.bf16.xpose.msra.mxu0 0
        %5039 = vmatpush.bf16.xpose.msra.mxu0 0
        %5040 = vmatpush.bf16.xpose.msra.mxu0 0
        %5041 = vmatpush.bf16.xpose.msra.mxu0 0
        %5042 = vmatpush.bf16.xpose.msra.mxu0 0
        %5043 = vmatpush.bf16.xpose.msra.mxu0 %v5028
        %5044 = vmatmul.bf16.gmra.mxu0 %v5024
        %v5045 = vpop.f32.mrf.mxu0
        %v5046 = vadd.f32 0.0, %v5045
        %v5047 = vpop.f32.mrf.mxu0
        %5048 = vdwg.mxu0
        %5049 = vmatpush.bf16.xpose.msra.mxu0 0
        %5050 = vmatpush.bf16.xpose.msra.mxu0 0
        %5051 = vmatpush.bf16.xpose.msra.mxu0 0
        %5052 = vmatpush.bf16.xpose.msra.mxu0 0
        %5053 = vmatpush.bf16.xpose.msra.mxu0 0
        %5054 = vmatpush.bf16.xpose.msra.mxu0 0
        %5055 = vmatpush.bf16.xpose.msra.mxu0 0
        %5056 = vmatpush.bf16.xpose.msra.mxu0 %v5029
        %5057 = vmatmul.bf16.gmra.mxu0 %v5025
        %v5058 = vpop.f32.mrf.mxu0
        %v5059 = vadd.f32 0.0, %v5058
        %v5060 = vpop.f32.mrf.mxu0
        %5061 = vdwg.mxu0
        %5062 = vmatpush.bf16.xpose.msra.mxu0 0
        %5063 = vmatpush.bf16.xpose.msra.mxu0 0
        %5064 = vmatpush.bf16.xpose.msra.mxu0 0
        %5065 = vmatpush.bf16.xpose.msra.mxu0 0
        %5066 = vmatpush.bf16.xpose.msra.mxu0 0
        %5067 = vmatpush.bf16.xpose.msra.mxu0 0
        %5068 = vmatpush.bf16.xpose.msra.mxu0 0
        %5069 = vmatpush.bf16.xpose.msra.mxu0 %v5030
        %5070 = vmatmul.bf16.gmra.mxu0 %v5026
        %v5071 = vpop.f32.mrf.mxu0
        %v5072 = vadd.f32 0.0, %v5071
        %v5073 = vpop.f32.mrf.mxu0
        %5074 = vdwg.mxu0
        %5075 = vmatpush.bf16.xpose.msra.mxu0 0
        %5076 = vmatpush.bf16.xpose.msra.mxu0 0
        %5077 = vmatpush.bf16.xpose.msra.mxu0 0
        %5078 = vmatpush.bf16.xpose.msra.mxu0 0
        %5079 = vmatpush.bf16.xpose.msra.mxu0 0
        %5080 = vmatpush.bf16.xpose.msra.mxu0 0
        %5081 = vmatpush.bf16.xpose.msra.mxu0 0
        %5082 = vmatpush.bf16.xpose.msra.mxu0 %v5031
        %5083 = vmatmul.bf16.gmra.mxu0 %v5027
        %v5084 = vpop.f32.mrf.mxu0
        %v5085 = vadd.f32 0.0, %v5084
        %v5086 = vpop.f32.mrf.mxu0
        %5087 = vdwg.mxu0
        %v5088 = vmul.f32 %v5046, 0.088388346
        %v5089 = vmul.f32 %v5059, 0.088388346
        %v5090 = vmul.f32 %v5072, 0.088388346
        %v5091 = vmul.f32 %v5085, 0.088388346
        %v5092 = vadd.f32 %v5088, %v718
        %v5093 = vadd.f32 %v5089, %v719
        %v5094 = vadd.f32 %v5090, %v718
        %v5095 = vadd.f32 %v5091, %v719
        %v5096 = vsel %vm1565, %v5092, -inf
        %5097 = vmax.xlane.f32.xlu0 %v5096
        %v5098 = vpop.xlane.xlu0 %5097
        %v5099 = vsel %vm1565, %v5093, -inf
        %5100 = vmax.xlane.f32.xlu0 %v5099
        %v5101 = vpop.xlane.xlu0 %5100
        %v5102 = vsel %vm1565, %v5094, -inf
        %5103 = vmax.xlane.f32.xlu0 %v5102
        %v5104 = vpop.xlane.xlu0 %5103
        %v5105 = vsel %vm1565, %v5095, -inf
        %5106 = vmax.xlane.f32.xlu0 %v5105
        %v5107 = vpop.xlane.xlu0 %5106
        %v5108 = vsub.f32 %v5092, %v5098
        %v5109 = vsub.f32 %v5093, %v5101
        %v5110 = vsub.f32 %v5094, %v5104
        %v5111 = vsub.f32 %v5095, %v5107
        %v5112 = vmul.f32 %v5108, 1.442695
        %v5113 = vpow.pop %v5112
        %v5114 = vmul.f32 %v5109, 1.442695
        %v5115 = vpow.pop %v5114
        %v5116 = vmul.f32 %v5110, 1.442695
        %v5117 = vpow.pop %v5116
        %v5118 = vmul.f32 %v5111, 1.442695
        %v5119 = vpow.pop %v5118
        %v5120 = vsel %vm1565, %v5113, 0.0
        %5121 = vadd.xlane.f32.xlu0 %v5120
        %v5122 = vpop.xlane.xlu0 %5121
        %v5123 = vsel %vm1565, %v5115, 0.0
        %5124 = vadd.xlane.f32.xlu0 %v5123
        %v5125 = vpop.xlane.xlu0 %5124
        %v5126 = vsel %vm1565, %v5117, 0.0
        %5127 = vadd.xlane.f32.xlu0 %v5126
        %v5128 = vpop.xlane.xlu0 %5127
        %v5129 = vsel %vm1565, %v5119, 0.0
        %5130 = vadd.xlane.f32.xlu0 %v5129
        %v5131 = vpop.xlane.xlu0 %5130
        %v5132 = vrcp.pop %v5122
        %v5133 = vrcp.pop %v5125
        %v5134 = vrcp.pop %v5128
        %v5135 = vrcp.pop %v5131
        %v5136 = vmul.f32 %v5113, %v5132
        %v5137 = vmul.f32 %v5115, %v5133
        %v5138 = vmul.f32 %v5117, %v5134
        %v5139 = vmul.f32 %v5119, %v5135
        %v5140 = vpack.c.bf16 %v5136, %v5136
        %v5141 = vpack.c.bf16 %v5137, %v5137
        %v5142 = vpack.c.bf16 %v5138, %v5138
        %v5143 = vpack.c.bf16 %v5139, %v5139
        %v5145 = vsel %vm1565, %v5140, 0
        %v5148 = vsel %vm831, %v5032, 0
        %5150 = vmatpush.bf16.msra.mxu0 0
        %5151 = vmatpush.bf16.msra.mxu0 0
        %5152 = vmatpush.bf16.msra.mxu0 0
        %5153 = vmatpush.bf16.msra.mxu0 0
        %5154 = vmatpush.bf16.msra.mxu0 0
        %5155 = vmatpush.bf16.msra.mxu0 0
        %5156 = vmatpush.bf16.msra.mxu0 0
        %5157 = vmatpush.bf16.msra.mxu0 %v5148
        %5158 = vmatmul.bf16.gmra.mxu0 %v5145
        %v5159 = vpop.f32.mrf.mxu0
        %v5160 = vadd.f32 0.0, %v5159
        %v5161 = vpop.f32.mrf.mxu0
        %5162 = vdwg.mxu0
        %v5164 = vsel %vm1565, %v5141, 0
        %v5167 = vsel %vm831, %v5033, 0
        %5169 = vmatpush.bf16.msra.mxu0 0
        %5170 = vmatpush.bf16.msra.mxu0 0
        %5171 = vmatpush.bf16.msra.mxu0 0
        %5172 = vmatpush.bf16.msra.mxu0 0
        %5173 = vmatpush.bf16.msra.mxu0 0
        %5174 = vmatpush.bf16.msra.mxu0 0
        %5175 = vmatpush.bf16.msra.mxu0 0
        %5176 = vmatpush.bf16.msra.mxu0 %v5167
        %5177 = vmatmul.bf16.gmra.mxu0 %v5164
        %v5178 = vpop.f32.mrf.mxu0
        %v5179 = vadd.f32 0.0, %v5178
        %v5180 = vpop.f32.mrf.mxu0
        %5181 = vdwg.mxu0
        %v5183 = vsel %vm1565, %v5142, 0
        %v5186 = vsel %vm831, %v5034, 0
        %5188 = vmatpush.bf16.msra.mxu0 0
        %5189 = vmatpush.bf16.msra.mxu0 0
        %5190 = vmatpush.bf16.msra.mxu0 0
        %5191 = vmatpush.bf16.msra.mxu0 0
        %5192 = vmatpush.bf16.msra.mxu0 0
        %5193 = vmatpush.bf16.msra.mxu0 0
        %5194 = vmatpush.bf16.msra.mxu0 0
        %5195 = vmatpush.bf16.msra.mxu0 %v5186
        %5196 = vmatmul.bf16.gmra.mxu0 %v5183
        %v5197 = vpop.f32.mrf.mxu0
        %v5198 = vadd.f32 0.0, %v5197
        %v5199 = vpop.f32.mrf.mxu0
        %5200 = vdwg.mxu0
        %v5202 = vsel %vm1565, %v5143, 0
        %v5205 = vsel %vm831, %v5035, 0
        %5207 = vmatpush.bf16.msra.mxu0 0
        %5208 = vmatpush.bf16.msra.mxu0 0
        %5209 = vmatpush.bf16.msra.mxu0 0
        %5210 = vmatpush.bf16.msra.mxu0 0
        %5211 = vmatpush.bf16.msra.mxu0 0
        %5212 = vmatpush.bf16.msra.mxu0 0
        %5213 = vmatpush.bf16.msra.mxu0 0
        %5214 = vmatpush.bf16.msra.mxu0 %v5205
        %5215 = vmatmul.bf16.gmra.mxu0 %v5202
        %v5216 = vpop.f32.mrf.mxu0
        %v5217 = vadd.f32 0.0, %v5216
        %v5218 = vpop.f32.mrf.mxu0
        %5219 = vdwg.mxu0
        %v5220 = vpack.c.bf16 %v5179, %v5160
        %v5221 = vpack.c.bf16 %v5217, %v5198
        %s5222 = scalar_lea.vmem %s512, 256 [#allocation7]
        %v5223 = vld [vmem:[%s5222] sm:$0xff]
        %v5224 = vld [vmem:[%s5222 + $0x8] sm:$0xff]
        %v5225 = vld [vmem:[%s5222 + $0x10] sm:$0xff]
        %v5226 = vld [vmem:[%s5222 + $0x18] sm:$0xff]
        %v5227 = vld [vmem:[%s5222 + $0x20] sm:$0xff]
        %v5228 = vld [vmem:[%s5222 + $0x28] sm:$0xff]
        %v5229 = vld [vmem:[%s5222 + $0x30] sm:$0xff]
        %v5230 = vld [vmem:[%s5222 + $0x38] sm:$0xff]
        %v5231 = vld [vmem:[%s5222 + $0x40] sm:$0xff]
        %v5232 = vld [vmem:[%s5222 + $0x48] sm:$0xff]
        %v5233 = vld [vmem:[%s5222 + $0x50] sm:$0xff]
        %v5234 = vld [vmem:[%s5222 + $0x58] sm:$0xff]
        %v5235 = vld [vmem:[%s5222 + $0x60] sm:$0xff]
        %v5236 = vld [vmem:[%s5222 + $0x68] sm:$0xff]
        %v5237 = vld [vmem:[%s5222 + $0x70] sm:$0xff]
        %v5238 = vld [vmem:[%s5222 + $0x78] sm:$0xff]
        %v5239 = vld [vmem:[%s5222 + $0x80] sm:$0xff]
        %v5240 = vld [vmem:[%s5222 + $0x88] sm:$0xff]
        %v5241 = vld [vmem:[%s5222 + $0x90] sm:$0xff]
        %v5242 = vld [vmem:[%s5222 + $0x98] sm:$0xff]
        %v5243 = vld [vmem:[%s5222 + $0xa0] sm:$0xff]
        %v5244 = vld [vmem:[%s5222 + $0xa8] sm:$0xff]
        %v5245 = vld [vmem:[%s5222 + $0xb0] sm:$0xff]
        %v5246 = vld [vmem:[%s5222 + $0xb8] sm:$0xff]
        %v5247 = vld [vmem:[%s5222 + $0xc0] sm:$0xff]
        %v5248 = vld [vmem:[%s5222 + $0xc8] sm:$0xff]
        %v5249 = vld [vmem:[%s5222 + $0xd0] sm:$0xff]
        %v5250 = vld [vmem:[%s5222 + $0xd8] sm:$0xff]
        %v5251 = vld [vmem:[%s5222 + $0xe0] sm:$0xff]
        %v5252 = vld [vmem:[%s5222 + $0xe8] sm:$0xff]
        %v5253 = vld [vmem:[%s5222 + $0xf0] sm:$0xff]
        %v5254 = vld [vmem:[%s5222 + $0xf8] sm:$0xff]
        %v5256 = vperm.slane %v4253, 0
        %v5257 = vperm.slane %v4253, 1
        %v5292 = vunpack.c.l.b16 %v5223
        %v5293 = vunpack.c.h.b16 %v5223
        %v5294 = vunpack.c.l.b16 %v5224
        %v5295 = vunpack.c.h.b16 %v5224
        %v5296 = vunpack.c.l.b16 %v5225
        %v5297 = vunpack.c.h.b16 %v5225
        %v5298 = vunpack.c.l.b16 %v5226
        %v5299 = vunpack.c.h.b16 %v5226
        %v5300 = vunpack.c.l.b16 %v5227
        %v5301 = vunpack.c.h.b16 %v5227
        %v5302 = vunpack.c.l.b16 %v5228
        %v5303 = vunpack.c.h.b16 %v5228
        %v5304 = vunpack.c.l.b16 %v5229
        %v5305 = vunpack.c.h.b16 %v5229
        %v5306 = vunpack.c.l.b16 %v5230
        %v5307 = vunpack.c.h.b16 %v5230
        %v5308 = vunpack.c.l.b16 %v5231
        %v5309 = vunpack.c.h.b16 %v5231
        %v5310 = vunpack.c.l.b16 %v5232
        %v5311 = vunpack.c.h.b16 %v5232
        %v5312 = vunpack.c.l.b16 %v5233
        %v5313 = vunpack.c.h.b16 %v5233
        %v5314 = vunpack.c.l.b16 %v5234
        %v5315 = vunpack.c.h.b16 %v5234
        %v5316 = vunpack.c.l.b16 %v5235
        %v5317 = vunpack.c.h.b16 %v5235
        %v5318 = vunpack.c.l.b16 %v5236
        %v5319 = vunpack.c.h.b16 %v5236
        %v5320 = vunpack.c.l.b16 %v5237
        %v5321 = vunpack.c.h.b16 %v5237
        %v5322 = vunpack.c.l.b16 %v5238
        %v5323 = vunpack.c.h.b16 %v5238
        %v5324 = vunpack.c.l.b16 %v5239
        %v5325 = vunpack.c.h.b16 %v5239
        %v5326 = vunpack.c.l.b16 %v5240
        %v5327 = vunpack.c.h.b16 %v5240
        %v5328 = vunpack.c.l.b16 %v5241
        %v5329 = vunpack.c.h.b16 %v5241
        %v5330 = vunpack.c.l.b16 %v5242
        %v5331 = vunpack.c.h.b16 %v5242
        %v5332 = vunpack.c.l.b16 %v5243
        %v5333 = vunpack.c.h.b16 %v5243
        %v5334 = vunpack.c.l.b16 %v5244
        %v5335 = vunpack.c.h.b16 %v5244
        %v5336 = vunpack.c.l.b16 %v5245
        %v5337 = vunpack.c.h.b16 %v5245
        %v5338 = vunpack.c.l.b16 %v5246
        %v5339 = vunpack.c.h.b16 %v5246
        %v5340 = vunpack.c.l.b16 %v5247
        %v5341 = vunpack.c.h.b16 %v5247
        %v5342 = vunpack.c.l.b16 %v5248
        %v5343 = vunpack.c.h.b16 %v5248
        %v5344 = vunpack.c.l.b16 %v5249
        %v5345 = vunpack.c.h.b16 %v5249
        %v5346 = vunpack.c.l.b16 %v5250
        %v5347 = vunpack.c.h.b16 %v5250
        %v5348 = vunpack.c.l.b16 %v5251
        %v5349 = vunpack.c.h.b16 %v5251
        %v5350 = vunpack.c.l.b16 %v5252
        %v5351 = vunpack.c.h.b16 %v5252
        %v5352 = vunpack.c.l.b16 %v5253
        %v5353 = vunpack.c.h.b16 %v5253
        %v5354 = vunpack.c.l.b16 %v5254
        %v5355 = vunpack.c.h.b16 %v5254
        %v5356 = vpack.c.b16 %v5294, %v5292
        %v5357 = vpack.c.b16 %v5295, %v5293
        %v5358 = vpack.c.b16 %v5298, %v5296
        %v5359 = vpack.c.b16 %v5299, %v5297
        %v5360 = vpack.c.b16 %v5302, %v5300
        %v5361 = vpack.c.b16 %v5303, %v5301
        %v5362 = vpack.c.b16 %v5306, %v5304
        %v5363 = vpack.c.b16 %v5307, %v5305
        %v5364 = vpack.c.b16 %v5310, %v5308
        %v5365 = vpack.c.b16 %v5311, %v5309
        %v5366 = vpack.c.b16 %v5314, %v5312
        %v5367 = vpack.c.b16 %v5315, %v5313
        %v5368 = vpack.c.b16 %v5318, %v5316
        %v5369 = vpack.c.b16 %v5319, %v5317
        %v5370 = vpack.c.b16 %v5322, %v5320
        %v5371 = vpack.c.b16 %v5323, %v5321
        %v5372 = vpack.c.b16 %v5326, %v5324
        %v5373 = vpack.c.b16 %v5327, %v5325
        %v5374 = vpack.c.b16 %v5330, %v5328
        %v5375 = vpack.c.b16 %v5331, %v5329
        %v5376 = vpack.c.b16 %v5334, %v5332
        %v5377 = vpack.c.b16 %v5335, %v5333
        %v5378 = vpack.c.b16 %v5338, %v5336
        %v5379 = vpack.c.b16 %v5339, %v5337
        %v5380 = vpack.c.b16 %v5342, %v5340
        %v5381 = vpack.c.b16 %v5343, %v5341
        %v5382 = vpack.c.b16 %v5346, %v5344
        %v5383 = vpack.c.b16 %v5347, %v5345
        %v5384 = vpack.c.b16 %v5350, %v5348
        %v5385 = vpack.c.b16 %v5351, %v5349
        %v5386 = vpack.c.b16 %v5354, %v5352
        %v5387 = vpack.c.b16 %v5355, %v5353
        %5420 = vmatpush.bf16.msra.mxu0 %v5370
        %5421 = vmatpush.bf16.msra.mxu0 %v5368
        %5422 = vmatpush.bf16.msra.mxu0 %v5366
        %5423 = vmatpush.bf16.msra.mxu0 %v5364
        %5424 = vmatpush.bf16.msra.mxu0 %v5362
        %5425 = vmatpush.bf16.msra.mxu0 %v5360
        %5426 = vmatpush.bf16.msra.mxu0 %v5358
        %5427 = vmatpush.bf16.msra.mxu0 %v5356
        %5428 = vmatmul.bf16.gmra.mxu0 %v5220
        %v5429 = vpop.f32.mrf.mxu0
        %v5430 = vadd.f32 %v5256, %v5429
        %v5431 = vpop.f32.mrf.mxu0
        %v5432 = vadd.f32 %v5256, %v5431
        %5433 = vdwg.mxu0
        %5434 = vmatpush.bf16.msra.mxu0 %v5386
        %5435 = vmatpush.bf16.msra.mxu0 %v5384
        %5436 = vmatpush.bf16.msra.mxu0 %v5382
        %5437 = vmatpush.bf16.msra.mxu0 %v5380
        %5438 = vmatpush.bf16.msra.mxu0 %v5378
        %5439 = vmatpush.bf16.msra.mxu0 %v5376
        %5440 = vmatpush.bf16.msra.mxu0 %v5374
        %5441 = vmatpush.bf16.msra.mxu0 %v5372
        %5442 = vmatmul.bf16.gmra.mxu0 %v5221
        %v5443 = vpop.f32.mrf.mxu0
        %v5444 = vadd.f32 %v5430, %v5443
        %v5445 = vpop.f32.mrf.mxu0
        %v5446 = vadd.f32 %v5432, %v5445
        %5447 = vdwg.mxu0
        %5448 = vmatpush.bf16.msra.mxu0 %v5371
        %5449 = vmatpush.bf16.msra.mxu0 %v5369
        %5450 = vmatpush.bf16.msra.mxu0 %v5367
        %5451 = vmatpush.bf16.msra.mxu0 %v5365
        %5452 = vmatpush.bf16.msra.mxu0 %v5363
        %5453 = vmatpush.bf16.msra.mxu0 %v5361
        %5454 = vmatpush.bf16.msra.mxu0 %v5359
        %5455 = vmatpush.bf16.msra.mxu0 %v5357
        %5456 = vmatmul.bf16.gmra.mxu0 %v5220
        %v5457 = vpop.f32.mrf.mxu0
        %v5458 = vadd.f32 %v5257, %v5457
        %v5459 = vpop.f32.mrf.mxu0
        %v5460 = vadd.f32 %v5257, %v5459
        %5461 = vdwg.mxu0
        %5462 = vmatpush.bf16.msra.mxu0 %v5387
        %5463 = vmatpush.bf16.msra.mxu0 %v5385
        %5464 = vmatpush.bf16.msra.mxu0 %v5383
        %5465 = vmatpush.bf16.msra.mxu0 %v5381
        %5466 = vmatpush.bf16.msra.mxu0 %v5379
        %5467 = vmatpush.bf16.msra.mxu0 %v5377
        %5468 = vmatpush.bf16.msra.mxu0 %v5375
        %5469 = vmatpush.bf16.msra.mxu0 %v5373
        %5470 = vmatmul.bf16.gmra.mxu0 %v5221
        %v5471 = vpop.f32.mrf.mxu0
        %v5472 = vadd.f32 %v5458, %v5471
        %v5473 = vpop.f32.mrf.mxu0
        %v5474 = vadd.f32 %v5460, %v5473
        %5475 = vdwg.mxu0
        %v5476 = vadd.f32 %v4248, %v5444
        %v5477 = vadd.f32 %v4249, %v5472
        %v5478 = vadd.f32 %v4250, %v5446
        %v5479 = vadd.f32 %v4251, %v5474
        %v5480 = vadd.f32 %v5476, %v5477
        %5481 = vadd.xlane.f32.xlu0 %v5480
        %v5482 = vpop.xlane.xlu0 %5481
        %v5483 = vadd.f32 %v5478, %v5479
        %5484 = vadd.xlane.f32.xlu0 %v5483
        %v5485 = vpop.xlane.xlu0 %5484
        %v5486 = vmul.f32 %v5482, %v647
        %v5487 = vmul.f32 %v5485, %v647
        %v5488 = vsub.f32 %v5476, %v5486
        %v5489 = vsub.f32 %v5477, %v5486
        %v5490 = vsub.f32 %v5478, %v5487
        %v5491 = vsub.f32 %v5479, %v5487
        %v5492 = vmul.f32 %v5488, %v5488
        %v5493 = vmul.f32 %v5489, %v5489
        %v5494 = vmul.f32 %v5490, %v5490
        %v5495 = vmul.f32 %v5491, %v5491
        %v5496 = vadd.f32 %v5492, %v5493
        %5497 = vadd.xlane.f32.xlu0 %v5496
        %v5498 = vpop.xlane.xlu0 %5497
        %v5499 = vadd.f32 %v5494, %v5495
        %5500 = vadd.xlane.f32.xlu0 %v5499
        %v5501 = vpop.xlane.xlu0 %5500
        %v5502 = vmul.f32 %v5498, %v647
        %v5503 = vmul.f32 %v5501, %v647
        %v5504 = vadd.f32 %v5502, 1e-12
        %v5505 = vadd.f32 %v5503, 1e-12
        %v5506 = vrsqrt.pop %v5504
        %v5507 = vmul.f32 %v5506, %v5504
        %v5508 = vmul.f32 %v5507, %v5506
        %v5509 = vmul.f32 0.5, %v5508
        %v5510 = vsub.f32 1.5, %v5509
        %v5511 = vmul.f32 %v5506, %v5510
        %vm5512 = vweird.f32 %v5504
        %vm5513 = vweird.f32 %v5506
        %vm5514 = vmor %vm5512, %vm5513
        %v5515 = vsel %vm5514, %v5506, %v5511
        %v5516 = vrsqrt.pop %v5505
        %v5517 = vmul.f32 %v5516, %v5505
        %v5518 = vmul.f32 %v5517, %v5516
        %v5519 = vmul.f32 0.5, %v5518
        %v5520 = vsub.f32 1.5, %v5519
        %v5521 = vmul.f32 %v5516, %v5520
        %vm5522 = vweird.f32 %v5505
        %vm5523 = vweird.f32 %v5516
        %vm5524 = vmor %vm5522, %vm5523
        %v5525 = vsel %vm5524, %v5516, %v5521
        %v5526 = vmul.f32 %v5488, %v5515
        %v5527 = vmul.f32 %v5489, %v5515
        %v5528 = vmul.f32 %v5490, %v5525
        %v5529 = vmul.f32 %v5491, %v5525
        %v5530 = vrot.slane %v4253, 2
        %v5531 = vperm.slane %v5530, 0
        %v5532 = vperm.slane %v5530, 1
        %v5535 = vmul.f32 %v5526, %v5531
        %v5536 = vmul.f32 %v5527, %v5532
        %v5537 = vmul.f32 %v5528, %v5531
        %v5538 = vmul.f32 %v5529, %v5532
        %v5539 = vrot.slane %v4253, 4
        %v5540 = vperm.slane %v5539, 0
        %v5541 = vperm.slane %v5539, 1
        %v5544 = vadd.f32 %v5535, %v5540
        %v5545 = vadd.f32 %v5536, %v5541
        %v5546 = vadd.f32 %v5537, %v5540
        %v5547 = vadd.f32 %v5538, %v5541
        %v5548 = vpack.c.bf16 %v5546, %v5544
        %v5549 = vpack.c.bf16 %v5547, %v5545
        %s5550 = scalar_lea.vmem %s522, 1024 [#allocation9]
        %v5551 = vld [vmem:[%s5550] sm:$0xff]
        %v5552 = vld [vmem:[%s5550 + $0x8] sm:$0xff]
        %v5553 = vld [vmem:[%s5550 + $0x10] sm:$0xff]
        %v5554 = vld [vmem:[%s5550 + $0x18] sm:$0xff]
        %v5555 = vld [vmem:[%s5550 + $0x20] sm:$0xff]
        %v5556 = vld [vmem:[%s5550 + $0x28] sm:$0xff]
        %v5557 = vld [vmem:[%s5550 + $0x30] sm:$0xff]
        %v5558 = vld [vmem:[%s5550 + $0x38] sm:$0xff]
        %v5559 = vld [vmem:[%s5550 + $0x40] sm:$0xff]
        %v5560 = vld [vmem:[%s5550 + $0x48] sm:$0xff]
        %v5561 = vld [vmem:[%s5550 + $0x50] sm:$0xff]
        %v5562 = vld [vmem:[%s5550 + $0x58] sm:$0xff]
        %v5563 = vld [vmem:[%s5550 + $0x60] sm:$0xff]
        %v5564 = vld [vmem:[%s5550 + $0x68] sm:$0xff]
        %v5565 = vld [vmem:[%s5550 + $0x70] sm:$0xff]
        %v5566 = vld [vmem:[%s5550 + $0x78] sm:$0xff]
        %v5567 = vld [vmem:[%s5550 + $0x80] sm:$0xff]
        %v5568 = vld [vmem:[%s5550 + $0x88] sm:$0xff]
        %v5569 = vld [vmem:[%s5550 + $0x90] sm:$0xff]
        %v5570 = vld [vmem:[%s5550 + $0x98] sm:$0xff]
        %v5571 = vld [vmem:[%s5550 + $0xa0] sm:$0xff]
        %v5572 = vld [vmem:[%s5550 + $0xa8] sm:$0xff]
        %v5573 = vld [vmem:[%s5550 + $0xb0] sm:$0xff]
        %v5574 = vld [vmem:[%s5550 + $0xb8] sm:$0xff]
        %v5575 = vld [vmem:[%s5550 + $0xc0] sm:$0xff]
        %v5576 = vld [vmem:[%s5550 + $0xc8] sm:$0xff]
        %v5577 = vld [vmem:[%s5550 + $0xd0] sm:$0xff]
        %v5578 = vld [vmem:[%s5550 + $0xd8] sm:$0xff]
        %v5579 = vld [vmem:[%s5550 + $0xe0] sm:$0xff]
        %v5580 = vld [vmem:[%s5550 + $0xe8] sm:$0xff]
        %v5581 = vld [vmem:[%s5550 + $0xf0] sm:$0xff]
        %v5582 = vld [vmem:[%s5550 + $0xf8] sm:$0xff]
        %v5583 = vld [vmem:[%s5550 + $0x100] sm:$0xff]
        %v5584 = vld [vmem:[%s5550 + $0x108] sm:$0xff]
        %v5585 = vld [vmem:[%s5550 + $0x110] sm:$0xff]
        %v5586 = vld [vmem:[%s5550 + $0x118] sm:$0xff]
        %v5587 = vld [vmem:[%s5550 + $0x120] sm:$0xff]
        %v5588 = vld [vmem:[%s5550 + $0x128] sm:$0xff]
        %v5589 = vld [vmem:[%s5550 + $0x130] sm:$0xff]
        %v5590 = vld [vmem:[%s5550 + $0x138] sm:$0xff]
        %v5591 = vld [vmem:[%s5550 + $0x140] sm:$0xff]
        %v5592 = vld [vmem:[%s5550 + $0x148] sm:$0xff]
        %v5593 = vld [vmem:[%s5550 + $0x150] sm:$0xff]
        %v5594 = vld [vmem:[%s5550 + $0x158] sm:$0xff]
        %v5595 = vld [vmem:[%s5550 + $0x160] sm:$0xff]
        %v5596 = vld [vmem:[%s5550 + $0x168] sm:$0xff]
        %v5597 = vld [vmem:[%s5550 + $0x170] sm:$0xff]
        %v5598 = vld [vmem:[%s5550 + $0x178] sm:$0xff]
        %v5599 = vld [vmem:[%s5550 + $0x180] sm:$0xff]
        %v5600 = vld [vmem:[%s5550 + $0x188] sm:$0xff]
        %v5601 = vld [vmem:[%s5550 + $0x190] sm:$0xff]
        %v5602 = vld [vmem:[%s5550 + $0x198] sm:$0xff]
        %v5603 = vld [vmem:[%s5550 + $0x1a0] sm:$0xff]
        %v5604 = vld [vmem:[%s5550 + $0x1a8] sm:$0xff]
        %v5605 = vld [vmem:[%s5550 + $0x1b0] sm:$0xff]
        %v5606 = vld [vmem:[%s5550 + $0x1b8] sm:$0xff]
        %v5607 = vld [vmem:[%s5550 + $0x1c0] sm:$0xff]
        %v5608 = vld [vmem:[%s5550 + $0x1c8] sm:$0xff]
        %v5609 = vld [vmem:[%s5550 + $0x1d0] sm:$0xff]
        %v5610 = vld [vmem:[%s5550 + $0x1d8] sm:$0xff]
        %v5611 = vld [vmem:[%s5550 + $0x1e0] sm:$0xff]
        %v5612 = vld [vmem:[%s5550 + $0x1e8] sm:$0xff]
        %v5613 = vld [vmem:[%s5550 + $0x1f0] sm:$0xff]
        %v5614 = vld [vmem:[%s5550 + $0x1f8] sm:$0xff]
        %v5615 = vld [vmem:[%s5550 + $0x200] sm:$0xff]
        %v5616 = vld [vmem:[%s5550 + $0x208] sm:$0xff]
        %v5617 = vld [vmem:[%s5550 + $0x210] sm:$0xff]
        %v5618 = vld [vmem:[%s5550 + $0x218] sm:$0xff]
        %v5619 = vld [vmem:[%s5550 + $0x220] sm:$0xff]
        %v5620 = vld [vmem:[%s5550 + $0x228] sm:$0xff]
        %v5621 = vld [vmem:[%s5550 + $0x230] sm:$0xff]
        %v5622 = vld [vmem:[%s5550 + $0x238] sm:$0xff]
        %v5623 = vld [vmem:[%s5550 + $0x240] sm:$0xff]
        %v5624 = vld [vmem:[%s5550 + $0x248] sm:$0xff]
        %v5625 = vld [vmem:[%s5550 + $0x250] sm:$0xff]
        %v5626 = vld [vmem:[%s5550 + $0x258] sm:$0xff]
        %v5627 = vld [vmem:[%s5550 + $0x260] sm:$0xff]
        %v5628 = vld [vmem:[%s5550 + $0x268] sm:$0xff]
        %v5629 = vld [vmem:[%s5550 + $0x270] sm:$0xff]
        %v5630 = vld [vmem:[%s5550 + $0x278] sm:$0xff]
        %v5631 = vld [vmem:[%s5550 + $0x280] sm:$0xff]
        %v5632 = vld [vmem:[%s5550 + $0x288] sm:$0xff]
        %v5633 = vld [vmem:[%s5550 + $0x290] sm:$0xff]
        %v5634 = vld [vmem:[%s5550 + $0x298] sm:$0xff]
        %v5635 = vld [vmem:[%s5550 + $0x2a0] sm:$0xff]
        %v5636 = vld [vmem:[%s5550 + $0x2a8] sm:$0xff]
        %v5637 = vld [vmem:[%s5550 + $0x2b0] sm:$0xff]
        %v5638 = vld [vmem:[%s5550 + $0x2b8] sm:$0xff]
        %v5639 = vld [vmem:[%s5550 + $0x2c0] sm:$0xff]
        %v5640 = vld [vmem:[%s5550 + $0x2c8] sm:$0xff]
        %v5641 = vld [vmem:[%s5550 + $0x2d0] sm:$0xff]
        %v5642 = vld [vmem:[%s5550 + $0x2d8] sm:$0xff]
        %v5643 = vld [vmem:[%s5550 + $0x2e0] sm:$0xff]
        %v5644 = vld [vmem:[%s5550 + $0x2e8] sm:$0xff]
        %v5645 = vld [vmem:[%s5550 + $0x2f0] sm:$0xff]
        %v5646 = vld [vmem:[%s5550 + $0x2f8] sm:$0xff]
        %v5647 = vld [vmem:[%s5550 + $0x300] sm:$0xff]
        %v5648 = vld [vmem:[%s5550 + $0x308] sm:$0xff]
        %v5649 = vld [vmem:[%s5550 + $0x310] sm:$0xff]
        %v5650 = vld [vmem:[%s5550 + $0x318] sm:$0xff]
        %v5651 = vld [vmem:[%s5550 + $0x320] sm:$0xff]
        %v5652 = vld [vmem:[%s5550 + $0x328] sm:$0xff]
        %v5653 = vld [vmem:[%s5550 + $0x330] sm:$0xff]
        %v5654 = vld [vmem:[%s5550 + $0x338] sm:$0xff]
        %v5655 = vld [vmem:[%s5550 + $0x340] sm:$0xff]
        %v5656 = vld [vmem:[%s5550 + $0x348] sm:$0xff]
        %v5657 = vld [vmem:[%s5550 + $0x350] sm:$0xff]
        %v5658 = vld [vmem:[%s5550 + $0x358] sm:$0xff]
        %v5659 = vld [vmem:[%s5550 + $0x360] sm:$0xff]
        %v5660 = vld [vmem:[%s5550 + $0x368] sm:$0xff]
        %v5661 = vld [vmem:[%s5550 + $0x370] sm:$0xff]
        %v5662 = vld [vmem:[%s5550 + $0x378] sm:$0xff]
        %v5663 = vld [vmem:[%s5550 + $0x380] sm:$0xff]
        %v5664 = vld [vmem:[%s5550 + $0x388] sm:$0xff]
        %v5665 = vld [vmem:[%s5550 + $0x390] sm:$0xff]
        %v5666 = vld [vmem:[%s5550 + $0x398] sm:$0xff]
        %v5667 = vld [vmem:[%s5550 + $0x3a0] sm:$0xff]
        %v5668 = vld [vmem:[%s5550 + $0x3a8] sm:$0xff]
        %v5669 = vld [vmem:[%s5550 + $0x3b0] sm:$0xff]
        %v5670 = vld [vmem:[%s5550 + $0x3b8] sm:$0xff]
        %v5671 = vld [vmem:[%s5550 + $0x3c0] sm:$0xff]
        %v5672 = vld [vmem:[%s5550 + $0x3c8] sm:$0xff]
        %v5673 = vld [vmem:[%s5550 + $0x3d0] sm:$0xff]
        %v5674 = vld [vmem:[%s5550 + $0x3d8] sm:$0xff]
        %v5675 = vld [vmem:[%s5550 + $0x3e0] sm:$0xff]
        %v5676 = vld [vmem:[%s5550 + $0x3e8] sm:$0xff]
        %v5677 = vld [vmem:[%s5550 + $0x3f0] sm:$0xff]
        %v5678 = vld [vmem:[%s5550 + $0x3f8] sm:$0xff]
        %v5680 = vrot.slane %v4257, 2
        %v5681 = vrot.slane %v4259, 2
        %v5682 = vsel %vm2150, %v5680, %v5681
        %v5683 = vperm.slane %v5682, 0
        %v5684 = vperm.slane %v5682, 1
        %v5685 = vperm.slane %v5682, 2
        %v5686 = vperm.slane %v5682, 3
        %v5687 = vperm.slane %v5682, 4
        %v5688 = vperm.slane %v5682, 5
        %v5689 = vperm.slane %v5682, 6
        %v5690 = vperm.slane %v5682, 7
        %v5827 = vunpack.c.l.b16 %v5551
        %v5828 = vunpack.c.h.b16 %v5551
        %v5829 = vunpack.c.l.b16 %v5552
        %v5830 = vunpack.c.h.b16 %v5552
        %v5831 = vunpack.c.l.b16 %v5553
        %v5832 = vunpack.c.h.b16 %v5553
        %v5833 = vunpack.c.l.b16 %v5554
        %v5834 = vunpack.c.h.b16 %v5554
        %v5835 = vunpack.c.l.b16 %v5555
        %v5836 = vunpack.c.h.b16 %v5555
        %v5837 = vunpack.c.l.b16 %v5556
        %v5838 = vunpack.c.h.b16 %v5556
        %v5839 = vunpack.c.l.b16 %v5557
        %v5840 = vunpack.c.h.b16 %v5557
        %v5841 = vunpack.c.l.b16 %v5558
        %v5842 = vunpack.c.h.b16 %v5558
        %v5843 = vunpack.c.l.b16 %v5559
        %v5844 = vunpack.c.h.b16 %v5559
        %v5845 = vunpack.c.l.b16 %v5560
        %v5846 = vunpack.c.h.b16 %v5560
        %v5847 = vunpack.c.l.b16 %v5561
        %v5848 = vunpack.c.h.b16 %v5561
        %v5849 = vunpack.c.l.b16 %v5562
        %v5850 = vunpack.c.h.b16 %v5562
        %v5851 = vunpack.c.l.b16 %v5563
        %v5852 = vunpack.c.h.b16 %v5563
        %v5853 = vunpack.c.l.b16 %v5564
        %v5854 = vunpack.c.h.b16 %v5564
        %v5855 = vunpack.c.l.b16 %v5565
        %v5856 = vunpack.c.h.b16 %v5565
        %v5857 = vunpack.c.l.b16 %v5566
        %v5858 = vunpack.c.h.b16 %v5566
        %v5859 = vunpack.c.l.b16 %v5567
        %v5860 = vunpack.c.h.b16 %v5567
        %v5861 = vunpack.c.l.b16 %v5568
        %v5862 = vunpack.c.h.b16 %v5568
        %v5863 = vunpack.c.l.b16 %v5569
        %v5864 = vunpack.c.h.b16 %v5569
        %v5865 = vunpack.c.l.b16 %v5570
        %v5866 = vunpack.c.h.b16 %v5570
        %v5867 = vunpack.c.l.b16 %v5571
        %v5868 = vunpack.c.h.b16 %v5571
        %v5869 = vunpack.c.l.b16 %v5572
        %v5870 = vunpack.c.h.b16 %v5572
        %v5871 = vunpack.c.l.b16 %v5573
        %v5872 = vunpack.c.h.b16 %v5573
        %v5873 = vunpack.c.l.b16 %v5574
        %v5874 = vunpack.c.h.b16 %v5574
        %v5875 = vunpack.c.l.b16 %v5575
        %v5876 = vunpack.c.h.b16 %v5575
        %v5877 = vunpack.c.l.b16 %v5576
        %v5878 = vunpack.c.h.b16 %v5576
        %v5879 = vunpack.c.l.b16 %v5577
        %v5880 = vunpack.c.h.b16 %v5577
        %v5881 = vunpack.c.l.b16 %v5578
        %v5882 = vunpack.c.h.b16 %v5578
        %v5883 = vunpack.c.l.b16 %v5579
        %v5884 = vunpack.c.h.b16 %v5579
        %v5885 = vunpack.c.l.b16 %v5580
        %v5886 = vunpack.c.h.b16 %v5580
        %v5887 = vunpack.c.l.b16 %v5581
        %v5888 = vunpack.c.h.b16 %v5581
        %v5889 = vunpack.c.l.b16 %v5582
        %v5890 = vunpack.c.h.b16 %v5582
        %v5891 = vunpack.c.l.b16 %v5583
        %v5892 = vunpack.c.h.b16 %v5583
        %v5893 = vunpack.c.l.b16 %v5584
        %v5894 = vunpack.c.h.b16 %v5584
        %v5895 = vunpack.c.l.b16 %v5585
        %v5896 = vunpack.c.h.b16 %v5585
        %v5897 = vunpack.c.l.b16 %v5586
        %v5898 = vunpack.c.h.b16 %v5586
        %v5899 = vunpack.c.l.b16 %v5587
        %v5900 = vunpack.c.h.b16 %v5587
        %v5901 = vunpack.c.l.b16 %v5588
        %v5902 = vunpack.c.h.b16 %v5588
        %v5903 = vunpack.c.l.b16 %v5589
        %v5904 = vunpack.c.h.b16 %v5589
        %v5905 = vunpack.c.l.b16 %v5590
        %v5906 = vunpack.c.h.b16 %v5590
        %v5907 = vunpack.c.l.b16 %v5591
        %v5908 = vunpack.c.h.b16 %v5591
        %v5909 = vunpack.c.l.b16 %v5592
        %v5910 = vunpack.c.h.b16 %v5592
        %v5911 = vunpack.c.l.b16 %v5593
        %v5912 = vunpack.c.h.b16 %v5593
        %v5913 = vunpack.c.l.b16 %v5594
        %v5914 = vunpack.c.h.b16 %v5594
        %v5915 = vunpack.c.l.b16 %v5595
        %v5916 = vunpack.c.h.b16 %v5595
        %v5917 = vunpack.c.l.b16 %v5596
        %v5918 = vunpack.c.h.b16 %v5596
        %v5919 = vunpack.c.l.b16 %v5597
        %v5920 = vunpack.c.h.b16 %v5597
        %v5921 = vunpack.c.l.b16 %v5598
        %v5922 = vunpack.c.h.b16 %v5598
        %v5923 = vunpack.c.l.b16 %v5599
        %v5924 = vunpack.c.h.b16 %v5599
        %v5925 = vunpack.c.l.b16 %v5600
        %v5926 = vunpack.c.h.b16 %v5600
        %v5927 = vunpack.c.l.b16 %v5601
        %v5928 = vunpack.c.h.b16 %v5601
        %v5929 = vunpack.c.l.b16 %v5602
        %v5930 = vunpack.c.h.b16 %v5602
        %v5931 = vunpack.c.l.b16 %v5603
        %v5932 = vunpack.c.h.b16 %v5603
        %v5933 = vunpack.c.l.b16 %v5604
        %v5934 = vunpack.c.h.b16 %v5604
        %v5935 = vunpack.c.l.b16 %v5605
        %v5936 = vunpack.c.h.b16 %v5605
        %v5937 = vunpack.c.l.b16 %v5606
        %v5938 = vunpack.c.h.b16 %v5606
        %v5939 = vunpack.c.l.b16 %v5607
        %v5940 = vunpack.c.h.b16 %v5607
        %v5941 = vunpack.c.l.b16 %v5608
        %v5942 = vunpack.c.h.b16 %v5608
        %v5943 = vunpack.c.l.b16 %v5609
        %v5944 = vunpack.c.h.b16 %v5609
        %v5945 = vunpack.c.l.b16 %v5610
        %v5946 = vunpack.c.h.b16 %v5610
        %v5947 = vunpack.c.l.b16 %v5611
        %v5948 = vunpack.c.h.b16 %v5611
        %v5949 = vunpack.c.l.b16 %v5612
        %v5950 = vunpack.c.h.b16 %v5612
        %v5951 = vunpack.c.l.b16 %v5613
        %v5952 = vunpack.c.h.b16 %v5613
        %v5953 = vunpack.c.l.b16 %v5614
        %v5954 = vunpack.c.h.b16 %v5614
        %v5955 = vunpack.c.l.b16 %v5615
        %v5956 = vunpack.c.h.b16 %v5615
        %v5957 = vunpack.c.l.b16 %v5616
        %v5958 = vunpack.c.h.b16 %v5616
        %v5959 = vunpack.c.l.b16 %v5617
        %v5960 = vunpack.c.h.b16 %v5617
        %v5961 = vunpack.c.l.b16 %v5618
        %v5962 = vunpack.c.h.b16 %v5618
        %v5963 = vunpack.c.l.b16 %v5619
        %v5964 = vunpack.c.h.b16 %v5619
        %v5965 = vunpack.c.l.b16 %v5620
        %v5966 = vunpack.c.h.b16 %v5620
        %v5967 = vunpack.c.l.b16 %v5621
        %v5968 = vunpack.c.h.b16 %v5621
        %v5969 = vunpack.c.l.b16 %v5622
        %v5970 = vunpack.c.h.b16 %v5622
        %v5971 = vunpack.c.l.b16 %v5623
        %v5972 = vunpack.c.h.b16 %v5623
        %v5973 = vunpack.c.l.b16 %v5624
        %v5974 = vunpack.c.h.b16 %v5624
        %v5975 = vunpack.c.l.b16 %v5625
        %v5976 = vunpack.c.h.b16 %v5625
        %v5977 = vunpack.c.l.b16 %v5626
        %v5978 = vunpack.c.h.b16 %v5626
        %v5979 = vunpack.c.l.b16 %v5627
        %v5980 = vunpack.c.h.b16 %v5627
        %v5981 = vunpack.c.l.b16 %v5628
        %v5982 = vunpack.c.h.b16 %v5628
        %v5983 = vunpack.c.l.b16 %v5629
        %v5984 = vunpack.c.h.b16 %v5629
        %v5985 = vunpack.c.l.b16 %v5630
        %v5986 = vunpack.c.h.b16 %v5630
        %v5987 = vunpack.c.l.b16 %v5631
        %v5988 = vunpack.c.h.b16 %v5631
        %v5989 = vunpack.c.l.b16 %v5632
        %v5990 = vunpack.c.h.b16 %v5632
        %v5991 = vunpack.c.l.b16 %v5633
        %v5992 = vunpack.c.h.b16 %v5633
        %v5993 = vunpack.c.l.b16 %v5634
        %v5994 = vunpack.c.h.b16 %v5634
        %v5995 = vunpack.c.l.b16 %v5635
        %v5996 = vunpack.c.h.b16 %v5635
        %v5997 = vunpack.c.l.b16 %v5636
        %v5998 = vunpack.c.h.b16 %v5636
        %v5999 = vunpack.c.l.b16 %v5637
        %v6000 = vunpack.c.h.b16 %v5637
        %v6001 = vunpack.c.l.b16 %v5638
        %v6002 = vunpack.c.h.b16 %v5638
        %v6003 = vunpack.c.l.b16 %v5639
        %v6004 = vunpack.c.h.b16 %v5639
        %v6005 = vunpack.c.l.b16 %v5640
        %v6006 = vunpack.c.h.b16 %v5640
        %v6007 = vunpack.c.l.b16 %v5641
        %v6008 = vunpack.c.h.b16 %v5641
        %v6009 = vunpack.c.l.b16 %v5642
        %v6010 = vunpack.c.h.b16 %v5642
        %v6011 = vunpack.c.l.b16 %v5643
        %v6012 = vunpack.c.h.b16 %v5643
        %v6013 = vunpack.c.l.b16 %v5644
        %v6014 = vunpack.c.h.b16 %v5644
        %v6015 = vunpack.c.l.b16 %v5645
        %v6016 = vunpack.c.h.b16 %v5645
        %v6017 = vunpack.c.l.b16 %v5646
        %v6018 = vunpack.c.h.b16 %v5646
        %v6019 = vunpack.c.l.b16 %v5647
        %v6020 = vunpack.c.h.b16 %v5647
        %v6021 = vunpack.c.l.b16 %v5648
        %v6022 = vunpack.c.h.b16 %v5648
        %v6023 = vunpack.c.l.b16 %v5649
        %v6024 = vunpack.c.h.b16 %v5649
        %v6025 = vunpack.c.l.b16 %v5650
        %v6026 = vunpack.c.h.b16 %v5650
        %v6027 = vunpack.c.l.b16 %v5651
        %v6028 = vunpack.c.h.b16 %v5651
        %v6029 = vunpack.c.l.b16 %v5652
        %v6030 = vunpack.c.h.b16 %v5652
        %v6031 = vunpack.c.l.b16 %v5653
        %v6032 = vunpack.c.h.b16 %v5653
        %v6033 = vunpack.c.l.b16 %v5654
        %v6034 = vunpack.c.h.b16 %v5654
        %v6035 = vunpack.c.l.b16 %v5655
        %v6036 = vunpack.c.h.b16 %v5655
        %v6037 = vunpack.c.l.b16 %v5656
        %v6038 = vunpack.c.h.b16 %v5656
        %v6039 = vunpack.c.l.b16 %v5657
        %v6040 = vunpack.c.h.b16 %v5657
        %v6041 = vunpack.c.l.b16 %v5658
        %v6042 = vunpack.c.h.b16 %v5658
        %v6043 = vunpack.c.l.b16 %v5659
        %v6044 = vunpack.c.h.b16 %v5659
        %v6045 = vunpack.c.l.b16 %v5660
        %v6046 = vunpack.c.h.b16 %v5660
        %v6047 = vunpack.c.l.b16 %v5661
        %v6048 = vunpack.c.h.b16 %v5661
        %v6049 = vunpack.c.l.b16 %v5662
        %v6050 = vunpack.c.h.b16 %v5662
        %v6051 = vunpack.c.l.b16 %v5663
        %v6052 = vunpack.c.h.b16 %v5663
        %v6053 = vunpack.c.l.b16 %v5664
        %v6054 = vunpack.c.h.b16 %v5664
        %v6055 = vunpack.c.l.b16 %v5665
        %v6056 = vunpack.c.h.b16 %v5665
        %v6057 = vunpack.c.l.b16 %v5666
        %v6058 = vunpack.c.h.b16 %v5666
        %v6059 = vunpack.c.l.b16 %v5667
        %v6060 = vunpack.c.h.b16 %v5667
        %v6061 = vunpack.c.l.b16 %v5668
        %v6062 = vunpack.c.h.b16 %v5668
        %v6063 = vunpack.c.l.b16 %v5669
        %v6064 = vunpack.c.h.b16 %v5669
        %v6065 = vunpack.c.l.b16 %v5670
        %v6066 = vunpack.c.h.b16 %v5670
        %v6067 = vunpack.c.l.b16 %v5671
        %v6068 = vunpack.c.h.b16 %v5671
        %v6069 = vunpack.c.l.b16 %v5672
        %v6070 = vunpack.c.h.b16 %v5672
        %v6071 = vunpack.c.l.b16 %v5673
        %v6072 = vunpack.c.h.b16 %v5673
        %v6073 = vunpack.c.l.b16 %v5674
        %v6074 = vunpack.c.h.b16 %v5674
        %v6075 = vunpack.c.l.b16 %v5675
        %v6076 = vunpack.c.h.b16 %v5675
        %v6077 = vunpack.c.l.b16 %v5676
        %v6078 = vunpack.c.h.b16 %v5676
        %v6079 = vunpack.c.l.b16 %v5677
        %v6080 = vunpack.c.h.b16 %v5677
        %v6081 = vunpack.c.l.b16 %v5678
        %v6082 = vunpack.c.h.b16 %v5678
        %v6083 = vpack.c.b16 %v5835, %v5827
        %v6084 = vpack.c.b16 %v5836, %v5828
        %v6085 = vpack.c.b16 %v5837, %v5829
        %v6086 = vpack.c.b16 %v5838, %v5830
        %v6087 = vpack.c.b16 %v5839, %v5831
        %v6088 = vpack.c.b16 %v5840, %v5832
        %v6089 = vpack.c.b16 %v5841, %v5833
        %v6090 = vpack.c.b16 %v5842, %v5834
        %v6091 = vpack.c.b16 %v5851, %v5843
        %v6092 = vpack.c.b16 %v5852, %v5844
        %v6093 = vpack.c.b16 %v5853, %v5845
        %v6094 = vpack.c.b16 %v5854, %v5846
        %v6095 = vpack.c.b16 %v5855, %v5847
        %v6096 = vpack.c.b16 %v5856, %v5848
        %v6097 = vpack.c.b16 %v5857, %v5849
        %v6098 = vpack.c.b16 %v5858, %v5850
        %v6099 = vpack.c.b16 %v5867, %v5859
        %v6100 = vpack.c.b16 %v5868, %v5860
        %v6101 = vpack.c.b16 %v5869, %v5861
        %v6102 = vpack.c.b16 %v5870, %v5862
        %v6103 = vpack.c.b16 %v5871, %v5863
        %v6104 = vpack.c.b16 %v5872, %v5864
        %v6105 = vpack.c.b16 %v5873, %v5865
        %v6106 = vpack.c.b16 %v5874, %v5866
        %v6107 = vpack.c.b16 %v5883, %v5875
        %v6108 = vpack.c.b16 %v5884, %v5876
        %v6109 = vpack.c.b16 %v5885, %v5877
        %v6110 = vpack.c.b16 %v5886, %v5878
        %v6111 = vpack.c.b16 %v5887, %v5879
        %v6112 = vpack.c.b16 %v5888, %v5880
        %v6113 = vpack.c.b16 %v5889, %v5881
        %v6114 = vpack.c.b16 %v5890, %v5882
        %v6115 = vpack.c.b16 %v5899, %v5891
        %v6116 = vpack.c.b16 %v5900, %v5892
        %v6117 = vpack.c.b16 %v5901, %v5893
        %v6118 = vpack.c.b16 %v5902, %v5894
        %v6119 = vpack.c.b16 %v5903, %v5895
        %v6120 = vpack.c.b16 %v5904, %v5896
        %v6121 = vpack.c.b16 %v5905, %v5897
        %v6122 = vpack.c.b16 %v5906, %v5898
        %v6123 = vpack.c.b16 %v5915, %v5907
        %v6124 = vpack.c.b16 %v5916, %v5908
        %v6125 = vpack.c.b16 %v5917, %v5909
        %v6126 = vpack.c.b16 %v5918, %v5910
        %v6127 = vpack.c.b16 %v5919, %v5911
        %v6128 = vpack.c.b16 %v5920, %v5912
        %v6129 = vpack.c.b16 %v5921, %v5913
        %v6130 = vpack.c.b16 %v5922, %v5914
        %v6131 = vpack.c.b16 %v5931, %v5923
        %v6132 = vpack.c.b16 %v5932, %v5924
        %v6133 = vpack.c.b16 %v5933, %v5925
        %v6134 = vpack.c.b16 %v5934, %v5926
        %v6135 = vpack.c.b16 %v5935, %v5927
        %v6136 = vpack.c.b16 %v5936, %v5928
        %v6137 = vpack.c.b16 %v5937, %v5929
        %v6138 = vpack.c.b16 %v5938, %v5930
        %v6139 = vpack.c.b16 %v5947, %v5939
        %v6140 = vpack.c.b16 %v5948, %v5940
        %v6141 = vpack.c.b16 %v5949, %v5941
        %v6142 = vpack.c.b16 %v5950, %v5942
        %v6143 = vpack.c.b16 %v5951, %v5943
        %v6144 = vpack.c.b16 %v5952, %v5944
        %v6145 = vpack.c.b16 %v5953, %v5945
        %v6146 = vpack.c.b16 %v5954, %v5946
        %v6147 = vpack.c.b16 %v5963, %v5955
        %v6148 = vpack.c.b16 %v5964, %v5956
        %v6149 = vpack.c.b16 %v5965, %v5957
        %v6150 = vpack.c.b16 %v5966, %v5958
        %v6151 = vpack.c.b16 %v5967, %v5959
        %v6152 = vpack.c.b16 %v5968, %v5960
        %v6153 = vpack.c.b16 %v5969, %v5961
        %v6154 = vpack.c.b16 %v5970, %v5962
        %v6155 = vpack.c.b16 %v5979, %v5971
        %v6156 = vpack.c.b16 %v5980, %v5972
        %v6157 = vpack.c.b16 %v5981, %v5973
        %v6158 = vpack.c.b16 %v5982, %v5974
        %v6159 = vpack.c.b16 %v5983, %v5975
        %v6160 = vpack.c.b16 %v5984, %v5976
        %v6161 = vpack.c.b16 %v5985, %v5977
        %v6162 = vpack.c.b16 %v5986, %v5978
        %v6163 = vpack.c.b16 %v5995, %v5987
        %v6164 = vpack.c.b16 %v5996, %v5988
        %v6165 = vpack.c.b16 %v5997, %v5989
        %v6166 = vpack.c.b16 %v5998, %v5990
        %v6167 = vpack.c.b16 %v5999, %v5991
        %v6168 = vpack.c.b16 %v6000, %v5992
        %v6169 = vpack.c.b16 %v6001, %v5993
        %v6170 = vpack.c.b16 %v6002, %v5994
        %v6171 = vpack.c.b16 %v6011, %v6003
        %v6172 = vpack.c.b16 %v6012, %v6004
        %v6173 = vpack.c.b16 %v6013, %v6005
        %v6174 = vpack.c.b16 %v6014, %v6006
        %v6175 = vpack.c.b16 %v6015, %v6007
        %v6176 = vpack.c.b16 %v6016, %v6008
        %v6177 = vpack.c.b16 %v6017, %v6009
        %v6178 = vpack.c.b16 %v6018, %v6010
        %v6179 = vpack.c.b16 %v6027, %v6019
        %v6180 = vpack.c.b16 %v6028, %v6020
        %v6181 = vpack.c.b16 %v6029, %v6021
        %v6182 = vpack.c.b16 %v6030, %v6022
        %v6183 = vpack.c.b16 %v6031, %v6023
        %v6184 = vpack.c.b16 %v6032, %v6024
        %v6185 = vpack.c.b16 %v6033, %v6025
        %v6186 = vpack.c.b16 %v6034, %v6026
        %v6187 = vpack.c.b16 %v6043, %v6035
        %v6188 = vpack.c.b16 %v6044, %v6036
        %v6189 = vpack.c.b16 %v6045, %v6037
        %v6190 = vpack.c.b16 %v6046, %v6038
        %v6191 = vpack.c.b16 %v6047, %v6039
        %v6192 = vpack.c.b16 %v6048, %v6040
        %v6193 = vpack.c.b16 %v6049, %v6041
        %v6194 = vpack.c.b16 %v6050, %v6042
        %v6195 = vpack.c.b16 %v6059, %v6051
        %v6196 = vpack.c.b16 %v6060, %v6052
        %v6197 = vpack.c.b16 %v6061, %v6053
        %v6198 = vpack.c.b16 %v6062, %v6054
        %v6199 = vpack.c.b16 %v6063, %v6055
        %v6200 = vpack.c.b16 %v6064, %v6056
        %v6201 = vpack.c.b16 %v6065, %v6057
        %v6202 = vpack.c.b16 %v6066, %v6058
        %v6203 = vpack.c.b16 %v6075, %v6067
        %v6204 = vpack.c.b16 %v6076, %v6068
        %v6205 = vpack.c.b16 %v6077, %v6069
        %v6206 = vpack.c.b16 %v6078, %v6070
        %v6207 = vpack.c.b16 %v6079, %v6071
        %v6208 = vpack.c.b16 %v6080, %v6072
        %v6209 = vpack.c.b16 %v6081, %v6073
        %v6210 = vpack.c.b16 %v6082, %v6074
        %6339 = vmatpush.bf16.msra.mxu0 %v6139
        %6340 = vmatpush.bf16.msra.mxu0 %v6131
        %6341 = vmatpush.bf16.msra.mxu0 %v6123
        %6342 = vmatpush.bf16.msra.mxu0 %v6115
        %6343 = vmatpush.bf16.msra.mxu0 %v6107
        %6344 = vmatpush.bf16.msra.mxu0 %v6099
        %6345 = vmatpush.bf16.msra.mxu0 %v6091
        %6346 = vmatpush.bf16.msra.mxu0 %v6083
        %6347 = vmatmul.bf16.gmra.mxu0 %v5548
        %v6348 = vpop.f32.mrf.mxu0
        %v6349 = vadd.f32 %v5683, %v6348
        %v6350 = vpop.f32.mrf.mxu0
        %v6351 = vadd.f32 %v5683, %v6350
        %6352 = vdwg.mxu0
        %6353 = vmatpush.bf16.msra.mxu0 %v6203
        %6354 = vmatpush.bf16.msra.mxu0 %v6195
        %6355 = vmatpush.bf16.msra.mxu0 %v6187
        %6356 = vmatpush.bf16.msra.mxu0 %v6179
        %6357 = vmatpush.bf16.msra.mxu0 %v6171
        %6358 = vmatpush.bf16.msra.mxu0 %v6163
        %6359 = vmatpush.bf16.msra.mxu0 %v6155
        %6360 = vmatpush.bf16.msra.mxu0 %v6147
        %6361 = vmatmul.bf16.gmra.mxu0 %v5549
        %v6362 = vpop.f32.mrf.mxu0
        %v6363 = vadd.f32 %v6349, %v6362
        %v6364 = vpop.f32.mrf.mxu0
        %v6365 = vadd.f32 %v6351, %v6364
        %6366 = vdwg.mxu0
        %6367 = vmatpush.bf16.msra.mxu0 %v6140
        %6368 = vmatpush.bf16.msra.mxu0 %v6132
        %6369 = vmatpush.bf16.msra.mxu0 %v6124
        %6370 = vmatpush.bf16.msra.mxu0 %v6116
        %6371 = vmatpush.bf16.msra.mxu0 %v6108
        %6372 = vmatpush.bf16.msra.mxu0 %v6100
        %6373 = vmatpush.bf16.msra.mxu0 %v6092
        %6374 = vmatpush.bf16.msra.mxu0 %v6084
        %6375 = vmatmul.bf16.gmra.mxu0 %v5548
        %v6376 = vpop.f32.mrf.mxu0
        %v6377 = vadd.f32 %v5684, %v6376
        %v6378 = vpop.f32.mrf.mxu0
        %v6379 = vadd.f32 %v5684, %v6378
        %6380 = vdwg.mxu0
        %6381 = vmatpush.bf16.msra.mxu0 %v6204
        %6382 = vmatpush.bf16.msra.mxu0 %v6196
        %6383 = vmatpush.bf16.msra.mxu0 %v6188
        %6384 = vmatpush.bf16.msra.mxu0 %v6180
        %6385 = vmatpush.bf16.msra.mxu0 %v6172
        %6386 = vmatpush.bf16.msra.mxu0 %v6164
        %6387 = vmatpush.bf16.msra.mxu0 %v6156
        %6388 = vmatpush.bf16.msra.mxu0 %v6148
        %6389 = vmatmul.bf16.gmra.mxu0 %v5549
        %v6390 = vpop.f32.mrf.mxu0
        %v6391 = vadd.f32 %v6377, %v6390
        %v6392 = vpop.f32.mrf.mxu0
        %v6393 = vadd.f32 %v6379, %v6392
        %6394 = vdwg.mxu0
        %6395 = vmatpush.bf16.msra.mxu0 %v6141
        %6396 = vmatpush.bf16.msra.mxu0 %v6133
        %6397 = vmatpush.bf16.msra.mxu0 %v6125
        %6398 = vmatpush.bf16.msra.mxu0 %v6117
        %6399 = vmatpush.bf16.msra.mxu0 %v6109
        %6400 = vmatpush.bf16.msra.mxu0 %v6101
        %6401 = vmatpush.bf16.msra.mxu0 %v6093
        %6402 = vmatpush.bf16.msra.mxu0 %v6085
        %6403 = vmatmul.bf16.gmra.mxu0 %v5548
        %v6404 = vpop.f32.mrf.mxu0
        %v6405 = vadd.f32 %v5685, %v6404
        %v6406 = vpop.f32.mrf.mxu0
        %v6407 = vadd.f32 %v5685, %v6406
        %6408 = vdwg.mxu0
        %6409 = vmatpush.bf16.msra.mxu0 %v6205
        %6410 = vmatpush.bf16.msra.mxu0 %v6197
        %6411 = vmatpush.bf16.msra.mxu0 %v6189
        %6412 = vmatpush.bf16.msra.mxu0 %v6181
        %6413 = vmatpush.bf16.msra.mxu0 %v6173
        %6414 = vmatpush.bf16.msra.mxu0 %v6165
        %6415 = vmatpush.bf16.msra.mxu0 %v6157
        %6416 = vmatpush.bf16.msra.mxu0 %v6149
        %6417 = vmatmul.bf16.gmra.mxu0 %v5549
        %v6418 = vpop.f32.mrf.mxu0
        %v6419 = vadd.f32 %v6405, %v6418
        %v6420 = vpop.f32.mrf.mxu0
        %v6421 = vadd.f32 %v6407, %v6420
        %6422 = vdwg.mxu0
        %6423 = vmatpush.bf16.msra.mxu0 %v6142
        %6424 = vmatpush.bf16.msra.mxu0 %v6134
        %6425 = vmatpush.bf16.msra.mxu0 %v6126
        %6426 = vmatpush.bf16.msra.mxu0 %v6118
        %6427 = vmatpush.bf16.msra.mxu0 %v6110
        %6428 = vmatpush.bf16.msra.mxu0 %v6102
        %6429 = vmatpush.bf16.msra.mxu0 %v6094
        %6430 = vmatpush.bf16.msra.mxu0 %v6086
        %6431 = vmatmul.bf16.gmra.mxu0 %v5548
        %v6432 = vpop.f32.mrf.mxu0
        %v6433 = vadd.f32 %v5686, %v6432
        %v6434 = vpop.f32.mrf.mxu0
        %v6435 = vadd.f32 %v5686, %v6434
        %6436 = vdwg.mxu0
        %6437 = vmatpush.bf16.msra.mxu0 %v6206
        %6438 = vmatpush.bf16.msra.mxu0 %v6198
        %6439 = vmatpush.bf16.msra.mxu0 %v6190
        %6440 = vmatpush.bf16.msra.mxu0 %v6182
        %6441 = vmatpush.bf16.msra.mxu0 %v6174
        %6442 = vmatpush.bf16.msra.mxu0 %v6166
        %6443 = vmatpush.bf16.msra.mxu0 %v6158
        %6444 = vmatpush.bf16.msra.mxu0 %v6150
        %6445 = vmatmul.bf16.gmra.mxu0 %v5549
        %v6446 = vpop.f32.mrf.mxu0
        %v6447 = vadd.f32 %v6433, %v6446
        %v6448 = vpop.f32.mrf.mxu0
        %v6449 = vadd.f32 %v6435, %v6448
        %6450 = vdwg.mxu0
        %6451 = vmatpush.bf16.msra.mxu0 %v6143
        %6452 = vmatpush.bf16.msra.mxu0 %v6135
        %6453 = vmatpush.bf16.msra.mxu0 %v6127
        %6454 = vmatpush.bf16.msra.mxu0 %v6119
        %6455 = vmatpush.bf16.msra.mxu0 %v6111
        %6456 = vmatpush.bf16.msra.mxu0 %v6103
        %6457 = vmatpush.bf16.msra.mxu0 %v6095
        %6458 = vmatpush.bf16.msra.mxu0 %v6087
        %6459 = vmatmul.bf16.gmra.mxu0 %v5548
        %v6460 = vpop.f32.mrf.mxu0
        %v6461 = vadd.f32 %v5687, %v6460
        %v6462 = vpop.f32.mrf.mxu0
        %v6463 = vadd.f32 %v5687, %v6462
        %6464 = vdwg.mxu0
        %6465 = vmatpush.bf16.msra.mxu0 %v6207
        %6466 = vmatpush.bf16.msra.mxu0 %v6199
        %6467 = vmatpush.bf16.msra.mxu0 %v6191
        %6468 = vmatpush.bf16.msra.mxu0 %v6183
        %6469 = vmatpush.bf16.msra.mxu0 %v6175
        %6470 = vmatpush.bf16.msra.mxu0 %v6167
        %6471 = vmatpush.bf16.msra.mxu0 %v6159
        %6472 = vmatpush.bf16.msra.mxu0 %v6151
        %6473 = vmatmul.bf16.gmra.mxu0 %v5549
        %v6474 = vpop.f32.mrf.mxu0
        %v6475 = vadd.f32 %v6461, %v6474
        %v6476 = vpop.f32.mrf.mxu0
        %v6477 = vadd.f32 %v6463, %v6476
        %6478 = vdwg.mxu0
        %6479 = vmatpush.bf16.msra.mxu0 %v6144
        %6480 = vmatpush.bf16.msra.mxu0 %v6136
        %6481 = vmatpush.bf16.msra.mxu0 %v6128
        %6482 = vmatpush.bf16.msra.mxu0 %v6120
        %6483 = vmatpush.bf16.msra.mxu0 %v6112
        %6484 = vmatpush.bf16.msra.mxu0 %v6104
        %6485 = vmatpush.bf16.msra.mxu0 %v6096
        %6486 = vmatpush.bf16.msra.mxu0 %v6088
        %6487 = vmatmul.bf16.gmra.mxu0 %v5548
        %v6488 = vpop.f32.mrf.mxu0
        %v6489 = vadd.f32 %v5688, %v6488
        %v6490 = vpop.f32.mrf.mxu0
        %v6491 = vadd.f32 %v5688, %v6490
        %6492 = vdwg.mxu0
        %6493 = vmatpush.bf16.msra.mxu0 %v6208
        %6494 = vmatpush.bf16.msra.mxu0 %v6200
        %6495 = vmatpush.bf16.msra.mxu0 %v6192
        %6496 = vmatpush.bf16.msra.mxu0 %v6184
        %6497 = vmatpush.bf16.msra.mxu0 %v6176
        %6498 = vmatpush.bf16.msra.mxu0 %v6168
        %6499 = vmatpush.bf16.msra.mxu0 %v6160
        %6500 = vmatpush.bf16.msra.mxu0 %v6152
        %6501 = vmatmul.bf16.gmra.mxu0 %v5549
        %v6502 = vpop.f32.mrf.mxu0
        %v6503 = vadd.f32 %v6489, %v6502
        %v6504 = vpop.f32.mrf.mxu0
        %v6505 = vadd.f32 %v6491, %v6504
        %6506 = vdwg.mxu0
        %6507 = vmatpush.bf16.msra.mxu0 %v6145
        %6508 = vmatpush.bf16.msra.mxu0 %v6137
        %6509 = vmatpush.bf16.msra.mxu0 %v6129
        %6510 = vmatpush.bf16.msra.mxu0 %v6121
        %6511 = vmatpush.bf16.msra.mxu0 %v6113
        %6512 = vmatpush.bf16.msra.mxu0 %v6105
        %6513 = vmatpush.bf16.msra.mxu0 %v6097
        %6514 = vmatpush.bf16.msra.mxu0 %v6089
        %6515 = vmatmul.bf16.gmra.mxu0 %v5548
        %v6516 = vpop.f32.mrf.mxu0
        %v6517 = vadd.f32 %v5689, %v6516
        %v6518 = vpop.f32.mrf.mxu0
        %v6519 = vadd.f32 %v5689, %v6518
        %6520 = vdwg.mxu0
        %6521 = vmatpush.bf16.msra.mxu0 %v6209
        %6522 = vmatpush.bf16.msra.mxu0 %v6201
        %6523 = vmatpush.bf16.msra.mxu0 %v6193
        %6524 = vmatpush.bf16.msra.mxu0 %v6185
        %6525 = vmatpush.bf16.msra.mxu0 %v6177
        %6526 = vmatpush.bf16.msra.mxu0 %v6169
        %6527 = vmatpush.bf16.msra.mxu0 %v6161
        %6528 = vmatpush.bf16.msra.mxu0 %v6153
        %6529 = vmatmul.bf16.gmra.mxu0 %v5549
        %v6530 = vpop.f32.mrf.mxu0
        %v6531 = vadd.f32 %v6517, %v6530
        %v6532 = vpop.f32.mrf.mxu0
        %v6533 = vadd.f32 %v6519, %v6532
        %6534 = vdwg.mxu0
        %6535 = vmatpush.bf16.msra.mxu0 %v6146
        %6536 = vmatpush.bf16.msra.mxu0 %v6138
        %6537 = vmatpush.bf16.msra.mxu0 %v6130
        %6538 = vmatpush.bf16.msra.mxu0 %v6122
        %6539 = vmatpush.bf16.msra.mxu0 %v6114
        %6540 = vmatpush.bf16.msra.mxu0 %v6106
        %6541 = vmatpush.bf16.msra.mxu0 %v6098
        %6542 = vmatpush.bf16.msra.mxu0 %v6090
        %6543 = vmatmul.bf16.gmra.mxu0 %v5548
        %v6544 = vpop.f32.mrf.mxu0
        %v6545 = vadd.f32 %v5690, %v6544
        %v6546 = vpop.f32.mrf.mxu0
        %v6547 = vadd.f32 %v5690, %v6546
        %6548 = vdwg.mxu0
        %6549 = vmatpush.bf16.msra.mxu0 %v6210
        %6550 = vmatpush.bf16.msra.mxu0 %v6202
        %6551 = vmatpush.bf16.msra.mxu0 %v6194
        %6552 = vmatpush.bf16.msra.mxu0 %v6186
        %6553 = vmatpush.bf16.msra.mxu0 %v6178
        %6554 = vmatpush.bf16.msra.mxu0 %v6170
        %6555 = vmatpush.bf16.msra.mxu0 %v6162
        %6556 = vmatpush.bf16.msra.mxu0 %v6154
        %6557 = vmatmul.bf16.gmra.mxu0 %v5549
        %v6558 = vpop.f32.mrf.mxu0
        %v6559 = vadd.f32 %v6545, %v6558
        %v6560 = vpop.f32.mrf.mxu0
        %v6561 = vadd.f32 %v6547, %v6560
        %6562 = vdwg.mxu0
        %v6563 = vmul.f32 %v6363, 0.5
        %v6564 = vmul.f32 %v6391, 0.5
        %v6565 = vmul.f32 %v6419, 0.5
        %v6566 = vmul.f32 %v6447, 0.5
        %v6567 = vmul.f32 %v6475, 0.5
        %v6568 = vmul.f32 %v6503, 0.5
        %v6569 = vmul.f32 %v6531, 0.5
        %v6570 = vmul.f32 %v6559, 0.5
        %v6571 = vmul.f32 %v6365, 0.5
        %v6572 = vmul.f32 %v6393, 0.5
        %v6573 = vmul.f32 %v6421, 0.5
        %v6574 = vmul.f32 %v6449, 0.5
        %v6575 = vmul.f32 %v6477, 0.5
        %v6576 = vmul.f32 %v6505, 0.5
        %v6577 = vmul.f32 %v6533, 0.5
        %v6578 = vmul.f32 %v6561, 0.5
        %v6579 = vmul.f32 %v6363, 0.044715
        %v6580 = vmul.f32 %v6391, 0.044715
        %v6581 = vmul.f32 %v6419, 0.044715
        %v6582 = vmul.f32 %v6447, 0.044715
        %v6583 = vmul.f32 %v6475, 0.044715
        %v6584 = vmul.f32 %v6503, 0.044715
        %v6585 = vmul.f32 %v6531, 0.044715
        %v6586 = vmul.f32 %v6559, 0.044715
        %v6587 = vmul.f32 %v6365, 0.044715
        %v6588 = vmul.f32 %v6393, 0.044715
        %v6589 = vmul.f32 %v6421, 0.044715
        %v6590 = vmul.f32 %v6449, 0.044715
        %v6591 = vmul.f32 %v6477, 0.044715
        %v6592 = vmul.f32 %v6505, 0.044715
        %v6593 = vmul.f32 %v6533, 0.044715
        %v6594 = vmul.f32 %v6561, 0.044715
        %v6595 = vmul.f32 %v6579, %v6363
        %v6596 = vmul.f32 %v6580, %v6391
        %v6597 = vmul.f32 %v6581, %v6419
        %v6598 = vmul.f32 %v6582, %v6447
        %v6599 = vmul.f32 %v6583, %v6475
        %v6600 = vmul.f32 %v6584, %v6503
        %v6601 = vmul.f32 %v6585, %v6531
        %v6602 = vmul.f32 %v6586, %v6559
        %v6603 = vmul.f32 %v6587, %v6365
        %v6604 = vmul.f32 %v6588, %v6393
        %v6605 = vmul.f32 %v6589, %v6421
        %v6606 = vmul.f32 %v6590, %v6449
        %v6607 = vmul.f32 %v6591, %v6477
        %v6608 = vmul.f32 %v6592, %v6505
        %v6609 = vmul.f32 %v6593, %v6533
        %v6610 = vmul.f32 %v6594, %v6561
        %v6611 = vmul.f32 %v6595, %v6363
        %v6612 = vmul.f32 %v6596, %v6391
        %v6613 = vmul.f32 %v6597, %v6419
        %v6614 = vmul.f32 %v6598, %v6447
        %v6615 = vmul.f32 %v6599, %v6475
        %v6616 = vmul.f32 %v6600, %v6503
        %v6617 = vmul.f32 %v6601, %v6531
        %v6618 = vmul.f32 %v6602, %v6559
        %v6619 = vmul.f32 %v6603, %v6365
        %v6620 = vmul.f32 %v6604, %v6393
        %v6621 = vmul.f32 %v6605, %v6421
        %v6622 = vmul.f32 %v6606, %v6449
        %v6623 = vmul.f32 %v6607, %v6477
        %v6624 = vmul.f32 %v6608, %v6505
        %v6625 = vmul.f32 %v6609, %v6533
        %v6626 = vmul.f32 %v6610, %v6561
        %v6627 = vadd.f32 %v6363, %v6611
        %v6628 = vadd.f32 %v6391, %v6612
        %v6629 = vadd.f32 %v6419, %v6613
        %v6630 = vadd.f32 %v6447, %v6614
        %v6631 = vadd.f32 %v6475, %v6615
        %v6632 = vadd.f32 %v6503, %v6616
        %v6633 = vadd.f32 %v6531, %v6617
        %v6634 = vadd.f32 %v6559, %v6618
        %v6635 = vadd.f32 %v6365, %v6619
        %v6636 = vadd.f32 %v6393, %v6620
        %v6637 = vadd.f32 %v6421, %v6621
        %v6638 = vadd.f32 %v6449, %v6622
        %v6639 = vadd.f32 %v6477, %v6623
        %v6640 = vadd.f32 %v6505, %v6624
        %v6641 = vadd.f32 %v6533, %v6625
        %v6642 = vadd.f32 %v6561, %v6626
        %v6643 = vmul.f32 %v6627, 0.7978846
        %v6644 = vmul.f32 %v6628, 0.7978846
        %v6645 = vmul.f32 %v6629, 0.7978846
        %v6646 = vmul.f32 %v6630, 0.7978846
        %v6647 = vmul.f32 %v6631, 0.7978846
        %v6648 = vmul.f32 %v6632, 0.7978846
        %v6649 = vmul.f32 %v6633, 0.7978846
        %v6650 = vmul.f32 %v6634, 0.7978846
        %v6651 = vmul.f32 %v6635, 0.7978846
        %v6652 = vmul.f32 %v6636, 0.7978846
        %v6653 = vmul.f32 %v6637, 0.7978846
        %v6654 = vmul.f32 %v6638, 0.7978846
        %v6655 = vmul.f32 %v6639, 0.7978846
        %v6656 = vmul.f32 %v6640, 0.7978846
        %v6657 = vmul.f32 %v6641, 0.7978846
        %v6658 = vmul.f32 %v6642, 0.7978846
        %v6659 = vtanh.pop %v6643
        %v6660 = vtanh.pop %v6644
        %v6661 = vtanh.pop %v6645
        %v6662 = vtanh.pop %v6646
        %v6663 = vtanh.pop %v6647
        %v6664 = vtanh.pop %v6648
        %v6665 = vtanh.pop %v6649
        %v6666 = vtanh.pop %v6650
        %v6667 = vtanh.pop %v6651
        %v6668 = vtanh.pop %v6652
        %v6669 = vtanh.pop %v6653
        %v6670 = vtanh.pop %v6654
        %v6671 = vtanh.pop %v6655
        %v6672 = vtanh.pop %v6656
        %v6673 = vtanh.pop %v6657
        %v6674 = vtanh.pop %v6658
        %v6675 = vadd.f32 %v6659, 1.0
        %v6676 = vadd.f32 %v6660, 1.0
        %v6677 = vadd.f32 %v6661, 1.0
        %v6678 = vadd.f32 %v6662, 1.0
        %v6679 = vadd.f32 %v6663, 1.0
        %v6680 = vadd.f32 %v6664, 1.0
        %v6681 = vadd.f32 %v6665, 1.0
        %v6682 = vadd.f32 %v6666, 1.0
        %v6683 = vadd.f32 %v6667, 1.0
        %v6684 = vadd.f32 %v6668, 1.0
        %v6685 = vadd.f32 %v6669, 1.0
        %v6686 = vadd.f32 %v6670, 1.0
        %v6687 = vadd.f32 %v6671, 1.0
        %v6688 = vadd.f32 %v6672, 1.0
        %v6689 = vadd.f32 %v6673, 1.0
        %v6690 = vadd.f32 %v6674, 1.0
        %v6691 = vmul.f32 %v6563, %v6675
        %v6692 = vmul.f32 %v6564, %v6676
        %v6693 = vmul.f32 %v6565, %v6677
        %v6694 = vmul.f32 %v6566, %v6678
        %v6695 = vmul.f32 %v6567, %v6679
        %v6696 = vmul.f32 %v6568, %v6680
        %v6697 = vmul.f32 %v6569, %v6681
        %v6698 = vmul.f32 %v6570, %v6682
        %v6699 = vmul.f32 %v6571, %v6683
        %v6700 = vmul.f32 %v6572, %v6684
        %v6701 = vmul.f32 %v6573, %v6685
        %v6702 = vmul.f32 %v6574, %v6686
        %v6703 = vmul.f32 %v6575, %v6687
        %v6704 = vmul.f32 %v6576, %v6688
        %v6705 = vmul.f32 %v6577, %v6689
        %v6706 = vmul.f32 %v6578, %v6690
        %v6707 = vpack.c.bf16 %v6699, %v6691
        %v6708 = vpack.c.bf16 %v6700, %v6692
        %v6709 = vpack.c.bf16 %v6701, %v6693
        %v6710 = vpack.c.bf16 %v6702, %v6694
        %v6711 = vpack.c.bf16 %v6703, %v6695
        %v6712 = vpack.c.bf16 %v6704, %v6696
        %v6713 = vpack.c.bf16 %v6705, %v6697
        %v6714 = vpack.c.bf16 %v6706, %v6698
        %s6715 = scalar_lea.vmem %s532, 1024 [#allocation10]
        %v6716 = vld [vmem:[%s6715] sm:$0xff]
        %v6717 = vld [vmem:[%s6715 + $0x8] sm:$0xff]
        %v6718 = vld [vmem:[%s6715 + $0x10] sm:$0xff]
        %v6719 = vld [vmem:[%s6715 + $0x18] sm:$0xff]
        %v6720 = vld [vmem:[%s6715 + $0x20] sm:$0xff]
        %v6721 = vld [vmem:[%s6715 + $0x28] sm:$0xff]
        %v6722 = vld [vmem:[%s6715 + $0x30] sm:$0xff]
        %v6723 = vld [vmem:[%s6715 + $0x38] sm:$0xff]
        %v6724 = vld [vmem:[%s6715 + $0x40] sm:$0xff]
        %v6725 = vld [vmem:[%s6715 + $0x48] sm:$0xff]
        %v6726 = vld [vmem:[%s6715 + $0x50] sm:$0xff]
        %v6727 = vld [vmem:[%s6715 + $0x58] sm:$0xff]
        %v6728 = vld [vmem:[%s6715 + $0x60] sm:$0xff]
        %v6729 = vld [vmem:[%s6715 + $0x68] sm:$0xff]
        %v6730 = vld [vmem:[%s6715 + $0x70] sm:$0xff]
        %v6731 = vld [vmem:[%s6715 + $0x78] sm:$0xff]
        %v6732 = vld [vmem:[%s6715 + $0x80] sm:$0xff]
        %v6733 = vld [vmem:[%s6715 + $0x88] sm:$0xff]
        %v6734 = vld [vmem:[%s6715 + $0x90] sm:$0xff]
        %v6735 = vld [vmem:[%s6715 + $0x98] sm:$0xff]
        %v6736 = vld [vmem:[%s6715 + $0xa0] sm:$0xff]
        %v6737 = vld [vmem:[%s6715 + $0xa8] sm:$0xff]
        %v6738 = vld [vmem:[%s6715 + $0xb0] sm:$0xff]
        %v6739 = vld [vmem:[%s6715 + $0xb8] sm:$0xff]
        %v6740 = vld [vmem:[%s6715 + $0xc0] sm:$0xff]
        %v6741 = vld [vmem:[%s6715 + $0xc8] sm:$0xff]
        %v6742 = vld [vmem:[%s6715 + $0xd0] sm:$0xff]
        %v6743 = vld [vmem:[%s6715 + $0xd8] sm:$0xff]
        %v6744 = vld [vmem:[%s6715 + $0xe0] sm:$0xff]
        %v6745 = vld [vmem:[%s6715 + $0xe8] sm:$0xff]
        %v6746 = vld [vmem:[%s6715 + $0xf0] sm:$0xff]
        %v6747 = vld [vmem:[%s6715 + $0xf8] sm:$0xff]
        %v6748 = vld [vmem:[%s6715 + $0x100] sm:$0xff]
        %v6749 = vld [vmem:[%s6715 + $0x108] sm:$0xff]
        %v6750 = vld [vmem:[%s6715 + $0x110] sm:$0xff]
        %v6751 = vld [vmem:[%s6715 + $0x118] sm:$0xff]
        %v6752 = vld [vmem:[%s6715 + $0x120] sm:$0xff]
        %v6753 = vld [vmem:[%s6715 + $0x128] sm:$0xff]
        %v6754 = vld [vmem:[%s6715 + $0x130] sm:$0xff]
        %v6755 = vld [vmem:[%s6715 + $0x138] sm:$0xff]
        %v6756 = vld [vmem:[%s6715 + $0x140] sm:$0xff]
        %v6757 = vld [vmem:[%s6715 + $0x148] sm:$0xff]
        %v6758 = vld [vmem:[%s6715 + $0x150] sm:$0xff]
        %v6759 = vld [vmem:[%s6715 + $0x158] sm:$0xff]
        %v6760 = vld [vmem:[%s6715 + $0x160] sm:$0xff]
        %v6761 = vld [vmem:[%s6715 + $0x168] sm:$0xff]
        %v6762 = vld [vmem:[%s6715 + $0x170] sm:$0xff]
        %v6763 = vld [vmem:[%s6715 + $0x178] sm:$0xff]
        %v6764 = vld [vmem:[%s6715 + $0x180] sm:$0xff]
        %v6765 = vld [vmem:[%s6715 + $0x188] sm:$0xff]
        %v6766 = vld [vmem:[%s6715 + $0x190] sm:$0xff]
        %v6767 = vld [vmem:[%s6715 + $0x198] sm:$0xff]
        %v6768 = vld [vmem:[%s6715 + $0x1a0] sm:$0xff]
        %v6769 = vld [vmem:[%s6715 + $0x1a8] sm:$0xff]
        %v6770 = vld [vmem:[%s6715 + $0x1b0] sm:$0xff]
        %v6771 = vld [vmem:[%s6715 + $0x1b8] sm:$0xff]
        %v6772 = vld [vmem:[%s6715 + $0x1c0] sm:$0xff]
        %v6773 = vld [vmem:[%s6715 + $0x1c8] sm:$0xff]
        %v6774 = vld [vmem:[%s6715 + $0x1d0] sm:$0xff]
        %v6775 = vld [vmem:[%s6715 + $0x1d8] sm:$0xff]
        %v6776 = vld [vmem:[%s6715 + $0x1e0] sm:$0xff]
        %v6777 = vld [vmem:[%s6715 + $0x1e8] sm:$0xff]
        %v6778 = vld [vmem:[%s6715 + $0x1f0] sm:$0xff]
        %v6779 = vld [vmem:[%s6715 + $0x1f8] sm:$0xff]
        %v6780 = vld [vmem:[%s6715 + $0x200] sm:$0xff]
        %v6781 = vld [vmem:[%s6715 + $0x208] sm:$0xff]
        %v6782 = vld [vmem:[%s6715 + $0x210] sm:$0xff]
        %v6783 = vld [vmem:[%s6715 + $0x218] sm:$0xff]
        %v6784 = vld [vmem:[%s6715 + $0x220] sm:$0xff]
        %v6785 = vld [vmem:[%s6715 + $0x228] sm:$0xff]
        %v6786 = vld [vmem:[%s6715 + $0x230] sm:$0xff]
        %v6787 = vld [vmem:[%s6715 + $0x238] sm:$0xff]
        %v6788 = vld [vmem:[%s6715 + $0x240] sm:$0xff]
        %v6789 = vld [vmem:[%s6715 + $0x248] sm:$0xff]
        %v6790 = vld [vmem:[%s6715 + $0x250] sm:$0xff]
        %v6791 = vld [vmem:[%s6715 + $0x258] sm:$0xff]
        %v6792 = vld [vmem:[%s6715 + $0x260] sm:$0xff]
        %v6793 = vld [vmem:[%s6715 + $0x268] sm:$0xff]
        %v6794 = vld [vmem:[%s6715 + $0x270] sm:$0xff]
        %v6795 = vld [vmem:[%s6715 + $0x278] sm:$0xff]
        %v6796 = vld [vmem:[%s6715 + $0x280] sm:$0xff]
        %v6797 = vld [vmem:[%s6715 + $0x288] sm:$0xff]
        %v6798 = vld [vmem:[%s6715 + $0x290] sm:$0xff]
        %v6799 = vld [vmem:[%s6715 + $0x298] sm:$0xff]
        %v6800 = vld [vmem:[%s6715 + $0x2a0] sm:$0xff]
        %v6801 = vld [vmem:[%s6715 + $0x2a8] sm:$0xff]
        %v6802 = vld [vmem:[%s6715 + $0x2b0] sm:$0xff]
        %v6803 = vld [vmem:[%s6715 + $0x2b8] sm:$0xff]
        %v6804 = vld [vmem:[%s6715 + $0x2c0] sm:$0xff]
        %v6805 = vld [vmem:[%s6715 + $0x2c8] sm:$0xff]
        %v6806 = vld [vmem:[%s6715 + $0x2d0] sm:$0xff]
        %v6807 = vld [vmem:[%s6715 + $0x2d8] sm:$0xff]
        %v6808 = vld [vmem:[%s6715 + $0x2e0] sm:$0xff]
        %v6809 = vld [vmem:[%s6715 + $0x2e8] sm:$0xff]
        %v6810 = vld [vmem:[%s6715 + $0x2f0] sm:$0xff]
        %v6811 = vld [vmem:[%s6715 + $0x2f8] sm:$0xff]
        %v6812 = vld [vmem:[%s6715 + $0x300] sm:$0xff]
        %v6813 = vld [vmem:[%s6715 + $0x308] sm:$0xff]
        %v6814 = vld [vmem:[%s6715 + $0x310] sm:$0xff]
        %v6815 = vld [vmem:[%s6715 + $0x318] sm:$0xff]
        %v6816 = vld [vmem:[%s6715 + $0x320] sm:$0xff]
        %v6817 = vld [vmem:[%s6715 + $0x328] sm:$0xff]
        %v6818 = vld [vmem:[%s6715 + $0x330] sm:$0xff]
        %v6819 = vld [vmem:[%s6715 + $0x338] sm:$0xff]
        %v6820 = vld [vmem:[%s6715 + $0x340] sm:$0xff]
        %v6821 = vld [vmem:[%s6715 + $0x348] sm:$0xff]
        %v6822 = vld [vmem:[%s6715 + $0x350] sm:$0xff]
        %v6823 = vld [vmem:[%s6715 + $0x358] sm:$0xff]
        %v6824 = vld [vmem:[%s6715 + $0x360] sm:$0xff]
        %v6825 = vld [vmem:[%s6715 + $0x368] sm:$0xff]
        %v6826 = vld [vmem:[%s6715 + $0x370] sm:$0xff]
        %v6827 = vld [vmem:[%s6715 + $0x378] sm:$0xff]
        %v6828 = vld [vmem:[%s6715 + $0x380] sm:$0xff]
        %v6829 = vld [vmem:[%s6715 + $0x388] sm:$0xff]
        %v6830 = vld [vmem:[%s6715 + $0x390] sm:$0xff]
        %v6831 = vld [vmem:[%s6715 + $0x398] sm:$0xff]
        %v6832 = vld [vmem:[%s6715 + $0x3a0] sm:$0xff]
        %v6833 = vld [vmem:[%s6715 + $0x3a8] sm:$0xff]
        %v6834 = vld [vmem:[%s6715 + $0x3b0] sm:$0xff]
        %v6835 = vld [vmem:[%s6715 + $0x3b8] sm:$0xff]
        %v6836 = vld [vmem:[%s6715 + $0x3c0] sm:$0xff]
        %v6837 = vld [vmem:[%s6715 + $0x3c8] sm:$0xff]
        %v6838 = vld [vmem:[%s6715 + $0x3d0] sm:$0xff]
        %v6839 = vld [vmem:[%s6715 + $0x3d8] sm:$0xff]
        %v6840 = vld [vmem:[%s6715 + $0x3e0] sm:$0xff]
        %v6841 = vld [vmem:[%s6715 + $0x3e8] sm:$0xff]
        %v6842 = vld [vmem:[%s6715 + $0x3f0] sm:$0xff]
        %v6843 = vld [vmem:[%s6715 + $0x3f8] sm:$0xff]
        %v6844 = vrot.slane %v4253, 6
        %v6845 = vperm.slane %v6844, 0
        %v6846 = vperm.slane %v6844, 1
        %v6977 = vunpack.c.l.b16 %v6716
        %v6978 = vunpack.c.h.b16 %v6716
        %v6979 = vunpack.c.l.b16 %v6717
        %v6980 = vunpack.c.h.b16 %v6717
        %v6981 = vunpack.c.l.b16 %v6718
        %v6982 = vunpack.c.h.b16 %v6718
        %v6983 = vunpack.c.l.b16 %v6719
        %v6984 = vunpack.c.h.b16 %v6719
        %v6985 = vunpack.c.l.b16 %v6720
        %v6986 = vunpack.c.h.b16 %v6720
        %v6987 = vunpack.c.l.b16 %v6721
        %v6988 = vunpack.c.h.b16 %v6721
        %v6989 = vunpack.c.l.b16 %v6722
        %v6990 = vunpack.c.h.b16 %v6722
        %v6991 = vunpack.c.l.b16 %v6723
        %v6992 = vunpack.c.h.b16 %v6723
        %v6993 = vunpack.c.l.b16 %v6724
        %v6994 = vunpack.c.h.b16 %v6724
        %v6995 = vunpack.c.l.b16 %v6725
        %v6996 = vunpack.c.h.b16 %v6725
        %v6997 = vunpack.c.l.b16 %v6726
        %v6998 = vunpack.c.h.b16 %v6726
        %v6999 = vunpack.c.l.b16 %v6727
        %v7000 = vunpack.c.h.b16 %v6727
        %v7001 = vunpack.c.l.b16 %v6728
        %v7002 = vunpack.c.h.b16 %v6728
        %v7003 = vunpack.c.l.b16 %v6729
        %v7004 = vunpack.c.h.b16 %v6729
        %v7005 = vunpack.c.l.b16 %v6730
        %v7006 = vunpack.c.h.b16 %v6730
        %v7007 = vunpack.c.l.b16 %v6731
        %v7008 = vunpack.c.h.b16 %v6731
        %v7009 = vunpack.c.l.b16 %v6732
        %v7010 = vunpack.c.h.b16 %v6732
        %v7011 = vunpack.c.l.b16 %v6733
        %v7012 = vunpack.c.h.b16 %v6733
        %v7013 = vunpack.c.l.b16 %v6734
        %v7014 = vunpack.c.h.b16 %v6734
        %v7015 = vunpack.c.l.b16 %v6735
        %v7016 = vunpack.c.h.b16 %v6735
        %v7017 = vunpack.c.l.b16 %v6736
        %v7018 = vunpack.c.h.b16 %v6736
        %v7019 = vunpack.c.l.b16 %v6737
        %v7020 = vunpack.c.h.b16 %v6737
        %v7021 = vunpack.c.l.b16 %v6738
        %v7022 = vunpack.c.h.b16 %v6738
        %v7023 = vunpack.c.l.b16 %v6739
        %v7024 = vunpack.c.h.b16 %v6739
        %v7025 = vunpack.c.l.b16 %v6740
        %v7026 = vunpack.c.h.b16 %v6740
        %v7027 = vunpack.c.l.b16 %v6741
        %v7028 = vunpack.c.h.b16 %v6741
        %v7029 = vunpack.c.l.b16 %v6742
        %v7030 = vunpack.c.h.b16 %v6742
        %v7031 = vunpack.c.l.b16 %v6743
        %v7032 = vunpack.c.h.b16 %v6743
        %v7033 = vunpack.c.l.b16 %v6744
        %v7034 = vunpack.c.h.b16 %v6744
        %v7035 = vunpack.c.l.b16 %v6745
        %v7036 = vunpack.c.h.b16 %v6745
        %v7037 = vunpack.c.l.b16 %v6746
        %v7038 = vunpack.c.h.b16 %v6746
        %v7039 = vunpack.c.l.b16 %v6747
        %v7040 = vunpack.c.h.b16 %v6747
        %v7041 = vunpack.c.l.b16 %v6748
        %v7042 = vunpack.c.h.b16 %v6748
        %v7043 = vunpack.c.l.b16 %v6749
        %v7044 = vunpack.c.h.b16 %v6749
        %v7045 = vunpack.c.l.b16 %v6750
        %v7046 = vunpack.c.h.b16 %v6750
        %v7047 = vunpack.c.l.b16 %v6751
        %v7048 = vunpack.c.h.b16 %v6751
        %v7049 = vunpack.c.l.b16 %v6752
        %v7050 = vunpack.c.h.b16 %v6752
        %v7051 = vunpack.c.l.b16 %v6753
        %v7052 = vunpack.c.h.b16 %v6753
        %v7053 = vunpack.c.l.b16 %v6754
        %v7054 = vunpack.c.h.b16 %v6754
        %v7055 = vunpack.c.l.b16 %v6755
        %v7056 = vunpack.c.h.b16 %v6755
        %v7057 = vunpack.c.l.b16 %v6756
        %v7058 = vunpack.c.h.b16 %v6756
        %v7059 = vunpack.c.l.b16 %v6757
        %v7060 = vunpack.c.h.b16 %v6757
        %v7061 = vunpack.c.l.b16 %v6758
        %v7062 = vunpack.c.h.b16 %v6758
        %v7063 = vunpack.c.l.b16 %v6759
        %v7064 = vunpack.c.h.b16 %v6759
        %v7065 = vunpack.c.l.b16 %v6760
        %v7066 = vunpack.c.h.b16 %v6760
        %v7067 = vunpack.c.l.b16 %v6761
        %v7068 = vunpack.c.h.b16 %v6761
        %v7069 = vunpack.c.l.b16 %v6762
        %v7070 = vunpack.c.h.b16 %v6762
        %v7071 = vunpack.c.l.b16 %v6763
        %v7072 = vunpack.c.h.b16 %v6763
        %v7073 = vunpack.c.l.b16 %v6764
        %v7074 = vunpack.c.h.b16 %v6764
        %v7075 = vunpack.c.l.b16 %v6765
        %v7076 = vunpack.c.h.b16 %v6765
        %v7077 = vunpack.c.l.b16 %v6766
        %v7078 = vunpack.c.h.b16 %v6766
        %v7079 = vunpack.c.l.b16 %v6767
        %v7080 = vunpack.c.h.b16 %v6767
        %v7081 = vunpack.c.l.b16 %v6768
        %v7082 = vunpack.c.h.b16 %v6768
        %v7083 = vunpack.c.l.b16 %v6769
        %v7084 = vunpack.c.h.b16 %v6769
        %v7085 = vunpack.c.l.b16 %v6770
        %v7086 = vunpack.c.h.b16 %v6770
        %v7087 = vunpack.c.l.b16 %v6771
        %v7088 = vunpack.c.h.b16 %v6771
        %v7089 = vunpack.c.l.b16 %v6772
        %v7090 = vunpack.c.h.b16 %v6772
        %v7091 = vunpack.c.l.b16 %v6773
        %v7092 = vunpack.c.h.b16 %v6773
        %v7093 = vunpack.c.l.b16 %v6774
        %v7094 = vunpack.c.h.b16 %v6774
        %v7095 = vunpack.c.l.b16 %v6775
        %v7096 = vunpack.c.h.b16 %v6775
        %v7097 = vunpack.c.l.b16 %v6776
        %v7098 = vunpack.c.h.b16 %v6776
        %v7099 = vunpack.c.l.b16 %v6777
        %v7100 = vunpack.c.h.b16 %v6777
        %v7101 = vunpack.c.l.b16 %v6778
        %v7102 = vunpack.c.h.b16 %v6778
        %v7103 = vunpack.c.l.b16 %v6779
        %v7104 = vunpack.c.h.b16 %v6779
        %v7105 = vunpack.c.l.b16 %v6780
        %v7106 = vunpack.c.h.b16 %v6780
        %v7107 = vunpack.c.l.b16 %v6781
        %v7108 = vunpack.c.h.b16 %v6781
        %v7109 = vunpack.c.l.b16 %v6782
        %v7110 = vunpack.c.h.b16 %v6782
        %v7111 = vunpack.c.l.b16 %v6783
        %v7112 = vunpack.c.h.b16 %v6783
        %v7113 = vunpack.c.l.b16 %v6784
        %v7114 = vunpack.c.h.b16 %v6784
        %v7115 = vunpack.c.l.b16 %v6785
        %v7116 = vunpack.c.h.b16 %v6785
        %v7117 = vunpack.c.l.b16 %v6786
        %v7118 = vunpack.c.h.b16 %v6786
        %v7119 = vunpack.c.l.b16 %v6787
        %v7120 = vunpack.c.h.b16 %v6787
        %v7121 = vunpack.c.l.b16 %v6788
        %v7122 = vunpack.c.h.b16 %v6788
        %v7123 = vunpack.c.l.b16 %v6789
        %v7124 = vunpack.c.h.b16 %v6789
        %v7125 = vunpack.c.l.b16 %v6790
        %v7126 = vunpack.c.h.b16 %v6790
        %v7127 = vunpack.c.l.b16 %v6791
        %v7128 = vunpack.c.h.b16 %v6791
        %v7129 = vunpack.c.l.b16 %v6792
        %v7130 = vunpack.c.h.b16 %v6792
        %v7131 = vunpack.c.l.b16 %v6793
        %v7132 = vunpack.c.h.b16 %v6793
        %v7133 = vunpack.c.l.b16 %v6794
        %v7134 = vunpack.c.h.b16 %v6794
        %v7135 = vunpack.c.l.b16 %v6795
        %v7136 = vunpack.c.h.b16 %v6795
        %v7137 = vunpack.c.l.b16 %v6796
        %v7138 = vunpack.c.h.b16 %v6796
        %v7139 = vunpack.c.l.b16 %v6797
        %v7140 = vunpack.c.h.b16 %v6797
        %v7141 = vunpack.c.l.b16 %v6798
        %v7142 = vunpack.c.h.b16 %v6798
        %v7143 = vunpack.c.l.b16 %v6799
        %v7144 = vunpack.c.h.b16 %v6799
        %v7145 = vunpack.c.l.b16 %v6800
        %v7146 = vunpack.c.h.b16 %v6800
        %v7147 = vunpack.c.l.b16 %v6801
        %v7148 = vunpack.c.h.b16 %v6801
        %v7149 = vunpack.c.l.b16 %v6802
        %v7150 = vunpack.c.h.b16 %v6802
        %v7151 = vunpack.c.l.b16 %v6803
        %v7152 = vunpack.c.h.b16 %v6803
        %v7153 = vunpack.c.l.b16 %v6804
        %v7154 = vunpack.c.h.b16 %v6804
        %v7155 = vunpack.c.l.b16 %v6805
        %v7156 = vunpack.c.h.b16 %v6805
        %v7157 = vunpack.c.l.b16 %v6806
        %v7158 = vunpack.c.h.b16 %v6806
        %v7159 = vunpack.c.l.b16 %v6807
        %v7160 = vunpack.c.h.b16 %v6807
        %v7161 = vunpack.c.l.b16 %v6808
        %v7162 = vunpack.c.h.b16 %v6808
        %v7163 = vunpack.c.l.b16 %v6809
        %v7164 = vunpack.c.h.b16 %v6809
        %v7165 = vunpack.c.l.b16 %v6810
        %v7166 = vunpack.c.h.b16 %v6810
        %v7167 = vunpack.c.l.b16 %v6811
        %v7168 = vunpack.c.h.b16 %v6811
        %v7169 = vunpack.c.l.b16 %v6812
        %v7170 = vunpack.c.h.b16 %v6812
        %v7171 = vunpack.c.l.b16 %v6813
        %v7172 = vunpack.c.h.b16 %v6813
        %v7173 = vunpack.c.l.b16 %v6814
        %v7174 = vunpack.c.h.b16 %v6814
        %v7175 = vunpack.c.l.b16 %v6815
        %v7176 = vunpack.c.h.b16 %v6815
        %v7177 = vunpack.c.l.b16 %v6816
        %v7178 = vunpack.c.h.b16 %v6816
        %v7179 = vunpack.c.l.b16 %v6817
        %v7180 = vunpack.c.h.b16 %v6817
        %v7181 = vunpack.c.l.b16 %v6818
        %v7182 = vunpack.c.h.b16 %v6818
        %v7183 = vunpack.c.l.b16 %v6819
        %v7184 = vunpack.c.h.b16 %v6819
        %v7185 = vunpack.c.l.b16 %v6820
        %v7186 = vunpack.c.h.b16 %v6820
        %v7187 = vunpack.c.l.b16 %v6821
        %v7188 = vunpack.c.h.b16 %v6821
        %v7189 = vunpack.c.l.b16 %v6822
        %v7190 = vunpack.c.h.b16 %v6822
        %v7191 = vunpack.c.l.b16 %v6823
        %v7192 = vunpack.c.h.b16 %v6823
        %v7193 = vunpack.c.l.b16 %v6824
        %v7194 = vunpack.c.h.b16 %v6824
        %v7195 = vunpack.c.l.b16 %v6825
        %v7196 = vunpack.c.h.b16 %v6825
        %v7197 = vunpack.c.l.b16 %v6826
        %v7198 = vunpack.c.h.b16 %v6826
        %v7199 = vunpack.c.l.b16 %v6827
        %v7200 = vunpack.c.h.b16 %v6827
        %v7201 = vunpack.c.l.b16 %v6828
        %v7202 = vunpack.c.h.b16 %v6828
        %v7203 = vunpack.c.l.b16 %v6829
        %v7204 = vunpack.c.h.b16 %v6829
        %v7205 = vunpack.c.l.b16 %v6830
        %v7206 = vunpack.c.h.b16 %v6830
        %v7207 = vunpack.c.l.b16 %v6831
        %v7208 = vunpack.c.h.b16 %v6831
        %v7209 = vunpack.c.l.b16 %v6832
        %v7210 = vunpack.c.h.b16 %v6832
        %v7211 = vunpack.c.l.b16 %v6833
        %v7212 = vunpack.c.h.b16 %v6833
        %v7213 = vunpack.c.l.b16 %v6834
        %v7214 = vunpack.c.h.b16 %v6834
        %v7215 = vunpack.c.l.b16 %v6835
        %v7216 = vunpack.c.h.b16 %v6835
        %v7217 = vunpack.c.l.b16 %v6836
        %v7218 = vunpack.c.h.b16 %v6836
        %v7219 = vunpack.c.l.b16 %v6837
        %v7220 = vunpack.c.h.b16 %v6837
        %v7221 = vunpack.c.l.b16 %v6838
        %v7222 = vunpack.c.h.b16 %v6838
        %v7223 = vunpack.c.l.b16 %v6839
        %v7224 = vunpack.c.h.b16 %v6839
        %v7225 = vunpack.c.l.b16 %v6840
        %v7226 = vunpack.c.h.b16 %v6840
        %v7227 = vunpack.c.l.b16 %v6841
        %v7228 = vunpack.c.h.b16 %v6841
        %v7229 = vunpack.c.l.b16 %v6842
        %v7230 = vunpack.c.h.b16 %v6842
        %v7231 = vunpack.c.l.b16 %v6843
        %v7232 = vunpack.c.h.b16 %v6843
        %v7233 = vpack.c.b16 %v6979, %v6977
        %v7234 = vpack.c.b16 %v6980, %v6978
        %v7235 = vpack.c.b16 %v6983, %v6981
        %v7236 = vpack.c.b16 %v6984, %v6982
        %v7237 = vpack.c.b16 %v6987, %v6985
        %v7238 = vpack.c.b16 %v6988, %v6986
        %v7239 = vpack.c.b16 %v6991, %v6989
        %v7240 = vpack.c.b16 %v6992, %v6990
        %v7241 = vpack.c.b16 %v6995, %v6993
        %v7242 = vpack.c.b16 %v6996, %v6994
        %v7243 = vpack.c.b16 %v6999, %v6997
        %v7244 = vpack.c.b16 %v7000, %v6998
        %v7245 = vpack.c.b16 %v7003, %v7001
        %v7246 = vpack.c.b16 %v7004, %v7002
        %v7247 = vpack.c.b16 %v7007, %v7005
        %v7248 = vpack.c.b16 %v7008, %v7006
        %v7249 = vpack.c.b16 %v7011, %v7009
        %v7250 = vpack.c.b16 %v7012, %v7010
        %v7251 = vpack.c.b16 %v7015, %v7013
        %v7252 = vpack.c.b16 %v7016, %v7014
        %v7253 = vpack.c.b16 %v7019, %v7017
        %v7254 = vpack.c.b16 %v7020, %v7018
        %v7255 = vpack.c.b16 %v7023, %v7021
        %v7256 = vpack.c.b16 %v7024, %v7022
        %v7257 = vpack.c.b16 %v7027, %v7025
        %v7258 = vpack.c.b16 %v7028, %v7026
        %v7259 = vpack.c.b16 %v7031, %v7029
        %v7260 = vpack.c.b16 %v7032, %v7030
        %v7261 = vpack.c.b16 %v7035, %v7033
        %v7262 = vpack.c.b16 %v7036, %v7034
        %v7263 = vpack.c.b16 %v7039, %v7037
        %v7264 = vpack.c.b16 %v7040, %v7038
        %v7265 = vpack.c.b16 %v7043, %v7041
        %v7266 = vpack.c.b16 %v7044, %v7042
        %v7267 = vpack.c.b16 %v7047, %v7045
        %v7268 = vpack.c.b16 %v7048, %v7046
        %v7269 = vpack.c.b16 %v7051, %v7049
        %v7270 = vpack.c.b16 %v7052, %v7050
        %v7271 = vpack.c.b16 %v7055, %v7053
        %v7272 = vpack.c.b16 %v7056, %v7054
        %v7273 = vpack.c.b16 %v7059, %v7057
        %v7274 = vpack.c.b16 %v7060, %v7058
        %v7275 = vpack.c.b16 %v7063, %v7061
        %v7276 = vpack.c.b16 %v7064, %v7062
        %v7277 = vpack.c.b16 %v7067, %v7065
        %v7278 = vpack.c.b16 %v7068, %v7066
        %v7279 = vpack.c.b16 %v7071, %v7069
        %v7280 = vpack.c.b16 %v7072, %v7070
        %v7281 = vpack.c.b16 %v7075, %v7073
        %v7282 = vpack.c.b16 %v7076, %v7074
        %v7283 = vpack.c.b16 %v7079, %v7077
        %v7284 = vpack.c.b16 %v7080, %v7078
        %v7285 = vpack.c.b16 %v7083, %v7081
        %v7286 = vpack.c.b16 %v7084, %v7082
        %v7287 = vpack.c.b16 %v7087, %v7085
        %v7288 = vpack.c.b16 %v7088, %v7086
        %v7289 = vpack.c.b16 %v7091, %v7089
        %v7290 = vpack.c.b16 %v7092, %v7090
        %v7291 = vpack.c.b16 %v7095, %v7093
        %v7292 = vpack.c.b16 %v7096, %v7094
        %v7293 = vpack.c.b16 %v7099, %v7097
        %v7294 = vpack.c.b16 %v7100, %v7098
        %v7295 = vpack.c.b16 %v7103, %v7101
        %v7296 = vpack.c.b16 %v7104, %v7102
        %v7297 = vpack.c.b16 %v7107, %v7105
        %v7298 = vpack.c.b16 %v7108, %v7106
        %v7299 = vpack.c.b16 %v7111, %v7109
        %v7300 = vpack.c.b16 %v7112, %v7110
        %v7301 = vpack.c.b16 %v7115, %v7113
        %v7302 = vpack.c.b16 %v7116, %v7114
        %v7303 = vpack.c.b16 %v7119, %v7117
        %v7304 = vpack.c.b16 %v7120, %v7118
        %v7305 = vpack.c.b16 %v7123, %v7121
        %v7306 = vpack.c.b16 %v7124, %v7122
        %v7307 = vpack.c.b16 %v7127, %v7125
        %v7308 = vpack.c.b16 %v7128, %v7126
        %v7309 = vpack.c.b16 %v7131, %v7129
        %v7310 = vpack.c.b16 %v7132, %v7130
        %v7311 = vpack.c.b16 %v7135, %v7133
        %v7312 = vpack.c.b16 %v7136, %v7134
        %v7313 = vpack.c.b16 %v7139, %v7137
        %v7314 = vpack.c.b16 %v7140, %v7138
        %v7315 = vpack.c.b16 %v7143, %v7141
        %v7316 = vpack.c.b16 %v7144, %v7142
        %v7317 = vpack.c.b16 %v7147, %v7145
        %v7318 = vpack.c.b16 %v7148, %v7146
        %v7319 = vpack.c.b16 %v7151, %v7149
        %v7320 = vpack.c.b16 %v7152, %v7150
        %v7321 = vpack.c.b16 %v7155, %v7153
        %v7322 = vpack.c.b16 %v7156, %v7154
        %v7323 = vpack.c.b16 %v7159, %v7157
        %v7324 = vpack.c.b16 %v7160, %v7158
        %v7325 = vpack.c.b16 %v7163, %v7161
        %v7326 = vpack.c.b16 %v7164, %v7162
        %v7327 = vpack.c.b16 %v7167, %v7165
        %v7328 = vpack.c.b16 %v7168, %v7166
        %v7329 = vpack.c.b16 %v7171, %v7169
        %v7330 = vpack.c.b16 %v7172, %v7170
        %v7331 = vpack.c.b16 %v7175, %v7173
        %v7332 = vpack.c.b16 %v7176, %v7174
        %v7333 = vpack.c.b16 %v7179, %v7177
        %v7334 = vpack.c.b16 %v7180, %v7178
        %v7335 = vpack.c.b16 %v7183, %v7181
        %v7336 = vpack.c.b16 %v7184, %v7182
        %v7337 = vpack.c.b16 %v7187, %v7185
        %v7338 = vpack.c.b16 %v7188, %v7186
        %v7339 = vpack.c.b16 %v7191, %v7189
        %v7340 = vpack.c.b16 %v7192, %v7190
        %v7341 = vpack.c.b16 %v7195, %v7193
        %v7342 = vpack.c.b16 %v7196, %v7194
        %v7343 = vpack.c.b16 %v7199, %v7197
        %v7344 = vpack.c.b16 %v7200, %v7198
        %v7345 = vpack.c.b16 %v7203, %v7201
        %v7346 = vpack.c.b16 %v7204, %v7202
        %v7347 = vpack.c.b16 %v7207, %v7205
        %v7348 = vpack.c.b16 %v7208, %v7206
        %v7349 = vpack.c.b16 %v7211, %v7209
        %v7350 = vpack.c.b16 %v7212, %v7210
        %v7351 = vpack.c.b16 %v7215, %v7213
        %v7352 = vpack.c.b16 %v7216, %v7214
        %v7353 = vpack.c.b16 %v7219, %v7217
        %v7354 = vpack.c.b16 %v7220, %v7218
        %v7355 = vpack.c.b16 %v7223, %v7221
        %v7356 = vpack.c.b16 %v7224, %v7222
        %v7357 = vpack.c.b16 %v7227, %v7225
        %v7358 = vpack.c.b16 %v7228, %v7226
        %v7359 = vpack.c.b16 %v7231, %v7229
        %v7360 = vpack.c.b16 %v7232, %v7230
        %7489 = vmatpush.bf16.msra.mxu0 %v7247
        %7490 = vmatpush.bf16.msra.mxu0 %v7245
        %7491 = vmatpush.bf16.msra.mxu0 %v7243
        %7492 = vmatpush.bf16.msra.mxu0 %v7241
        %7493 = vmatpush.bf16.msra.mxu0 %v7239
        %7494 = vmatpush.bf16.msra.mxu0 %v7237
        %7495 = vmatpush.bf16.msra.mxu0 %v7235
        %7496 = vmatpush.bf16.msra.mxu0 %v7233
        %7497 = vmatmul.bf16.gmra.mxu0 %v6707
        %v7498 = vpop.f32.mrf.mxu0
        %v7499 = vadd.f32 %v6845, %v7498
        %v7500 = vpop.f32.mrf.mxu0
        %v7501 = vadd.f32 %v6845, %v7500
        %7502 = vdwg.mxu0
        %7503 = vmatpush.bf16.msra.mxu0 %v7263
        %7504 = vmatpush.bf16.msra.mxu0 %v7261
        %7505 = vmatpush.bf16.msra.mxu0 %v7259
        %7506 = vmatpush.bf16.msra.mxu0 %v7257
        %7507 = vmatpush.bf16.msra.mxu0 %v7255
        %7508 = vmatpush.bf16.msra.mxu0 %v7253
        %7509 = vmatpush.bf16.msra.mxu0 %v7251
        %7510 = vmatpush.bf16.msra.mxu0 %v7249
        %7511 = vmatmul.bf16.gmra.mxu0 %v6708
        %v7512 = vpop.f32.mrf.mxu0
        %v7513 = vadd.f32 %v7499, %v7512
        %v7514 = vpop.f32.mrf.mxu0
        %v7515 = vadd.f32 %v7501, %v7514
        %7516 = vdwg.mxu0
        %7517 = vmatpush.bf16.msra.mxu0 %v7279
        %7518 = vmatpush.bf16.msra.mxu0 %v7277
        %7519 = vmatpush.bf16.msra.mxu0 %v7275
        %7520 = vmatpush.bf16.msra.mxu0 %v7273
        %7521 = vmatpush.bf16.msra.mxu0 %v7271
        %7522 = vmatpush.bf16.msra.mxu0 %v7269
        %7523 = vmatpush.bf16.msra.mxu0 %v7267
        %7524 = vmatpush.bf16.msra.mxu0 %v7265
        %7525 = vmatmul.bf16.gmra.mxu0 %v6709
        %v7526 = vpop.f32.mrf.mxu0
        %v7527 = vadd.f32 %v7513, %v7526
        %v7528 = vpop.f32.mrf.mxu0
        %v7529 = vadd.f32 %v7515, %v7528
        %7530 = vdwg.mxu0
        %7531 = vmatpush.bf16.msra.mxu0 %v7295
        %7532 = vmatpush.bf16.msra.mxu0 %v7293
        %7533 = vmatpush.bf16.msra.mxu0 %v7291
        %7534 = vmatpush.bf16.msra.mxu0 %v7289
        %7535 = vmatpush.bf16.msra.mxu0 %v7287
        %7536 = vmatpush.bf16.msra.mxu0 %v7285
        %7537 = vmatpush.bf16.msra.mxu0 %v7283
        %7538 = vmatpush.bf16.msra.mxu0 %v7281
        %7539 = vmatmul.bf16.gmra.mxu0 %v6710
        %v7540 = vpop.f32.mrf.mxu0
        %v7541 = vadd.f32 %v7527, %v7540
        %v7542 = vpop.f32.mrf.mxu0
        %v7543 = vadd.f32 %v7529, %v7542
        %7544 = vdwg.mxu0
        %7545 = vmatpush.bf16.msra.mxu0 %v7311
        %7546 = vmatpush.bf16.msra.mxu0 %v7309
        %7547 = vmatpush.bf16.msra.mxu0 %v7307
        %7548 = vmatpush.bf16.msra.mxu0 %v7305
        %7549 = vmatpush.bf16.msra.mxu0 %v7303
        %7550 = vmatpush.bf16.msra.mxu0 %v7301
        %7551 = vmatpush.bf16.msra.mxu0 %v7299
        %7552 = vmatpush.bf16.msra.mxu0 %v7297
        %7553 = vmatmul.bf16.gmra.mxu0 %v6711
        %v7554 = vpop.f32.mrf.mxu0
        %v7555 = vadd.f32 %v7541, %v7554
        %v7556 = vpop.f32.mrf.mxu0
        %v7557 = vadd.f32 %v7543, %v7556
        %7558 = vdwg.mxu0
        %7559 = vmatpush.bf16.msra.mxu0 %v7327
        %7560 = vmatpush.bf16.msra.mxu0 %v7325
        %7561 = vmatpush.bf16.msra.mxu0 %v7323
        %7562 = vmatpush.bf16.msra.mxu0 %v7321
        %7563 = vmatpush.bf16.msra.mxu0 %v7319
        %7564 = vmatpush.bf16.msra.mxu0 %v7317
        %7565 = vmatpush.bf16.msra.mxu0 %v7315
        %7566 = vmatpush.bf16.msra.mxu0 %v7313
        %7567 = vmatmul.bf16.gmra.mxu0 %v6712
        %v7568 = vpop.f32.mrf.mxu0
        %v7569 = vadd.f32 %v7555, %v7568
        %v7570 = vpop.f32.mrf.mxu0
        %v7571 = vadd.f32 %v7557, %v7570
        %7572 = vdwg.mxu0
        %7573 = vmatpush.bf16.msra.mxu0 %v7343
        %7574 = vmatpush.bf16.msra.mxu0 %v7341
        %7575 = vmatpush.bf16.msra.mxu0 %v7339
        %7576 = vmatpush.bf16.msra.mxu0 %v7337
        %7577 = vmatpush.bf16.msra.mxu0 %v7335
        %7578 = vmatpush.bf16.msra.mxu0 %v7333
        %7579 = vmatpush.bf16.msra.mxu0 %v7331
        %7580 = vmatpush.bf16.msra.mxu0 %v7329
        %7581 = vmatmul.bf16.gmra.mxu0 %v6713
        %v7582 = vpop.f32.mrf.mxu0
        %v7583 = vadd.f32 %v7569, %v7582
        %v7584 = vpop.f32.mrf.mxu0
        %v7585 = vadd.f32 %v7571, %v7584
        %7586 = vdwg.mxu0
        %7587 = vmatpush.bf16.msra.mxu0 %v7359
        %7588 = vmatpush.bf16.msra.mxu0 %v7357
        %7589 = vmatpush.bf16.msra.mxu0 %v7355
        %7590 = vmatpush.bf16.msra.mxu0 %v7353
        %7591 = vmatpush.bf16.msra.mxu0 %v7351
        %7592 = vmatpush.bf16.msra.mxu0 %v7349
        %7593 = vmatpush.bf16.msra.mxu0 %v7347
        %7594 = vmatpush.bf16.msra.mxu0 %v7345
        %7595 = vmatmul.bf16.gmra.mxu0 %v6714
        %v7596 = vpop.f32.mrf.mxu0
        %v7597 = vadd.f32 %v7583, %v7596
        %v7598 = vpop.f32.mrf.mxu0
        %v7599 = vadd.f32 %v7585, %v7598
        %7600 = vdwg.mxu0
        %7601 = vmatpush.bf16.msra.mxu0 %v7248
        %7602 = vmatpush.bf16.msra.mxu0 %v7246
        %7603 = vmatpush.bf16.msra.mxu0 %v7244
        %7604 = vmatpush.bf16.msra.mxu0 %v7242
        %7605 = vmatpush.bf16.msra.mxu0 %v7240
        %7606 = vmatpush.bf16.msra.mxu0 %v7238
        %7607 = vmatpush.bf16.msra.mxu0 %v7236
        %7608 = vmatpush.bf16.msra.mxu0 %v7234
        %7609 = vmatmul.bf16.gmra.mxu0 %v6707
        %v7610 = vpop.f32.mrf.mxu0
        %v7611 = vadd.f32 %v6846, %v7610
        %v7612 = vpop.f32.mrf.mxu0
        %v7613 = vadd.f32 %v6846, %v7612
        %7614 = vdwg.mxu0
        %7615 = vmatpush.bf16.msra.mxu0 %v7264
        %7616 = vmatpush.bf16.msra.mxu0 %v7262
        %7617 = vmatpush.bf16.msra.mxu0 %v7260
        %7618 = vmatpush.bf16.msra.mxu0 %v7258
        %7619 = vmatpush.bf16.msra.mxu0 %v7256
        %7620 = vmatpush.bf16.msra.mxu0 %v7254
        %7621 = vmatpush.bf16.msra.mxu0 %v7252
        %7622 = vmatpush.bf16.msra.mxu0 %v7250
        %7623 = vmatmul.bf16.gmra.mxu0 %v6708
        %v7624 = vpop.f32.mrf.mxu0
        %v7625 = vadd.f32 %v7611, %v7624
        %v7626 = vpop.f32.mrf.mxu0
        %v7627 = vadd.f32 %v7613, %v7626
        %7628 = vdwg.mxu0
        %7629 = vmatpush.bf16.msra.mxu0 %v7280
        %7630 = vmatpush.bf16.msra.mxu0 %v7278
        %7631 = vmatpush.bf16.msra.mxu0 %v7276
        %7632 = vmatpush.bf16.msra.mxu0 %v7274
        %7633 = vmatpush.bf16.msra.mxu0 %v7272
        %7634 = vmatpush.bf16.msra.mxu0 %v7270
        %7635 = vmatpush.bf16.msra.mxu0 %v7268
        %7636 = vmatpush.bf16.msra.mxu0 %v7266
        %7637 = vmatmul.bf16.gmra.mxu0 %v6709
        %v7638 = vpop.f32.mrf.mxu0
        %v7639 = vadd.f32 %v7625, %v7638
        %v7640 = vpop.f32.mrf.mxu0
        %v7641 = vadd.f32 %v7627, %v7640
        %7642 = vdwg.mxu0
        %7643 = vmatpush.bf16.msra.mxu0 %v7296
        %7644 = vmatpush.bf16.msra.mxu0 %v7294
        %7645 = vmatpush.bf16.msra.mxu0 %v7292
        %7646 = vmatpush.bf16.msra.mxu0 %v7290
        %7647 = vmatpush.bf16.msra.mxu0 %v7288
        %7648 = vmatpush.bf16.msra.mxu0 %v7286
        %7649 = vmatpush.bf16.msra.mxu0 %v7284
        %7650 = vmatpush.bf16.msra.mxu0 %v7282
        %7651 = vmatmul.bf16.gmra.mxu0 %v6710
        %v7652 = vpop.f32.mrf.mxu0
        %v7653 = vadd.f32 %v7639, %v7652
        %v7654 = vpop.f32.mrf.mxu0
        %v7655 = vadd.f32 %v7641, %v7654
        %7656 = vdwg.mxu0
        %7657 = vmatpush.bf16.msra.mxu0 %v7312
        %7658 = vmatpush.bf16.msra.mxu0 %v7310
        %7659 = vmatpush.bf16.msra.mxu0 %v7308
        %7660 = vmatpush.bf16.msra.mxu0 %v7306
        %7661 = vmatpush.bf16.msra.mxu0 %v7304
        %7662 = vmatpush.bf16.msra.mxu0 %v7302
        %7663 = vmatpush.bf16.msra.mxu0 %v7300
        %7664 = vmatpush.bf16.msra.mxu0 %v7298
        %7665 = vmatmul.bf16.gmra.mxu0 %v6711
        %v7666 = vpop.f32.mrf.mxu0
        %v7667 = vadd.f32 %v7653, %v7666
        %v7668 = vpop.f32.mrf.mxu0
        %v7669 = vadd.f32 %v7655, %v7668
        %7670 = vdwg.mxu0
        %7671 = vmatpush.bf16.msra.mxu0 %v7328
        %7672 = vmatpush.bf16.msra.mxu0 %v7326
        %7673 = vmatpush.bf16.msra.mxu0 %v7324
        %7674 = vmatpush.bf16.msra.mxu0 %v7322
        %7675 = vmatpush.bf16.msra.mxu0 %v7320
        %7676 = vmatpush.bf16.msra.mxu0 %v7318
        %7677 = vmatpush.bf16.msra.mxu0 %v7316
        %7678 = vmatpush.bf16.msra.mxu0 %v7314
        %7679 = vmatmul.bf16.gmra.mxu0 %v6712
        %v7680 = vpop.f32.mrf.mxu0
        %v7681 = vadd.f32 %v7667, %v7680
        %v7682 = vpop.f32.mrf.mxu0
        %v7683 = vadd.f32 %v7669, %v7682
        %7684 = vdwg.mxu0
        %7685 = vmatpush.bf16.msra.mxu0 %v7344
        %7686 = vmatpush.bf16.msra.mxu0 %v7342
        %7687 = vmatpush.bf16.msra.mxu0 %v7340
        %7688 = vmatpush.bf16.msra.mxu0 %v7338
        %7689 = vmatpush.bf16.msra.mxu0 %v7336
        %7690 = vmatpush.bf16.msra.mxu0 %v7334
        %7691 = vmatpush.bf16.msra.mxu0 %v7332
        %7692 = vmatpush.bf16.msra.mxu0 %v7330
        %7693 = vmatmul.bf16.gmra.mxu0 %v6713
        %v7694 = vpop.f32.mrf.mxu0
        %v7695 = vadd.f32 %v7681, %v7694
        %v7696 = vpop.f32.mrf.mxu0
        %v7697 = vadd.f32 %v7683, %v7696
        %7698 = vdwg.mxu0
        %7699 = vmatpush.bf16.msra.mxu0 %v7360
        %7700 = vmatpush.bf16.msra.mxu0 %v7358
        %7701 = vmatpush.bf16.msra.mxu0 %v7356
        %7702 = vmatpush.bf16.msra.mxu0 %v7354
        %7703 = vmatpush.bf16.msra.mxu0 %v7352
        %7704 = vmatpush.bf16.msra.mxu0 %v7350
        %7705 = vmatpush.bf16.msra.mxu0 %v7348
        %7706 = vmatpush.bf16.msra.mxu0 %v7346
        %7707 = vmatmul.bf16.gmra.mxu0 %v6714
        %v7708 = vpop.f32.mrf.mxu0
        %v7709 = vadd.f32 %v7695, %v7708
        %v7710 = vpop.f32.mrf.mxu0
        %v7711 = vadd.f32 %v7697, %v7710
        %7712 = vdwg.mxu0
        %v7713 = vadd.f32 %v5544, %v7597
        %v7714 = vadd.f32 %v5545, %v7709
        %v7715 = vadd.f32 %v5546, %v7599
        %v7716 = vadd.f32 %v5547, %v7711
        %v7717 = vadd.f32 %v7713, %v7714
        %7718 = vadd.xlane.f32.xlu0 %v7717
        %v7719 = vpop.xlane.xlu0 %7718
        %v7720 = vadd.f32 %v7715, %v7716
        %7721 = vadd.xlane.f32.xlu0 %v7720
        %v7722 = vpop.xlane.xlu0 %7721
        %v7723 = vmul.f32 %v7719, %v647
        %v7724 = vmul.f32 %v7722, %v647
        %v7725 = vsub.f32 %v7713, %v7723
        %v7726 = vsub.f32 %v7714, %v7723
        %v7727 = vsub.f32 %v7715, %v7724
        %v7728 = vsub.f32 %v7716, %v7724
        %v7729 = vmul.f32 %v7725, %v7725
        %v7730 = vmul.f32 %v7726, %v7726
        %v7731 = vmul.f32 %v7727, %v7727
        %v7732 = vmul.f32 %v7728, %v7728
        %v7733 = vadd.f32 %v7729, %v7730
        %7734 = vadd.xlane.f32.xlu0 %v7733
        %v7735 = vpop.xlane.xlu0 %7734
        %v7736 = vadd.f32 %v7731, %v7732
        %7737 = vadd.xlane.f32.xlu0 %v7736
        %v7738 = vpop.xlane.xlu0 %7737
        %v7739 = vmul.f32 %v7735, %v647
        %v7740 = vmul.f32 %v7738, %v647
        %v7741 = vadd.f32 %v7739, 1e-12
        %v7742 = vadd.f32 %v7740, 1e-12
        %v7743 = vrsqrt.pop %v7741
        %v7744 = vmul.f32 %v7743, %v7741
        %v7745 = vmul.f32 %v7744, %v7743
        %v7746 = vmul.f32 0.5, %v7745
        %v7747 = vsub.f32 1.5, %v7746
        %v7748 = vmul.f32 %v7743, %v7747
        %vm7749 = vweird.f32 %v7741
        %vm7750 = vweird.f32 %v7743
        %vm7751 = vmor %vm7749, %vm7750
        %v7752 = vsel %vm7751, %v7743, %v7748
        %v7753 = vrsqrt.pop %v7742
        %v7754 = vmul.f32 %v7753, %v7742
        %v7755 = vmul.f32 %v7754, %v7753
        %v7756 = vmul.f32 0.5, %v7755
        %v7757 = vsub.f32 1.5, %v7756
        %v7758 = vmul.f32 %v7753, %v7757
        %vm7759 = vweird.f32 %v7742
        %vm7760 = vweird.f32 %v7753
        %vm7761 = vmor %vm7759, %vm7760
        %v7762 = vsel %vm7761, %v7753, %v7758
        %v7763 = vmul.f32 %v7725, %v7752
        %v7764 = vmul.f32 %v7726, %v7752
        %v7765 = vmul.f32 %v7727, %v7762
        %v7766 = vmul.f32 %v7728, %v7762
        %v7767 = vperm.slane %v4255, 0
        %v7768 = vperm.slane %v4255, 1
        %v7771 = vmul.f32 %v7763, %v7767
        %v7772 = vmul.f32 %v7764, %v7768
        %v7773 = vmul.f32 %v7765, %v7767
        %v7774 = vmul.f32 %v7766, %v7768
        %v7775 = vrot.slane %v4255, 2
        %v7776 = vperm.slane %v7775, 0
        %v7777 = vperm.slane %v7775, 1
        %v7780 = vadd.f32 %v7771, %v7776
        %v7781 = vadd.f32 %v7772, %v7777
        %v7782 = vadd.f32 %v7773, %v7776
        %v7783 = vadd.f32 %v7774, %v7777
        %v7784 = vpack.c.bf16 %v7780, %v7780
        %v7785 = vpack.c.bf16 %v7781, %v7781
        %v7786 = vpack.c.bf16 %v7782, %v7782
        %v7787 = vpack.c.bf16 %v7783, %v7783
        %v7788 = vld [vmem:[%s542] sm:$0xff]
        %v7789 = vld [vmem:[%s542 + $0xc] sm:$0xff]
        %v7790 = vld [vmem:[%s542 + $0x18] sm:$0xff]
        %v7791 = vld [vmem:[%s542 + $0x24] sm:$0xff]
        %v7792 = vld [vmem:[%s542 + $0x30] sm:$0xff]
        %v7793 = vld [vmem:[%s542 + $0x3c] sm:$0xff]
        %v7794 = vld [vmem:[%s542 + $0x48] sm:$0xff]
        %v7795 = vld [vmem:[%s542 + $0x54] sm:$0xff]
        %v7796 = vld [vmem:[%s542 + $0x60] sm:$0xff]
        %v7797 = vld [vmem:[%s542 + $0x6c] sm:$0xff]
        %v7798 = vld [vmem:[%s542 + $0x78] sm:$0xff]
        %v7799 = vld [vmem:[%s542 + $0x84] sm:$0xff]
        %v7800 = vld [vmem:[%s542 + $0x90] sm:$0xff]
        %v7801 = vld [vmem:[%s542 + $0x9c] sm:$0xff]
        %v7802 = vld [vmem:[%s542 + $0xa8] sm:$0xff]
        %v7803 = vld [vmem:[%s542 + $0xb4] sm:$0xff]
        %v7804 = vld [vmem:[%s542 + $0xc0] sm:$0xff]
        %v7805 = vld [vmem:[%s542 + $0xcc] sm:$0xff]
        %v7806 = vld [vmem:[%s542 + $0xd8] sm:$0xff]
        %v7807 = vld [vmem:[%s542 + $0xe4] sm:$0xff]
        %v7808 = vld [vmem:[%s542 + $0xf0] sm:$0xff]
        %v7809 = vld [vmem:[%s542 + $0xfc] sm:$0xff]
        %v7810 = vld [vmem:[%s542 + $0x108] sm:$0xff]
        %v7811 = vld [vmem:[%s542 + $0x114] sm:$0xff]
        %v7812 = vld [vmem:[%s542 + $0x120] sm:$0xff]
        %v7813 = vld [vmem:[%s542 + $0x12c] sm:$0xff]
        %v7814 = vld [vmem:[%s542 + $0x138] sm:$0xff]
        %v7815 = vld [vmem:[%s542 + $0x144] sm:$0xff]
        %v7816 = vld [vmem:[%s542 + $0x150] sm:$0xff]
        %v7817 = vld [vmem:[%s542 + $0x15c] sm:$0xff]
        %v7818 = vld [vmem:[%s542 + $0x168] sm:$0xff]
        %v7819 = vld [vmem:[%s542 + $0x174] sm:$0xff]
        %v7820 = vperm.slane %v630, 2
        %v7821 = vperm.slane %v630, 6
        %v7824 = vperm.slane %v7820, 2
        %v7825 = vperm.slane %v7821, 2
        %v7830 = vunpack.c.l.b16 %v7784
        %v7831 = vunpack.c.l.b16 %v7785
        %v7832 = vunpack.c.l.b16 %v7786
        %v7833 = vunpack.c.l.b16 %v7787
        %v7834 = vrot.slane %v7832, 7
        %vm7835 = vcmask 1041409
        %v7836 = vsel %vm7835, %v7834, %v7830
        %v7837 = vrot.slane %v7833, 7
        %v7838 = vsel %vm7835, %v7837, %v7831
        %v7839 = vpack.c.b16 %v7836, %v7836
        %v7840 = vpack.c.b16 %v7838, %v7838
        %v7875 = vunpack.c.l.b16 %v7788
        %v7876 = vunpack.c.h.b16 %v7788
        %v7877 = vunpack.c.l.b16 %v7789
        %v7878 = vunpack.c.h.b16 %v7789
        %v7879 = vunpack.c.l.b16 %v7790
        %v7880 = vunpack.c.h.b16 %v7790
        %v7881 = vunpack.c.l.b16 %v7791
        %v7882 = vunpack.c.h.b16 %v7791
        %v7883 = vunpack.c.l.b16 %v7792
        %v7884 = vunpack.c.h.b16 %v7792
        %v7885 = vunpack.c.l.b16 %v7793
        %v7886 = vunpack.c.h.b16 %v7793
        %v7887 = vunpack.c.l.b16 %v7794
        %v7888 = vunpack.c.h.b16 %v7794
        %v7889 = vunpack.c.l.b16 %v7795
        %v7890 = vunpack.c.h.b16 %v7795
        %v7891 = vunpack.c.l.b16 %v7796
        %v7892 = vunpack.c.h.b16 %v7796
        %v7893 = vunpack.c.l.b16 %v7797
        %v7894 = vunpack.c.h.b16 %v7797
        %v7895 = vunpack.c.l.b16 %v7798
        %v7896 = vunpack.c.h.b16 %v7798
        %v7897 = vunpack.c.l.b16 %v7799
        %v7898 = vunpack.c.h.b16 %v7799
        %v7899 = vunpack.c.l.b16 %v7800
        %v7900 = vunpack.c.h.b16 %v7800
        %v7901 = vunpack.c.l.b16 %v7801
        %v7902 = vunpack.c.h.b16 %v7801
        %v7903 = vunpack.c.l.b16 %v7802
        %v7904 = vunpack.c.h.b16 %v7802
        %v7905 = vunpack.c.l.b16 %v7803
        %v7906 = vunpack.c.h.b16 %v7803
        %v7907 = vunpack.c.l.b16 %v7804
        %v7908 = vunpack.c.h.b16 %v7804
        %v7909 = vunpack.c.l.b16 %v7805
        %v7910 = vunpack.c.h.b16 %v7805
        %v7911 = vunpack.c.l.b16 %v7806
        %v7912 = vunpack.c.h.b16 %v7806
        %v7913 = vunpack.c.l.b16 %v7807
        %v7914 = vunpack.c.h.b16 %v7807
        %v7915 = vunpack.c.l.b16 %v7808
        %v7916 = vunpack.c.h.b16 %v7808
        %v7917 = vunpack.c.l.b16 %v7809
        %v7918 = vunpack.c.h.b16 %v7809
        %v7919 = vunpack.c.l.b16 %v7810
        %v7920 = vunpack.c.h.b16 %v7810
        %v7921 = vunpack.c.l.b16 %v7811
        %v7922 = vunpack.c.h.b16 %v7811
        %v7923 = vunpack.c.l.b16 %v7812
        %v7924 = vunpack.c.h.b16 %v7812
        %v7925 = vunpack.c.l.b16 %v7813
        %v7926 = vunpack.c.h.b16 %v7813
        %v7927 = vunpack.c.l.b16 %v7814
        %v7928 = vunpack.c.h.b16 %v7814
        %v7929 = vunpack.c.l.b16 %v7815
        %v7930 = vunpack.c.h.b16 %v7815
        %v7931 = vunpack.c.l.b16 %v7816
        %v7932 = vunpack.c.h.b16 %v7816
        %v7933 = vunpack.c.l.b16 %v7817
        %v7934 = vunpack.c.h.b16 %v7817
        %v7935 = vunpack.c.l.b16 %v7818
        %v7936 = vunpack.c.h.b16 %v7818
        %v7937 = vunpack.c.l.b16 %v7819
        %v7938 = vunpack.c.h.b16 %v7819
        %v7939 = vpack.c.b16 %v7877, %v7875
        %v7940 = vpack.c.b16 %v7878, %v7876
        %v7941 = vpack.c.b16 %v7881, %v7879
        %v7942 = vpack.c.b16 %v7882, %v7880
        %v7943 = vpack.c.b16 %v7885, %v7883
        %v7944 = vpack.c.b16 %v7886, %v7884
        %v7945 = vpack.c.b16 %v7889, %v7887
        %v7946 = vpack.c.b16 %v7890, %v7888
        %v7947 = vpack.c.b16 %v7893, %v7891
        %v7948 = vpack.c.b16 %v7894, %v7892
        %v7949 = vpack.c.b16 %v7897, %v7895
        %v7950 = vpack.c.b16 %v7898, %v7896
        %v7951 = vpack.c.b16 %v7901, %v7899
        %v7952 = vpack.c.b16 %v7902, %v7900
        %v7953 = vpack.c.b16 %v7905, %v7903
        %v7954 = vpack.c.b16 %v7906, %v7904
        %v7955 = vpack.c.b16 %v7909, %v7907
        %v7956 = vpack.c.b16 %v7910, %v7908
        %v7957 = vpack.c.b16 %v7913, %v7911
        %v7958 = vpack.c.b16 %v7914, %v7912
        %v7959 = vpack.c.b16 %v7917, %v7915
        %v7960 = vpack.c.b16 %v7918, %v7916
        %v7961 = vpack.c.b16 %v7921, %v7919
        %v7962 = vpack.c.b16 %v7922, %v7920
        %v7963 = vpack.c.b16 %v7925, %v7923
        %v7964 = vpack.c.b16 %v7926, %v7924
        %v7965 = vpack.c.b16 %v7929, %v7927
        %v7966 = vpack.c.b16 %v7930, %v7928
        %v7967 = vpack.c.b16 %v7933, %v7931
        %v7968 = vpack.c.b16 %v7934, %v7932
        %v7969 = vpack.c.b16 %v7937, %v7935
        %v7970 = vpack.c.b16 %v7938, %v7936
        %8003 = vmatpush.bf16.msra.mxu0 %v7953
        %8004 = vmatpush.bf16.msra.mxu0 %v7951
        %8005 = vmatpush.bf16.msra.mxu0 %v7949
        %8006 = vmatpush.bf16.msra.mxu0 %v7947
        %8007 = vmatpush.bf16.msra.mxu0 %v7945
        %8008 = vmatpush.bf16.msra.mxu0 %v7943
        %8009 = vmatpush.bf16.msra.mxu0 %v7941
        %8010 = vmatpush.bf16.msra.mxu0 %v7939
        %8011 = vmatmul.bf16.gmra.mxu0 %v7839
        %v8012 = vpop.f32.mrf.mxu0
        %v8013 = vadd.f32 %v7824, %v8012
        %v8014 = vpop.f32.mrf.mxu0
        %8015 = vdwg.mxu0
        %8016 = vmatpush.bf16.msra.mxu0 %v7969
        %8017 = vmatpush.bf16.msra.mxu0 %v7967
        %8018 = vmatpush.bf16.msra.mxu0 %v7965
        %8019 = vmatpush.bf16.msra.mxu0 %v7963
        %8020 = vmatpush.bf16.msra.mxu0 %v7961
        %8021 = vmatpush.bf16.msra.mxu0 %v7959
        %8022 = vmatpush.bf16.msra.mxu0 %v7957
        %8023 = vmatpush.bf16.msra.mxu0 %v7955
        %8024 = vmatmul.bf16.gmra.mxu0 %v7840
        %v8025 = vpop.f32.mrf.mxu0
        %v8026 = vadd.f32 %v8013, %v8025
        %v8027 = vpop.f32.mrf.mxu0
        %8028 = vdwg.mxu0
        %8029 = vmatpush.bf16.msra.mxu0 %v7954
        %8030 = vmatpush.bf16.msra.mxu0 %v7952
        %8031 = vmatpush.bf16.msra.mxu0 %v7950
        %8032 = vmatpush.bf16.msra.mxu0 %v7948
        %8033 = vmatpush.bf16.msra.mxu0 %v7946
        %8034 = vmatpush.bf16.msra.mxu0 %v7944
        %8035 = vmatpush.bf16.msra.mxu0 %v7942
        %8036 = vmatpush.bf16.msra.mxu0 %v7940
        %8037 = vmatmul.bf16.gmra.mxu0 %v7839
        %v8038 = vpop.f32.mrf.mxu0
        %v8039 = vadd.f32 %v7825, %v8038
        %v8040 = vpop.f32.mrf.mxu0
        %8041 = vdwg.mxu0
        %8042 = vmatpush.bf16.msra.mxu0 %v7970
        %8043 = vmatpush.bf16.msra.mxu0 %v7968
        %8044 = vmatpush.bf16.msra.mxu0 %v7966
        %8045 = vmatpush.bf16.msra.mxu0 %v7964
        %8046 = vmatpush.bf16.msra.mxu0 %v7962
        %8047 = vmatpush.bf16.msra.mxu0 %v7960
        %8048 = vmatpush.bf16.msra.mxu0 %v7958
        %8049 = vmatpush.bf16.msra.mxu0 %v7956
        %8050 = vmatmul.bf16.gmra.mxu0 %v7840
        %v8051 = vpop.f32.mrf.mxu0
        %v8052 = vadd.f32 %v8039, %v8051
        %v8053 = vpop.f32.mrf.mxu0
        %8054 = vdwg.mxu0
        %v8055 = vtanh.pop %v8026
        %v8056 = vtanh.pop %v8052
        %v8057 = vpack.c.bf16 %v8055, %v8055
        %v8058 = vpack.c.bf16 %v8056, %v8056
        %v8059 = vld [vmem:[%s542 + $0x8] sm:$0xf]
        %v8060 = vld [vmem:[%s542 + $0x14] sm:$0xf]
        %v8061 = vld [vmem:[%s542 + $0x20] sm:$0xf]
        %v8062 = vld [vmem:[%s542 + $0x2c] sm:$0xf]
        %v8063 = vld [vmem:[%s542 + $0x38] sm:$0xf]
        %v8064 = vld [vmem:[%s542 + $0x44] sm:$0xf]
        %v8065 = vld [vmem:[%s542 + $0x50] sm:$0xf]
        %v8066 = vld [vmem:[%s542 + $0x5c] sm:$0xf]
        %v8067 = vld [vmem:[%s542 + $0x68] sm:$0xf]
        %v8068 = vld [vmem:[%s542 + $0x74] sm:$0xf]
        %v8069 = vld [vmem:[%s542 + $0x80] sm:$0xf]
        %v8070 = vld [vmem:[%s542 + $0x8c] sm:$0xf]
        %v8071 = vld [vmem:[%s542 + $0x98] sm:$0xf]
        %v8072 = vld [vmem:[%s542 + $0xa4] sm:$0xf]
        %v8073 = vld [vmem:[%s542 + $0xb0] sm:$0xf]
        %v8074 = vld [vmem:[%s542 + $0xbc] sm:$0xf]
        %v8075 = vld [vmem:[%s542 + $0xc8] sm:$0xf]
        %v8076 = vld [vmem:[%s542 + $0xd4] sm:$0xf]
        %v8077 = vld [vmem:[%s542 + $0xe0] sm:$0xf]
        %v8078 = vld [vmem:[%s542 + $0xec] sm:$0xf]
        %v8079 = vld [vmem:[%s542 + $0xf8] sm:$0xf]
        %v8080 = vld [vmem:[%s542 + $0x104] sm:$0xf]
        %v8081 = vld [vmem:[%s542 + $0x110] sm:$0xf]
        %v8082 = vld [vmem:[%s542 + $0x11c] sm:$0xf]
        %v8083 = vld [vmem:[%s542 + $0x128] sm:$0xf]
        %v8084 = vld [vmem:[%s542 + $0x134] sm:$0xf]
        %v8085 = vld [vmem:[%s542 + $0x140] sm:$0xf]
        %v8086 = vld [vmem:[%s542 + $0x14c] sm:$0xf]
        %v8087 = vld [vmem:[%s542 + $0x158] sm:$0xf]
        %v8088 = vld [vmem:[%s542 + $0x164] sm:$0xf]
        %v8089 = vld [vmem:[%s542 + $0x170] sm:$0xf]
        %v8090 = vld [vmem:[%s542 + $0x17c] sm:$0xf]
        %v8091 = vperm.slane %v630, 3
        %v8124 = vunpack.c.l.b16 %v8059
        %v8125 = vunpack.c.l.b16 %v8060
        %v8126 = vunpack.c.l.b16 %v8061
        %v8127 = vunpack.c.l.b16 %v8062
        %v8128 = vunpack.c.l.b16 %v8063
        %v8129 = vunpack.c.l.b16 %v8064
        %v8130 = vunpack.c.l.b16 %v8065
        %v8131 = vunpack.c.l.b16 %v8066
        %v8132 = vunpack.c.l.b16 %v8067
        %v8133 = vunpack.c.l.b16 %v8068
        %v8134 = vunpack.c.l.b16 %v8069
        %v8135 = vunpack.c.l.b16 %v8070
        %v8136 = vunpack.c.l.b16 %v8071
        %v8137 = vunpack.c.l.b16 %v8072
        %v8138 = vunpack.c.l.b16 %v8073
        %v8139 = vunpack.c.l.b16 %v8074
        %v8140 = vunpack.c.l.b16 %v8075
        %v8141 = vunpack.c.l.b16 %v8076
        %v8142 = vunpack.c.l.b16 %v8077
        %v8143 = vunpack.c.l.b16 %v8078
        %v8144 = vunpack.c.l.b16 %v8079
        %v8145 = vunpack.c.l.b16 %v8080
        %v8146 = vunpack.c.l.b16 %v8081
        %v8147 = vunpack.c.l.b16 %v8082
        %v8148 = vunpack.c.l.b16 %v8083
        %v8149 = vunpack.c.l.b16 %v8084
        %v8150 = vunpack.c.l.b16 %v8085
        %v8151 = vunpack.c.l.b16 %v8086
        %v8152 = vunpack.c.l.b16 %v8087
        %v8153 = vunpack.c.l.b16 %v8088
        %v8154 = vunpack.c.l.b16 %v8089
        %v8155 = vunpack.c.l.b16 %v8090
        %v8156 = vpack.c.b16 %v8125, %v8124
        %v8157 = vpack.c.b16 %v8127, %v8126
        %v8158 = vpack.c.b16 %v8129, %v8128
        %v8159 = vpack.c.b16 %v8131, %v8130
        %v8160 = vpack.c.b16 %v8133, %v8132
        %v8161 = vpack.c.b16 %v8135, %v8134
        %v8162 = vpack.c.b16 %v8137, %v8136
        %v8163 = vpack.c.b16 %v8139, %v8138
        %v8164 = vpack.c.b16 %v8141, %v8140
        %v8165 = vpack.c.b16 %v8143, %v8142
        %v8166 = vpack.c.b16 %v8145, %v8144
        %v8167 = vpack.c.b16 %v8147, %v8146
        %v8168 = vpack.c.b16 %v8149, %v8148
        %v8169 = vpack.c.b16 %v8151, %v8150
        %v8170 = vpack.c.b16 %v8153, %v8152
        %v8171 = vpack.c.b16 %v8155, %v8154
        %8188 = vmatpush.bf16.msra.mxu0 %v8163
        %8189 = vmatpush.bf16.msra.mxu0 %v8162
        %8190 = vmatpush.bf16.msra.mxu0 %v8161
        %8191 = vmatpush.bf16.msra.mxu0 %v8160
        %8192 = vmatpush.bf16.msra.mxu0 %v8159
        %8193 = vmatpush.bf16.msra.mxu0 %v8158
        %8194 = vmatpush.bf16.msra.mxu0 %v8157
        %8195 = vmatpush.bf16.msra.mxu0 %v8156
        %8196 = vmatmul.bf16.gmra.mxu0 %v8057
        %v8197 = vpop.f32.mrf.mxu0
        %v8198 = vadd.f32 %v8091, %v8197
        %v8199 = vpop.f32.mrf.mxu0
        %8200 = vdwg.mxu0
        %8201 = vmatpush.bf16.msra.mxu0 %v8171
        %8202 = vmatpush.bf16.msra.mxu0 %v8170
        %8203 = vmatpush.bf16.msra.mxu0 %v8169
        %8204 = vmatpush.bf16.msra.mxu0 %v8168
        %8205 = vmatpush.bf16.msra.mxu0 %v8167
        %8206 = vmatpush.bf16.msra.mxu0 %v8166
        %8207 = vmatpush.bf16.msra.mxu0 %v8165
        %8208 = vmatpush.bf16.msra.mxu0 %v8164
        %8209 = vmatmul.bf16.gmra.mxu0 %v8058
        %v8210 = vpop.f32.mrf.mxu0
        %v8211 = vadd.f32 %v8198, %v8210
        %v8212 = vpop.f32.mrf.mxu0
        %8213 = vdwg.mxu0
        %8214 = vst [vmem:[%s628] sm:$0x3] %v8211
        %p8215 = scmp.lt.s32.totalorder %s32, 1
        %s8216 = scalar_select %p8215, %s32, 1
        %s8217 = smul.addr %s8216, 2
        %s8218 = scalar_lea.vmem %s9, %s8217
        // Predicated region
        $region85: #{biencoder_forward.1} parent=55 // pred_check
          %p8219 = pneg %p284
        $region86: #{biencoder_forward.1} parent=55 // pred_check_branch
          %8221 = sbr.rel (%p8219) target = $region88
        $region87: #{biencoder_forward.1} parent=55 // pred_region
          _
        $region88: #{biencoder_forward.1} parent=55 // pred_fallthru
          _
      $region56: #{biencoder_forward.1} parent=5 // pred_fallthru
        _
      %p8222 = scmp.le.s32.totalorder 2, %s27
      // Predicated region
      $region89: #{biencoder_forward.1} parent=5 // pred_check
        %p8223 = pneg %p8222
      $region90: #{biencoder_forward.1} parent=5 // pred_check_branch
        %8225 = sbr.rel (%p8223) target = $region92
      $region91: #{biencoder_forward.1} parent=5 // pred_region
        %s8226 = ssub.s32 %s27, 2
        // Predicated region
        $region93: #{biencoder_forward.1} parent=91 // pred_check
          %p8227 = pneg %p290
        $region94: #{biencoder_forward.1} parent=91 // pred_check_branch
          %8229 = sbr.rel (%p8227) target = $region96
        $region95: #{biencoder_forward.1} parent=91 // pred_region
          %p8230 = scmp.lt.s32.totalorder %s33, 1
          %s8231 = scalar_select %p8230, %s33, 1
          %s8232 = smul.addr %s8231, 2
          %s8233 = scalar_lea.vmem %s9, %s8232
        $region96: #{biencoder_forward.1} parent=91 // pred_fallthru
          _
      $region92: #{biencoder_forward.1} parent=5 // pred_fallthru
        _
    $region6: #{biencoder_forward.1} parent=1 // loop_footer
      %s31 = sadd.s32 1, %s27
    $region7: #{biencoder_forward.1} parent=1 // loop_footer_branch
      %26 = sbr.rel target = $region3
    $region8: #{biencoder_forward.1} parent=1 // loop_exit
      _
    %8234 = vsyncpa [#allocation3], 1
    %s8235 = scalar_lea.sflag [#allocation3], 1
    %8236 = vsyncpa %s8235, 1
    %8237 = vsyncpa [#allocation5], 1
    %s8238 = scalar_lea.sflag [#allocation5], 1
    %8239 = vsyncpa %s8238, 1
    %8240 = vsyncpa [#allocation8], 1
    %s8241 = scalar_lea.sflag [#allocation8], 1
    %8242 = vsyncpa %s8241, 1
    %8243 = vsyncpa [#allocation11], 1
    %s8244 = scalar_lea.sflag [#allocation11], 1
    %8245 = vsyncpa %s8244, 1

</llo_original>
